<compile_context>
chip_gen: v7x
topology: tpu7x:2x2x1
jax: 0.10.0
libtpu: 0.0.40
codegen_flags: <defaults>
</compile_context>

<pallas_src>
import jax
import jax.numpy as jnp
from jax.experimental import pallas as pl
from jax.experimental.pallas import tpu as pltpu

# ----------------------------- model constants --------------------------------
K1 = 25                 # conv1 im2col depth (5*5*1)
K1_PAD = 128            # conv1 K padded 25 -> 128 (lane-dense patches)
C1_PAD = 128            # conv1 out channels 20 -> 128 (lane-dense)
C2_PAD = 64             # conv2 out channels 50 -> 64 (compact head K, lane multiple)
BOTTLENECK = 256        # bottleneck_dim
NUM_CLASSES = 10
NCLASS_PAD = 128        # fc output 10 -> 128 (lane-dense)
FEAT = 4 * 4 * C2_PAD   # flattened feature width fed to the head = 1024
BN_EPS = 1e-5


def _round_up(x, m):
    return (x + m - 1) // m * m


# ----------------------------- Pallas kernels ---------------------------------
def _conv1_pool_relu_kernel(p_ref, w_ref, b_ref, o_ref):
    """conv1 (im2col matmul) + bias + 2x2 maxpool + ReLU.

    p_ref: (4, TM, 128) bf16   im2col patches, leading axis = pool-window parity
    w_ref: (128, 128)   bf16   packed conv1 weight (zero-padded K / channels)
    b_ref: (1, 128)     f32    packed bias
    o_ref: (TM, 128)    bf16   pooled + ReLU'd activations, channels in lanes
    """
    w = w_ref[...]
    m = jnp.dot(p_ref[0], w, preferred_element_type=jnp.float32)
    for q in range(1, 4):
        m = jnp.maximum(m, jnp.dot(p_ref[q], w, preferred_element_type=jnp.float32))
    # per-channel bias after the max is exact; ReLU last (commutes with max).
    o_ref[...] = jnp.maximum(m + b_ref[...], 0.0).astype(o_ref.dtype)


def _conv2_pool_relu_kernel(h_ref, w_ref, b_ref, o_ref):
    """conv2 with in-kernel im2col (25 shifted K=128 matmuls) + maxpool + bias + ReLU.

    h_ref: (TB, 12, 12, 128) bf16   conv1 output, lane-dense channels (>=20 are zero)
    w_ref: (25, 128, 64)     bf16   per-tap weight, w[t, ci, co]
    b_ref: (1, 64)           f32
    o_ref: (TB, 4, 256)      bf16   pooled/ReLU'd features, (y, x*64+c) lane-dense
    """
    tb = h_ref.shape[0]
    acc = None
    for t in range(25):                          # unrolled: 25 shifted MXU matmuls
        dy, dx = t // 5, t % 5
        patch = h_ref[:, dy:dy + 8, dx:dx + 8, :].reshape(tb * 64, 128)
        contrib = jnp.dot(patch, w_ref[t], preferred_element_type=jnp.float32)
        acc = contrib if acc is None else acc + contrib
    # 2x2 maxpool over the 8x8 conv grid, then bias + ReLU (Dropout2d eval = id).
    a = acc.reshape(tb, 4, 2, 4, 2, C2_PAD)
    pooled = jnp.max(jnp.max(a, axis=4), axis=2)                # (TB, 4, 4, 64)
    act = jnp.maximum(pooled + b_ref[...], 0.0)
    o_ref[...] = act.reshape(tb, 4, 4 * C2_PAD).astype(o_ref.dtype)


def _head_kernel(x_ref, wb_ref, bb_ref, scale_ref, shift_ref, wf_ref, bf_ref, o_ref):
    """bottleneck Linear + BatchNorm1d (eval, folded) + [dropout=id] + fc Linear."""
    h = jnp.dot(x_ref[...], wb_ref[...], preferred_element_type=jnp.float32) + bb_ref[...]
    h = h * scale_ref[...] + shift_ref[...]          # BatchNorm1d folded scale/shift
    # TODO(synk): Dropout(p=0.5)/Dropout2d are identity here (eval mode); training-mode
    # stochastic masking is not implemented.
    h = h.astype(jnp.bfloat16)
    o_ref[...] = (jnp.dot(h, wf_ref[...], preferred_element_type=jnp.float32)
                  + bf_ref[...]).astype(o_ref.dtype)


# ----------------------------- one-time weight packing ------------------------
def pack_params(p):
    """Transpose / pad / fold / bf16-cast the torch-layout parameters once."""
    f32, bf16 = jnp.float32, jnp.bfloat16

    # conv1: (20,1,5,5) -> (128,128), w1p[dy*5+dx, co] = w1[co,0,dy,dx]
    w1p = jnp.zeros((K1_PAD, C1_PAD), f32)
    w1p = w1p.at[:K1, :20].set(jnp.transpose(p["w1"][:, 0], (1, 2, 0)).reshape(K1, 20))
    b1p = jnp.zeros((1, C1_PAD), f32).at[0, :20].set(p["b1"])

    # conv2: (50,20,5,5) -> (25,128,64), w2p[dy*5+dx, ci, co] = w2[co,ci,dy,dx]
    w2r = jnp.transpose(p["w2"], (2, 3, 1, 0)).reshape(25, 20, 50)
    w2p = jnp.zeros((25, C1_PAD, C2_PAD), f32).at[:, :20, :50].set(w2r)
    b2p = jnp.zeros((1, C2_PAD), f32).at[0, :50].set(p["b2"])

    # bottleneck: torch flatten order is (c,h,w); repack to our (h,w,c64) order.
    wb_hwc = jnp.transpose(p["wb"].reshape(BOTTLENECK, 50, 4, 4), (2, 3, 1, 0))  # (h,w,c,out)
    wbp = (jnp.zeros((4, 4, C2_PAD, BOTTLENECK), f32).at[:, :, :50, :].set(wb_hwc)
           .reshape(FEAT, BOTTLENECK))
    bbp = p["bb"].reshape(1, BOTTLENECK).astype(f32)

    # BatchNorm1d (eval): y = gamma*(x-mean)/sqrt(var+eps) + beta -> scale/shift
    scale = (p["bn_gamma"] / jnp.sqrt(p["bn_var"] + BN_EPS)).reshape(1, BOTTLENECK)
    shift = (p["bn_beta"] - p["bn_mean"] * scale[0]).reshape(1, BOTTLENECK)

    # fc: (10,256) -> (256,128), padded classes zero
    wfp = jnp.zeros((BOTTLENECK, NCLASS_PAD), f32).at[:, :NUM_CLASSES].set(p["wf"].T)
    bfp = jnp.zeros((1, NCLASS_PAD), f32).at[0, :NUM_CLASSES].set(p["bf"])

    return dict(w1p=w1p.astype(bf16), b1p=b1p,
                w2p=w2p.astype(bf16), b2p=b2p,
                wbp=wbp.astype(bf16), bbp=bbp,
                scale=scale.astype(f32), shift=shift.astype(f32),
                wfp=wfp.astype(bf16), bfp=bfp)


# ----------------------------- forward pass ------------------------------------
@jax.jit
def lenet_forward(x, pp):
    """x: (B, 1, 28, 28) float32 (NCHW like torch). Returns logits (B, 10)."""
    B = x.shape[0]
    xs = x[:, 0].astype(jnp.bfloat16)                                  # (B,28,28)

    # ---- conv1 + maxpool(2) + relu ----------------------------------------------
    # im2col patches for all 24x24 positions, K padded 25->128, grouped by parity.
    p1 = jnp.stack([xs[:, dy:dy + 24, dx:dx + 24]
                    for dy in range(5) for dx in range(5)], axis=-1)   # (B,24,24,25)
    p1 = jnp.pad(p1, ((0, 0), (0, 0), (0, 0), (0, K1_PAD - K1)))       # lane-dense K
    p1 = (p1.reshape(B, 12, 2, 12, 2, K1_PAD)
            .transpose(2, 4, 0, 1, 3, 5)
            .reshape(4, B * 144, K1_PAD))

    M1 = B * 144
    tm1 = min(1024, max(8, _round_up(pl.cdiv(M1, 2), 8)))   # >=2 grid steps when possible
    M1p = _round_up(M1, tm1)
    if M1p != M1:
        p1 = jnp.pad(p1, ((0, 0), (0, M1p - M1), (0, 0)))

    o1 = pl.pallas_call(
        _conv1_pool_relu_kernel,
        out_shape=jax.ShapeDtypeStruct((M1p, C1_PAD), jnp.bfloat16),
        grid=(M1p // tm1,),
        in_specs=[
            pl.BlockSpec((4, tm1, K1_PAD), lambda i: (0, i, 0)),       # patches stream
            pl.BlockSpec((K1_PAD, C1_PAD), lambda i: (0, 0)),          # weights resident
            pl.BlockSpec((1, C1_PAD), lambda i: (0, 0)),
        ],
        out_specs=pl.BlockSpec((tm1, C1_PAD), lambda i: (i, 0)),
        compiler_params=pltpu.CompilerParams(dimension_semantics=("parallel",)),
    )(p1, pp["w1p"], pp["b1p"])                                        # (M1p, 128) bf16

    h1 = o1[:M1].reshape(B, 12, 12, C1_PAD)                            # lane-dense conv1 out

    # ---- conv2 (+Dropout2d eval=id) + maxpool(2) + relu: im2col done in-kernel ----
    tb2 = min(64, max(1, pl.cdiv(B, 2)))                               # >=2 steps when B>=2
    B2p = _round_up(B, tb2)
    if B2p != B:
        h1 = jnp.pad(h1, ((0, B2p - B), (0, 0), (0, 0), (0, 0)))

    o2 = pl.pallas_call(
        _conv2_pool_relu_kernel,
        out_shape=jax.ShapeDtypeStruct((B2p, 4, 4 * C2_PAD), jnp.bfloat16),
        grid=(B2p // tb2,),
        in_specs=[
            pl.BlockSpec((tb2, 12, 12, C1_PAD), lambda i: (i, 0, 0, 0)),   # activations
            pl.BlockSpec((25, C1_PAD, C2_PAD), lambda i: (0, 0, 0)),       # taps resident
            pl.BlockSpec((1, C2_PAD), lambda i: (0, 0)),
        ],
        out_specs=pl.BlockSpec((tb2, 4, 4 * C2_PAD), lambda i: (i, 0, 0)),  # lane-dense 256
        compiler_params=pltpu.CompilerParams(dimension_semantics=("parallel",)),
    )(h1, pp["w2p"], pp["b2p"])                                        # (B2p, 4, 256) bf16

    feat = o2.reshape(B2p, FEAT)[:B]                                   # (B, 1024) bf16

    # ---- flatten -> bottleneck -> BN(eval) -> dropout(id) -> fc -------------------
    tbh = min(1024, max(8, _round_up(pl.cdiv(B, 2), 8)))
    Bhp = _round_up(B, tbh)
    if Bhp != B:
        feat = jnp.pad(feat, ((0, Bhp - B), (0, 0)))

    out = pl.pallas_call(
        _head_kernel,
        out_shape=jax.ShapeDtypeStruct((Bhp, NCLASS_PAD), jnp.float32),
        grid=(Bhp // tbh,),
        in_specs=[
            pl.BlockSpec((tbh, FEAT), lambda i: (i, 0)),               # activations stream
            pl.BlockSpec((FEAT, BOTTLENECK), lambda i: (0, 0)),        # weights resident
            pl.BlockSpec((1, BOTTLENECK), lambda i: (0, 0)),
            pl.BlockSpec((1, BOTTLENECK), lambda i: (0, 0)),
            pl.BlockSpec((1, BOTTLENECK), lambda i: (0, 0)),
            pl.BlockSpec((BOTTLENECK, NCLASS_PAD), lambda i: (0, 0)),
            pl.BlockSpec((1, NCLASS_PAD), lambda i: (0, 0)),
        ],
        out_specs=pl.BlockSpec((tbh, NCLASS_PAD), lambda i: (i, 0)),   # lane-dense output
        compiler_params=pltpu.CompilerParams(dimension_semantics=("parallel",)),
    )(feat, pp["wbp"], pp["bbp"], pp["scale"], pp["shift"], pp["wfp"], pp["bfp"])

    return out[:B, :NUM_CLASSES]


# ----------------------------- pure-JAX reference ------------------------------
def reference_forward(x, p):
    """Mirror of LeNet.forward in eval mode (dropout = identity, BN = running stats)."""
    dn = ("NCHW", "OIHW", "NCHW")
    y = jax.lax.conv_general_dilated(x, p["w1"], (1, 1), "VALID", dimension_numbers=dn)
    y = y + p["b1"][None, :, None, None]
    y = jax.lax.reduce_window(y, jnp.array(-jnp.inf, y.dtype), jax.lax.max,
                              (1, 1, 2, 2), (1, 1, 2, 2), "VALID")
    y = jnp.maximum(y, 0.0)
    y = jax.lax.conv_general_dilated(y, p["w2"], (1, 1), "VALID", dimension_numbers=dn)
    y = y + p["b2"][None, :, None, None]
    # Dropout2d: identity in eval mode.
    y = jax.lax.reduce_window(y, jnp.array(-jnp.inf, y.dtype), jax.lax.max,
                              (1, 1, 2, 2), (1, 1, 2, 2), "VALID")
    y = jnp.maximum(y, 0.0)
    f = y.reshape(y.shape[0], -1)                       # (B, 800), torch (c,h,w) order
    h = f @ p["wb"].T + p["bb"]
    h = (h - p["bn_mean"]) / jnp.sqrt(p["bn_var"] + BN_EPS) * p["bn_gamma"] + p["bn_beta"]
    # Dropout: identity in eval mode.
    return h @ p["wf"].T + p["bf"]


# ----------------------------- deterministic init ------------------------------
def init_lenet_params(key):
    ks = jax.random.split(key, 9)
    bw1 = 1.0 / (1 * 5 * 5) ** 0.5
    bw2 = 1.0 / (20 * 5 * 5) ** 0.5
    w1 = jax.random.uniform(ks[0], (20, 1, 5, 5), jnp.float32, -bw1, bw1)
    b1 = jax.random.uniform(ks[1], (20,), jnp.float32, -bw1, bw1)
    w2 = jax.random.uniform(ks[2], (50, 20, 5, 5), jnp.float32, -bw2, bw2)
    b2 = jax.random.uniform(ks[3], (50,), jnp.float32, -bw2, bw2)
    # bottleneck / fc: xavier_normal weights, zero bias (as in init_weights()).
    wb = jax.random.normal(ks[4], (BOTTLENECK, 800), jnp.float32) * (2.0 / (800 + BOTTLENECK)) ** 0.5
    bb = jnp.zeros((BOTTLENECK,), jnp.float32)
    wf = jax.random.normal(ks[5], (NUM_CLASSES, BOTTLENECK), jnp.float32) * (2.0 / (BOTTLENECK + NUM_CLASSES)) ** 0.5
    bf = jnp.zeros((NUM_CLASSES,), jnp.float32)
    # BatchNorm1d: affine params + non-trivial "running" stats (eval mode).
    bn_gamma = 1.0 + 0.02 * jax.random.normal(ks[6], (BOTTLENECK,), jnp.float32)
    bn_beta = jnp.zeros((BOTTLENECK,), jnp.float32)
    bn_mean = 0.1 * jax.random.normal(ks[7], (BOTTLENECK,), jnp.float32)
    bn_var = jax.random.uniform(ks[8], (BOTTLENECK,), jnp.float32, 0.5, 1.5)
    return dict(w1=w1, b1=b1, w2=w2, b2=b2, wb=wb, bb=bb, wf=wf, bf=bf,
                bn_gamma=bn_gamma, bn_beta=bn_beta, bn_mean=bn_mean, bn_var=bn_var)


if __name__ == "__main__":
    key = jax.random.PRNGKey(0)
    kx, kp = jax.random.split(key)

    # MNIST-shaped input implied by feature_dim = 50*4*4 -> (B, 1, 28, 28)
    batch = 2
    x = jax.random.normal(kx, (batch, 1, 28, 28), dtype=jnp.float32)

    params = init_lenet_params(kp)
    packed = pack_params(params)           # one-time pack/pad/cast (not in hot path)

    out = lenet_forward(x, packed)
    out = jax.block_until_ready(out)

    ref = reference_forward(x, params)
    assert out.shape == (batch, NUM_CLASSES)
    err = float(jnp.max(jnp.abs(out - ref)))
    # bf16 MXU operands through 4 matmul layers -> looser tolerance than f32.
    assert jnp.allclose(out, ref, atol=1e-1, rtol=1e-1), (
        "mismatch vs reference, max abs err = %f" % err)

    print("KERNEL_OK")
</pallas_src>

<mosaic_0001>
module attributes {stable_mosaic.version = 11 : i64} {
  func.func @_conv1_pool_relu_kernel(%arg0: i32, %arg1: memref<4x144x128xbf16, #tpu.memory_space<vmem>>, %arg2: memref<128x128xbf16, #tpu.memory_space<vmem>>, %arg3: memref<1x128xf32, #tpu.memory_space<vmem>>, %arg4: memref<144x128xbf16, #tpu.memory_space<vmem>>) attributes {dimension_semantics = [#tpu.dimension_semantics<parallel>], iteration_bounds = array<i64: 2>, scalar_prefetch = 0 : i64, scratch_operands = 0 : i64, tpu.core_type = #tpu.core_type<tc>, window_params = [{transform_indices = @transform_0, window_bounds = array<i64: 4, 144, 128>}, {pipeline_mode = #tpu.pipeline_mode<synchronous>, transform_indices = @transform_1, window_bounds = array<i64: 128, 128>}, {pipeline_mode = #tpu.pipeline_mode<synchronous>, transform_indices = @transform_2, window_bounds = array<i64: 1, 128>}, {transform_indices = @transform_3, window_bounds = array<i64: 144, 128>}]} {
    %c0 = arith.constant 0 : index
    %c0_0 = arith.constant 0 : index
    %0 = vector.load %arg2[%c0, %c0_0] : memref<128x128xbf16, #tpu.memory_space<vmem>>, vector<128x128xbf16>
    %c0_1 = arith.constant 0 : index
    %c0_2 = arith.constant 0 : index
    %c0_3 = arith.constant 0 : index
    %1 = vector.load %arg1[%c0_1, %c0_2, %c0_3] : memref<4x144x128xbf16, #tpu.memory_space<vmem>>, vector<1x144x128xbf16>
    %2 = vector.shape_cast %1 : vector<1x144x128xbf16> to vector<144x128xbf16>
    %cst = arith.constant dense<0.000000e+00> : vector<144x128xf32>
    %3 = tpu.matmul %2, %0, %cst {dimension_numbers = #tpu.dot_dimension_numbers<[1], [0], [0], [1], [0, 0, 1, 1], [], []>} : vector<144x128xbf16>, vector<128x128xbf16>, vector<144x128xf32> -> vector<144x128xf32>
    %c1 = arith.constant 1 : index
    %c0_4 = arith.constant 0 : index
    %c0_5 = arith.constant 0 : index
    %4 = vector.load %arg1[%c1, %c0_4, %c0_5] : memref<4x144x128xbf16, #tpu.memory_space<vmem>>, vector<1x144x128xbf16>
    %5 = vector.shape_cast %4 : vector<1x144x128xbf16> to vector<144x128xbf16>
    %cst_6 = arith.constant dense<0.000000e+00> : vector<144x128xf32>
    %6 = tpu.matmul %5, %0, %cst_6 {dimension_numbers = #tpu.dot_dimension_numbers<[1], [0], [0], [1], [0, 0, 1, 1], [], []>} : vector<144x128xbf16>, vector<128x128xbf16>, vector<144x128xf32> -> vector<144x128xf32>
    %7 = arith.maximumf %3, %6 : vector<144x128xf32>
    %c2 = arith.constant 2 : index
    %c0_7 = arith.constant 0 : index
    %c0_8 = arith.constant 0 : index
    %8 = vector.load %arg1[%c2, %c0_7, %c0_8] : memref<4x144x128xbf16, #tpu.memory_space<vmem>>, vector<1x144x128xbf16>
    %9 = vector.shape_cast %8 : vector<1x144x128xbf16> to vector<144x128xbf16>
    %cst_9 = arith.constant dense<0.000000e+00> : vector<144x128xf32>
    %10 = tpu.matmul %9, %0, %cst_9 {dimension_numbers = #tpu.dot_dimension_numbers<[1], [0], [0], [1], [0, 0, 1, 1], [], []>} : vector<144x128xbf16>, vector<128x128xbf16>, vector<144x128xf32> -> vector<144x128xf32>
    %11 = arith.maximumf %7, %10 : vector<144x128xf32>
    %c3 = arith.constant 3 : index
    %c0_10 = arith.constant 0 : index
    %c0_11 = arith.constant 0 : index
    %12 = vector.load %arg1[%c3, %c0_10, %c0_11] : memref<4x144x128xbf16, #tpu.memory_space<vmem>>, vector<1x144x128xbf16>
    %13 = vector.shape_cast %12 : vector<1x144x128xbf16> to vector<144x128xbf16>
    %cst_12 = arith.constant dense<0.000000e+00> : vector<144x128xf32>
    %14 = tpu.matmul %13, %0, %cst_12 {dimension_numbers = #tpu.dot_dimension_numbers<[1], [0], [0], [1], [0, 0, 1, 1], [], []>} : vector<144x128xbf16>, vector<128x128xbf16>, vector<144x128xf32> -> vector<144x128xf32>
    %15 = arith.maximumf %11, %14 : vector<144x128xf32>
    %c0_13 = arith.constant 0 : index
    %c0_14 = arith.constant 0 : index
    %16 = vector.load %arg3[%c0_13, %c0_14] : memref<1x128xf32, #tpu.memory_space<vmem>>, vector<1x128xf32>
    %17 = vector.broadcast %16 : vector<1x128xf32> to vector<144x128xf32>
    %18 = arith.addf %15, %17 : vector<144x128xf32>
    %cst_15 = arith.constant 0.000000e+00 : f32
    %19 = vector.broadcast %cst_15 : f32 to vector<144x128xf32>
    %20 = arith.maximumf %18, %19 : vector<144x128xf32>
    %21 = arith.truncf %20 : vector<144x128xf32> to vector<144x128xbf16>
    %c0_16 = arith.constant 0 : index
    %c0_17 = arith.constant 0 : index
    %22 = vector.load %arg4[%c0_16, %c0_17] : memref<144x128xbf16, #tpu.memory_space<vmem>>, vector<144x128xbf16>
    tpu.vector_store %arg4[%c0_16, %c0_17], %21 {strides = array<i32>} : memref<144x128xbf16, #tpu.memory_space<vmem>>, vector<144x128xbf16>,
    return
  }
  func.func @transform_0(%arg0: i32) -> (i32, i32, i32) {
    %c0_i32 = arith.constant 0 : i32
    %c0_i32_0 = arith.constant 0 : i32
    %c0_i32_1 = arith.constant 0 : i32
    return %c0_i32, %arg0, %c0_i32_0 : i32, i32, i32
  }
  func.func @transform_1(%arg0: i32) -> (i32, i32) {
    %c0_i32 = arith.constant 0 : i32
    %c0_i32_0 = arith.constant 0 : i32
    %c0_i32_1 = arith.constant 0 : i32
    return %c0_i32, %c0_i32_0 : i32, i32
  }
  func.func @transform_2(%arg0: i32) -> (i32, i32) {
    %c0_i32 = arith.constant 0 : i32
    %c0_i32_0 = arith.constant 0 : i32
    %c0_i32_1 = arith.constant 0 : i32
    return %c0_i32, %c0_i32_0 : i32, i32
  }
  func.func @transform_3(%arg0: i32) -> (i32, i32) {
    %c0_i32 = arith.constant 0 : i32
    %c0_i32_0 = arith.constant 0 : i32
    return %arg0, %c0_i32 : i32, i32
  }
}

module attributes {stable_mosaic.version = 11 : i64} {
  func.func @_conv2_pool_relu_kernel(%arg0: i32, %arg1: memref<1x12x12x128xbf16, #tpu.memory_space<vmem>>, %arg2: memref<25x128x64xbf16, #tpu.memory_space<vmem>>, %arg3: memref<1x64xf32, #tpu.memory_space<vmem>>, %arg4: memref<1x4x256xbf16, #tpu.memory_space<vmem>>) attributes {dimension_semantics = [#tpu.dimension_semantics<parallel>], iteration_bounds = array<i64: 2>, scalar_prefetch = 0 : i64, scratch_operands = 0 : i64, tpu.core_type = #tpu.core_type<tc>, window_params = [{transform_indices = @transform_0, window_bounds = array<i64: 1, 12, 12, 128>}, {pipeline_mode = #tpu.pipeline_mode<synchronous>, transform_indices = @transform_1, window_bounds = array<i64: 25, 128, 64>}, {pipeline_mode = #tpu.pipeline_mode<synchronous>, transform_indices = @transform_2, window_bounds = array<i64: 1, 64>}, {transform_indices = @transform_3, window_bounds = array<i64: 1, 4, 256>}]} {
    %c0 = arith.constant 0 : index
    %c0_0 = arith.constant 0 : index
    %c0_1 = arith.constant 0 : index
    %c0_2 = arith.constant 0 : index
    %0 = vector.load %arg1[%c0, %c0_0, %c0_1, %c0_2] : memref<1x12x12x128xbf16, #tpu.memory_space<vmem>>, vector<1x8x8x128xbf16>
    %1 = vector.shape_cast %0 : vector<1x8x8x128xbf16> to vector<64x128xbf16>
    %c0_3 = arith.constant 0 : index
    %c0_4 = arith.constant 0 : index
    %c0_5 = arith.constant 0 : index
    %2 = vector.load %arg2[%c0_3, %c0_4, %c0_5] : memref<25x128x64xbf16, #tpu.memory_space<vmem>>, vector<1x128x64xbf16>
    %3 = vector.shape_cast %2 : vector<1x128x64xbf16> to vector<128x64xbf16>
    %cst = arith.constant dense<0.000000e+00> : vector<64x64xf32>
    %4 = tpu.matmul %1, %3, %cst {dimension_numbers = #tpu.dot_dimension_numbers<[1], [0], [0], [1], [0, 0, 1, 1], [], []>} : vector<64x128xbf16>, vector<128x64xbf16>, vector<64x64xf32> -> vector<64x64xf32>
    %c0_6 = arith.constant 0 : index
    %c0_7 = arith.constant 0 : index
    %c1 = arith.constant 1 : index
    %c0_8 = arith.constant 0 : index
    %5 = vector.load %arg1[%c0_6, %c0_7, %c1, %c0_8] : memref<1x12x12x128xbf16, #tpu.memory_space<vmem>>, vector<1x8x8x128xbf16>
    %6 = vector.shape_cast %5 : vector<1x8x8x128xbf16> to vector<64x128xbf16>
    %c1_9 = arith.constant 1 : index
    %c0_10 = arith.constant 0 : index
    %c0_11 = arith.constant 0 : index
    %7 = vector.load %arg2[%c1_9, %c0_10, %c0_11] : memref<25x128x64xbf16, #tpu.memory_space<vmem>>, vector<1x128x64xbf16>
    %8 = vector.shape_cast %7 : vector<1x128x64xbf16> to vector<128x64xbf16>
    %cst_12 = arith.constant dense<0.000000e+00> : vector<64x64xf32>
    %9 = tpu.matmul %6, %8, %cst_12 {dimension_numbers = #tpu.dot_dimension_numbers<[1], [0], [0], [1], [0, 0, 1, 1], [], []>} : vector<64x128xbf16>, vector<128x64xbf16>, vector<64x64xf32> -> vector<64x64xf32>
    %10 = arith.addf %4, %9 : vector<64x64xf32>
    %c0_13 = arith.constant 0 : index
    %c0_14 = arith.constant 0 : index
    %c2 = arith.constant 2 : index
    %c0_15 = arith.constant 0 : index
    %11 = vector.load %arg1[%c0_13, %c0_14, %c2, %c0_15] : memref<1x12x12x128xbf16, #tpu.memory_space<vmem>>, vector<1x8x8x128xbf16>
    %12 = vector.shape_cast %11 : vector<1x8x8x128xbf16> to vector<64x128xbf16>
    %c2_16 = arith.constant 2 : index
    %c0_17 = arith.constant 0 : index
    %c0_18 = arith.constant 0 : index
    %13 = vector.load %arg2[%c2_16, %c0_17, %c0_18] : memref<25x128x64xbf16, #tpu.memory_space<vmem>>, vector<1x128x64xbf16>
    %14 = vector.shape_cast %13 : vector<1x128x64xbf16> to vector<128x64xbf16>
    %cst_19 = arith.constant dense<0.000000e+00> : vector<64x64xf32>
    %15 = tpu.matmul %12, %14, %cst_19 {dimension_numbers = #tpu.dot_dimension_numbers<[1], [0], [0], [1], [0, 0, 1, 1], [], []>} : vector<64x128xbf16>, vector<128x64xbf16>, vector<64x64xf32> -> vector<64x64xf32>
    %16 = arith.addf %10, %15 : vector<64x64xf32>
    %c0_20 = arith.constant 0 : index
    %c0_21 = arith.constant 0 : index
    %c3 = arith.constant 3 : index
    %c0_22 = arith.constant 0 : index
    %17 = vector.load %arg1[%c0_20, %c0_21, %c3, %c0_22] : memref<1x12x12x128xbf16, #tpu.memory_space<vmem>>, vector<1x8x8x128xbf16>
    %18 = vector.shape_cast %17 : vector<1x8x8x128xbf16> to vector<64x128xbf16>
    %c3_23 = arith.constant 3 : index
    %c0_24 = arith.constant 0 : index
    %c0_25 = arith.constant 0 : index
    %19 = vector.load %arg2[%c3_23, %c0_24, %c0_25] : memref<25x128x64xbf16, #tpu.memory_space<vmem>>, vector<1x128x64xbf16>
    %20 = vector.shape_cast %19 : vector<1x128x64xbf16> to vector<128x64xbf16>
    %cst_26 = arith.constant dense<0.000000e+00> : vector<64x64xf32>
    %21 = tpu.matmul %18, %20, %cst_26 {dimension_numbers = #tpu.dot_dimension_numbers<[1], [0], [0], [1], [0, 0, 1, 1], [], []>} : vector<64x128xbf16>, vector<128x64xbf16>, vector<64x64xf32> -> vector<64x64xf32>
    %22 = arith.addf %16, %21 : vector<64x64xf32>
    %c0_27 = arith.constant 0 : index
    %c0_28 = arith.constant 0 : index
    %c4 = arith.constant 4 : index
    %c0_29 = arith.constant 0 : index
    %23 = vector.load %arg1[%c0_27, %c0_28, %c4, %c0_29] : memref<1x12x12x128xbf16, #tpu.memory_space<vmem>>, vector<1x8x8x128xbf16>
    %24 = vector.shape_cast %23 : vector<1x8x8x128xbf16> to vector<64x128xbf16>
    %c4_30 = arith.constant 4 : index
    %c0_31 = arith.constant 0 : index
    %c0_32 = arith.constant 0 : index
    %25 = vector.load %arg2[%c4_30, %c0_31, %c0_32] : memref<25x128x64xbf16, #tpu.memory_space<vmem>>, vector<1x128x64xbf16>
    %26 = vector.shape_cast %25 : vector<1x128x64xbf16> to vector<128x64xbf16>
    %cst_33 = arith.constant dense<0.000000e+00> : vector<64x64xf32>
    %27 = tpu.matmul %24, %26, %cst_33 {dimension_numbers = #tpu.dot_dimension_numbers<[1], [0], [0], [1], [0, 0, 1, 1], [], []>} : vector<64x128xbf16>, vector<128x64xbf16>, vector<64x64xf32> -> vector<64x64xf32>
    %28 = arith.addf %22, %27 : vector<64x64xf32>
    %c0_34 = arith.constant 0 : index
    %c1_35 = arith.constant 1 : index
    %c0_36 = arith.constant 0 : index
    %c0_37 = arith.constant 0 : index
    %29 = vector.load %arg1[%c0_34, %c1_35, %c0_36, %c0_37] : memref<1x12x12x128xbf16, #tpu.memory_space<vmem>>, vector<1x8x8x128xbf16>
    %30 = vector.shape_cast %29 : vector<1x8x8x128xbf16> to vector<64x128xbf16>
    %c5 = arith.constant 5 : index
    %c0_38 = arith.constant 0 : index
    %c0_39 = arith.constant 0 : index
    %31 = vector.load %arg2[%c5, %c0_38, %c0_39] : memref<25x128x64xbf16, #tpu.memory_space<vmem>>, vector<1x128x64xbf16>
    %32 = vector.shape_cast %31 : vector<1x128x64xbf16> to vector<128x64xbf16>
    %cst_40 = arith.constant dense<0.000000e+00> : vector<64x64xf32>
    %33 = tpu.matmul %30, %32, %cst_40 {dimension_numbers = #tpu.dot_dimension_numbers<[1], [0], [0], [1], [0, 0, 1, 1], [], []>} : vector<64x128xbf16>, vector<128x64xbf16>, vector<64x64xf32> -> vector<64x64xf32>
    %34 = arith.addf %28, %33 : vector<64x64xf32>
    %c0_41 = arith.constant 0 : index
    %c1_42 = arith.constant 1 : index
    %c1_43 = arith.constant 1 : index
    %c0_44 = arith.constant 0 : index
    %35 = vector.load %arg1[%c0_41, %c1_42, %c1_43, %c0_44] : memref<1x12x12x128xbf16, #tpu.memory_space<vmem>>, vector<1x8x8x128xbf16>
    %36 = vector.shape_cast %35 : vector<1x8x8x128xbf16> to vector<64x128xbf16>
    %c6 = arith.constant 6 : index
    %c0_45 = arith.constant 0 : index
    %c0_46 = arith.constant 0 : index
    %37 = vector.load %arg2[%c6, %c0_45, %c0_46] : memref<25x128x64xbf16, #tpu.memory_space<vmem>>, vector<1x128x64xbf16>
    %38 = vector.shape_cast %37 : vector<1x128x64xbf16> to vector<128x64xbf16>
    %cst_47 = arith.constant dense<0.000000e+00> : vector<64x64xf32>
    %39 = tpu.matmul %36, %38, %cst_47 {dimension_numbers = #tpu.dot_dimension_numbers<[1], [0], [0], [1], [0, 0, 1, 1], [], []>} : vector<64x128xbf16>, vector<128x64xbf16>, vector<64x64xf32> -> vector<64x64xf32>
    %40 = arith.addf %34, %39 : vector<64x64xf32>
    %c0_48 = arith.constant 0 : index
    %c1_49 = arith.constant 1 : index
    %c2_50 = arith.constant 2 : index
    %c0_51 = arith.constant 0 : index
    %41 = vector.load %arg1[%c0_48, %c1_49, %c2_50, %c0_51] : memref<1x12x12x128xbf16, #tpu.memory_space<vmem>>, vector<1x8x8x128xbf16>
    %42 = vector.shape_cast %41 : vector<1x8x8x128xbf16> to vector<64x128xbf16>
    %c7 = arith.constant 7 : index
    %c0_52 = arith.constant 0 : index
    %c0_53 = arith.constant 0 : index
    %43 = vector.load %arg2[%c7, %c0_52, %c0_53] : memref<25x128x64xbf16, #tpu.memory_space<vmem>>, vector<1x128x64xbf16>
    %44 = vector.shape_cast %43 : vector<1x128x64xbf16> to vector<128x64xbf16>
    %cst_54 = arith.constant dense<0.000000e+00> : vector<64x64xf32>
    %45 = tpu.matmul %42, %44, %cst_54 {dimension_numbers = #tpu.dot_dimension_numbers<[1], [0], [0], [1], [0, 0, 1, 1], [], []>} : vector<64x128xbf16>, vector<128x64xbf16>, vector<64x64xf32> -> vector<64x64xf32>
    %46 = arith.addf %40, %45 : vector<64x64xf32>
    %c0_55 = arith.constant 0 : index
    %c1_56 = arith.constant 1 : index
    %c3_57 = arith.constant 3 : index
    %c0_58 = arith.constant 0 : index
    %47 = vector.load %arg1[%c0_55, %c1_56, %c3_57, %c0_58] : memref<1x12x12x128xbf16, #tpu.memory_space<vmem>>, vector<1x8x8x128xbf16>
    %48 = vector.shape_cast %47 : vector<1x8x8x128xbf16> to vector<64x128xbf16>
    %c8 = arith.constant 8 : index
    %c0_59 = arith.constant 0 : index
    %c0_60 = arith.constant 0 : index
    %49 = vector.load %arg2[%c8, %c0_59, %c0_60] : memref<25x128x64xbf16, #tpu.memory_space<vmem>>, vector<1x128x64xbf16>
    %50 = vector.shape_cast %49 : vector<1x128x64xbf16> to vector<128x64xbf16>
    %cst_61 = arith.constant dense<0.000000e+00> : vector<64x64xf32>
    %51 = tpu.matmul %48, %50, %cst_61 {dimension_numbers = #tpu.dot_dimension_numbers<[1], [0], [0], [1], [0, 0, 1, 1], [], []>} : vector<64x128xbf16>, vector<128x64xbf16>, vector<64x64xf32> -> vector<64x64xf32>
    %52 = arith.addf %46, %51 : vector<64x64xf32>
    %c0_62 = arith.constant 0 : index
    %c1_63 = arith.constant 1 : index
    %c4_64 = arith.constant 4 : index
    %c0_65 = arith.constant 0 : index
    %53 = vector.load %arg1[%c0_62, %c1_63, %c4_64, %c0_65] : memref<1x12x12x128xbf16, #tpu.memory_space<vmem>>, vector<1x8x8x128xbf16>
    %54 = vector.shape_cast %53 : vector<1x8x8x128xbf16> to vector<64x128xbf16>
    %c9 = arith.constant 9 : index
    %c0_66 = arith.constant 0 : index
    %c0_67 = arith.constant 0 : index
    %55 = vector.load %arg2[%c9, %c0_66, %c0_67] : memref<25x128x64xbf16, #tpu.memory_space<vmem>>, vector<1x128x64xbf16>
    %56 = vector.shape_cast %55 : vector<1x128x64xbf16> to vector<128x64xbf16>
    %cst_68 = arith.constant dense<0.000000e+00> : vector<64x64xf32>
    %57 = tpu.matmul %54, %56, %cst_68 {dimension_numbers = #tpu.dot_dimension_numbers<[1], [0], [0], [1], [0, 0, 1, 1], [], []>} : vector<64x128xbf16>, vector<128x64xbf16>, vector<64x64xf32> -> vector<64x64xf32>
    %58 = arith.addf %52, %57 : vector<64x64xf32>
    %c0_69 = arith.constant 0 : index
    %c2_70 = arith.constant 2 : index
    %c0_71 = arith.constant 0 : index
    %c0_72 = arith.constant 0 : index
    %59 = vector.load %arg1[%c0_69, %c2_70, %c0_71, %c0_72] : memref<1x12x12x128xbf16, #tpu.memory_space<vmem>>, vector<1x8x8x128xbf16>
    %60 = vector.shape_cast %59 : vector<1x8x8x128xbf16> to vector<64x128xbf16>
    %c10 = arith.constant 10 : index
    %c0_73 = arith.constant 0 : index
    %c0_74 = arith.constant 0 : index
    %61 = vector.load %arg2[%c10, %c0_73, %c0_74] : memref<25x128x64xbf16, #tpu.memory_space<vmem>>, vector<1x128x64xbf16>
    %62 = vector.shape_cast %61 : vector<1x128x64xbf16> to vector<128x64xbf16>
    %cst_75 = arith.constant dense<0.000000e+00> : vector<64x64xf32>
    %63 = tpu.matmul %60, %62, %cst_75 {dimension_numbers = #tpu.dot_dimension_numbers<[1], [0], [0], [1], [0, 0, 1, 1], [], []>} : vector<64x128xbf16>, vector<128x64xbf16>, vector<64x64xf32> -> vector<64x64xf32>
    %64 = arith.addf %58, %63 : vector<64x64xf32>
    %c0_76 = arith.constant 0 : index
    %c2_77 = arith.constant 2 : index
    %c1_78 = arith.constant 1 : index
    %c0_79 = arith.constant 0 : index
    %65 = vector.load %arg1[%c0_76, %c2_77, %c1_78, %c0_79] : memref<1x12x12x128xbf16, #tpu.memory_space<vmem>>, vector<1x8x8x128xbf16>
    %66 = vector.shape_cast %65 : vector<1x8x8x128xbf16> to vector<64x128xbf16>
    %c11 = arith.constant 11 : index
    %c0_80 = arith.constant 0 : index
    %c0_81 = arith.constant 0 : index
    %67 = vector.load %arg2[%c11, %c0_80, %c0_81] : memref<25x128x64xbf16, #tpu.memory_space<vmem>>, vector<1x128x64xbf16>
    %68 = vector.shape_cast %67 : vector<1x128x64xbf16> to vector<128x64xbf16>
    %cst_82 = arith.constant dense<0.000000e+00> : vector<64x64xf32>
    %69 = tpu.matmul %66, %68, %cst_82 {dimension_numbers = #tpu.dot_dimension_numbers<[1], [0], [0], [1], [0, 0, 1, 1], [], []>} : vector<64x128xbf16>, vector<128x64xbf16>, vector<64x64xf32> -> vector<64x64xf32>
    %70 = arith.addf %64, %69 : vector<64x64xf32>
    %c0_83 = arith.constant 0 : index
    %c2_84 = arith.constant 2 : index
    %c2_85 = arith.constant 2 : index
    %c0_86 = arith.constant 0 : index
    %71 = vector.load %arg1[%c0_83, %c2_84, %c2_85, %c0_86] : memref<1x12x12x128xbf16, #tpu.memory_space<vmem>>, vector<1x8x8x128xbf16>
    %72 = vector.shape_cast %71 : vector<1x8x8x128xbf16> to vector<64x128xbf16>
    %c12 = arith.constant 12 : index
    %c0_87 = arith.constant 0 : index
    %c0_88 = arith.constant 0 : index
    %73 = vector.load %arg2[%c12, %c0_87, %c0_88] : memref<25x128x64xbf16, #tpu.memory_space<vmem>>, vector<1x128x64xbf16>
    %74 = vector.shape_cast %73 : vector<1x128x64xbf16> to vector<128x64xbf16>
    %cst_89 = arith.constant dense<0.000000e+00> : vector<64x64xf32>
    %75 = tpu.matmul %72, %74, %cst_89 {dimension_numbers = #tpu.dot_dimension_numbers<[1], [0], [0], [1], [0, 0, 1, 1], [], []>} : vector<64x128xbf16>, vector<128x64xbf16>, vector<64x64xf32> -> vector<64x64xf32>
    %76 = arith.addf %70, %75 : vector<64x64xf32>
    %c0_90 = arith.constant 0 : index
    %c2_91 = arith.constant 2 : index
    %c3_92 = arith.constant 3 : index
    %c0_93 = arith.constant 0 : index
    %77 = vector.load %arg1[%c0_90, %c2_91, %c3_92, %c0_93] : memref<1x12x12x128xbf16, #tpu.memory_space<vmem>>, vector<1x8x8x128xbf16>
    %78 = vector.shape_cast %77 : vector<1x8x8x128xbf16> to vector<64x128xbf16>
    %c13 = arith.constant 13 : index
    %c0_94 = arith.constant 0 : index
    %c0_95 = arith.constant 0 : index
    %79 = vector.load %arg2[%c13, %c0_94, %c0_95] : memref<25x128x64xbf16, #tpu.memory_space<vmem>>, vector<1x128x64xbf16>
    %80 = vector.shape_cast %79 : vector<1x128x64xbf16> to vector<128x64xbf16>
    %cst_96 = arith.constant dense<0.000000e+00> : vector<64x64xf32>
    %81 = tpu.matmul %78, %80, %cst_96 {dimension_numbers = #tpu.dot_dimension_numbers<[1], [0], [0], [1], [0, 0, 1, 1], [], []>} : vector<64x128xbf16>, vector<128x64xbf16>, vector<64x64xf32> -> vector<64x64xf32>
    %82 = arith.addf %76, %81 : vector<64x64xf32>
    %c0_97 = arith.constant 0 : index
    %c2_98 = arith.constant 2 : index
    %c4_99 = arith.constant 4 : index
    %c0_100 = arith.constant 0 : index
    %83 = vector.load %arg1[%c0_97, %c2_98, %c4_99, %c0_100] : memref<1x12x12x128xbf16, #tpu.memory_space<vmem>>, vector<1x8x8x128xbf16>
    %84 = vector.shape_cast %83 : vector<1x8x8x128xbf16> to vector<64x128xbf16>
    %c14 = arith.constant 14 : index
    %c0_101 = arith.constant 0 : index
    %c0_102 = arith.constant 0 : index
    %85 = vector.load %arg2[%c14, %c0_101, %c0_102] : memref<25x128x64xbf16, #tpu.memory_space<vmem>>, vector<1x128x64xbf16>
    %86 = vector.shape_cast %85 : vector<1x128x64xbf16> to vector<128x64xbf16>
    %cst_103 = arith.constant dense<0.000000e+00> : vector<64x64xf32>
    %87 = tpu.matmul %84, %86, %cst_103 {dimension_numbers = #tpu.dot_dimension_numbers<[1], [0], [0], [1], [0, 0, 1, 1], [], []>} : vector<64x128xbf16>, vector<128x64xbf16>, vector<64x64xf32> -> vector<64x64xf32>
    %88 = arith.addf %82, %87 : vector<64x64xf32>
    %c0_104 = arith.constant 0 : index
    %c3_105 = arith.constant 3 : index
    %c0_106 = arith.constant 0 : index
    %c0_107 = arith.constant 0 : index
    %89 = vector.load %arg1[%c0_104, %c3_105, %c0_106, %c0_107] : memref<1x12x12x128xbf16, #tpu.memory_space<vmem>>, vector<1x8x8x128xbf16>
    %90 = vector.shape_cast %89 : vector<1x8x8x128xbf16> to vector<64x128xbf16>
    %c15 = arith.constant 15 : index
    %c0_108 = arith.constant 0 : index
    %c0_109 = arith.constant 0 : index
    %91 = vector.load %arg2[%c15, %c0_108, %c0_109] : memref<25x128x64xbf16, #tpu.memory_space<vmem>>, vector<1x128x64xbf16>
    %92 = vector.shape_cast %91 : vector<1x128x64xbf16> to vector<128x64xbf16>
    %cst_110 = arith.constant dense<0.000000e+00> : vector<64x64xf32>
    %93 = tpu.matmul %90, %92, %cst_110 {dimension_numbers = #tpu.dot_dimension_numbers<[1], [0], [0], [1], [0, 0, 1, 1], [], []>} : vector<64x128xbf16>, vector<128x64xbf16>, vector<64x64xf32> -> vector<64x64xf32>
    %94 = arith.addf %88, %93 : vector<64x64xf32>
    %c0_111 = arith.constant 0 : index
    %c3_112 = arith.constant 3 : index
    %c1_113 = arith.constant 1 : index
    %c0_114 = arith.constant 0 : index
    %95 = vector.load %arg1[%c0_111, %c3_112, %c1_113, %c0_114] : memref<1x12x12x128xbf16, #tpu.memory_space<vmem>>, vector<1x8x8x128xbf16>
    %96 = vector.shape_cast %95 : vector<1x8x8x128xbf16> to vector<64x128xbf16>
    %c16 = arith.constant 16 : index
    %c0_115 = arith.constant 0 : index
    %c0_116 = arith.constant 0 : index
    %97 = vector.load %arg2[%c16, %c0_115, %c0_116] : memref<25x128x64xbf16, #tpu.memory_space<vmem>>, vector<1x128x64xbf16>
    %98 = vector.shape_cast %97 : vector<1x128x64xbf16> to vector<128x64xbf16>
    %cst_117 = arith.constant dense<0.000000e+00> : vector<64x64xf32>
    %99 = tpu.matmul %96, %98, %cst_117 {dimension_numbers = #tpu.dot_dimension_numbers<[1], [0], [0], [1], [0, 0, 1, 1], [], []>} : vector<64x128xbf16>, vector<128x64xbf16>, vector<64x64xf32> -> vector<64x64xf32>
    %100 = arith.addf %94, %99 : vector<64x64xf32>
    %c0_118 = arith.constant 0 : index
    %c3_119 = arith.constant 3 : index
    %c2_120 = arith.constant 2 : index
    %c0_121 = arith.constant 0 : index
    %101 = vector.load %arg1[%c0_118, %c3_119, %c2_120, %c0_121] : memref<1x12x12x128xbf16, #tpu.memory_space<vmem>>, vector<1x8x8x128xbf16>
    %102 = vector.shape_cast %101 : vector<1x8x8x128xbf16> to vector<64x128xbf16>
    %c17 = arith.constant 17 : index
    %c0_122 = arith.constant 0 : index
    %c0_123 = arith.constant 0 : index
    %103 = vector.load %arg2[%c17, %c0_122, %c0_123] : memref<25x128x64xbf16, #tpu.memory_space<vmem>>, vector<1x128x64xbf16>
    %104 = vector.shape_cast %103 : vector<1x128x64xbf16> to vector<128x64xbf16>
    %cst_124 = arith.constant dense<0.000000e+00> : vector<64x64xf32>
    %105 = tpu.matmul %102, %104, %cst_124 {dimension_numbers = #tpu.dot_dimension_numbers<[1], [0], [0], [1], [0, 0, 1, 1], [], []>} : vector<64x128xbf16>, vector<128x64xbf16>, vector<64x64xf32> -> vector<64x64xf32>
    %106 = arith.addf %100, %105 : vector<64x64xf32>
    %c0_125 = arith.constant 0 : index
    %c3_126 = arith.constant 3 : index
    %c3_127 = arith.constant 3 : index
    %c0_128 = arith.constant 0 : index
    %107 = vector.load %arg1[%c0_125, %c3_126, %c3_127, %c0_128] : memref<1x12x12x128xbf16, #tpu.memory_space<vmem>>, vector<1x8x8x128xbf16>
    %108 = vector.shape_cast %107 : vector<1x8x8x128xbf16> to vector<64x128xbf16>
    %c18 = arith.constant 18 : index
    %c0_129 = arith.constant 0 : index
    %c0_130 = arith.constant 0 : index
    %109 = vector.load %arg2[%c18, %c0_129, %c0_130] : memref<25x128x64xbf16, #tpu.memory_space<vmem>>, vector<1x128x64xbf16>
    %110 = vector.shape_cast %109 : vector<1x128x64xbf16> to vector<128x64xbf16>
    %cst_131 = arith.constant dense<0.000000e+00> : vector<64x64xf32>
    %111 = tpu.matmul %108, %110, %cst_131 {dimension_numbers = #tpu.dot_dimension_numbers<[1], [0], [0], [1], [0, 0, 1, 1], [], []>} : vector<64x128xbf16>, vector<128x64xbf16>, vector<64x64xf32> -> vector<64x64xf32>
    %112 = arith.addf %106, %111 : vector<64x64xf32>
    %c0_132 = arith.constant 0 : index
    %c3_133 = arith.constant 3 : index
    %c4_134 = arith.constant 4 : index
    %c0_135 = arith.constant 0 : index
    %113 = vector.load %arg1[%c0_132, %c3_133, %c4_134, %c0_135] : memref<1x12x12x128xbf16, #tpu.memory_space<vmem>>, vector<1x8x8x128xbf16>
    %114 = vector.shape_cast %113 : vector<1x8x8x128xbf16> to vector<64x128xbf16>
    %c19 = arith.constant 19 : index
    %c0_136 = arith.constant 0 : index
    %c0_137 = arith.constant 0 : index
    %115 = vector.load %arg2[%c19, %c0_136, %c0_137] : memref<25x128x64xbf16, #tpu.memory_space<vmem>>, vector<1x128x64xbf16>
    %116 = vector.shape_cast %115 : vector<1x128x64xbf16> to vector<128x64xbf16>
    %cst_138 = arith.constant dense<0.000000e+00> : vector<64x64xf32>
    %117 = tpu.matmul %114, %116, %cst_138 {dimension_numbers = #tpu.dot_dimension_numbers<[1], [0], [0], [1], [0, 0, 1, 1], [], []>} : vector<64x128xbf16>, vector<128x64xbf16>, vector<64x64xf32> -> vector<64x64xf32>
    %118 = arith.addf %112, %117 : vector<64x64xf32>
    %c0_139 = arith.constant 0 : index
    %c4_140 = arith.constant 4 : index
    %c0_141 = arith.constant 0 : index
    %c0_142 = arith.constant 0 : index
    %119 = vector.load %arg1[%c0_139, %c4_140, %c0_141, %c0_142] : memref<1x12x12x128xbf16, #tpu.memory_space<vmem>>, vector<1x8x8x128xbf16>
    %120 = vector.shape_cast %119 : vector<1x8x8x128xbf16> to vector<64x128xbf16>
    %c20 = arith.constant 20 : index
    %c0_143 = arith.constant 0 : index
    %c0_144 = arith.constant 0 : index
    %121 = vector.load %arg2[%c20, %c0_143, %c0_144] : memref<25x128x64xbf16, #tpu.memory_space<vmem>>, vector<1x128x64xbf16>
    %122 = vector.shape_cast %121 : vector<1x128x64xbf16> to vector<128x64xbf16>
    %cst_145 = arith.constant dense<0.000000e+00> : vector<64x64xf32>
    %123 = tpu.matmul %120, %122, %cst_145 {dimension_numbers = #tpu.dot_dimension_numbers<[1], [0], [0], [1], [0, 0, 1, 1], [], []>} : vector<64x128xbf16>, vector<128x64xbf16>, vector<64x64xf32> -> vector<64x64xf32>
    %124 = arith.addf %118, %123 : vector<64x64xf32>
    %c0_146 = arith.constant 0 : index
    %c4_147 = arith.constant 4 : index
    %c1_148 = arith.constant 1 : index
    %c0_149 = arith.constant 0 : index
    %125 = vector.load %arg1[%c0_146, %c4_147, %c1_148, %c0_149] : memref<1x12x12x128xbf16, #tpu.memory_space<vmem>>, vector<1x8x8x128xbf16>
    %126 = vector.shape_cast %125 : vector<1x8x8x128xbf16> to vector<64x128xbf16>
    %c21 = arith.constant 21 : index
    %c0_150 = arith.constant 0 : index
    %c0_151 = arith.constant 0 : index
    %127 = vector.load %arg2[%c21, %c0_150, %c0_151] : memref<25x128x64xbf16, #tpu.memory_space<vmem>>, vector<1x128x64xbf16>
    %128 = vector.shape_cast %127 : vector<1x128x64xbf16> to vector<128x64xbf16>
    %cst_152 = arith.constant dense<0.000000e+00> : vector<64x64xf32>
    %129 = tpu.matmul %126, %128, %cst_152 {dimension_numbers = #tpu.dot_dimension_numbers<[1], [0], [0], [1], [0, 0, 1, 1], [], []>} : vector<64x128xbf16>, vector<128x64xbf16>, vector<64x64xf32> -> vector<64x64xf32>
    %130 = arith.addf %124, %129 : vector<64x64xf32>
    %c0_153 = arith.constant 0 : index
    %c4_154 = arith.constant 4 : index
    %c2_155 = arith.constant 2 : index
    %c0_156 = arith.constant 0 : index
    %131 = vector.load %arg1[%c0_153, %c4_154, %c2_155, %c0_156] : memref<1x12x12x128xbf16, #tpu.memory_space<vmem>>, vector<1x8x8x128xbf16>
    %132 = vector.shape_cast %131 : vector<1x8x8x128xbf16> to vector<64x128xbf16>
    %c22 = arith.constant 22 : index
    %c0_157 = arith.constant 0 : index
    %c0_158 = arith.constant 0 : index
    %133 = vector.load %arg2[%c22, %c0_157, %c0_158] : memref<25x128x64xbf16, #tpu.memory_space<vmem>>, vector<1x128x64xbf16>
    %134 = vector.shape_cast %133 : vector<1x128x64xbf16> to vector<128x64xbf16>
    %cst_159 = arith.constant dense<0.000000e+00> : vector<64x64xf32>
    %135 = tpu.matmul %132, %134, %cst_159 {dimension_numbers = #tpu.dot_dimension_numbers<[1], [0], [0], [1], [0, 0, 1, 1], [], []>} : vector<64x128xbf16>, vector<128x64xbf16>, vector<64x64xf32> -> vector<64x64xf32>
    %136 = arith.addf %130, %135 : vector<64x64xf32>
    %c0_160 = arith.constant 0 : index
    %c4_161 = arith.constant 4 : index
    %c3_162 = arith.constant 3 : index
    %c0_163 = arith.constant 0 : index
    %137 = vector.load %arg1[%c0_160, %c4_161, %c3_162, %c0_163] : memref<1x12x12x128xbf16, #tpu.memory_space<vmem>>, vector<1x8x8x128xbf16>
    %138 = vector.shape_cast %137 : vector<1x8x8x128xbf16> to vector<64x128xbf16>
    %c23 = arith.constant 23 : index
    %c0_164 = arith.constant 0 : index
    %c0_165 = arith.constant 0 : index
    %139 = vector.load %arg2[%c23, %c0_164, %c0_165] : memref<25x128x64xbf16, #tpu.memory_space<vmem>>, vector<1x128x64xbf16>
    %140 = vector.shape_cast %139 : vector<1x128x64xbf16> to vector<128x64xbf16>
    %cst_166 = arith.constant dense<0.000000e+00> : vector<64x64xf32>
    %141 = tpu.matmul %138, %140, %cst_166 {dimension_numbers = #tpu.dot_dimension_numbers<[1], [0], [0], [1], [0, 0, 1, 1], [], []>} : vector<64x128xbf16>, vector<128x64xbf16>, vector<64x64xf32> -> vector<64x64xf32>
    %142 = arith.addf %136, %141 : vector<64x64xf32>
    %c0_167 = arith.constant 0 : index
    %c4_168 = arith.constant 4 : index
    %c4_169 = arith.constant 4 : index
    %c0_170 = arith.constant 0 : index
    %143 = vector.load %arg1[%c0_167, %c4_168, %c4_169, %c0_170] : memref<1x12x12x128xbf16, #tpu.memory_space<vmem>>, vector<1x8x8x128xbf16>
    %144 = vector.shape_cast %143 : vector<1x8x8x128xbf16> to vector<64x128xbf16>
    %c24 = arith.constant 24 : index
    %c0_171 = arith.constant 0 : index
    %c0_172 = arith.constant 0 : index
    %145 = vector.load %arg2[%c24, %c0_171, %c0_172] : memref<25x128x64xbf16, #tpu.memory_space<vmem>>, vector<1x128x64xbf16>
    %146 = vector.shape_cast %145 : vector<1x128x64xbf16> to vector<128x64xbf16>
    %cst_173 = arith.constant dense<0.000000e+00> : vector<64x64xf32>
    %147 = tpu.matmul %144, %146, %cst_173 {dimension_numbers = #tpu.dot_dimension_numbers<[1], [0], [0], [1], [0, 0, 1, 1], [], []>} : vector<64x128xbf16>, vector<128x64xbf16>, vector<64x64xf32> -> vector<64x64xf32>
    %148 = arith.addf %142, %147 : vector<64x64xf32>
    %149 = vector.shape_cast %148 : vector<64x64xf32> to vector<1x4x2x4x2x64xf32>
    %cst_174 = arith.constant dense<0xFF800000> : vector<1x4x2x4x64xf32>
    %150 = vector.multi_reduction <maximumf>, %149, %cst_174 [4] : vector<1x4x2x4x2x64xf32> to vector<1x4x2x4x64xf32>
    %cst_175 = arith.constant dense<0xFF800000> : vector<1x4x4x64xf32>
    %151 = vector.multi_reduction <maximumf>, %150, %cst_175 [2] : vector<1x4x2x4x64xf32> to vector<1x4x4x64xf32>
    %c0_176 = arith.constant 0 : index
    %c0_177 = arith.constant 0 : index
    %152 = vector.load %arg3[%c0_176, %c0_177] : memref<1x64xf32, #tpu.memory_space<vmem>>, vector<1x64xf32>
    %153 = vector.shape_cast %152 : vector<1x64xf32> to vector<1x1x1x64xf32>
    %154 = vector.broadcast %153 : vector<1x1x1x64xf32> to vector<1x4x4x64xf32>
    %155 = arith.addf %151, %154 : vector<1x4x4x64xf32>
    %cst_178 = arith.constant 0.000000e+00 : f32
    %156 = vector.broadcast %cst_178 : f32 to vector<1x4x4x64xf32>
    %157 = arith.maximumf %155, %156 : vector<1x4x4x64xf32>
    %158 = vector.shape_cast %157 : vector<1x4x4x64xf32> to vector<1x4x256xf32>
    %159 = arith.truncf %158 : vector<1x4x256xf32> to vector<1x4x256xbf16>
    %c0_179 = arith.constant 0 : index
    %c0_180 = arith.constant 0 : index
    %c0_181 = arith.constant 0 : index
    %160 = vector.load %arg4[%c0_179, %c0_180, %c0_181] : memref<1x4x256xbf16, #tpu.memory_space<vmem>>, vector<1x4x256xbf16>
    tpu.vector_store %arg4[%c0_179, %c0_180, %c0_181], %159 {strides = array<i32>} : memref<1x4x256xbf16, #tpu.memory_space<vmem>>, vector<1x4x256xbf16>,
    return
  }
  func.func @transform_0(%arg0: i32) -> (i32, i32, i32, i32) {
    %c0_i32 = arith.constant 0 : i32
    %c0_i32_0 = arith.constant 0 : i32
    %c0_i32_1 = arith.constant 0 : i32
    %c0_i32_2 = arith.constant 0 : i32
    return %arg0, %c0_i32, %c0_i32_0, %c0_i32_1 : i32, i32, i32, i32
  }
  func.func @transform_1(%arg0: i32) -> (i32, i32, i32) {
    %c0_i32 = arith.constant 0 : i32
    %c0_i32_0 = arith.constant 0 : i32
    %c0_i32_1 = arith.constant 0 : i32
    %c0_i32_2 = arith.constant 0 : i32
    return %c0_i32, %c0_i32_0, %c0_i32_1 : i32, i32, i32
  }
  func.func @transform_2(%arg0: i32) -> (i32, i32) {
    %c0_i32 = arith.constant 0 : i32
    %c0_i32_0 = arith.constant 0 : i32
    %c0_i32_1 = arith.constant 0 : i32
    return %c0_i32, %c0_i32_0 : i32, i32
  }
  func.func @transform_3(%arg0: i32) -> (i32, i32, i32) {
    %c0_i32 = arith.constant 0 : i32
    %c0_i32_0 = arith.constant 0 : i32
    %c0_i32_1 = arith.constant 0 : i32
    return %arg0, %c0_i32, %c0_i32_0 : i32, i32, i32
  }
}

module attributes {stable_mosaic.version = 11 : i64} {
  func.func @_head_kernel(%arg0: i32, %arg1: memref<8x1024xbf16, #tpu.memory_space<vmem>>, %arg2: memref<1024x256xbf16, #tpu.memory_space<vmem>>, %arg3: memref<1x256xf32, #tpu.memory_space<vmem>>, %arg4: memref<1x256xf32, #tpu.memory_space<vmem>>, %arg5: memref<1x256xf32, #tpu.memory_space<vmem>>, %arg6: memref<256x128xbf16, #tpu.memory_space<vmem>>, %arg7: memref<1x128xf32, #tpu.memory_space<vmem>>, %arg8: memref<8x128xf32, #tpu.memory_space<vmem>>) attributes {dimension_semantics = [#tpu.dimension_semantics<parallel>], iteration_bounds = array<i64: 1>, scalar_prefetch = 0 : i64, scratch_operands = 0 : i64, tpu.core_type = #tpu.core_type<tc>, window_params = [{transform_indices = @transform_0, window_bounds = array<i64: 8, 1024>}, {pipeline_mode = #tpu.pipeline_mode<synchronous>, transform_indices = @transform_1, window_bounds = array<i64: 1024, 256>}, {pipeline_mode = #tpu.pipeline_mode<synchronous>, transform_indices = @transform_2, window_bounds = array<i64: 1, 256>}, {pipeline_mode = #tpu.pipeline_mode<synchronous>, transform_indices = @transform_3, window_bounds = array<i64: 1, 256>}, {pipeline_mode = #tpu.pipeline_mode<synchronous>, transform_indices = @transform_4, window_bounds = array<i64: 1, 256>}, {pipeline_mode = #tpu.pipeline_mode<synchronous>, transform_indices = @transform_5, window_bounds = array<i64: 256, 128>}, {pipeline_mode = #tpu.pipeline_mode<synchronous>, transform_indices = @transform_6, window_bounds = array<i64: 1, 128>}, {transform_indices = @transform_7, window_bounds = array<i64: 8, 128>}]} {
    %c0 = arith.constant 0 : index
    %c0_0 = arith.constant 0 : index
    %0 = vector.load %arg1[%c0, %c0_0] : memref<8x1024xbf16, #tpu.memory_space<vmem>>, vector<8x1024xbf16>
    %c0_1 = arith.constant 0 : index
    %c0_2 = arith.constant 0 : index
    %1 = vector.load %arg2[%c0_1, %c0_2] : memref<1024x256xbf16, #tpu.memory_space<vmem>>, vector<1024x256xbf16>
    %cst = arith.constant dense<0.000000e+00> : vector<8x256xf32>
    %2 = tpu.matmul %0, %1, %cst {dimension_numbers = #tpu.dot_dimension_numbers<[1], [0], [0], [1], [0, 0, 1, 1], [], []>} : vector<8x1024xbf16>, vector<1024x256xbf16>, vector<8x256xf32> -> vector<8x256xf32>
    %c0_3 = arith.constant 0 : index
    %c0_4 = arith.constant 0 : index
    %3 = vector.load %arg3[%c0_3, %c0_4] : memref<1x256xf32, #tpu.memory_space<vmem>>, vector<1x256xf32>
    %4 = vector.broadcast %3 : vector<1x256xf32> to vector<8x256xf32>
    %5 = arith.addf %2, %4 : vector<8x256xf32>
    %c0_5 = arith.constant 0 : index
    %c0_6 = arith.constant 0 : index
    %6 = vector.load %arg4[%c0_5, %c0_6] : memref<1x256xf32, #tpu.memory_space<vmem>>, vector<1x256xf32>
    %7 = vector.broadcast %6 : vector<1x256xf32> to vector<8x256xf32>
    %8 = arith.mulf %5, %7 : vector<8x256xf32>
    %c0_7 = arith.constant 0 : index
    %c0_8 = arith.constant 0 : index
    %9 = vector.load %arg5[%c0_7, %c0_8] : memref<1x256xf32, #tpu.memory_space<vmem>>, vector<1x256xf32>
    %10 = vector.broadcast %9 : vector<1x256xf32> to vector<8x256xf32>
    %11 = arith.addf %8, %10 : vector<8x256xf32>
    %12 = arith.truncf %11 : vector<8x256xf32> to vector<8x256xbf16>
    %c0_9 = arith.constant 0 : index
    %c0_10 = arith.constant 0 : index
    %13 = vector.load %arg6[%c0_9, %c0_10] : memref<256x128xbf16, #tpu.memory_space<vmem>>, vector<256x128xbf16>
    %cst_11 = arith.constant dense<0.000000e+00> : vector<8x128xf32>
    %14 = tpu.matmul %12, %13, %cst_11 {dimension_numbers = #tpu.dot_dimension_numbers<[1], [0], [0], [1], [0, 0, 1, 1], [], []>} : vector<8x256xbf16>, vector<256x128xbf16>, vector<8x128xf32> -> vector<8x128xf32>
    %c0_12 = arith.constant 0 : index
    %c0_13 = arith.constant 0 : index
    %15 = vector.load %arg7[%c0_12, %c0_13] : memref<1x128xf32, #tpu.memory_space<vmem>>, vector<1x128xf32>
    %16 = vector.broadcast %15 : vector<1x128xf32> to vector<8x128xf32>
    %17 = arith.addf %14, %16 : vector<8x128xf32>
    %c0_14 = arith.constant 0 : index
    %c0_15 = arith.constant 0 : index
    %18 = vector.load %arg8[%c0_14, %c0_15] : memref<8x128xf32, #tpu.memory_space<vmem>>, vector<8x128xf32>
    tpu.vector_store %arg8[%c0_14, %c0_15], %17 {strides = array<i32>} : memref<8x128xf32, #tpu.memory_space<vmem>>, vector<8x128xf32>,
    return
  }
  func.func @transform_0(%arg0: i32) -> (i32, i32) {
    %c0_i32 = arith.constant 0 : i32
    %c0_i32_0 = arith.constant 0 : i32
    return %arg0, %c0_i32 : i32, i32
  }
  func.func @transform_1(%arg0: i32) -> (i32, i32) {
    %c0_i32 = arith.constant 0 : i32
    %c0_i32_0 = arith.constant 0 : i32
    %c0_i32_1 = arith.constant 0 : i32
    return %c0_i32, %c0_i32_0 : i32, i32
  }
  func.func @transform_2(%arg0: i32) -> (i32, i32) {
    %c0_i32 = arith.constant 0 : i32
    %c0_i32_0 = arith.constant 0 : i32
    %c0_i32_1 = arith.constant 0 : i32
    return %c0_i32, %c0_i32_0 : i32, i32
  }
  func.func @transform_3(%arg0: i32) -> (i32, i32) {
    %c0_i32 = arith.constant 0 : i32
    %c0_i32_0 = arith.constant 0 : i32
    %c0_i32_1 = arith.constant 0 : i32
    return %c0_i32, %c0_i32_0 : i32, i32
  }
  func.func @transform_4(%arg0: i32) -> (i32, i32) {
    %c0_i32 = arith.constant 0 : i32
    %c0_i32_0 = arith.constant 0 : i32
    %c0_i32_1 = arith.constant 0 : i32
    return %c0_i32, %c0_i32_0 : i32, i32
  }
  func.func @transform_5(%arg0: i32) -> (i32, i32) {
    %c0_i32 = arith.constant 0 : i32
    %c0_i32_0 = arith.constant 0 : i32
    %c0_i32_1 = arith.constant 0 : i32
    return %c0_i32, %c0_i32_0 : i32, i32
  }
  func.func @transform_6(%arg0: i32) -> (i32, i32) {
    %c0_i32 = arith.constant 0 : i32
    %c0_i32_0 = arith.constant 0 : i32
    %c0_i32_1 = arith.constant 0 : i32
    return %c0_i32, %c0_i32_0 : i32, i32
  }
  func.func @transform_7(%arg0: i32) -> (i32, i32) {
    %c0_i32 = arith.constant 0 : i32
    %c0_i32_0 = arith.constant 0 : i32
    return %arg0, %c0_i32 : i32, i32
  }
}

</mosaic_0001>

<llo_original>
// kernel: lenet_forward.3
$region0: #{lenet_forward.3}
  #allocation0 [shape = 'u32[]', space=smem, size = 0x4, offset = 0x4, fixed_abs, tag = 'smem constant byte address 0x4 - core index']
  #allocation1 [shape = 'u32[144,128]{1,0:T(1,128)}', space=vmem, size = 0x12000, scoped, tag = 'internal scratch']
  %s0 = inlined_call_operand.vmem [shape: bf16[4,288,128], index: 0, kind: input, shape index: {}]
  %s1 = inlined_call_operand.vmem [shape: bf16[128,128], index: 1, kind: input, shape index: {}]
  %s2 = inlined_call_operand.vmem [shape: f32[1,128], index: 2, kind: input, shape index: {}]
  %s3 = inlined_call_operand.vmem [shape: bf16[288,128], index: 3, kind: output, shape index: {}]
  %s4 = sld [smem:[#allocation0]]
  $region86: #{lenet_forward.3} parent=0
    _
  %s6 = ssub.s32 1, %s4
  %s7 = scalar_select 0, %s6, %s4
  $region1: #{lenet_forward.3} parent=0
    #allocation2 [shape = 'u8[294912]{0}', space=vmem, size = 0x48000, scoped, tag = 'input window, operand 0']
    loop: start=0, step=1, limit=4
    $region2: #{lenet_forward.3} parent=1 // loop_pre_header
      _
    $region3: #{lenet_forward.3} parent=1 // loop_header
      %s9 = sphi 0, %s13
      %p10 = scmp.ge.s32.totalorder %s9, 4
      %s19 = sphi 0, %s21
      %s22 = sphi 0, %s19
      %s23 = sphi 0, %s22
      %s39 = sphi 0, %s23
      %s43 = sphi 0, %s43
      %s45 = sphi 0, %s43
      %s46 = sphi 0, %s45
      %s60 = sphi 0, %s46
      %s64 = sphi 0, %s64
      %s66 = sphi 0, %s64
      %s67 = sphi 0, %s66
      %s81 = sphi 0, %s67
      %s87 = sphi 0, %s89
      %s90 = sphi 0, %s87
      %s91 = sphi 0, %s90
      %s107 = sphi 0, %s91
    $region4: #{lenet_forward.3} parent=1 // loop_header_branch
      %12 = sbr.rel (%p10) target = $region8
    $region5: #{lenet_forward.3} parent=1 // loop_body
      %s14 = ssub.s32 %s9, 1
      %s15 = ssub.s32 %s9, 2
      %s16 = sadd.s32 %s9, 1
      %s17 = ssub.s32 %s9, %s16
      %p18 = scmp.eq.s32.totalorder %s17, 0
      %s20 = sadd.s32 %s19, 1
      %s21 = scalar_select %p18, %s19, %s20
      %p24 = pneg %p18
      %p25 = scmp.eq.s32.totalorder %s9, 1
      %p26 = por %p24, %p25
      %p27 = scmp.ne.s32.totalorder %s19, %s22
      %p28 = scmp.eq.s32.totalorder %s9, 0
      %p29 = por %p27, %p28
      %p30 = scmp.ne.s32.totalorder %s19, %s22
      %p31 = scmp.eq.s32.totalorder %s14, 1
      %p32 = por %p30, %p31
      %p33 = scmp.ne.s32.totalorder %s22, %s23
      %p34 = scmp.eq.s32.totalorder %s14, 0
      %p35 = por %p33, %p34
      %p36 = scmp.ne.s32.totalorder %s22, %s23
      %p37 = scmp.eq.s32.totalorder %s15, 1
      %p38 = por %p36, %p37
      %p40 = scmp.ne.s32.totalorder %s23, %s39
      %p41 = scmp.eq.s32.totalorder %s15, 0
      %p42 = por %p40, %p41
      %s44 = sadd.s32 %s43, 1
      %p47 = scmp.eq.s32.totalorder %s9, 1
      %p48 = scmp.ne.s32.totalorder %s43, %s45
      %p49 = scmp.eq.s32.totalorder %s9, 0
      %p50 = por %p48, %p49
      %p51 = scmp.ne.s32.totalorder %s43, %s45
      %p52 = scmp.eq.s32.totalorder %s14, 1
      %p53 = por %p51, %p52
      %p54 = scmp.ne.s32.totalorder %s45, %s46
      %p55 = scmp.eq.s32.totalorder %s14, 0
      %p56 = por %p54, %p55
      %p57 = scmp.ne.s32.totalorder %s45, %s46
      %p58 = scmp.eq.s32.totalorder %s15, 1
      %p59 = por %p57, %p58
      %p61 = scmp.ne.s32.totalorder %s46, %s60
      %p62 = scmp.eq.s32.totalorder %s15, 0
      %p63 = por %p61, %p62
      %s65 = sadd.s32 %s64, 1
      %p68 = scmp.eq.s32.totalorder %s9, 1
      %p69 = scmp.ne.s32.totalorder %s64, %s66
      %p70 = scmp.eq.s32.totalorder %s9, 0
      %p71 = por %p69, %p70
      %p72 = scmp.ne.s32.totalorder %s64, %s66
      %p73 = scmp.eq.s32.totalorder %s14, 1
      %p74 = por %p72, %p73
      %p75 = scmp.ne.s32.totalorder %s66, %s67
      %p76 = scmp.eq.s32.totalorder %s14, 0
      %p77 = por %p75, %p76
      %p78 = scmp.ne.s32.totalorder %s66, %s67
      %p79 = scmp.eq.s32.totalorder %s15, 1
      %p80 = por %p78, %p79
      %p82 = scmp.ne.s32.totalorder %s67, %s81
      %p83 = scmp.eq.s32.totalorder %s15, 0
      %p84 = por %p82, %p83
      %s85 = ssub.s32 %s9, %s16
      %p86 = scmp.eq.s32.totalorder %s85, 0
      %s88 = sadd.s32 %s87, 1
      %s89 = scalar_select %p86, %s87, %s88
      %p92 = pneg %p86
      %p93 = scmp.eq.s32.totalorder %s9, 1
      %p94 = por %p92, %p93
      %p95 = scmp.ne.s32.totalorder %s87, %s90
      %p96 = scmp.eq.s32.totalorder %s9, 0
      %p97 = por %p95, %p96
      %p98 = scmp.ne.s32.totalorder %s87, %s90
      %p99 = scmp.eq.s32.totalorder %s14, 1
      %p100 = por %p98, %p99
      %p101 = scmp.ne.s32.totalorder %s90, %s91
      %p102 = scmp.eq.s32.totalorder %s14, 0
      %p103 = por %p101, %p102
      %p104 = scmp.ne.s32.totalorder %s90, %s91
      %p105 = scmp.eq.s32.totalorder %s15, 1
      %p106 = por %p104, %p105
      %p108 = scmp.ne.s32.totalorder %s91, %s107
      %p109 = scmp.eq.s32.totalorder %s15, 0
      %p110 = por %p108, %p109
      %p111 = scmp.le.s32.totalorder 1, %s9
      %p112 = scmp.lt.s32.totalorder %s9, 3
      %p113 = pnand %p111, %p112
      %p114 = pneg %p113
      // Predicated region
      $region9: #{lenet_forward.3} parent=5 // pred_check
        _
      $region10: #{lenet_forward.3} parent=5 // pred_check_branch
        %116 = sbr.rel (%p113) target = $region12
      $region11: #{lenet_forward.3} parent=5 // pred_region
        %s117 = ssub.s32 %s9, 1
        // Predicated region
        $region13: #{lenet_forward.3} parent=11 // pred_check
          %p118 = pneg %p56
        $region14: #{lenet_forward.3} parent=11 // pred_check_branch
          %120 = sbr.rel (%p118) target = $region16
        $region15: #{lenet_forward.3} parent=11 // pred_region
          _
        $region16: #{lenet_forward.3} parent=11 // pred_fallthru
          _
        // Predicated region
        $region17: #{lenet_forward.3} parent=11 // pred_check
          %p121 = pneg %p77
        $region18: #{lenet_forward.3} parent=11 // pred_check_branch
          %123 = sbr.rel (%p121) target = $region20
        $region19: #{lenet_forward.3} parent=11 // pred_region
          _
        $region20: #{lenet_forward.3} parent=11 // pred_fallthru
          _
      $region12: #{lenet_forward.3} parent=5 // pred_fallthru
        _
      %p124 = scmp.lt.s32.totalorder %s9, 2
      // Predicated region
      $region21: #{lenet_forward.3} parent=5 // pred_check
        %p125 = pneg %p124
      $region22: #{lenet_forward.3} parent=5 // pred_check_branch
        %127 = sbr.rel (%p125) target = $region24
      $region23: #{lenet_forward.3} parent=5 // pred_region
        // Predicated region
        $region25: #{lenet_forward.3} parent=23 // pred_check
          %p128 = pneg %p29
        $region26: #{lenet_forward.3} parent=23 // pred_check_branch
          %130 = sbr.rel (%p128) target = $region28
        $region27: #{lenet_forward.3} parent=23 // pred_region
          %s131 = sand.u32 %s19, 1
          %s132 = sand.u32 %s19, 1
          %s133 = smul.addr %s132, 288
          %s134 = scalar_lea.vmem [#allocation2], %s133
          %s135 = smul.u32 18, %s9
          %s136 = smul.addr %s135, 4
          %s137 = scalar_lea.vmem %s0, %s136
          // Predicated region
          $region29: #{lenet_forward.3} parent=27 // pred_check
            _
          $region30: #{lenet_forward.3} parent=27 // pred_check_branch
            %139 = sbr.rel (0) target = $region32
          $region31: #{lenet_forward.3} parent=27 // pred_region
            // Predicated region
            $region33: #{lenet_forward.3} parent=31 // pred_check
              _
            $region34: #{lenet_forward.3} parent=31 // pred_check_branch
              %141 = sbr.rel target = $region36
            $region35: #{lenet_forward.3} parent=31 // pred_region
              // Predicated region
              $region48: #{lenet_forward.3} parent=35 // pred_check
                _
              $region49: #{lenet_forward.3} parent=35 // pred_check_branch
                %298 = sbr.rel (0) target = $region51
              $region50: #{lenet_forward.3} parent=35 // pred_region
                loop: start=0, step=1, limit=1
                $region52: #{lenet_forward.3} parent=50 // loop_pre_header
                  _
                $region53: #{lenet_forward.3} parent=50 // loop_header
                  %s300 = sphi 0, %s304
                  %p301 = scmp.ge.s32.totalorder %s300, 1
                  %s305 = sphi %s137, %s137
                  %s306 = sphi %s134, %s134
                $region54: #{lenet_forward.3} parent=50 // loop_header_branch
                  %303 = sbr.rel (%p301) target = $region58
                $region55: #{lenet_forward.3} parent=50 // loop_body
                  _
                $region56: #{lenet_forward.3} parent=50 // loop_footer
                  %s304 = sadd.s32 1, %s300
                $region57: #{lenet_forward.3} parent=50 // loop_footer_branch
                  %299 = sbr.rel target = $region53
                $region58: #{lenet_forward.3} parent=50 // loop_exit
                  _
                loop: start=0, step=1, limit=1
                $region59: #{lenet_forward.3} parent=50 // loop_pre_header
                  _
                $region60: #{lenet_forward.3} parent=50 // loop_header
                  %s309 = sphi 0, %s313
                  %p310 = scmp.ge.s32.totalorder %s309, 1
                  %s314 = sphi %s137, %s137
                  %s315 = sphi %s134, %s134
                $region61: #{lenet_forward.3} parent=50 // loop_header_branch
                  %312 = sbr.rel (%p310) target = $region65
                $region62: #{lenet_forward.3} parent=50 // loop_body
                  %v316 = vld [vmem:[%s314] sm:$0xf]
                  %317 = vst [vmem:[%s315] sm:$0xf] %v316
                  %v318 = vld [vmem:[%s314 + $0x4] sm:$0xf]
                  %319 = vst [vmem:[%s315 + $0x4] sm:$0xf] %v318
                  %v320 = vld [vmem:[%s314 + $0x8] sm:$0xf]
                  %321 = vst [vmem:[%s315 + $0x8] sm:$0xf] %v320
                  %v322 = vld [vmem:[%s314 + $0xc] sm:$0xf]
                  %323 = vst [vmem:[%s315 + $0xc] sm:$0xf] %v322
                  %v324 = vld [vmem:[%s314 + $0x10] sm:$0xf]
                  %325 = vst [vmem:[%s315 + $0x10] sm:$0xf] %v324
                  %v326 = vld [vmem:[%s314 + $0x14] sm:$0xf]
                  %327 = vst [vmem:[%s315 + $0x14] sm:$0xf] %v326
                  %v328 = vld [vmem:[%s314 + $0x18] sm:$0xf]
                  %329 = vst [vmem:[%s315 + $0x18] sm:$0xf] %v328
                  %v330 = vld [vmem:[%s314 + $0x1c] sm:$0xf]
                  %331 = vst [vmem:[%s315 + $0x1c] sm:$0xf] %v330
                  %v332 = vld [vmem:[%s314 + $0x20] sm:$0xf]
                  %333 = vst [vmem:[%s315 + $0x20] sm:$0xf] %v332
                  %v334 = vld [vmem:[%s314 + $0x24] sm:$0xf]
                  %335 = vst [vmem:[%s315 + $0x24] sm:$0xf] %v334
                  %v336 = vld [vmem:[%s314 + $0x28] sm:$0xf]
                  %337 = vst [vmem:[%s315 + $0x28] sm:$0xf] %v336
                  %v338 = vld [vmem:[%s314 + $0x2c] sm:$0xf]
                  %339 = vst [vmem:[%s315 + $0x2c] sm:$0xf] %v338
                  %v340 = vld [vmem:[%s314 + $0x30] sm:$0xf]
                  %341 = vst [vmem:[%s315 + $0x30] sm:$0xf] %v340
                  %v342 = vld [vmem:[%s314 + $0x34] sm:$0xf]
                  %343 = vst [vmem:[%s315 + $0x34] sm:$0xf] %v342
                  %v344 = vld [vmem:[%s314 + $0x38] sm:$0xf]
                  %345 = vst [vmem:[%s315 + $0x38] sm:$0xf] %v344
                  %v346 = vld [vmem:[%s314 + $0x3c] sm:$0xf]
                  %347 = vst [vmem:[%s315 + $0x3c] sm:$0xf] %v346
                  %v348 = vld [vmem:[%s314 + $0x40] sm:$0xf]
                  %349 = vst [vmem:[%s315 + $0x40] sm:$0xf] %v348
                  %v350 = vld [vmem:[%s314 + $0x44] sm:$0xf]
                  %351 = vst [vmem:[%s315 + $0x44] sm:$0xf] %v350
                  %v352 = vld [vmem:[%s314 + $0x90] sm:$0xf]
                  %353 = vst [vmem:[%s315 + $0x48] sm:$0xf] %v352
                  %v354 = vld [vmem:[%s314 + $0x94] sm:$0xf]
                  %355 = vst [vmem:[%s315 + $0x4c] sm:$0xf] %v354
                  %v356 = vld [vmem:[%s314 + $0x98] sm:$0xf]
                  %357 = vst [vmem:[%s315 + $0x50] sm:$0xf] %v356
                  %v358 = vld [vmem:[%s314 + $0x9c] sm:$0xf]
                  %359 = vst [vmem:[%s315 + $0x54] sm:$0xf] %v358
                  %v360 = vld [vmem:[%s314 + $0xa0] sm:$0xf]
                  %361 = vst [vmem:[%s315 + $0x58] sm:$0xf] %v360
                  %v362 = vld [vmem:[%s314 + $0xa4] sm:$0xf]
                  %363 = vst [vmem:[%s315 + $0x5c] sm:$0xf] %v362
                  %v364 = vld [vmem:[%s314 + $0xa8] sm:$0xf]
                  %365 = vst [vmem:[%s315 + $0x60] sm:$0xf] %v364
                  %v366 = vld [vmem:[%s314 + $0xac] sm:$0xf]
                  %367 = vst [vmem:[%s315 + $0x64] sm:$0xf] %v366
                  %v368 = vld [vmem:[%s314 + $0xb0] sm:$0xf]
                  %369 = vst [vmem:[%s315 + $0x68] sm:$0xf] %v368
                  %v370 = vld [vmem:[%s314 + $0xb4] sm:$0xf]
                  %371 = vst [vmem:[%s315 + $0x6c] sm:$0xf] %v370
                  %v372 = vld [vmem:[%s314 + $0xb8] sm:$0xf]
                  %373 = vst [vmem:[%s315 + $0x70] sm:$0xf] %v372
                  %v374 = vld [vmem:[%s314 + $0xbc] sm:$0xf]
                  %375 = vst [vmem:[%s315 + $0x74] sm:$0xf] %v374
                  %v376 = vld [vmem:[%s314 + $0xc0] sm:$0xf]
                  %377 = vst [vmem:[%s315 + $0x78] sm:$0xf] %v376
                  %v378 = vld [vmem:[%s314 + $0xc4] sm:$0xf]
                  %379 = vst [vmem:[%s315 + $0x7c] sm:$0xf] %v378
                  %v380 = vld [vmem:[%s314 + $0xc8] sm:$0xf]
                  %381 = vst [vmem:[%s315 + $0x80] sm:$0xf] %v380
                  %v382 = vld [vmem:[%s314 + $0xcc] sm:$0xf]
                  %383 = vst [vmem:[%s315 + $0x84] sm:$0xf] %v382
                  %v384 = vld [vmem:[%s314 + $0xd0] sm:$0xf]
                  %385 = vst [vmem:[%s315 + $0x88] sm:$0xf] %v384
                  %v386 = vld [vmem:[%s314 + $0xd4] sm:$0xf]
                  %387 = vst [vmem:[%s315 + $0x8c] sm:$0xf] %v386
                  %v388 = vld [vmem:[%s314 + $0x120] sm:$0xf]
                  %389 = vst [vmem:[%s315 + $0x90] sm:$0xf] %v388
                  %v390 = vld [vmem:[%s314 + $0x124] sm:$0xf]
                  %391 = vst [vmem:[%s315 + $0x94] sm:$0xf] %v390
                  %v392 = vld [vmem:[%s314 + $0x128] sm:$0xf]
                  %393 = vst [vmem:[%s315 + $0x98] sm:$0xf] %v392
                  %v394 = vld [vmem:[%s314 + $0x12c] sm:$0xf]
                  %395 = vst [vmem:[%s315 + $0x9c] sm:$0xf] %v394
                  %v396 = vld [vmem:[%s314 + $0x130] sm:$0xf]
                  %397 = vst [vmem:[%s315 + $0xa0] sm:$0xf] %v396
                  %v398 = vld [vmem:[%s314 + $0x134] sm:$0xf]
                  %399 = vst [vmem:[%s315 + $0xa4] sm:$0xf] %v398
                  %v400 = vld [vmem:[%s314 + $0x138] sm:$0xf]
                  %401 = vst [vmem:[%s315 + $0xa8] sm:$0xf] %v400
                  %v402 = vld [vmem:[%s314 + $0x13c] sm:$0xf]
                  %403 = vst [vmem:[%s315 + $0xac] sm:$0xf] %v402
                  %v404 = vld [vmem:[%s314 + $0x140] sm:$0xf]
                  %405 = vst [vmem:[%s315 + $0xb0] sm:$0xf] %v404
                  %v406 = vld [vmem:[%s314 + $0x144] sm:$0xf]
                  %407 = vst [vmem:[%s315 + $0xb4] sm:$0xf] %v406
                  %v408 = vld [vmem:[%s314 + $0x148] sm:$0xf]
                  %409 = vst [vmem:[%s315 + $0xb8] sm:$0xf] %v408
                  %v410 = vld [vmem:[%s314 + $0x14c] sm:$0xf]
                  %411 = vst [vmem:[%s315 + $0xbc] sm:$0xf] %v410
                  %v412 = vld [vmem:[%s314 + $0x150] sm:$0xf]
                  %413 = vst [vmem:[%s315 + $0xc0] sm:$0xf] %v412
                  %v414 = vld [vmem:[%s314 + $0x154] sm:$0xf]
                  %415 = vst [vmem:[%s315 + $0xc4] sm:$0xf] %v414
                  %v416 = vld [vmem:[%s314 + $0x158] sm:$0xf]
                  %417 = vst [vmem:[%s315 + $0xc8] sm:$0xf] %v416
                  %v418 = vld [vmem:[%s314 + $0x15c] sm:$0xf]
                  %419 = vst [vmem:[%s315 + $0xcc] sm:$0xf] %v418
                  %v420 = vld [vmem:[%s314 + $0x160] sm:$0xf]
                  %421 = vst [vmem:[%s315 + $0xd0] sm:$0xf] %v420
                  %v422 = vld [vmem:[%s314 + $0x164] sm:$0xf]
                  %423 = vst [vmem:[%s315 + $0xd4] sm:$0xf] %v422
                  %v424 = vld [vmem:[%s314 + $0x1b0] sm:$0xf]
                  %425 = vst [vmem:[%s315 + $0xd8] sm:$0xf] %v424
                  %v426 = vld [vmem:[%s314 + $0x1b4] sm:$0xf]
                  %427 = vst [vmem:[%s315 + $0xdc] sm:$0xf] %v426
                  %v428 = vld [vmem:[%s314 + $0x1b8] sm:$0xf]
                  %429 = vst [vmem:[%s315 + $0xe0] sm:$0xf] %v428
                  %v430 = vld [vmem:[%s314 + $0x1bc] sm:$0xf]
                  %431 = vst [vmem:[%s315 + $0xe4] sm:$0xf] %v430
                  %v432 = vld [vmem:[%s314 + $0x1c0] sm:$0xf]
                  %433 = vst [vmem:[%s315 + $0xe8] sm:$0xf] %v432
                  %v434 = vld [vmem:[%s314 + $0x1c4] sm:$0xf]
                  %435 = vst [vmem:[%s315 + $0xec] sm:$0xf] %v434
                  %v436 = vld [vmem:[%s314 + $0x1c8] sm:$0xf]
                  %437 = vst [vmem:[%s315 + $0xf0] sm:$0xf] %v436
                  %v438 = vld [vmem:[%s314 + $0x1cc] sm:$0xf]
                  %439 = vst [vmem:[%s315 + $0xf4] sm:$0xf] %v438
                  %v440 = vld [vmem:[%s314 + $0x1d0] sm:$0xf]
                  %441 = vst [vmem:[%s315 + $0xf8] sm:$0xf] %v440
                  %v442 = vld [vmem:[%s314 + $0x1d4] sm:$0xf]
                  %443 = vst [vmem:[%s315 + $0xfc] sm:$0xf] %v442
                  %v444 = vld [vmem:[%s314 + $0x1d8] sm:$0xf]
                  %445 = vst [vmem:[%s315 + $0x100] sm:$0xf] %v444
                  %v446 = vld [vmem:[%s314 + $0x1dc] sm:$0xf]
                  %447 = vst [vmem:[%s315 + $0x104] sm:$0xf] %v446
                  %v448 = vld [vmem:[%s314 + $0x1e0] sm:$0xf]
                  %449 = vst [vmem:[%s315 + $0x108] sm:$0xf] %v448
                  %v450 = vld [vmem:[%s314 + $0x1e4] sm:$0xf]
                  %451 = vst [vmem:[%s315 + $0x10c] sm:$0xf] %v450
                  %v452 = vld [vmem:[%s314 + $0x1e8] sm:$0xf]
                  %453 = vst [vmem:[%s315 + $0x110] sm:$0xf] %v452
                  %v454 = vld [vmem:[%s314 + $0x1ec] sm:$0xf]
                  %455 = vst [vmem:[%s315 + $0x114] sm:$0xf] %v454
                  %v456 = vld [vmem:[%s314 + $0x1f0] sm:$0xf]
                  %457 = vst [vmem:[%s315 + $0x118] sm:$0xf] %v456
                  %v458 = vld [vmem:[%s314 + $0x1f4] sm:$0xf]
                  %459 = vst [vmem:[%s315 + $0x11c] sm:$0xf] %v458
                $region63: #{lenet_forward.3} parent=50 // loop_footer
                  %s313 = sadd.s32 1, %s309
                $region64: #{lenet_forward.3} parent=50 // loop_footer_branch
                  %308 = sbr.rel target = $region60
                $region65: #{lenet_forward.3} parent=50 // loop_exit
                  _
              $region51: #{lenet_forward.3} parent=35 // pred_fallthru
                _
            $region36: #{lenet_forward.3} parent=31 // pred_fallthru
              _
            // Predicated region
            $region37: #{lenet_forward.3} parent=31 // pred_check
              _
            $region38: #{lenet_forward.3} parent=31 // pred_check_branch
              %143 = sbr.rel (0) target = $region40
            $region39: #{lenet_forward.3} parent=31 // pred_region
              loop: start=0, step=1, limit=1
              $region41: #{lenet_forward.3} parent=39 // loop_pre_header
                _
              $region42: #{lenet_forward.3} parent=39 // loop_header
                %s146 = sphi 0, %s150
                %p147 = scmp.ge.s32.totalorder %s146, 1
                %s151 = sphi %s137, %s137
                %s152 = sphi %s134, %s134
              $region43: #{lenet_forward.3} parent=39 // loop_header_branch
                %149 = sbr.rel (%p147) target = $region47
              $region44: #{lenet_forward.3} parent=39 // loop_body
                %v153 = vld [vmem:[%s151] sm:$0xf]
                %154 = vst [vmem:[%s152] sm:$0xf] %v153
                %v155 = vld [vmem:[%s151 + $0x4] sm:$0xf]
                %156 = vst [vmem:[%s152 + $0x4] sm:$0xf] %v155
                %v157 = vld [vmem:[%s151 + $0x8] sm:$0xf]
                %158 = vst [vmem:[%s152 + $0x8] sm:$0xf] %v157
                %v159 = vld [vmem:[%s151 + $0xc] sm:$0xf]
                %160 = vst [vmem:[%s152 + $0xc] sm:$0xf] %v159
                %v161 = vld [vmem:[%s151 + $0x10] sm:$0xf]
                %162 = vst [vmem:[%s152 + $0x10] sm:$0xf] %v161
                %v163 = vld [vmem:[%s151 + $0x14] sm:$0xf]
                %164 = vst [vmem:[%s152 + $0x14] sm:$0xf] %v163
                %v165 = vld [vmem:[%s151 + $0x18] sm:$0xf]
                %166 = vst [vmem:[%s152 + $0x18] sm:$0xf] %v165
                %v167 = vld [vmem:[%s151 + $0x1c] sm:$0xf]
                %168 = vst [vmem:[%s152 + $0x1c] sm:$0xf] %v167
                %v169 = vld [vmem:[%s151 + $0x20] sm:$0xf]
                %170 = vst [vmem:[%s152 + $0x20] sm:$0xf] %v169
                %v171 = vld [vmem:[%s151 + $0x24] sm:$0xf]
                %172 = vst [vmem:[%s152 + $0x24] sm:$0xf] %v171
                %v173 = vld [vmem:[%s151 + $0x28] sm:$0xf]
                %174 = vst [vmem:[%s152 + $0x28] sm:$0xf] %v173
                %v175 = vld [vmem:[%s151 + $0x2c] sm:$0xf]
                %176 = vst [vmem:[%s152 + $0x2c] sm:$0xf] %v175
                %v177 = vld [vmem:[%s151 + $0x30] sm:$0xf]
                %178 = vst [vmem:[%s152 + $0x30] sm:$0xf] %v177
                %v179 = vld [vmem:[%s151 + $0x34] sm:$0xf]
                %180 = vst [vmem:[%s152 + $0x34] sm:$0xf] %v179
                %v181 = vld [vmem:[%s151 + $0x38] sm:$0xf]
                %182 = vst [vmem:[%s152 + $0x38] sm:$0xf] %v181
                %v183 = vld [vmem:[%s151 + $0x3c] sm:$0xf]
                %184 = vst [vmem:[%s152 + $0x3c] sm:$0xf] %v183
                %v185 = vld [vmem:[%s151 + $0x40] sm:$0xf]
                %186 = vst [vmem:[%s152 + $0x40] sm:$0xf] %v185
                %v187 = vld [vmem:[%s151 + $0x44] sm:$0xf]
                %188 = vst [vmem:[%s152 + $0x44] sm:$0xf] %v187
                %v189 = vld [vmem:[%s151 + $0x90] sm:$0xf]
                %190 = vst [vmem:[%s152 + $0x48] sm:$0xf] %v189
                %v191 = vld [vmem:[%s151 + $0x94] sm:$0xf]
                %192 = vst [vmem:[%s152 + $0x4c] sm:$0xf] %v191
                %v193 = vld [vmem:[%s151 + $0x98] sm:$0xf]
                %194 = vst [vmem:[%s152 + $0x50] sm:$0xf] %v193
                %v195 = vld [vmem:[%s151 + $0x9c] sm:$0xf]
                %196 = vst [vmem:[%s152 + $0x54] sm:$0xf] %v195
                %v197 = vld [vmem:[%s151 + $0xa0] sm:$0xf]
                %198 = vst [vmem:[%s152 + $0x58] sm:$0xf] %v197
                %v199 = vld [vmem:[%s151 + $0xa4] sm:$0xf]
                %200 = vst [vmem:[%s152 + $0x5c] sm:$0xf] %v199
                %v201 = vld [vmem:[%s151 + $0xa8] sm:$0xf]
                %202 = vst [vmem:[%s152 + $0x60] sm:$0xf] %v201
                %v203 = vld [vmem:[%s151 + $0xac] sm:$0xf]
                %204 = vst [vmem:[%s152 + $0x64] sm:$0xf] %v203
                %v205 = vld [vmem:[%s151 + $0xb0] sm:$0xf]
                %206 = vst [vmem:[%s152 + $0x68] sm:$0xf] %v205
                %v207 = vld [vmem:[%s151 + $0xb4] sm:$0xf]
                %208 = vst [vmem:[%s152 + $0x6c] sm:$0xf] %v207
                %v209 = vld [vmem:[%s151 + $0xb8] sm:$0xf]
                %210 = vst [vmem:[%s152 + $0x70] sm:$0xf] %v209
                %v211 = vld [vmem:[%s151 + $0xbc] sm:$0xf]
                %212 = vst [vmem:[%s152 + $0x74] sm:$0xf] %v211
                %v213 = vld [vmem:[%s151 + $0xc0] sm:$0xf]
                %214 = vst [vmem:[%s152 + $0x78] sm:$0xf] %v213
                %v215 = vld [vmem:[%s151 + $0xc4] sm:$0xf]
                %216 = vst [vmem:[%s152 + $0x7c] sm:$0xf] %v215
                %v217 = vld [vmem:[%s151 + $0xc8] sm:$0xf]
                %218 = vst [vmem:[%s152 + $0x80] sm:$0xf] %v217
                %v219 = vld [vmem:[%s151 + $0xcc] sm:$0xf]
                %220 = vst [vmem:[%s152 + $0x84] sm:$0xf] %v219
                %v221 = vld [vmem:[%s151 + $0xd0] sm:$0xf]
                %222 = vst [vmem:[%s152 + $0x88] sm:$0xf] %v221
                %v223 = vld [vmem:[%s151 + $0xd4] sm:$0xf]
                %224 = vst [vmem:[%s152 + $0x8c] sm:$0xf] %v223
                %v225 = vld [vmem:[%s151 + $0x120] sm:$0xf]
                %226 = vst [vmem:[%s152 + $0x90] sm:$0xf] %v225
                %v227 = vld [vmem:[%s151 + $0x124] sm:$0xf]
                %228 = vst [vmem:[%s152 + $0x94] sm:$0xf] %v227
                %v229 = vld [vmem:[%s151 + $0x128] sm:$0xf]
                %230 = vst [vmem:[%s152 + $0x98] sm:$0xf] %v229
                %v231 = vld [vmem:[%s151 + $0x12c] sm:$0xf]
                %232 = vst [vmem:[%s152 + $0x9c] sm:$0xf] %v231
                %v233 = vld [vmem:[%s151 + $0x130] sm:$0xf]
                %234 = vst [vmem:[%s152 + $0xa0] sm:$0xf] %v233
                %v235 = vld [vmem:[%s151 + $0x134] sm:$0xf]
                %236 = vst [vmem:[%s152 + $0xa4] sm:$0xf] %v235
                %v237 = vld [vmem:[%s151 + $0x138] sm:$0xf]
                %238 = vst [vmem:[%s152 + $0xa8] sm:$0xf] %v237
                %v239 = vld [vmem:[%s151 + $0x13c] sm:$0xf]
                %240 = vst [vmem:[%s152 + $0xac] sm:$0xf] %v239
                %v241 = vld [vmem:[%s151 + $0x140] sm:$0xf]
                %242 = vst [vmem:[%s152 + $0xb0] sm:$0xf] %v241
                %v243 = vld [vmem:[%s151 + $0x144] sm:$0xf]
                %244 = vst [vmem:[%s152 + $0xb4] sm:$0xf] %v243
                %v245 = vld [vmem:[%s151 + $0x148] sm:$0xf]
                %246 = vst [vmem:[%s152 + $0xb8] sm:$0xf] %v245
                %v247 = vld [vmem:[%s151 + $0x14c] sm:$0xf]
                %248 = vst [vmem:[%s152 + $0xbc] sm:$0xf] %v247
                %v249 = vld [vmem:[%s151 + $0x150] sm:$0xf]
                %250 = vst [vmem:[%s152 + $0xc0] sm:$0xf] %v249
                %v251 = vld [vmem:[%s151 + $0x154] sm:$0xf]
                %252 = vst [vmem:[%s152 + $0xc4] sm:$0xf] %v251
                %v253 = vld [vmem:[%s151 + $0x158] sm:$0xf]
                %254 = vst [vmem:[%s152 + $0xc8] sm:$0xf] %v253
                %v255 = vld [vmem:[%s151 + $0x15c] sm:$0xf]
                %256 = vst [vmem:[%s152 + $0xcc] sm:$0xf] %v255
                %v257 = vld [vmem:[%s151 + $0x160] sm:$0xf]
                %258 = vst [vmem:[%s152 + $0xd0] sm:$0xf] %v257
                %v259 = vld [vmem:[%s151 + $0x164] sm:$0xf]
                %260 = vst [vmem:[%s152 + $0xd4] sm:$0xf] %v259
                %v261 = vld [vmem:[%s151 + $0x1b0] sm:$0xf]
                %262 = vst [vmem:[%s152 + $0xd8] sm:$0xf] %v261
                %v263 = vld [vmem:[%s151 + $0x1b4] sm:$0xf]
                %264 = vst [vmem:[%s152 + $0xdc] sm:$0xf] %v263
                %v265 = vld [vmem:[%s151 + $0x1b8] sm:$0xf]
                %266 = vst [vmem:[%s152 + $0xe0] sm:$0xf] %v265
                %v267 = vld [vmem:[%s151 + $0x1bc] sm:$0xf]
                %268 = vst [vmem:[%s152 + $0xe4] sm:$0xf] %v267
                %v269 = vld [vmem:[%s151 + $0x1c0] sm:$0xf]
                %270 = vst [vmem:[%s152 + $0xe8] sm:$0xf] %v269
                %v271 = vld [vmem:[%s151 + $0x1c4] sm:$0xf]
                %272 = vst [vmem:[%s152 + $0xec] sm:$0xf] %v271
                %v273 = vld [vmem:[%s151 + $0x1c8] sm:$0xf]
                %274 = vst [vmem:[%s152 + $0xf0] sm:$0xf] %v273
                %v275 = vld [vmem:[%s151 + $0x1cc] sm:$0xf]
                %276 = vst [vmem:[%s152 + $0xf4] sm:$0xf] %v275
                %v277 = vld [vmem:[%s151 + $0x1d0] sm:$0xf]
                %278 = vst [vmem:[%s152 + $0xf8] sm:$0xf] %v277
                %v279 = vld [vmem:[%s151 + $0x1d4] sm:$0xf]
                %280 = vst [vmem:[%s152 + $0xfc] sm:$0xf] %v279
                %v281 = vld [vmem:[%s151 + $0x1d8] sm:$0xf]
                %282 = vst [vmem:[%s152 + $0x100] sm:$0xf] %v281
                %v283 = vld [vmem:[%s151 + $0x1dc] sm:$0xf]
                %284 = vst [vmem:[%s152 + $0x104] sm:$0xf] %v283
                %v285 = vld [vmem:[%s151 + $0x1e0] sm:$0xf]
                %286 = vst [vmem:[%s152 + $0x108] sm:$0xf] %v285
                %v287 = vld [vmem:[%s151 + $0x1e4] sm:$0xf]
                %288 = vst [vmem:[%s152 + $0x10c] sm:$0xf] %v287
                %v289 = vld [vmem:[%s151 + $0x1e8] sm:$0xf]
                %290 = vst [vmem:[%s152 + $0x110] sm:$0xf] %v289
                %v291 = vld [vmem:[%s151 + $0x1ec] sm:$0xf]
                %292 = vst [vmem:[%s152 + $0x114] sm:$0xf] %v291
                %v293 = vld [vmem:[%s151 + $0x1f0] sm:$0xf]
                %294 = vst [vmem:[%s152 + $0x118] sm:$0xf] %v293
                %v295 = vld [vmem:[%s151 + $0x1f4] sm:$0xf]
                %296 = vst [vmem:[%s152 + $0x11c] sm:$0xf] %v295
              $region45: #{lenet_forward.3} parent=39 // loop_footer
                %s150 = sadd.s32 1, %s146
              $region46: #{lenet_forward.3} parent=39 // loop_footer_branch
                %145 = sbr.rel target = $region42
              $region47: #{lenet_forward.3} parent=39 // loop_exit
                _
            $region40: #{lenet_forward.3} parent=31 // pred_fallthru
              _
          $region32: #{lenet_forward.3} parent=27 // pred_fallthru
            _
          %460 = vnop
        $region28: #{lenet_forward.3} parent=23 // pred_fallthru
          _
      $region24: #{lenet_forward.3} parent=5 // pred_fallthru
        _
      %p461 = scmp.le.s32.totalorder 1, %s9
      %p462 = scmp.lt.s32.totalorder %s9, 3
      %p463 = pnand %p461, %p462
      %p464 = pneg %p463
      // Predicated region
      $region66: #{lenet_forward.3} parent=5 // pred_check
        _
      $region67: #{lenet_forward.3} parent=5 // pred_check_branch
        %466 = sbr.rel (%p463) target = $region69
      $region68: #{lenet_forward.3} parent=5 // pred_region
        %s467 = ssub.s32 %s9, 1
        %s468 = sand.u32 %s22, 1
        %s469 = sand.u32 %s22, 1
        %s470 = smul.addr %s469, 288
        %s471 = scalar_lea.vmem [#allocation2], %s470
        // Predicated region
        $region70: #{lenet_forward.3} parent=68 // pred_check
          %p472 = pneg %p35
        $region71: #{lenet_forward.3} parent=68 // pred_check_branch
          %474 = sbr.rel (%p472) target = $region73
        $region72: #{lenet_forward.3} parent=68 // pred_region
          _
        $region73: #{lenet_forward.3} parent=68 // pred_fallthru
          _
        %s475 = sand.u32 %s22, 1
        %s476 = sand.u32 %s22, 1
        %s477 = smul.addr %s476, 288
        %s478 = scalar_lea.vmem [#allocation2], %s477
        %p479 = pneg %p35
        %p480 = pneg %p32
        %p481 = pneg %p56
        %p482 = pneg %p53
        %p483 = pneg %p77
        %p484 = pneg %p74
        %p485 = pneg %p103
        %p486 = pneg %p100
        %s487 = smul.u32 18, %s14
        %p488 = scmp.lt.s32.totalorder %s487, 35
        %s489 = scalar_select %p488, %s487, 35
        %s490 = smul.addr %s489, 4
        %s491 = scalar_lea.vmem %s3, %s490
        %s492 = smul.u32 18, %s14
        %s493 = smul.u32 18, %s14
        %p494 = scmp.lt.s32.totalorder %s493, 35
        %s495 = scalar_select %p494, %s493, 35
        %s496 = smul.addr %s495, 4
        %s497 = scalar_lea.vmem %s3, %s496
        %s498 = smul.u32 18, %s14
        %v500 = vld [vmem:[%s1] sm:$0xf]
        %v501 = vld [vmem:[%s1 + $0x4] sm:$0xf]
        %v502 = vld [vmem:[%s1 + $0x8] sm:$0xf]
        %v503 = vld [vmem:[%s1 + $0xc] sm:$0xf]
        %v504 = vld [vmem:[%s1 + $0x10] sm:$0xf]
        %v505 = vld [vmem:[%s1 + $0x14] sm:$0xf]
        %v506 = vld [vmem:[%s1 + $0x18] sm:$0xf]
        %v507 = vld [vmem:[%s1 + $0x1c] sm:$0xf]
        %v508 = vld [vmem:[%s1 + $0x20] sm:$0xf]
        %v509 = vld [vmem:[%s1 + $0x24] sm:$0xf]
        %v510 = vld [vmem:[%s1 + $0x28] sm:$0xf]
        %v511 = vld [vmem:[%s1 + $0x2c] sm:$0xf]
        %v512 = vld [vmem:[%s1 + $0x30] sm:$0xf]
        %v513 = vld [vmem:[%s1 + $0x34] sm:$0xf]
        %v514 = vld [vmem:[%s1 + $0x38] sm:$0xf]
        %v515 = vld [vmem:[%s1 + $0x3c] sm:$0xf]
        %v516 = vld [vmem:[%s471] sm:$0xf]
        %v517 = vld [vmem:[%s471 + $0x4] sm:$0xf]
        %v518 = vld [vmem:[%s471 + $0x8] sm:$0xf]
        %v519 = vld [vmem:[%s471 + $0xc] sm:$0xf]
        %v520 = vld [vmem:[%s471 + $0x10] sm:$0xf]
        %v521 = vld [vmem:[%s471 + $0x14] sm:$0xf]
        %v522 = vld [vmem:[%s471 + $0x18] sm:$0xf]
        %v523 = vld [vmem:[%s471 + $0x1c] sm:$0xf]
        %v524 = vld [vmem:[%s471 + $0x20] sm:$0xf]
        %v525 = vld [vmem:[%s471 + $0x24] sm:$0xf]
        %v526 = vld [vmem:[%s471 + $0x28] sm:$0xf]
        %v527 = vld [vmem:[%s471 + $0x2c] sm:$0xf]
        %v528 = vld [vmem:[%s471 + $0x30] sm:$0xf]
        %v529 = vld [vmem:[%s471 + $0x34] sm:$0xf]
        %v530 = vld [vmem:[%s471 + $0x38] sm:$0xf]
        %v531 = vld [vmem:[%s471 + $0x3c] sm:$0xf]
        %v532 = vld [vmem:[%s471 + $0x40] sm:$0xf]
        %v533 = vld [vmem:[%s471 + $0x44] sm:$0xf]
        %v552 = vunpack.c.l.b16 %v516
        %v553 = vunpack.c.l.b16 %v517
        %v554 = vunpack.c.l.b16 %v518
        %v555 = vunpack.c.l.b16 %v519
        %v556 = vunpack.c.l.b16 %v520
        %v557 = vunpack.c.l.b16 %v521
        %v558 = vunpack.c.l.b16 %v522
        %v559 = vunpack.c.l.b16 %v523
        %v560 = vunpack.c.l.b16 %v524
        %v561 = vunpack.c.l.b16 %v525
        %v562 = vunpack.c.l.b16 %v526
        %v563 = vunpack.c.l.b16 %v527
        %v564 = vunpack.c.l.b16 %v528
        %v565 = vunpack.c.l.b16 %v529
        %v566 = vunpack.c.l.b16 %v530
        %v567 = vunpack.c.l.b16 %v531
        %v568 = vunpack.c.l.b16 %v532
        %v569 = vunpack.c.l.b16 %v533
        %v570 = vpack.c.b16 %v553, %v552
        %v571 = vpack.c.b16 %v555, %v554
        %v572 = vpack.c.b16 %v557, %v556
        %v573 = vpack.c.b16 %v559, %v558
        %v574 = vpack.c.b16 %v561, %v560
        %v575 = vpack.c.b16 %v563, %v562
        %v576 = vpack.c.b16 %v565, %v564
        %v577 = vpack.c.b16 %v567, %v566
        %v578 = vpack.c.b16 %v569, %v568
        %v604 = vunpack.c.l.b16 %v500
        %v605 = vunpack.c.l.b16 %v501
        %v606 = vunpack.c.l.b16 %v502
        %v607 = vunpack.c.l.b16 %v503
        %v608 = vunpack.c.l.b16 %v504
        %v609 = vunpack.c.l.b16 %v505
        %v610 = vunpack.c.l.b16 %v506
        %v611 = vunpack.c.l.b16 %v507
        %v612 = vunpack.c.l.b16 %v508
        %v613 = vunpack.c.l.b16 %v509
        %v614 = vunpack.c.l.b16 %v510
        %v615 = vunpack.c.l.b16 %v511
        %v616 = vunpack.c.l.b16 %v512
        %v617 = vunpack.c.l.b16 %v513
        %v618 = vunpack.c.l.b16 %v514
        %v619 = vunpack.c.l.b16 %v515
        %v620 = vpack.c.b16 %v605, %v604
        %v621 = vpack.c.b16 %v607, %v606
        %v622 = vpack.c.b16 %v609, %v608
        %v623 = vpack.c.b16 %v611, %v610
        %v624 = vpack.c.b16 %v613, %v612
        %v625 = vpack.c.b16 %v615, %v614
        %v626 = vpack.c.b16 %v617, %v616
        %v627 = vpack.c.b16 %v619, %v618
        %636 = vmatprep.subr.bf16.mxu0 0
        %637 = vmatpush1.bf16.msra.mxu0 %v620
        %638 = vmatprep.subr.bf16.mxu0 0
        %639 = vmatpush1.bf16.msra.mxu0 %v621
        %640 = vmatprep.subr.bf16.mxu0 0
        %641 = vmatpush1.bf16.msra.mxu0 %v622
        %642 = vmatprep.subr.bf16.mxu0 0
        %643 = vmatpush1.bf16.msra.mxu0 %v623
        %644 = vmatprep.subr.bf16.mxu0 0
        %645 = vmatpush1.bf16.msra.mxu0 %v624
        %646 = vmatprep.subr.bf16.mxu0 0
        %647 = vmatpush1.bf16.msra.mxu0 %v625
        %648 = vmatprep.subr.bf16.mxu0 0
        %649 = vmatpush1.bf16.msra.mxu0 %v626
        %650 = vmatprep.subr.bf16.mxu0 0
        %651 = vmatpush1.bf16.msra.mxu0 %v627
        %652 = vmatprep.subr.bf16.mxu0 0
        %653 = vmatpush1.bf16.msra.mxu0 0
        %654 = vmatprep.subr.bf16.mxu0 0
        %655 = vmatpush1.bf16.msra.mxu0 0
        %656 = vmatprep.subr.bf16.mxu0 0
        %657 = vmatpush1.bf16.msra.mxu0 0
        %658 = vmatprep.subr.bf16.mxu0 0
        %659 = vmatpush1.bf16.msra.mxu0 0
        %660 = vmatprep.subr.bf16.mxu0 0
        %661 = vmatpush1.bf16.msra.mxu0 0
        %662 = vmatprep.subr.bf16.mxu0 0
        %663 = vmatpush1.bf16.msra.mxu0 0
        %664 = vmatprep.subr.bf16.mxu0 0
        %665 = vmatpush1.bf16.msra.mxu0 0
        %666 = vmatprep.subr.bf16.mxu0 0
        %667 = vmatpush1.bf16.msra.mxu0 0
        %668 = vmatprep.mubr.bf16.mxu0 0
        %669 = vmatmul.mubr.bf16.gmra.mrb[0].mxu0 %v570
        %v670 = vpop.f32.mrb[0].mxu0
        %v671 = vadd.f32 0.0, %v670
        %v672 = vpop.f32.mrb[0].mxu0
        %v673 = vpop.f32.mrb[0].mxu0
        %v674 = vadd.f32 0.0, %v673
        %v675 = vpop.f32.mrb[0].mxu0
        %676 = vmatprep.mubr.bf16.mxu0 0
        %677 = vmatmul.mubr.bf16.gmra.mrb[0].mxu0 %v571
        %v678 = vpop.f32.mrb[0].mxu0
        %v679 = vadd.f32 0.0, %v678
        %v680 = vpop.f32.mrb[0].mxu0
        %v681 = vpop.f32.mrb[0].mxu0
        %v682 = vadd.f32 0.0, %v681
        %v683 = vpop.f32.mrb[0].mxu0
        %684 = vmatprep.mubr.bf16.mxu0 0
        %685 = vmatmul.mubr.bf16.gmra.mrb[0].mxu0 %v572
        %v686 = vpop.f32.mrb[0].mxu0
        %v687 = vadd.f32 0.0, %v686
        %v688 = vpop.f32.mrb[0].mxu0
        %v689 = vpop.f32.mrb[0].mxu0
        %v690 = vadd.f32 0.0, %v689
        %v691 = vpop.f32.mrb[0].mxu0
        %692 = vmatprep.mubr.bf16.mxu0 0
        %693 = vmatmul.mubr.bf16.gmra.mrb[0].mxu0 %v573
        %v694 = vpop.f32.mrb[0].mxu0
        %v695 = vadd.f32 0.0, %v694
        %v696 = vpop.f32.mrb[0].mxu0
        %v697 = vpop.f32.mrb[0].mxu0
        %v698 = vadd.f32 0.0, %v697
        %v699 = vpop.f32.mrb[0].mxu0
        %700 = vmatprep.mubr.bf16.mxu0 0
        %701 = vmatmul.mubr.bf16.gmra.mrb[0].mxu0 %v574
        %v702 = vpop.f32.mrb[0].mxu0
        %v703 = vadd.f32 0.0, %v702
        %v704 = vpop.f32.mrb[0].mxu0
        %v705 = vpop.f32.mrb[0].mxu0
        %v706 = vadd.f32 0.0, %v705
        %v707 = vpop.f32.mrb[0].mxu0
        %708 = vmatprep.mubr.bf16.mxu0 0
        %709 = vmatmul.mubr.bf16.gmra.mrb[0].mxu0 %v575
        %v710 = vpop.f32.mrb[0].mxu0
        %v711 = vadd.f32 0.0, %v710
        %v712 = vpop.f32.mrb[0].mxu0
        %v713 = vpop.f32.mrb[0].mxu0
        %v714 = vadd.f32 0.0, %v713
        %v715 = vpop.f32.mrb[0].mxu0
        %716 = vmatprep.mubr.bf16.mxu0 0
        %717 = vmatmul.mubr.bf16.gmra.mrb[0].mxu0 %v576
        %v718 = vpop.f32.mrb[0].mxu0
        %v719 = vadd.f32 0.0, %v718
        %v720 = vpop.f32.mrb[0].mxu0
        %v721 = vpop.f32.mrb[0].mxu0
        %v722 = vadd.f32 0.0, %v721
        %v723 = vpop.f32.mrb[0].mxu0
        %724 = vmatprep.mubr.bf16.mxu0 0
        %725 = vmatmul.mubr.bf16.gmra.mrb[0].mxu0 %v577
        %v726 = vpop.f32.mrb[0].mxu0
        %v727 = vadd.f32 0.0, %v726
        %v728 = vpop.f32.mrb[0].mxu0
        %v729 = vpop.f32.mrb[0].mxu0
        %v730 = vadd.f32 0.0, %v729
        %v731 = vpop.f32.mrb[0].mxu0
        %732 = vmatprep.mubr.bf16.mxu0 0
        %733 = vmatmul.mubr.bf16.gmra.mrb[0].mxu0 %v578
        %v734 = vpop.f32.mrb[0].mxu0
        %v735 = vadd.f32 0.0, %v734
        %v736 = vpop.f32.mrb[0].mxu0
        %v737 = vpop.f32.mrb[0].mxu0
        %v738 = vadd.f32 0.0, %v737
        %v739 = vpop.f32.mrb[0].mxu0
        %740 = vdwg.mxu0
        %s741 = scalar_lea.vmem %s471, 72 [#allocation2]
        %v742 = vld [vmem:[%s741] sm:$0xf]
        %v743 = vld [vmem:[%s741 + $0x4] sm:$0xf]
        %v744 = vld [vmem:[%s741 + $0x8] sm:$0xf]
        %v745 = vld [vmem:[%s741 + $0xc] sm:$0xf]
        %v746 = vld [vmem:[%s741 + $0x10] sm:$0xf]
        %v747 = vld [vmem:[%s741 + $0x14] sm:$0xf]
        %v748 = vld [vmem:[%s741 + $0x18] sm:$0xf]
        %v749 = vld [vmem:[%s741 + $0x1c] sm:$0xf]
        %v750 = vld [vmem:[%s741 + $0x20] sm:$0xf]
        %v751 = vld [vmem:[%s741 + $0x24] sm:$0xf]
        %v752 = vld [vmem:[%s741 + $0x28] sm:$0xf]
        %v753 = vld [vmem:[%s741 + $0x2c] sm:$0xf]
        %v754 = vld [vmem:[%s741 + $0x30] sm:$0xf]
        %v755 = vld [vmem:[%s741 + $0x34] sm:$0xf]
        %v756 = vld [vmem:[%s741 + $0x38] sm:$0xf]
        %v757 = vld [vmem:[%s741 + $0x3c] sm:$0xf]
        %v758 = vld [vmem:[%s741 + $0x40] sm:$0xf]
        %v759 = vld [vmem:[%s741 + $0x44] sm:$0xf]
        %v778 = vunpack.c.l.b16 %v742
        %v779 = vunpack.c.l.b16 %v743
        %v780 = vunpack.c.l.b16 %v744
        %v781 = vunpack.c.l.b16 %v745
        %v782 = vunpack.c.l.b16 %v746
        %v783 = vunpack.c.l.b16 %v747
        %v784 = vunpack.c.l.b16 %v748
        %v785 = vunpack.c.l.b16 %v749
        %v786 = vunpack.c.l.b16 %v750
        %v787 = vunpack.c.l.b16 %v751
        %v788 = vunpack.c.l.b16 %v752
        %v789 = vunpack.c.l.b16 %v753
        %v790 = vunpack.c.l.b16 %v754
        %v791 = vunpack.c.l.b16 %v755
        %v792 = vunpack.c.l.b16 %v756
        %v793 = vunpack.c.l.b16 %v757
        %v794 = vunpack.c.l.b16 %v758
        %v795 = vunpack.c.l.b16 %v759
        %v796 = vpack.c.b16 %v779, %v778
        %v797 = vpack.c.b16 %v781, %v780
        %v798 = vpack.c.b16 %v783, %v782
        %v799 = vpack.c.b16 %v785, %v784
        %v800 = vpack.c.b16 %v787, %v786
        %v801 = vpack.c.b16 %v789, %v788
        %v802 = vpack.c.b16 %v791, %v790
        %v803 = vpack.c.b16 %v793, %v792
        %v804 = vpack.c.b16 %v795, %v794
        %814 = vmatprep.subr.bf16.mxu0 0
        %815 = vmatpush1.bf16.msra.mxu0 %v620
        %816 = vmatprep.subr.bf16.mxu0 0
        %817 = vmatpush1.bf16.msra.mxu0 %v621
        %818 = vmatprep.subr.bf16.mxu0 0
        %819 = vmatpush1.bf16.msra.mxu0 %v622
        %820 = vmatprep.subr.bf16.mxu0 0
        %821 = vmatpush1.bf16.msra.mxu0 %v623
        %822 = vmatprep.subr.bf16.mxu0 0
        %823 = vmatpush1.bf16.msra.mxu0 %v624
        %824 = vmatprep.subr.bf16.mxu0 0
        %825 = vmatpush1.bf16.msra.mxu0 %v625
        %826 = vmatprep.subr.bf16.mxu0 0
        %827 = vmatpush1.bf16.msra.mxu0 %v626
        %828 = vmatprep.subr.bf16.mxu0 0
        %829 = vmatpush1.bf16.msra.mxu0 %v627
        %830 = vmatprep.subr.bf16.mxu0 0
        %831 = vmatpush1.bf16.msra.mxu0 0
        %832 = vmatprep.subr.bf16.mxu0 0
        %833 = vmatpush1.bf16.msra.mxu0 0
        %834 = vmatprep.subr.bf16.mxu0 0
        %835 = vmatpush1.bf16.msra.mxu0 0
        %836 = vmatprep.subr.bf16.mxu0 0
        %837 = vmatpush1.bf16.msra.mxu0 0
        %838 = vmatprep.subr.bf16.mxu0 0
        %839 = vmatpush1.bf16.msra.mxu0 0
        %840 = vmatprep.subr.bf16.mxu0 0
        %841 = vmatpush1.bf16.msra.mxu0 0
        %842 = vmatprep.subr.bf16.mxu0 0
        %843 = vmatpush1.bf16.msra.mxu0 0
        %844 = vmatprep.subr.bf16.mxu0 0
        %845 = vmatpush1.bf16.msra.mxu0 0
        %846 = vmatprep.mubr.bf16.mxu0 0
        %847 = vmatmul.mubr.bf16.gmra.mrb[0].mxu0 %v796
        %v848 = vpop.f32.mrb[0].mxu0
        %v849 = vadd.f32 0.0, %v848
        %v850 = vpop.f32.mrb[0].mxu0
        %v851 = vpop.f32.mrb[0].mxu0
        %v852 = vadd.f32 0.0, %v851
        %v853 = vpop.f32.mrb[0].mxu0
        %854 = vmatprep.mubr.bf16.mxu0 0
        %855 = vmatmul.mubr.bf16.gmra.mrb[0].mxu0 %v797
        %v856 = vpop.f32.mrb[0].mxu0
        %v857 = vadd.f32 0.0, %v856
        %v858 = vpop.f32.mrb[0].mxu0
        %v859 = vpop.f32.mrb[0].mxu0
        %v860 = vadd.f32 0.0, %v859
        %v861 = vpop.f32.mrb[0].mxu0
        %862 = vmatprep.mubr.bf16.mxu0 0
        %863 = vmatmul.mubr.bf16.gmra.mrb[0].mxu0 %v798
        %v864 = vpop.f32.mrb[0].mxu0
        %v865 = vadd.f32 0.0, %v864
        %v866 = vpop.f32.mrb[0].mxu0
        %v867 = vpop.f32.mrb[0].mxu0
        %v868 = vadd.f32 0.0, %v867
        %v869 = vpop.f32.mrb[0].mxu0
        %870 = vmatprep.mubr.bf16.mxu0 0
        %871 = vmatmul.mubr.bf16.gmra.mrb[0].mxu0 %v799
        %v872 = vpop.f32.mrb[0].mxu0
        %v873 = vadd.f32 0.0, %v872
        %v874 = vpop.f32.mrb[0].mxu0
        %v875 = vpop.f32.mrb[0].mxu0
        %v876 = vadd.f32 0.0, %v875
        %v877 = vpop.f32.mrb[0].mxu0
        %878 = vmatprep.mubr.bf16.mxu0 0
        %879 = vmatmul.mubr.bf16.gmra.mrb[0].mxu0 %v800
        %v880 = vpop.f32.mrb[0].mxu0
        %v881 = vadd.f32 0.0, %v880
        %v882 = vpop.f32.mrb[0].mxu0
        %v883 = vpop.f32.mrb[0].mxu0
        %v884 = vadd.f32 0.0, %v883
        %v885 = vpop.f32.mrb[0].mxu0
        %886 = vmatprep.mubr.bf16.mxu0 0
        %887 = vmatmul.mubr.bf16.gmra.mrb[0].mxu0 %v801
        %v888 = vpop.f32.mrb[0].mxu0
        %v889 = vadd.f32 0.0, %v888
        %v890 = vpop.f32.mrb[0].mxu0
        %v891 = vpop.f32.mrb[0].mxu0
        %v892 = vadd.f32 0.0, %v891
        %v893 = vpop.f32.mrb[0].mxu0
        %894 = vmatprep.mubr.bf16.mxu0 0
        %895 = vmatmul.mubr.bf16.gmra.mrb[0].mxu0 %v802
        %v896 = vpop.f32.mrb[0].mxu0
        %v897 = vadd.f32 0.0, %v896
        %v898 = vpop.f32.mrb[0].mxu0
        %v899 = vpop.f32.mrb[0].mxu0
        %v900 = vadd.f32 0.0, %v899
        %v901 = vpop.f32.mrb[0].mxu0
        %902 = vmatprep.mubr.bf16.mxu0 0
        %903 = vmatmul.mubr.bf16.gmra.mrb[0].mxu0 %v803
        %v904 = vpop.f32.mrb[0].mxu0
        %v905 = vadd.f32 0.0, %v904
        %v906 = vpop.f32.mrb[0].mxu0
        %v907 = vpop.f32.mrb[0].mxu0
        %v908 = vadd.f32 0.0, %v907
        %v909 = vpop.f32.mrb[0].mxu0
        %910 = vmatprep.mubr.bf16.mxu0 0
        %911 = vmatmul.mubr.bf16.gmra.mrb[0].mxu0 %v804
        %v912 = vpop.f32.mrb[0].mxu0
        %v913 = vadd.f32 0.0, %v912
        %v914 = vpop.f32.mrb[0].mxu0
        %v915 = vpop.f32.mrb[0].mxu0
        %v916 = vadd.f32 0.0, %v915
        %v917 = vpop.f32.mrb[0].mxu0
        %918 = vdwg.mxu0
        %v919 = vmax.f32 %v671, %v849
        %v920 = vmax.f32 %v674, %v852
        %v921 = vmax.f32 %v679, %v857
        %v922 = vmax.f32 %v682, %v860
        %v923 = vmax.f32 %v687, %v865
        %v924 = vmax.f32 %v690, %v868
        %v925 = vmax.f32 %v695, %v873
        %v926 = vmax.f32 %v698, %v876
        %v927 = vmax.f32 %v703, %v881
        %v928 = vmax.f32 %v706, %v884
        %v929 = vmax.f32 %v711, %v889
        %v930 = vmax.f32 %v714, %v892
        %v931 = vmax.f32 %v719, %v897
        %v932 = vmax.f32 %v722, %v900
        %v933 = vmax.f32 %v727, %v905
        %v934 = vmax.f32 %v730, %v908
        %v935 = vmax.f32 %v735, %v913
        %v936 = vmax.f32 %v738, %v916
        %s937 = scalar_lea.vmem %s471, 144 [#allocation2]
        %v938 = vld [vmem:[%s937] sm:$0xf]
        %v939 = vld [vmem:[%s937 + $0x4] sm:$0xf]
        %v940 = vld [vmem:[%s937 + $0x8] sm:$0xf]
        %v941 = vld [vmem:[%s937 + $0xc] sm:$0xf]
        %v942 = vld [vmem:[%s937 + $0x10] sm:$0xf]
        %v943 = vld [vmem:[%s937 + $0x14] sm:$0xf]
        %v944 = vld [vmem:[%s937 + $0x18] sm:$0xf]
        %v945 = vld [vmem:[%s937 + $0x1c] sm:$0xf]
        %v946 = vld [vmem:[%s937 + $0x20] sm:$0xf]
        %v947 = vld [vmem:[%s937 + $0x24] sm:$0xf]
        %v948 = vld [vmem:[%s937 + $0x28] sm:$0xf]
        %v949 = vld [vmem:[%s937 + $0x2c] sm:$0xf]
        %v950 = vld [vmem:[%s937 + $0x30] sm:$0xf]
        %v951 = vld [vmem:[%s937 + $0x34] sm:$0xf]
        %v952 = vld [vmem:[%s937 + $0x38] sm:$0xf]
        %v953 = vld [vmem:[%s937 + $0x3c] sm:$0xf]
        %v954 = vld [vmem:[%s937 + $0x40] sm:$0xf]
        %v955 = vld [vmem:[%s937 + $0x44] sm:$0xf]
        %v974 = vunpack.c.l.b16 %v938
        %v975 = vunpack.c.l.b16 %v939
        %v976 = vunpack.c.l.b16 %v940
        %v977 = vunpack.c.l.b16 %v941
        %v978 = vunpack.c.l.b16 %v942
        %v979 = vunpack.c.l.b16 %v943
        %v980 = vunpack.c.l.b16 %v944
        %v981 = vunpack.c.l.b16 %v945
        %v982 = vunpack.c.l.b16 %v946
        %v983 = vunpack.c.l.b16 %v947
        %v984 = vunpack.c.l.b16 %v948
        %v985 = vunpack.c.l.b16 %v949
        %v986 = vunpack.c.l.b16 %v950
        %v987 = vunpack.c.l.b16 %v951
        %v988 = vunpack.c.l.b16 %v952
        %v989 = vunpack.c.l.b16 %v953
        %v990 = vunpack.c.l.b16 %v954
        %v991 = vunpack.c.l.b16 %v955
        %v992 = vpack.c.b16 %v975, %v974
        %v993 = vpack.c.b16 %v977, %v976
        %v994 = vpack.c.b16 %v979, %v978
        %v995 = vpack.c.b16 %v981, %v980
        %v996 = vpack.c.b16 %v983, %v982
        %v997 = vpack.c.b16 %v985, %v984
        %v998 = vpack.c.b16 %v987, %v986
        %v999 = vpack.c.b16 %v989, %v988
        %v1000 = vpack.c.b16 %v991, %v990
        %1010 = vmatprep.subr.bf16.mxu0 0
        %1011 = vmatpush1.bf16.msra.mxu0 %v620
        %1012 = vmatprep.subr.bf16.mxu0 0
        %1013 = vmatpush1.bf16.msra.mxu0 %v621
        %1014 = vmatprep.subr.bf16.mxu0 0
        %1015 = vmatpush1.bf16.msra.mxu0 %v622
        %1016 = vmatprep.subr.bf16.mxu0 0
        %1017 = vmatpush1.bf16.msra.mxu0 %v623
        %1018 = vmatprep.subr.bf16.mxu0 0
        %1019 = vmatpush1.bf16.msra.mxu0 %v624
        %1020 = vmatprep.subr.bf16.mxu0 0
        %1021 = vmatpush1.bf16.msra.mxu0 %v625
        %1022 = vmatprep.subr.bf16.mxu0 0
        %1023 = vmatpush1.bf16.msra.mxu0 %v626
        %1024 = vmatprep.subr.bf16.mxu0 0
        %1025 = vmatpush1.bf16.msra.mxu0 %v627
        %1026 = vmatprep.subr.bf16.mxu0 0
        %1027 = vmatpush1.bf16.msra.mxu0 0
        %1028 = vmatprep.subr.bf16.mxu0 0
        %1029 = vmatpush1.bf16.msra.mxu0 0
        %1030 = vmatprep.subr.bf16.mxu0 0
        %1031 = vmatpush1.bf16.msra.mxu0 0
        %1032 = vmatprep.subr.bf16.mxu0 0
        %1033 = vmatpush1.bf16.msra.mxu0 0
        %1034 = vmatprep.subr.bf16.mxu0 0
        %1035 = vmatpush1.bf16.msra.mxu0 0
        %1036 = vmatprep.subr.bf16.mxu0 0
        %1037 = vmatpush1.bf16.msra.mxu0 0
        %1038 = vmatprep.subr.bf16.mxu0 0
        %1039 = vmatpush1.bf16.msra.mxu0 0
        %1040 = vmatprep.subr.bf16.mxu0 0
        %1041 = vmatpush1.bf16.msra.mxu0 0
        %1042 = vmatprep.mubr.bf16.mxu0 0
        %1043 = vmatmul.mubr.bf16.gmra.mrb[0].mxu0 %v992
        %v1044 = vpop.f32.mrb[0].mxu0
        %v1045 = vadd.f32 0.0, %v1044
        %v1046 = vpop.f32.mrb[0].mxu0
        %v1047 = vpop.f32.mrb[0].mxu0
        %v1048 = vadd.f32 0.0, %v1047
        %v1049 = vpop.f32.mrb[0].mxu0
        %1050 = vmatprep.mubr.bf16.mxu0 0
        %1051 = vmatmul.mubr.bf16.gmra.mrb[0].mxu0 %v993
        %v1052 = vpop.f32.mrb[0].mxu0
        %v1053 = vadd.f32 0.0, %v1052
        %v1054 = vpop.f32.mrb[0].mxu0
        %v1055 = vpop.f32.mrb[0].mxu0
        %v1056 = vadd.f32 0.0, %v1055
        %v1057 = vpop.f32.mrb[0].mxu0
        %1058 = vmatprep.mubr.bf16.mxu0 0
        %1059 = vmatmul.mubr.bf16.gmra.mrb[0].mxu0 %v994
        %v1060 = vpop.f32.mrb[0].mxu0
        %v1061 = vadd.f32 0.0, %v1060
        %v1062 = vpop.f32.mrb[0].mxu0
        %v1063 = vpop.f32.mrb[0].mxu0
        %v1064 = vadd.f32 0.0, %v1063
        %v1065 = vpop.f32.mrb[0].mxu0
        %1066 = vmatprep.mubr.bf16.mxu0 0
        %1067 = vmatmul.mubr.bf16.gmra.mrb[0].mxu0 %v995
        %v1068 = vpop.f32.mrb[0].mxu0
        %v1069 = vadd.f32 0.0, %v1068
        %v1070 = vpop.f32.mrb[0].mxu0
        %v1071 = vpop.f32.mrb[0].mxu0
        %v1072 = vadd.f32 0.0, %v1071
        %v1073 = vpop.f32.mrb[0].mxu0
        %1074 = vmatprep.mubr.bf16.mxu0 0
        %1075 = vmatmul.mubr.bf16.gmra.mrb[0].mxu0 %v996
        %v1076 = vpop.f32.mrb[0].mxu0
        %v1077 = vadd.f32 0.0, %v1076
        %v1078 = vpop.f32.mrb[0].mxu0
        %v1079 = vpop.f32.mrb[0].mxu0
        %v1080 = vadd.f32 0.0, %v1079
        %v1081 = vpop.f32.mrb[0].mxu0
        %1082 = vmatprep.mubr.bf16.mxu0 0
        %1083 = vmatmul.mubr.bf16.gmra.mrb[0].mxu0 %v997
        %v1084 = vpop.f32.mrb[0].mxu0
        %v1085 = vadd.f32 0.0, %v1084
        %v1086 = vpop.f32.mrb[0].mxu0
        %v1087 = vpop.f32.mrb[0].mxu0
        %v1088 = vadd.f32 0.0, %v1087
        %v1089 = vpop.f32.mrb[0].mxu0
        %1090 = vmatprep.mubr.bf16.mxu0 0
        %1091 = vmatmul.mubr.bf16.gmra.mrb[0].mxu0 %v998
        %v1092 = vpop.f32.mrb[0].mxu0
        %v1093 = vadd.f32 0.0, %v1092
        %v1094 = vpop.f32.mrb[0].mxu0
        %v1095 = vpop.f32.mrb[0].mxu0
        %v1096 = vadd.f32 0.0, %v1095
        %v1097 = vpop.f32.mrb[0].mxu0
        %1098 = vmatprep.mubr.bf16.mxu0 0
        %1099 = vmatmul.mubr.bf16.gmra.mrb[0].mxu0 %v999
        %v1100 = vpop.f32.mrb[0].mxu0
        %v1101 = vadd.f32 0.0, %v1100
        %v1102 = vpop.f32.mrb[0].mxu0
        %v1103 = vpop.f32.mrb[0].mxu0
        %v1104 = vadd.f32 0.0, %v1103
        %v1105 = vpop.f32.mrb[0].mxu0
        %1106 = vmatprep.mubr.bf16.mxu0 0
        %1107 = vmatmul.mubr.bf16.gmra.mrb[0].mxu0 %v1000
        %v1108 = vpop.f32.mrb[0].mxu0
        %v1109 = vadd.f32 0.0, %v1108
        %v1110 = vpop.f32.mrb[0].mxu0
        %v1111 = vpop.f32.mrb[0].mxu0
        %v1112 = vadd.f32 0.0, %v1111
        %v1113 = vpop.f32.mrb[0].mxu0
        %1114 = vdwg.mxu0
        %v1115 = vmax.f32 %v919, %v1045
        %v1116 = vmax.f32 %v920, %v1048
        %v1117 = vmax.f32 %v921, %v1053
        %v1118 = vmax.f32 %v922, %v1056
        %v1119 = vmax.f32 %v923, %v1061
        %v1120 = vmax.f32 %v924, %v1064
        %v1121 = vmax.f32 %v925, %v1069
        %v1122 = vmax.f32 %v926, %v1072
        %v1123 = vmax.f32 %v927, %v1077
        %v1124 = vmax.f32 %v928, %v1080
        %v1125 = vmax.f32 %v929, %v1085
        %v1126 = vmax.f32 %v930, %v1088
        %v1127 = vmax.f32 %v931, %v1093
        %v1128 = vmax.f32 %v932, %v1096
        %v1129 = vmax.f32 %v933, %v1101
        %v1130 = vmax.f32 %v934, %v1104
        %v1131 = vmax.f32 %v935, %v1109
        %v1132 = vmax.f32 %v936, %v1112
        %s1133 = scalar_lea.vmem %s471, 216 [#allocation2]
        %v1134 = vld [vmem:[%s1133] sm:$0xf]
        %v1135 = vld [vmem:[%s1133 + $0x4] sm:$0xf]
        %v1136 = vld [vmem:[%s1133 + $0x8] sm:$0xf]
        %v1137 = vld [vmem:[%s1133 + $0xc] sm:$0xf]
        %v1138 = vld [vmem:[%s1133 + $0x10] sm:$0xf]
        %v1139 = vld [vmem:[%s1133 + $0x14] sm:$0xf]
        %v1140 = vld [vmem:[%s1133 + $0x18] sm:$0xf]
        %v1141 = vld [vmem:[%s1133 + $0x1c] sm:$0xf]
        %v1142 = vld [vmem:[%s1133 + $0x20] sm:$0xf]
        %v1143 = vld [vmem:[%s1133 + $0x24] sm:$0xf]
        %v1144 = vld [vmem:[%s1133 + $0x28] sm:$0xf]
        %v1145 = vld [vmem:[%s1133 + $0x2c] sm:$0xf]
        %v1146 = vld [vmem:[%s1133 + $0x30] sm:$0xf]
        %v1147 = vld [vmem:[%s1133 + $0x34] sm:$0xf]
        %v1148 = vld [vmem:[%s1133 + $0x38] sm:$0xf]
        %v1149 = vld [vmem:[%s1133 + $0x3c] sm:$0xf]
        %v1150 = vld [vmem:[%s1133 + $0x40] sm:$0xf]
        %v1151 = vld [vmem:[%s1133 + $0x44] sm:$0xf]
        %v1170 = vunpack.c.l.b16 %v1134
        %v1171 = vunpack.c.l.b16 %v1135
        %v1172 = vunpack.c.l.b16 %v1136
        %v1173 = vunpack.c.l.b16 %v1137
        %v1174 = vunpack.c.l.b16 %v1138
        %v1175 = vunpack.c.l.b16 %v1139
        %v1176 = vunpack.c.l.b16 %v1140
        %v1177 = vunpack.c.l.b16 %v1141
        %v1178 = vunpack.c.l.b16 %v1142
        %v1179 = vunpack.c.l.b16 %v1143
        %v1180 = vunpack.c.l.b16 %v1144
        %v1181 = vunpack.c.l.b16 %v1145
        %v1182 = vunpack.c.l.b16 %v1146
        %v1183 = vunpack.c.l.b16 %v1147
        %v1184 = vunpack.c.l.b16 %v1148
        %v1185 = vunpack.c.l.b16 %v1149
        %v1186 = vunpack.c.l.b16 %v1150
        %v1187 = vunpack.c.l.b16 %v1151
        %v1188 = vpack.c.b16 %v1171, %v1170
        %v1189 = vpack.c.b16 %v1173, %v1172
        %v1190 = vpack.c.b16 %v1175, %v1174
        %v1191 = vpack.c.b16 %v1177, %v1176
        %v1192 = vpack.c.b16 %v1179, %v1178
        %v1193 = vpack.c.b16 %v1181, %v1180
        %v1194 = vpack.c.b16 %v1183, %v1182
        %v1195 = vpack.c.b16 %v1185, %v1184
        %v1196 = vpack.c.b16 %v1187, %v1186
        %1206 = vmatprep.subr.bf16.mxu0 0
        %1207 = vmatpush1.bf16.msra.mxu0 %v620
        %1208 = vmatprep.subr.bf16.mxu0 0
        %1209 = vmatpush1.bf16.msra.mxu0 %v621
        %1210 = vmatprep.subr.bf16.mxu0 0
        %1211 = vmatpush1.bf16.msra.mxu0 %v622
        %1212 = vmatprep.subr.bf16.mxu0 0
        %1213 = vmatpush1.bf16.msra.mxu0 %v623
        %1214 = vmatprep.subr.bf16.mxu0 0
        %1215 = vmatpush1.bf16.msra.mxu0 %v624
        %1216 = vmatprep.subr.bf16.mxu0 0
        %1217 = vmatpush1.bf16.msra.mxu0 %v625
        %1218 = vmatprep.subr.bf16.mxu0 0
        %1219 = vmatpush1.bf16.msra.mxu0 %v626
        %1220 = vmatprep.subr.bf16.mxu0 0
        %1221 = vmatpush1.bf16.msra.mxu0 %v627
        %1222 = vmatprep.subr.bf16.mxu0 0
        %1223 = vmatpush1.bf16.msra.mxu0 0
        %1224 = vmatprep.subr.bf16.mxu0 0
        %1225 = vmatpush1.bf16.msra.mxu0 0
        %1226 = vmatprep.subr.bf16.mxu0 0
        %1227 = vmatpush1.bf16.msra.mxu0 0
        %1228 = vmatprep.subr.bf16.mxu0 0
        %1229 = vmatpush1.bf16.msra.mxu0 0
        %1230 = vmatprep.subr.bf16.mxu0 0
        %1231 = vmatpush1.bf16.msra.mxu0 0
        %1232 = vmatprep.subr.bf16.mxu0 0
        %1233 = vmatpush1.bf16.msra.mxu0 0
        %1234 = vmatprep.subr.bf16.mxu0 0
        %1235 = vmatpush1.bf16.msra.mxu0 0
        %1236 = vmatprep.subr.bf16.mxu0 0
        %1237 = vmatpush1.bf16.msra.mxu0 0
        %1238 = vmatprep.mubr.bf16.mxu0 0
        %1239 = vmatmul.mubr.bf16.gmra.mrb[0].mxu0 %v1188
        %v1240 = vpop.f32.mrb[0].mxu0
        %v1241 = vadd.f32 0.0, %v1240
        %v1242 = vpop.f32.mrb[0].mxu0
        %v1243 = vpop.f32.mrb[0].mxu0
        %v1244 = vadd.f32 0.0, %v1243
        %v1245 = vpop.f32.mrb[0].mxu0
        %1246 = vmatprep.mubr.bf16.mxu0 0
        %1247 = vmatmul.mubr.bf16.gmra.mrb[0].mxu0 %v1189
        %v1248 = vpop.f32.mrb[0].mxu0
        %v1249 = vadd.f32 0.0, %v1248
        %v1250 = vpop.f32.mrb[0].mxu0
        %v1251 = vpop.f32.mrb[0].mxu0
        %v1252 = vadd.f32 0.0, %v1251
        %v1253 = vpop.f32.mrb[0].mxu0
        %1254 = vmatprep.mubr.bf16.mxu0 0
        %1255 = vmatmul.mubr.bf16.gmra.mrb[0].mxu0 %v1190
        %v1256 = vpop.f32.mrb[0].mxu0
        %v1257 = vadd.f32 0.0, %v1256
        %v1258 = vpop.f32.mrb[0].mxu0
        %v1259 = vpop.f32.mrb[0].mxu0
        %v1260 = vadd.f32 0.0, %v1259
        %v1261 = vpop.f32.mrb[0].mxu0
        %1262 = vmatprep.mubr.bf16.mxu0 0
        %1263 = vmatmul.mubr.bf16.gmra.mrb[0].mxu0 %v1191
        %v1264 = vpop.f32.mrb[0].mxu0
        %v1265 = vadd.f32 0.0, %v1264
        %v1266 = vpop.f32.mrb[0].mxu0
        %v1267 = vpop.f32.mrb[0].mxu0
        %v1268 = vadd.f32 0.0, %v1267
        %v1269 = vpop.f32.mrb[0].mxu0
        %1270 = vmatprep.mubr.bf16.mxu0 0
        %1271 = vmatmul.mubr.bf16.gmra.mrb[0].mxu0 %v1192
        %v1272 = vpop.f32.mrb[0].mxu0
        %v1273 = vadd.f32 0.0, %v1272
        %v1274 = vpop.f32.mrb[0].mxu0
        %v1275 = vpop.f32.mrb[0].mxu0
        %v1276 = vadd.f32 0.0, %v1275
        %v1277 = vpop.f32.mrb[0].mxu0
        %1278 = vmatprep.mubr.bf16.mxu0 0
        %1279 = vmatmul.mubr.bf16.gmra.mrb[0].mxu0 %v1193
        %v1280 = vpop.f32.mrb[0].mxu0
        %v1281 = vadd.f32 0.0, %v1280
        %v1282 = vpop.f32.mrb[0].mxu0
        %v1283 = vpop.f32.mrb[0].mxu0
        %v1284 = vadd.f32 0.0, %v1283
        %v1285 = vpop.f32.mrb[0].mxu0
        %1286 = vmatprep.mubr.bf16.mxu0 0
        %1287 = vmatmul.mubr.bf16.gmra.mrb[0].mxu0 %v1194
        %v1288 = vpop.f32.mrb[0].mxu0
        %v1289 = vadd.f32 0.0, %v1288
        %v1290 = vpop.f32.mrb[0].mxu0
        %v1291 = vpop.f32.mrb[0].mxu0
        %v1292 = vadd.f32 0.0, %v1291
        %v1293 = vpop.f32.mrb[0].mxu0
        %1294 = vmatprep.mubr.bf16.mxu0 0
        %1295 = vmatmul.mubr.bf16.gmra.mrb[0].mxu0 %v1195
        %v1296 = vpop.f32.mrb[0].mxu0
        %v1297 = vadd.f32 0.0, %v1296
        %v1298 = vpop.f32.mrb[0].mxu0
        %v1299 = vpop.f32.mrb[0].mxu0
        %v1300 = vadd.f32 0.0, %v1299
        %v1301 = vpop.f32.mrb[0].mxu0
        %1302 = vmatprep.mubr.bf16.mxu0 0
        %1303 = vmatmul.mubr.bf16.gmra.mrb[0].mxu0 %v1196
        %v1304 = vpop.f32.mrb[0].mxu0
        %v1305 = vadd.f32 0.0, %v1304
        %v1306 = vpop.f32.mrb[0].mxu0
        %v1307 = vpop.f32.mrb[0].mxu0
        %v1308 = vadd.f32 0.0, %v1307
        %v1309 = vpop.f32.mrb[0].mxu0
        %1310 = vdwg.mxu0
        %v1311 = vmax.f32 %v1115, %v1241
        %v1312 = vmax.f32 %v1116, %v1244
        %v1313 = vmax.f32 %v1117, %v1249
        %v1314 = vmax.f32 %v1118, %v1252
        %v1315 = vmax.f32 %v1119, %v1257
        %v1316 = vmax.f32 %v1120, %v1260
        %v1317 = vmax.f32 %v1121, %v1265
        %v1318 = vmax.f32 %v1122, %v1268
        %v1319 = vmax.f32 %v1123, %v1273
        %v1320 = vmax.f32 %v1124, %v1276
        %v1321 = vmax.f32 %v1125, %v1281
        %v1322 = vmax.f32 %v1126, %v1284
        %v1323 = vmax.f32 %v1127, %v1289
        %v1324 = vmax.f32 %v1128, %v1292
        %v1325 = vmax.f32 %v1129, %v1297
        %v1326 = vmax.f32 %v1130, %v1300
        %v1327 = vmax.f32 %v1131, %v1305
        %v1328 = vmax.f32 %v1132, %v1308
        %v1329 = vld [vmem:[%s2] sm:$0x1]
        %v1331 = vlaneseq
        %v1332 = vshrl.u32 %v1331, 7
        %v1333 = vsub.s32 0, %v1332
        %v1334 = vrot.slane %v1329, %v1333
        %v1336 = vadd.f32 %v1311, %v1334
        %v1337 = vadd.f32 %v1312, %v1334
        %v1338 = vadd.f32 %v1313, %v1334
        %v1339 = vadd.f32 %v1314, %v1334
        %v1340 = vadd.f32 %v1315, %v1334
        %v1341 = vadd.f32 %v1316, %v1334
        %v1342 = vadd.f32 %v1317, %v1334
        %v1343 = vadd.f32 %v1318, %v1334
        %v1344 = vadd.f32 %v1319, %v1334
        %v1345 = vadd.f32 %v1320, %v1334
        %v1346 = vadd.f32 %v1321, %v1334
        %v1347 = vadd.f32 %v1322, %v1334
        %v1348 = vadd.f32 %v1323, %v1334
        %v1349 = vadd.f32 %v1324, %v1334
        %v1350 = vadd.f32 %v1325, %v1334
        %v1351 = vadd.f32 %v1326, %v1334
        %v1352 = vadd.f32 %v1327, %v1334
        %v1353 = vadd.f32 %v1328, %v1334
        %v1354 = vmax.f32 %v1336, 0.0
        %v1355 = vmax.f32 %v1337, 0.0
        %v1356 = vmax.f32 %v1338, 0.0
        %v1357 = vmax.f32 %v1339, 0.0
        %v1358 = vmax.f32 %v1340, 0.0
        %v1359 = vmax.f32 %v1341, 0.0
        %v1360 = vmax.f32 %v1342, 0.0
        %v1361 = vmax.f32 %v1343, 0.0
        %v1362 = vmax.f32 %v1344, 0.0
        %v1363 = vmax.f32 %v1345, 0.0
        %v1364 = vmax.f32 %v1346, 0.0
        %v1365 = vmax.f32 %v1347, 0.0
        %v1366 = vmax.f32 %v1348, 0.0
        %v1367 = vmax.f32 %v1349, 0.0
        %v1368 = vmax.f32 %v1350, 0.0
        %v1369 = vmax.f32 %v1351, 0.0
        %v1370 = vmax.f32 %v1352, 0.0
        %v1371 = vmax.f32 %v1353, 0.0
        %v1372 = vpack.c.bf16 %v1355, %v1354
        %v1373 = vpack.c.bf16 %v1357, %v1356
        %v1374 = vpack.c.bf16 %v1359, %v1358
        %v1375 = vpack.c.bf16 %v1361, %v1360
        %v1376 = vpack.c.bf16 %v1363, %v1362
        %v1377 = vpack.c.bf16 %v1365, %v1364
        %v1378 = vpack.c.bf16 %v1367, %v1366
        %v1379 = vpack.c.bf16 %v1369, %v1368
        %v1380 = vpack.c.bf16 %v1371, %v1370
        %v1390 = vunpack.c.l.b16 %v1372
        %v1391 = vunpack.c.h.b16 %v1372
        %v1392 = vunpack.c.l.b16 %v1373
        %v1393 = vunpack.c.h.b16 %v1373
        %v1394 = vunpack.c.l.b16 %v1374
        %v1395 = vunpack.c.h.b16 %v1374
        %v1396 = vunpack.c.l.b16 %v1375
        %v1397 = vunpack.c.h.b16 %v1375
        %v1398 = vunpack.c.l.b16 %v1376
        %v1399 = vunpack.c.h.b16 %v1376
        %v1400 = vunpack.c.l.b16 %v1377
        %v1401 = vunpack.c.h.b16 %v1377
        %v1402 = vunpack.c.l.b16 %v1378
        %v1403 = vunpack.c.h.b16 %v1378
        %v1404 = vunpack.c.l.b16 %v1379
        %v1405 = vunpack.c.h.b16 %v1379
        %v1406 = vunpack.c.l.b16 %v1380
        %v1407 = vunpack.c.h.b16 %v1380
        %v1408 = vpack.c.b16 %v1390, %v1390
        %v1409 = vpack.c.b16 %v1391, %v1391
        %v1410 = vpack.c.b16 %v1392, %v1392
        %v1411 = vpack.c.b16 %v1393, %v1393
        %v1412 = vpack.c.b16 %v1394, %v1394
        %v1413 = vpack.c.b16 %v1395, %v1395
        %v1414 = vpack.c.b16 %v1396, %v1396
        %v1415 = vpack.c.b16 %v1397, %v1397
        %v1416 = vpack.c.b16 %v1398, %v1398
        %v1417 = vpack.c.b16 %v1399, %v1399
        %v1418 = vpack.c.b16 %v1400, %v1400
        %v1419 = vpack.c.b16 %v1401, %v1401
        %v1420 = vpack.c.b16 %v1402, %v1402
        %v1421 = vpack.c.b16 %v1403, %v1403
        %v1422 = vpack.c.b16 %v1404, %v1404
        %v1423 = vpack.c.b16 %v1405, %v1405
        %v1424 = vpack.c.b16 %v1406, %v1406
        %v1425 = vpack.c.b16 %v1407, %v1407
        %1444 = vst [vmem:[%s497] sm:$0xf] %v1408
        %1445 = vst [vmem:[%s497 + $0x4] sm:$0xf] %v1409
        %1446 = vst [vmem:[%s497 + $0x8] sm:$0xf] %v1410
        %1447 = vst [vmem:[%s497 + $0xc] sm:$0xf] %v1411
        %1448 = vst [vmem:[%s497 + $0x10] sm:$0xf] %v1412
        %1449 = vst [vmem:[%s497 + $0x14] sm:$0xf] %v1413
        %1450 = vst [vmem:[%s497 + $0x18] sm:$0xf] %v1414
        %1451 = vst [vmem:[%s497 + $0x1c] sm:$0xf] %v1415
        %1452 = vst [vmem:[%s497 + $0x20] sm:$0xf] %v1416
        %1453 = vst [vmem:[%s497 + $0x24] sm:$0xf] %v1417
        %1454 = vst [vmem:[%s497 + $0x28] sm:$0xf] %v1418
        %1455 = vst [vmem:[%s497 + $0x2c] sm:$0xf] %v1419
        %1456 = vst [vmem:[%s497 + $0x30] sm:$0xf] %v1420
        %1457 = vst [vmem:[%s497 + $0x34] sm:$0xf] %v1421
        %1458 = vst [vmem:[%s497 + $0x38] sm:$0xf] %v1422
        %1459 = vst [vmem:[%s497 + $0x3c] sm:$0xf] %v1423
        %1460 = vst [vmem:[%s497 + $0x40] sm:$0xf] %v1424
        %1461 = vst [vmem:[%s497 + $0x44] sm:$0xf] %v1425
        %s1462 = smul.u32 18, %s14
        %p1463 = scmp.lt.s32.totalorder %s1462, 35
        %s1464 = scalar_select %p1463, %s1462, 35
        %s1465 = smul.addr %s1464, 4
        %s1466 = scalar_lea.vmem %s3, %s1465
        // Predicated region
        $region74: #{lenet_forward.3} parent=68 // pred_check
          %p1467 = pneg %p100
        $region75: #{lenet_forward.3} parent=68 // pred_check_branch
          %1469 = sbr.rel (%p1467) target = $region77
        $region76: #{lenet_forward.3} parent=68 // pred_region
          %s1470 = smul.u32 18, %s14
        $region77: #{lenet_forward.3} parent=68 // pred_fallthru
          _
      $region69: #{lenet_forward.3} parent=5 // pred_fallthru
        _
      %p1471 = scmp.le.s32.totalorder 2, %s9
      // Predicated region
      $region78: #{lenet_forward.3} parent=5 // pred_check
        %p1472 = pneg %p1471
      $region79: #{lenet_forward.3} parent=5 // pred_check_branch
        %1474 = sbr.rel (%p1472) target = $region81
      $region80: #{lenet_forward.3} parent=5 // pred_region
        %s1475 = ssub.s32 %s9, 2
        // Predicated region
        $region82: #{lenet_forward.3} parent=80 // pred_check
          %p1476 = pneg %p106
        $region83: #{lenet_forward.3} parent=80 // pred_check_branch
          %1478 = sbr.rel (%p1476) target = $region85
        $region84: #{lenet_forward.3} parent=80 // pred_region
          %s1479 = smul.u32 18, %s15
          %p1480 = scmp.lt.s32.totalorder %s1479, 35
          %s1481 = scalar_select %p1480, %s1479, 35
          %s1482 = smul.addr %s1481, 4
          %s1483 = scalar_lea.vmem %s3, %s1482
        $region85: #{lenet_forward.3} parent=80 // pred_fallthru
          _
      $region81: #{lenet_forward.3} parent=5 // pred_fallthru
        _
    $region6: #{lenet_forward.3} parent=1 // loop_footer
      %s13 = sadd.s32 1, %s9
    $region7: #{lenet_forward.3} parent=1 // loop_footer_branch
      %8 = sbr.rel target = $region3
    $region8: #{lenet_forward.3} parent=1 // loop_exit
      _

// kernel: lenet_forward.5
$region0: #{lenet_forward.5}
  #allocation0 [shape = 'u32[]', space=smem, size = 0x4, offset = 0x4, fixed_abs, tag = 'smem constant byte address 0x4 - core index']
  #allocation1 [shape = 'u32[144,128]{1,0:T(1,128)}', space=vmem, size = 0x12000, scoped, tag = 'internal scratch']
  %s0 = inlined_call_operand.vmem [shape: bf16[8,1024], index: 0, kind: input, shape index: {}]
  %s1 = inlined_call_operand.vmem [shape: bf16[1024,256], index: 1, kind: input, shape index: {}]
  %s2 = inlined_call_operand.vmem [shape: f32[1,256], index: 2, kind: input, shape index: {}]
  %s3 = inlined_call_operand.vmem [shape: f32[1,256], index: 3, kind: input, shape index: {}]
  %s4 = inlined_call_operand.vmem [shape: f32[1,256], index: 4, kind: input, shape index: {}]
  %s5 = inlined_call_operand.vmem [shape: bf16[256,128], index: 5, kind: input, shape index: {}]
  %s6 = inlined_call_operand.vmem [shape: f32[1,128], index: 6, kind: input, shape index: {}]
  %s7 = inlined_call_operand.vmem [shape: f32[8,128], index: 7, kind: output, shape index: {}]
  %s8 = sld [smem:[#allocation0]]
  $region38: #{lenet_forward.5} parent=0
    _
  %s10 = ssub.s32 1, %s8
  %s11 = scalar_select 0, %s10, %s8
  // Predicated region
  $region2: #{lenet_forward.5} parent=0 // pred_check
    _
  $region3: #{lenet_forward.5} parent=0 // pred_check_branch
    %13 = sbr.rel (0) target = $region5
  $region4: #{lenet_forward.5} parent=0 // pred_region
    _
  $region5: #{lenet_forward.5} parent=0 // pred_fallthru
    _
  // Predicated region
  $region6: #{lenet_forward.5} parent=0 // pred_check
    _
  $region7: #{lenet_forward.5} parent=0 // pred_check_branch
    %15 = sbr.rel (0) target = $region9
  $region8: #{lenet_forward.5} parent=0 // pred_region
    _
  $region9: #{lenet_forward.5} parent=0 // pred_fallthru
    _
  // Predicated region
  $region10: #{lenet_forward.5} parent=0 // pred_check
    _
  $region11: #{lenet_forward.5} parent=0 // pred_check_branch
    %17 = sbr.rel (0) target = $region13
  $region12: #{lenet_forward.5} parent=0 // pred_region
    _
  $region13: #{lenet_forward.5} parent=0 // pred_fallthru
    _
  // Predicated region
  $region14: #{lenet_forward.5} parent=0 // pred_check
    _
  $region15: #{lenet_forward.5} parent=0 // pred_check_branch
    %19 = sbr.rel (0) target = $region17
  $region16: #{lenet_forward.5} parent=0 // pred_region
    _
  $region17: #{lenet_forward.5} parent=0 // pred_fallthru
    _
  // Predicated region
  $region18: #{lenet_forward.5} parent=0 // pred_check
    _
  $region19: #{lenet_forward.5} parent=0 // pred_check_branch
    %21 = sbr.rel (0) target = $region21
  $region20: #{lenet_forward.5} parent=0 // pred_region
    _
  $region21: #{lenet_forward.5} parent=0 // pred_fallthru
    _
  // Predicated region
  $region22: #{lenet_forward.5} parent=0 // pred_check
    _
  $region23: #{lenet_forward.5} parent=0 // pred_check_branch
    %23 = sbr.rel (0) target = $region25
  $region24: #{lenet_forward.5} parent=0 // pred_region
    _
  $region25: #{lenet_forward.5} parent=0 // pred_fallthru
    _
  // Predicated region
  $region26: #{lenet_forward.5} parent=0 // pred_check
    _
  $region27: #{lenet_forward.5} parent=0 // pred_check_branch
    %25 = sbr.rel (0) target = $region29
  $region28: #{lenet_forward.5} parent=0 // pred_region
    _
  $region29: #{lenet_forward.5} parent=0 // pred_fallthru
    _
  %v27 = vld [vmem:[%s0] sm:$0xff]
  %v28 = vld [vmem:[%s0 + $0x8] sm:$0xff]
  %v29 = vld [vmem:[%s0 + $0x10] sm:$0xff]
  %v30 = vld [vmem:[%s0 + $0x18] sm:$0xff]
  %v31 = vld [vmem:[%s1] sm:$0xff]
  %v32 = vld [vmem:[%s1 + $0x8] sm:$0xff]
  %v33 = vld [vmem:[%s1 + $0x10] sm:$0xff]
  %v34 = vld [vmem:[%s1 + $0x18] sm:$0xff]
  %v35 = vld [vmem:[%s1 + $0x20] sm:$0xff]
  %v36 = vld [vmem:[%s1 + $0x28] sm:$0xff]
  %v37 = vld [vmem:[%s1 + $0x30] sm:$0xff]
  %v38 = vld [vmem:[%s1 + $0x38] sm:$0xff]
  %v39 = vld [vmem:[%s1 + $0x40] sm:$0xff]
  %v40 = vld [vmem:[%s1 + $0x48] sm:$0xff]
  %v41 = vld [vmem:[%s1 + $0x50] sm:$0xff]
  %v42 = vld [vmem:[%s1 + $0x58] sm:$0xff]
  %v43 = vld [vmem:[%s1 + $0x60] sm:$0xff]
  %v44 = vld [vmem:[%s1 + $0x68] sm:$0xff]
  %v45 = vld [vmem:[%s1 + $0x70] sm:$0xff]
  %v46 = vld [vmem:[%s1 + $0x78] sm:$0xff]
  %v47 = vld [vmem:[%s1 + $0x80] sm:$0xff]
  %v48 = vld [vmem:[%s1 + $0x88] sm:$0xff]
  %v49 = vld [vmem:[%s1 + $0x90] sm:$0xff]
  %v50 = vld [vmem:[%s1 + $0x98] sm:$0xff]
  %v51 = vld [vmem:[%s1 + $0xa0] sm:$0xff]
  %v52 = vld [vmem:[%s1 + $0xa8] sm:$0xff]
  %v53 = vld [vmem:[%s1 + $0xb0] sm:$0xff]
  %v54 = vld [vmem:[%s1 + $0xb8] sm:$0xff]
  %v55 = vld [vmem:[%s1 + $0xc0] sm:$0xff]
  %v56 = vld [vmem:[%s1 + $0xc8] sm:$0xff]
  %v57 = vld [vmem:[%s1 + $0xd0] sm:$0xff]
  %v58 = vld [vmem:[%s1 + $0xd8] sm:$0xff]
  %v59 = vld [vmem:[%s1 + $0xe0] sm:$0xff]
  %v60 = vld [vmem:[%s1 + $0xe8] sm:$0xff]
  %v61 = vld [vmem:[%s1 + $0xf0] sm:$0xff]
  %v62 = vld [vmem:[%s1 + $0xf8] sm:$0xff]
  %v63 = vld [vmem:[%s1 + $0x100] sm:$0xff]
  %v64 = vld [vmem:[%s1 + $0x108] sm:$0xff]
  %v65 = vld [vmem:[%s1 + $0x110] sm:$0xff]
  %v66 = vld [vmem:[%s1 + $0x118] sm:$0xff]
  %v67 = vld [vmem:[%s1 + $0x120] sm:$0xff]
  %v68 = vld [vmem:[%s1 + $0x128] sm:$0xff]
  %v69 = vld [vmem:[%s1 + $0x130] sm:$0xff]
  %v70 = vld [vmem:[%s1 + $0x138] sm:$0xff]
  %v71 = vld [vmem:[%s1 + $0x140] sm:$0xff]
  %v72 = vld [vmem:[%s1 + $0x148] sm:$0xff]
  %v73 = vld [vmem:[%s1 + $0x150] sm:$0xff]
  %v74 = vld [vmem:[%s1 + $0x158] sm:$0xff]
  %v75 = vld [vmem:[%s1 + $0x160] sm:$0xff]
  %v76 = vld [vmem:[%s1 + $0x168] sm:$0xff]
  %v77 = vld [vmem:[%s1 + $0x170] sm:$0xff]
  %v78 = vld [vmem:[%s1 + $0x178] sm:$0xff]
  %v79 = vld [vmem:[%s1 + $0x180] sm:$0xff]
  %v80 = vld [vmem:[%s1 + $0x188] sm:$0xff]
  %v81 = vld [vmem:[%s1 + $0x190] sm:$0xff]
  %v82 = vld [vmem:[%s1 + $0x198] sm:$0xff]
  %v83 = vld [vmem:[%s1 + $0x1a0] sm:$0xff]
  %v84 = vld [vmem:[%s1 + $0x1a8] sm:$0xff]
  %v85 = vld [vmem:[%s1 + $0x1b0] sm:$0xff]
  %v86 = vld [vmem:[%s1 + $0x1b8] sm:$0xff]
  %v87 = vld [vmem:[%s1 + $0x1c0] sm:$0xff]
  %v88 = vld [vmem:[%s1 + $0x1c8] sm:$0xff]
  %v89 = vld [vmem:[%s1 + $0x1d0] sm:$0xff]
  %v90 = vld [vmem:[%s1 + $0x1d8] sm:$0xff]
  %v91 = vld [vmem:[%s1 + $0x1e0] sm:$0xff]
  %v92 = vld [vmem:[%s1 + $0x1e8] sm:$0xff]
  %v93 = vld [vmem:[%s1 + $0x1f0] sm:$0xff]
  %v94 = vld [vmem:[%s1 + $0x1f8] sm:$0xff]
  %v95 = vld [vmem:[%s1 + $0x200] sm:$0xff]
  %v96 = vld [vmem:[%s1 + $0x208] sm:$0xff]
  %v97 = vld [vmem:[%s1 + $0x210] sm:$0xff]
  %v98 = vld [vmem:[%s1 + $0x218] sm:$0xff]
  %v99 = vld [vmem:[%s1 + $0x220] sm:$0xff]
  %v100 = vld [vmem:[%s1 + $0x228] sm:$0xff]
  %v101 = vld [vmem:[%s1 + $0x230] sm:$0xff]
  %v102 = vld [vmem:[%s1 + $0x238] sm:$0xff]
  %v103 = vld [vmem:[%s1 + $0x240] sm:$0xff]
  %v104 = vld [vmem:[%s1 + $0x248] sm:$0xff]
  %v105 = vld [vmem:[%s1 + $0x250] sm:$0xff]
  %v106 = vld [vmem:[%s1 + $0x258] sm:$0xff]
  %v107 = vld [vmem:[%s1 + $0x260] sm:$0xff]
  %v108 = vld [vmem:[%s1 + $0x268] sm:$0xff]
  %v109 = vld [vmem:[%s1 + $0x270] sm:$0xff]
  %v110 = vld [vmem:[%s1 + $0x278] sm:$0xff]
  %v111 = vld [vmem:[%s1 + $0x280] sm:$0xff]
  %v112 = vld [vmem:[%s1 + $0x288] sm:$0xff]
  %v113 = vld [vmem:[%s1 + $0x290] sm:$0xff]
  %v114 = vld [vmem:[%s1 + $0x298] sm:$0xff]
  %v115 = vld [vmem:[%s1 + $0x2a0] sm:$0xff]
  %v116 = vld [vmem:[%s1 + $0x2a8] sm:$0xff]
  %v117 = vld [vmem:[%s1 + $0x2b0] sm:$0xff]
  %v118 = vld [vmem:[%s1 + $0x2b8] sm:$0xff]
  %v119 = vld [vmem:[%s1 + $0x2c0] sm:$0xff]
  %v120 = vld [vmem:[%s1 + $0x2c8] sm:$0xff]
  %v121 = vld [vmem:[%s1 + $0x2d0] sm:$0xff]
  %v122 = vld [vmem:[%s1 + $0x2d8] sm:$0xff]
  %v123 = vld [vmem:[%s1 + $0x2e0] sm:$0xff]
  %v124 = vld [vmem:[%s1 + $0x2e8] sm:$0xff]
  %v125 = vld [vmem:[%s1 + $0x2f0] sm:$0xff]
  %v126 = vld [vmem:[%s1 + $0x2f8] sm:$0xff]
  %v127 = vld [vmem:[%s1 + $0x300] sm:$0xff]
  %v128 = vld [vmem:[%s1 + $0x308] sm:$0xff]
  %v129 = vld [vmem:[%s1 + $0x310] sm:$0xff]
  %v130 = vld [vmem:[%s1 + $0x318] sm:$0xff]
  %v131 = vld [vmem:[%s1 + $0x320] sm:$0xff]
  %v132 = vld [vmem:[%s1 + $0x328] sm:$0xff]
  %v133 = vld [vmem:[%s1 + $0x330] sm:$0xff]
  %v134 = vld [vmem:[%s1 + $0x338] sm:$0xff]
  %v135 = vld [vmem:[%s1 + $0x340] sm:$0xff]
  %v136 = vld [vmem:[%s1 + $0x348] sm:$0xff]
  %v137 = vld [vmem:[%s1 + $0x350] sm:$0xff]
  %v138 = vld [vmem:[%s1 + $0x358] sm:$0xff]
  %v139 = vld [vmem:[%s1 + $0x360] sm:$0xff]
  %v140 = vld [vmem:[%s1 + $0x368] sm:$0xff]
  %v141 = vld [vmem:[%s1 + $0x370] sm:$0xff]
  %v142 = vld [vmem:[%s1 + $0x378] sm:$0xff]
  %v143 = vld [vmem:[%s1 + $0x380] sm:$0xff]
  %v144 = vld [vmem:[%s1 + $0x388] sm:$0xff]
  %v145 = vld [vmem:[%s1 + $0x390] sm:$0xff]
  %v146 = vld [vmem:[%s1 + $0x398] sm:$0xff]
  %v147 = vld [vmem:[%s1 + $0x3a0] sm:$0xff]
  %v148 = vld [vmem:[%s1 + $0x3a8] sm:$0xff]
  %v149 = vld [vmem:[%s1 + $0x3b0] sm:$0xff]
  %v150 = vld [vmem:[%s1 + $0x3b8] sm:$0xff]
  %v151 = vld [vmem:[%s1 + $0x3c0] sm:$0xff]
  %v152 = vld [vmem:[%s1 + $0x3c8] sm:$0xff]
  %v153 = vld [vmem:[%s1 + $0x3d0] sm:$0xff]
  %v154 = vld [vmem:[%s1 + $0x3d8] sm:$0xff]
  %v155 = vld [vmem:[%s1 + $0x3e0] sm:$0xff]
  %v156 = vld [vmem:[%s1 + $0x3e8] sm:$0xff]
  %v157 = vld [vmem:[%s1 + $0x3f0] sm:$0xff]
  %v158 = vld [vmem:[%s1 + $0x3f8] sm:$0xff]
  %v159 = vld [vmem:[%s2] sm:$0x3]
  %v161 = vlaneseq
  %v162 = vshrl.u32 %v161, 7
  %v163 = vsub.s32 0, %v162
  %v164 = vrot.slane %v159, %v163
  %v165 = vlaneseq
  %v166 = vshrl.u32 %v165, 7
  %v167 = vsub.s32 1, %v166
  %v168 = vrot.slane %v159, %v167
  %v175 = vunpack.c.l.b16 %v27
  %v176 = vunpack.c.h.b16 %v27
  %v177 = vunpack.c.l.b16 %v28
  %v178 = vunpack.c.h.b16 %v28
  %v179 = vunpack.c.l.b16 %v29
  %v180 = vunpack.c.h.b16 %v29
  %v181 = vunpack.c.l.b16 %v30
  %v182 = vunpack.c.h.b16 %v30
  %v183 = vpack.c.b16 %v175, %v175
  %v184 = vpack.c.b16 %v176, %v176
  %v185 = vpack.c.b16 %v177, %v177
  %v186 = vpack.c.b16 %v178, %v178
  %v187 = vpack.c.b16 %v179, %v179
  %v188 = vpack.c.b16 %v180, %v180
  %v189 = vpack.c.b16 %v181, %v181
  %v190 = vpack.c.b16 %v182, %v182
  %v327 = vunpack.c.l.b16 %v31
  %v328 = vunpack.c.h.b16 %v31
  %v329 = vunpack.c.l.b16 %v32
  %v330 = vunpack.c.h.b16 %v32
  %v331 = vunpack.c.l.b16 %v33
  %v332 = vunpack.c.h.b16 %v33
  %v333 = vunpack.c.l.b16 %v34
  %v334 = vunpack.c.h.b16 %v34
  %v335 = vunpack.c.l.b16 %v35
  %v336 = vunpack.c.h.b16 %v35
  %v337 = vunpack.c.l.b16 %v36
  %v338 = vunpack.c.h.b16 %v36
  %v339 = vunpack.c.l.b16 %v37
  %v340 = vunpack.c.h.b16 %v37
  %v341 = vunpack.c.l.b16 %v38
  %v342 = vunpack.c.h.b16 %v38
  %v343 = vunpack.c.l.b16 %v39
  %v344 = vunpack.c.h.b16 %v39
  %v345 = vunpack.c.l.b16 %v40
  %v346 = vunpack.c.h.b16 %v40
  %v347 = vunpack.c.l.b16 %v41
  %v348 = vunpack.c.h.b16 %v41
  %v349 = vunpack.c.l.b16 %v42
  %v350 = vunpack.c.h.b16 %v42
  %v351 = vunpack.c.l.b16 %v43
  %v352 = vunpack.c.h.b16 %v43
  %v353 = vunpack.c.l.b16 %v44
  %v354 = vunpack.c.h.b16 %v44
  %v355 = vunpack.c.l.b16 %v45
  %v356 = vunpack.c.h.b16 %v45
  %v357 = vunpack.c.l.b16 %v46
  %v358 = vunpack.c.h.b16 %v46
  %v359 = vunpack.c.l.b16 %v47
  %v360 = vunpack.c.h.b16 %v47
  %v361 = vunpack.c.l.b16 %v48
  %v362 = vunpack.c.h.b16 %v48
  %v363 = vunpack.c.l.b16 %v49
  %v364 = vunpack.c.h.b16 %v49
  %v365 = vunpack.c.l.b16 %v50
  %v366 = vunpack.c.h.b16 %v50
  %v367 = vunpack.c.l.b16 %v51
  %v368 = vunpack.c.h.b16 %v51
  %v369 = vunpack.c.l.b16 %v52
  %v370 = vunpack.c.h.b16 %v52
  %v371 = vunpack.c.l.b16 %v53
  %v372 = vunpack.c.h.b16 %v53
  %v373 = vunpack.c.l.b16 %v54
  %v374 = vunpack.c.h.b16 %v54
  %v375 = vunpack.c.l.b16 %v55
  %v376 = vunpack.c.h.b16 %v55
  %v377 = vunpack.c.l.b16 %v56
  %v378 = vunpack.c.h.b16 %v56
  %v379 = vunpack.c.l.b16 %v57
  %v380 = vunpack.c.h.b16 %v57
  %v381 = vunpack.c.l.b16 %v58
  %v382 = vunpack.c.h.b16 %v58
  %v383 = vunpack.c.l.b16 %v59
  %v384 = vunpack.c.h.b16 %v59
  %v385 = vunpack.c.l.b16 %v60
  %v386 = vunpack.c.h.b16 %v60
  %v387 = vunpack.c.l.b16 %v61
  %v388 = vunpack.c.h.b16 %v61
  %v389 = vunpack.c.l.b16 %v62
  %v390 = vunpack.c.h.b16 %v62
  %v391 = vunpack.c.l.b16 %v63
  %v392 = vunpack.c.h.b16 %v63
  %v393 = vunpack.c.l.b16 %v64
  %v394 = vunpack.c.h.b16 %v64
  %v395 = vunpack.c.l.b16 %v65
  %v396 = vunpack.c.h.b16 %v65
  %v397 = vunpack.c.l.b16 %v66
  %v398 = vunpack.c.h.b16 %v66
  %v399 = vunpack.c.l.b16 %v67
  %v400 = vunpack.c.h.b16 %v67
  %v401 = vunpack.c.l.b16 %v68
  %v402 = vunpack.c.h.b16 %v68
  %v403 = vunpack.c.l.b16 %v69
  %v404 = vunpack.c.h.b16 %v69
  %v405 = vunpack.c.l.b16 %v70
  %v406 = vunpack.c.h.b16 %v70
  %v407 = vunpack.c.l.b16 %v71
  %v408 = vunpack.c.h.b16 %v71
  %v409 = vunpack.c.l.b16 %v72
  %v410 = vunpack.c.h.b16 %v72
  %v411 = vunpack.c.l.b16 %v73
  %v412 = vunpack.c.h.b16 %v73
  %v413 = vunpack.c.l.b16 %v74
  %v414 = vunpack.c.h.b16 %v74
  %v415 = vunpack.c.l.b16 %v75
  %v416 = vunpack.c.h.b16 %v75
  %v417 = vunpack.c.l.b16 %v76
  %v418 = vunpack.c.h.b16 %v76
  %v419 = vunpack.c.l.b16 %v77
  %v420 = vunpack.c.h.b16 %v77
  %v421 = vunpack.c.l.b16 %v78
  %v422 = vunpack.c.h.b16 %v78
  %v423 = vunpack.c.l.b16 %v79
  %v424 = vunpack.c.h.b16 %v79
  %v425 = vunpack.c.l.b16 %v80
  %v426 = vunpack.c.h.b16 %v80
  %v427 = vunpack.c.l.b16 %v81
  %v428 = vunpack.c.h.b16 %v81
  %v429 = vunpack.c.l.b16 %v82
  %v430 = vunpack.c.h.b16 %v82
  %v431 = vunpack.c.l.b16 %v83
  %v432 = vunpack.c.h.b16 %v83
  %v433 = vunpack.c.l.b16 %v84
  %v434 = vunpack.c.h.b16 %v84
  %v435 = vunpack.c.l.b16 %v85
  %v436 = vunpack.c.h.b16 %v85
  %v437 = vunpack.c.l.b16 %v86
  %v438 = vunpack.c.h.b16 %v86
  %v439 = vunpack.c.l.b16 %v87
  %v440 = vunpack.c.h.b16 %v87
  %v441 = vunpack.c.l.b16 %v88
  %v442 = vunpack.c.h.b16 %v88
  %v443 = vunpack.c.l.b16 %v89
  %v444 = vunpack.c.h.b16 %v89
  %v445 = vunpack.c.l.b16 %v90
  %v446 = vunpack.c.h.b16 %v90
  %v447 = vunpack.c.l.b16 %v91
  %v448 = vunpack.c.h.b16 %v91
  %v449 = vunpack.c.l.b16 %v92
  %v450 = vunpack.c.h.b16 %v92
  %v451 = vunpack.c.l.b16 %v93
  %v452 = vunpack.c.h.b16 %v93
  %v453 = vunpack.c.l.b16 %v94
  %v454 = vunpack.c.h.b16 %v94
  %v455 = vunpack.c.l.b16 %v95
  %v456 = vunpack.c.h.b16 %v95
  %v457 = vunpack.c.l.b16 %v96
  %v458 = vunpack.c.h.b16 %v96
  %v459 = vunpack.c.l.b16 %v97
  %v460 = vunpack.c.h.b16 %v97
  %v461 = vunpack.c.l.b16 %v98
  %v462 = vunpack.c.h.b16 %v98
  %v463 = vunpack.c.l.b16 %v99
  %v464 = vunpack.c.h.b16 %v99
  %v465 = vunpack.c.l.b16 %v100
  %v466 = vunpack.c.h.b16 %v100
  %v467 = vunpack.c.l.b16 %v101
  %v468 = vunpack.c.h.b16 %v101
  %v469 = vunpack.c.l.b16 %v102
  %v470 = vunpack.c.h.b16 %v102
  %v471 = vunpack.c.l.b16 %v103
  %v472 = vunpack.c.h.b16 %v103
  %v473 = vunpack.c.l.b16 %v104
  %v474 = vunpack.c.h.b16 %v104
  %v475 = vunpack.c.l.b16 %v105
  %v476 = vunpack.c.h.b16 %v105
  %v477 = vunpack.c.l.b16 %v106
  %v478 = vunpack.c.h.b16 %v106
  %v479 = vunpack.c.l.b16 %v107
  %v480 = vunpack.c.h.b16 %v107
  %v481 = vunpack.c.l.b16 %v108
  %v482 = vunpack.c.h.b16 %v108
  %v483 = vunpack.c.l.b16 %v109
  %v484 = vunpack.c.h.b16 %v109
  %v485 = vunpack.c.l.b16 %v110
  %v486 = vunpack.c.h.b16 %v110
  %v487 = vunpack.c.l.b16 %v111
  %v488 = vunpack.c.h.b16 %v111
  %v489 = vunpack.c.l.b16 %v112
  %v490 = vunpack.c.h.b16 %v112
  %v491 = vunpack.c.l.b16 %v113
  %v492 = vunpack.c.h.b16 %v113
  %v493 = vunpack.c.l.b16 %v114
  %v494 = vunpack.c.h.b16 %v114
  %v495 = vunpack.c.l.b16 %v115
  %v496 = vunpack.c.h.b16 %v115
  %v497 = vunpack.c.l.b16 %v116
  %v498 = vunpack.c.h.b16 %v116
  %v499 = vunpack.c.l.b16 %v117
  %v500 = vunpack.c.h.b16 %v117
  %v501 = vunpack.c.l.b16 %v118
  %v502 = vunpack.c.h.b16 %v118
  %v503 = vunpack.c.l.b16 %v119
  %v504 = vunpack.c.h.b16 %v119
  %v505 = vunpack.c.l.b16 %v120
  %v506 = vunpack.c.h.b16 %v120
  %v507 = vunpack.c.l.b16 %v121
  %v508 = vunpack.c.h.b16 %v121
  %v509 = vunpack.c.l.b16 %v122
  %v510 = vunpack.c.h.b16 %v122
  %v511 = vunpack.c.l.b16 %v123
  %v512 = vunpack.c.h.b16 %v123
  %v513 = vunpack.c.l.b16 %v124
  %v514 = vunpack.c.h.b16 %v124
  %v515 = vunpack.c.l.b16 %v125
  %v516 = vunpack.c.h.b16 %v125
  %v517 = vunpack.c.l.b16 %v126
  %v518 = vunpack.c.h.b16 %v126
  %v519 = vunpack.c.l.b16 %v127
  %v520 = vunpack.c.h.b16 %v127
  %v521 = vunpack.c.l.b16 %v128
  %v522 = vunpack.c.h.b16 %v128
  %v523 = vunpack.c.l.b16 %v129
  %v524 = vunpack.c.h.b16 %v129
  %v525 = vunpack.c.l.b16 %v130
  %v526 = vunpack.c.h.b16 %v130
  %v527 = vunpack.c.l.b16 %v131
  %v528 = vunpack.c.h.b16 %v131
  %v529 = vunpack.c.l.b16 %v132
  %v530 = vunpack.c.h.b16 %v132
  %v531 = vunpack.c.l.b16 %v133
  %v532 = vunpack.c.h.b16 %v133
  %v533 = vunpack.c.l.b16 %v134
  %v534 = vunpack.c.h.b16 %v134
  %v535 = vunpack.c.l.b16 %v135
  %v536 = vunpack.c.h.b16 %v135
  %v537 = vunpack.c.l.b16 %v136
  %v538 = vunpack.c.h.b16 %v136
  %v539 = vunpack.c.l.b16 %v137
  %v540 = vunpack.c.h.b16 %v137
  %v541 = vunpack.c.l.b16 %v138
  %v542 = vunpack.c.h.b16 %v138
  %v543 = vunpack.c.l.b16 %v139
  %v544 = vunpack.c.h.b16 %v139
  %v545 = vunpack.c.l.b16 %v140
  %v546 = vunpack.c.h.b16 %v140
  %v547 = vunpack.c.l.b16 %v141
  %v548 = vunpack.c.h.b16 %v141
  %v549 = vunpack.c.l.b16 %v142
  %v550 = vunpack.c.h.b16 %v142
  %v551 = vunpack.c.l.b16 %v143
  %v552 = vunpack.c.h.b16 %v143
  %v553 = vunpack.c.l.b16 %v144
  %v554 = vunpack.c.h.b16 %v144
  %v555 = vunpack.c.l.b16 %v145
  %v556 = vunpack.c.h.b16 %v145
  %v557 = vunpack.c.l.b16 %v146
  %v558 = vunpack.c.h.b16 %v146
  %v559 = vunpack.c.l.b16 %v147
  %v560 = vunpack.c.h.b16 %v147
  %v561 = vunpack.c.l.b16 %v148
  %v562 = vunpack.c.h.b16 %v148
  %v563 = vunpack.c.l.b16 %v149
  %v564 = vunpack.c.h.b16 %v149
  %v565 = vunpack.c.l.b16 %v150
  %v566 = vunpack.c.h.b16 %v150
  %v567 = vunpack.c.l.b16 %v151
  %v568 = vunpack.c.h.b16 %v151
  %v569 = vunpack.c.l.b16 %v152
  %v570 = vunpack.c.h.b16 %v152
  %v571 = vunpack.c.l.b16 %v153
  %v572 = vunpack.c.h.b16 %v153
  %v573 = vunpack.c.l.b16 %v154
  %v574 = vunpack.c.h.b16 %v154
  %v575 = vunpack.c.l.b16 %v155
  %v576 = vunpack.c.h.b16 %v155
  %v577 = vunpack.c.l.b16 %v156
  %v578 = vunpack.c.h.b16 %v156
  %v579 = vunpack.c.l.b16 %v157
  %v580 = vunpack.c.h.b16 %v157
  %v581 = vunpack.c.l.b16 %v158
  %v582 = vunpack.c.h.b16 %v158
  %v583 = vpack.c.b16 %v329, %v327
  %v584 = vpack.c.b16 %v330, %v328
  %v585 = vpack.c.b16 %v333, %v331
  %v586 = vpack.c.b16 %v334, %v332
  %v587 = vpack.c.b16 %v337, %v335
  %v588 = vpack.c.b16 %v338, %v336
  %v589 = vpack.c.b16 %v341, %v339
  %v590 = vpack.c.b16 %v342, %v340
  %v591 = vpack.c.b16 %v345, %v343
  %v592 = vpack.c.b16 %v346, %v344
  %v593 = vpack.c.b16 %v349, %v347
  %v594 = vpack.c.b16 %v350, %v348
  %v595 = vpack.c.b16 %v353, %v351
  %v596 = vpack.c.b16 %v354, %v352
  %v597 = vpack.c.b16 %v357, %v355
  %v598 = vpack.c.b16 %v358, %v356
  %v599 = vpack.c.b16 %v361, %v359
  %v600 = vpack.c.b16 %v362, %v360
  %v601 = vpack.c.b16 %v365, %v363
  %v602 = vpack.c.b16 %v366, %v364
  %v603 = vpack.c.b16 %v369, %v367
  %v604 = vpack.c.b16 %v370, %v368
  %v605 = vpack.c.b16 %v373, %v371
  %v606 = vpack.c.b16 %v374, %v372
  %v607 = vpack.c.b16 %v377, %v375
  %v608 = vpack.c.b16 %v378, %v376
  %v609 = vpack.c.b16 %v381, %v379
  %v610 = vpack.c.b16 %v382, %v380
  %v611 = vpack.c.b16 %v385, %v383
  %v612 = vpack.c.b16 %v386, %v384
  %v613 = vpack.c.b16 %v389, %v387
  %v614 = vpack.c.b16 %v390, %v388
  %v615 = vpack.c.b16 %v393, %v391
  %v616 = vpack.c.b16 %v394, %v392
  %v617 = vpack.c.b16 %v397, %v395
  %v618 = vpack.c.b16 %v398, %v396
  %v619 = vpack.c.b16 %v401, %v399
  %v620 = vpack.c.b16 %v402, %v400
  %v621 = vpack.c.b16 %v405, %v403
  %v622 = vpack.c.b16 %v406, %v404
  %v623 = vpack.c.b16 %v409, %v407
  %v624 = vpack.c.b16 %v410, %v408
  %v625 = vpack.c.b16 %v413, %v411
  %v626 = vpack.c.b16 %v414, %v412
  %v627 = vpack.c.b16 %v417, %v415
  %v628 = vpack.c.b16 %v418, %v416
  %v629 = vpack.c.b16 %v421, %v419
  %v630 = vpack.c.b16 %v422, %v420
  %v631 = vpack.c.b16 %v425, %v423
  %v632 = vpack.c.b16 %v426, %v424
  %v633 = vpack.c.b16 %v429, %v427
  %v634 = vpack.c.b16 %v430, %v428
  %v635 = vpack.c.b16 %v433, %v431
  %v636 = vpack.c.b16 %v434, %v432
  %v637 = vpack.c.b16 %v437, %v435
  %v638 = vpack.c.b16 %v438, %v436
  %v639 = vpack.c.b16 %v441, %v439
  %v640 = vpack.c.b16 %v442, %v440
  %v641 = vpack.c.b16 %v445, %v443
  %v642 = vpack.c.b16 %v446, %v444
  %v643 = vpack.c.b16 %v449, %v447
  %v644 = vpack.c.b16 %v450, %v448
  %v645 = vpack.c.b16 %v453, %v451
  %v646 = vpack.c.b16 %v454, %v452
  %v647 = vpack.c.b16 %v457, %v455
  %v648 = vpack.c.b16 %v458, %v456
  %v649 = vpack.c.b16 %v461, %v459
  %v650 = vpack.c.b16 %v462, %v460
  %v651 = vpack.c.b16 %v465, %v463
  %v652 = vpack.c.b16 %v466, %v464
  %v653 = vpack.c.b16 %v469, %v467
  %v654 = vpack.c.b16 %v470, %v468
  %v655 = vpack.c.b16 %v473, %v471
  %v656 = vpack.c.b16 %v474, %v472
  %v657 = vpack.c.b16 %v477, %v475
  %v658 = vpack.c.b16 %v478, %v476
  %v659 = vpack.c.b16 %v481, %v479
  %v660 = vpack.c.b16 %v482, %v480
  %v661 = vpack.c.b16 %v485, %v483
  %v662 = vpack.c.b16 %v486, %v484
  %v663 = vpack.c.b16 %v489, %v487
  %v664 = vpack.c.b16 %v490, %v488
  %v665 = vpack.c.b16 %v493, %v491
  %v666 = vpack.c.b16 %v494, %v492
  %v667 = vpack.c.b16 %v497, %v495
  %v668 = vpack.c.b16 %v498, %v496
  %v669 = vpack.c.b16 %v501, %v499
  %v670 = vpack.c.b16 %v502, %v500
  %v671 = vpack.c.b16 %v505, %v503
  %v672 = vpack.c.b16 %v506, %v504
  %v673 = vpack.c.b16 %v509, %v507
  %v674 = vpack.c.b16 %v510, %v508
  %v675 = vpack.c.b16 %v513, %v511
  %v676 = vpack.c.b16 %v514, %v512
  %v677 = vpack.c.b16 %v517, %v515
  %v678 = vpack.c.b16 %v518, %v516
  %v679 = vpack.c.b16 %v521, %v519
  %v680 = vpack.c.b16 %v522, %v520
  %v681 = vpack.c.b16 %v525, %v523
  %v682 = vpack.c.b16 %v526, %v524
  %v683 = vpack.c.b16 %v529, %v527
  %v684 = vpack.c.b16 %v530, %v528
  %v685 = vpack.c.b16 %v533, %v531
  %v686 = vpack.c.b16 %v534, %v532
  %v687 = vpack.c.b16 %v537, %v535
  %v688 = vpack.c.b16 %v538, %v536
  %v689 = vpack.c.b16 %v541, %v539
  %v690 = vpack.c.b16 %v542, %v540
  %v691 = vpack.c.b16 %v545, %v543
  %v692 = vpack.c.b16 %v546, %v544
  %v693 = vpack.c.b16 %v549, %v547
  %v694 = vpack.c.b16 %v550, %v548
  %v695 = vpack.c.b16 %v553, %v551
  %v696 = vpack.c.b16 %v554, %v552
  %v697 = vpack.c.b16 %v557, %v555
  %v698 = vpack.c.b16 %v558, %v556
  %v699 = vpack.c.b16 %v561, %v559
  %v700 = vpack.c.b16 %v562, %v560
  %v701 = vpack.c.b16 %v565, %v563
  %v702 = vpack.c.b16 %v566, %v564
  %v703 = vpack.c.b16 %v569, %v567
  %v704 = vpack.c.b16 %v570, %v568
  %v705 = vpack.c.b16 %v573, %v571
  %v706 = vpack.c.b16 %v574, %v572
  %v707 = vpack.c.b16 %v577, %v575
  %v708 = vpack.c.b16 %v578, %v576
  %v709 = vpack.c.b16 %v581, %v579
  %v710 = vpack.c.b16 %v582, %v580
  %839 = vmatprep.subr.bf16.mxu0 %v584
  %840 = vmatpush1.bf16.msra.mxu0 %v583
  %841 = vmatprep.subr.bf16.mxu0 %v586
  %842 = vmatpush1.bf16.msra.mxu0 %v585
  %843 = vmatprep.subr.bf16.mxu0 %v588
  %844 = vmatpush1.bf16.msra.mxu0 %v587
  %845 = vmatprep.subr.bf16.mxu0 %v590
  %846 = vmatpush1.bf16.msra.mxu0 %v589
  %847 = vmatprep.subr.bf16.mxu0 %v592
  %848 = vmatpush1.bf16.msra.mxu0 %v591
  %849 = vmatprep.subr.bf16.mxu0 %v594
  %850 = vmatpush1.bf16.msra.mxu0 %v593
  %851 = vmatprep.subr.bf16.mxu0 %v596
  %852 = vmatpush1.bf16.msra.mxu0 %v595
  %853 = vmatprep.subr.bf16.mxu0 %v598
  %854 = vmatpush1.bf16.msra.mxu0 %v597
  %855 = vmatprep.subr.bf16.mxu0 %v600
  %856 = vmatpush1.bf16.msra.mxu0 %v599
  %857 = vmatprep.subr.bf16.mxu0 %v602
  %858 = vmatpush1.bf16.msra.mxu0 %v601
  %859 = vmatprep.subr.bf16.mxu0 %v604
  %860 = vmatpush1.bf16.msra.mxu0 %v603
  %861 = vmatprep.subr.bf16.mxu0 %v606
  %862 = vmatpush1.bf16.msra.mxu0 %v605
  %863 = vmatprep.subr.bf16.mxu0 %v608
  %864 = vmatpush1.bf16.msra.mxu0 %v607
  %865 = vmatprep.subr.bf16.mxu0 %v610
  %866 = vmatpush1.bf16.msra.mxu0 %v609
  %867 = vmatprep.subr.bf16.mxu0 %v612
  %868 = vmatpush1.bf16.msra.mxu0 %v611
  %869 = vmatprep.subr.bf16.mxu0 %v614
  %870 = vmatpush1.bf16.msra.mxu0 %v613
  %871 = vmatprep.mubr.bf16.mxu0 %v184
  %872 = vmatmul.mubr.bf16.gmra.mrb[0].mxu0 %v183
  %v873 = vpop.f32.mrb[0].mxu0
  %v874 = vadd.f32 %v164, %v873
  %v875 = vpop.f32.mrb[0].mxu0
  %v876 = vadd.f32 %v168, %v875
  %v877 = vpop.f32.mrb[0].mxu0
  %v878 = vpop.f32.mrb[0].mxu0
  %879 = vdwg.mxu0
  %880 = vmatprep.subr.bf16.mxu0 %v616
  %881 = vmatpush1.bf16.msra.mxu0 %v615
  %882 = vmatprep.subr.bf16.mxu0 %v618
  %883 = vmatpush1.bf16.msra.mxu0 %v617
  %884 = vmatprep.subr.bf16.mxu0 %v620
  %885 = vmatpush1.bf16.msra.mxu0 %v619
  %886 = vmatprep.subr.bf16.mxu0 %v622
  %887 = vmatpush1.bf16.msra.mxu0 %v621
  %888 = vmatprep.subr.bf16.mxu0 %v624
  %889 = vmatpush1.bf16.msra.mxu0 %v623
  %890 = vmatprep.subr.bf16.mxu0 %v626
  %891 = vmatpush1.bf16.msra.mxu0 %v625
  %892 = vmatprep.subr.bf16.mxu0 %v628
  %893 = vmatpush1.bf16.msra.mxu0 %v627
  %894 = vmatprep.subr.bf16.mxu0 %v630
  %895 = vmatpush1.bf16.msra.mxu0 %v629
  %896 = vmatprep.subr.bf16.mxu0 %v632
  %897 = vmatpush1.bf16.msra.mxu0 %v631
  %898 = vmatprep.subr.bf16.mxu0 %v634
  %899 = vmatpush1.bf16.msra.mxu0 %v633
  %900 = vmatprep.subr.bf16.mxu0 %v636
  %901 = vmatpush1.bf16.msra.mxu0 %v635
  %902 = vmatprep.subr.bf16.mxu0 %v638
  %903 = vmatpush1.bf16.msra.mxu0 %v637
  %904 = vmatprep.subr.bf16.mxu0 %v640
  %905 = vmatpush1.bf16.msra.mxu0 %v639
  %906 = vmatprep.subr.bf16.mxu0 %v642
  %907 = vmatpush1.bf16.msra.mxu0 %v641
  %908 = vmatprep.subr.bf16.mxu0 %v644
  %909 = vmatpush1.bf16.msra.mxu0 %v643
  %910 = vmatprep.subr.bf16.mxu0 %v646
  %911 = vmatpush1.bf16.msra.mxu0 %v645
  %912 = vmatprep.mubr.bf16.mxu0 %v186
  %913 = vmatmul.mubr.bf16.gmra.mrb[0].mxu0 %v185
  %v914 = vpop.f32.mrb[0].mxu0
  %v915 = vadd.f32 %v874, %v914
  %v916 = vpop.f32.mrb[0].mxu0
  %v917 = vadd.f32 %v876, %v916
  %v918 = vpop.f32.mrb[0].mxu0
  %v919 = vpop.f32.mrb[0].mxu0
  %920 = vdwg.mxu0
  %921 = vmatprep.subr.bf16.mxu0 %v648
  %922 = vmatpush1.bf16.msra.mxu0 %v647
  %923 = vmatprep.subr.bf16.mxu0 %v650
  %924 = vmatpush1.bf16.msra.mxu0 %v649
  %925 = vmatprep.subr.bf16.mxu0 %v652
  %926 = vmatpush1.bf16.msra.mxu0 %v651
  %927 = vmatprep.subr.bf16.mxu0 %v654
  %928 = vmatpush1.bf16.msra.mxu0 %v653
  %929 = vmatprep.subr.bf16.mxu0 %v656
  %930 = vmatpush1.bf16.msra.mxu0 %v655
  %931 = vmatprep.subr.bf16.mxu0 %v658
  %932 = vmatpush1.bf16.msra.mxu0 %v657
  %933 = vmatprep.subr.bf16.mxu0 %v660
  %934 = vmatpush1.bf16.msra.mxu0 %v659
  %935 = vmatprep.subr.bf16.mxu0 %v662
  %936 = vmatpush1.bf16.msra.mxu0 %v661
  %937 = vmatprep.subr.bf16.mxu0 %v664
  %938 = vmatpush1.bf16.msra.mxu0 %v663
  %939 = vmatprep.subr.bf16.mxu0 %v666
  %940 = vmatpush1.bf16.msra.mxu0 %v665
  %941 = vmatprep.subr.bf16.mxu0 %v668
  %942 = vmatpush1.bf16.msra.mxu0 %v667
  %943 = vmatprep.subr.bf16.mxu0 %v670
  %944 = vmatpush1.bf16.msra.mxu0 %v669
  %945 = vmatprep.subr.bf16.mxu0 %v672
  %946 = vmatpush1.bf16.msra.mxu0 %v671
  %947 = vmatprep.subr.bf16.mxu0 %v674
  %948 = vmatpush1.bf16.msra.mxu0 %v673
  %949 = vmatprep.subr.bf16.mxu0 %v676
  %950 = vmatpush1.bf16.msra.mxu0 %v675
  %951 = vmatprep.subr.bf16.mxu0 %v678
  %952 = vmatpush1.bf16.msra.mxu0 %v677
  %953 = vmatprep.mubr.bf16.mxu0 %v188
  %954 = vmatmul.mubr.bf16.gmra.mrb[0].mxu0 %v187
  %v955 = vpop.f32.mrb[0].mxu0
  %v956 = vadd.f32 %v915, %v955
  %v957 = vpop.f32.mrb[0].mxu0
  %v958 = vadd.f32 %v917, %v957
  %v959 = vpop.f32.mrb[0].mxu0
  %v960 = vpop.f32.mrb[0].mxu0
  %961 = vdwg.mxu0
  %962 = vmatprep.subr.bf16.mxu0 %v680
  %963 = vmatpush1.bf16.msra.mxu0 %v679
  %964 = vmatprep.subr.bf16.mxu0 %v682
  %965 = vmatpush1.bf16.msra.mxu0 %v681
  %966 = vmatprep.subr.bf16.mxu0 %v684
  %967 = vmatpush1.bf16.msra.mxu0 %v683
  %968 = vmatprep.subr.bf16.mxu0 %v686
  %969 = vmatpush1.bf16.msra.mxu0 %v685
  %970 = vmatprep.subr.bf16.mxu0 %v688
  %971 = vmatpush1.bf16.msra.mxu0 %v687
  %972 = vmatprep.subr.bf16.mxu0 %v690
  %973 = vmatpush1.bf16.msra.mxu0 %v689
  %974 = vmatprep.subr.bf16.mxu0 %v692
  %975 = vmatpush1.bf16.msra.mxu0 %v691
  %976 = vmatprep.subr.bf16.mxu0 %v694
  %977 = vmatpush1.bf16.msra.mxu0 %v693
  %978 = vmatprep.subr.bf16.mxu0 %v696
  %979 = vmatpush1.bf16.msra.mxu0 %v695
  %980 = vmatprep.subr.bf16.mxu0 %v698
  %981 = vmatpush1.bf16.msra.mxu0 %v697
  %982 = vmatprep.subr.bf16.mxu0 %v700
  %983 = vmatpush1.bf16.msra.mxu0 %v699
  %984 = vmatprep.subr.bf16.mxu0 %v702
  %985 = vmatpush1.bf16.msra.mxu0 %v701
  %986 = vmatprep.subr.bf16.mxu0 %v704
  %987 = vmatpush1.bf16.msra.mxu0 %v703
  %988 = vmatprep.subr.bf16.mxu0 %v706
  %989 = vmatpush1.bf16.msra.mxu0 %v705
  %990 = vmatprep.subr.bf16.mxu0 %v708
  %991 = vmatpush1.bf16.msra.mxu0 %v707
  %992 = vmatprep.subr.bf16.mxu0 %v710
  %993 = vmatpush1.bf16.msra.mxu0 %v709
  %994 = vmatprep.mubr.bf16.mxu0 %v190
  %995 = vmatmul.mubr.bf16.gmra.mrb[0].mxu0 %v189
  %v996 = vpop.f32.mrb[0].mxu0
  %v997 = vadd.f32 %v956, %v996
  %v998 = vpop.f32.mrb[0].mxu0
  %v999 = vadd.f32 %v958, %v998
  %v1000 = vpop.f32.mrb[0].mxu0
  %v1001 = vpop.f32.mrb[0].mxu0
  %1002 = vdwg.mxu0
  %v1003 = vld [vmem:[%s3] sm:$0x3]
  %v1005 = vlaneseq
  %v1006 = vshrl.u32 %v1005, 7
  %v1007 = vsub.s32 0, %v1006
  %v1008 = vrot.slane %v1003, %v1007
  %v1009 = vlaneseq
  %v1010 = vshrl.u32 %v1009, 7
  %v1011 = vsub.s32 1, %v1010
  %v1012 = vrot.slane %v1003, %v1011
  %v1015 = vmul.f32 %v997, %v1008
  %v1016 = vmul.f32 %v999, %v1012
  %v1017 = vld [vmem:[%s4] sm:$0x3]
  %v1019 = vlaneseq
  %v1020 = vshrl.u32 %v1019, 7
  %v1021 = vsub.s32 0, %v1020
  %v1022 = vrot.slane %v1017, %v1021
  %v1023 = vlaneseq
  %v1024 = vshrl.u32 %v1023, 7
  %v1025 = vsub.s32 1, %v1024
  %v1026 = vrot.slane %v1017, %v1025
  %v1029 = vadd.f32 %v1015, %v1022
  %v1030 = vadd.f32 %v1016, %v1026
  %v1031 = vpack.c.bf16 %v1029, %v1029
  %v1032 = vpack.c.bf16 %v1030, %v1030
  %v1033 = vld [vmem:[%s5] sm:$0xf]
  %v1034 = vld [vmem:[%s5 + $0x4] sm:$0xf]
  %v1035 = vld [vmem:[%s5 + $0x8] sm:$0xf]
  %v1036 = vld [vmem:[%s5 + $0xc] sm:$0xf]
  %v1037 = vld [vmem:[%s5 + $0x10] sm:$0xf]
  %v1038 = vld [vmem:[%s5 + $0x14] sm:$0xf]
  %v1039 = vld [vmem:[%s5 + $0x18] sm:$0xf]
  %v1040 = vld [vmem:[%s5 + $0x1c] sm:$0xf]
  %v1041 = vld [vmem:[%s5 + $0x20] sm:$0xf]
  %v1042 = vld [vmem:[%s5 + $0x24] sm:$0xf]
  %v1043 = vld [vmem:[%s5 + $0x28] sm:$0xf]
  %v1044 = vld [vmem:[%s5 + $0x2c] sm:$0xf]
  %v1045 = vld [vmem:[%s5 + $0x30] sm:$0xf]
  %v1046 = vld [vmem:[%s5 + $0x34] sm:$0xf]
  %v1047 = vld [vmem:[%s5 + $0x38] sm:$0xf]
  %v1048 = vld [vmem:[%s5 + $0x3c] sm:$0xf]
  %v1049 = vld [vmem:[%s5 + $0x40] sm:$0xf]
  %v1050 = vld [vmem:[%s5 + $0x44] sm:$0xf]
  %v1051 = vld [vmem:[%s5 + $0x48] sm:$0xf]
  %v1052 = vld [vmem:[%s5 + $0x4c] sm:$0xf]
  %v1053 = vld [vmem:[%s5 + $0x50] sm:$0xf]
  %v1054 = vld [vmem:[%s5 + $0x54] sm:$0xf]
  %v1055 = vld [vmem:[%s5 + $0x58] sm:$0xf]
  %v1056 = vld [vmem:[%s5 + $0x5c] sm:$0xf]
  %v1057 = vld [vmem:[%s5 + $0x60] sm:$0xf]
  %v1058 = vld [vmem:[%s5 + $0x64] sm:$0xf]
  %v1059 = vld [vmem:[%s5 + $0x68] sm:$0xf]
  %v1060 = vld [vmem:[%s5 + $0x6c] sm:$0xf]
  %v1061 = vld [vmem:[%s5 + $0x70] sm:$0xf]
  %v1062 = vld [vmem:[%s5 + $0x74] sm:$0xf]
  %v1063 = vld [vmem:[%s5 + $0x78] sm:$0xf]
  %v1064 = vld [vmem:[%s5 + $0x7c] sm:$0xf]
  %v1065 = vld [vmem:[%s6] sm:$0x1]
  %v1067 = vlaneseq
  %v1068 = vshrl.u32 %v1067, 7
  %v1069 = vsub.s32 0, %v1068
  %v1070 = vrot.slane %v1065, %v1069
  %v1104 = vunpack.c.l.b16 %v1033
  %v1105 = vunpack.c.l.b16 %v1034
  %v1106 = vunpack.c.l.b16 %v1035
  %v1107 = vunpack.c.l.b16 %v1036
  %v1108 = vunpack.c.l.b16 %v1037
  %v1109 = vunpack.c.l.b16 %v1038
  %v1110 = vunpack.c.l.b16 %v1039
  %v1111 = vunpack.c.l.b16 %v1040
  %v1112 = vunpack.c.l.b16 %v1041
  %v1113 = vunpack.c.l.b16 %v1042
  %v1114 = vunpack.c.l.b16 %v1043
  %v1115 = vunpack.c.l.b16 %v1044
  %v1116 = vunpack.c.l.b16 %v1045
  %v1117 = vunpack.c.l.b16 %v1046
  %v1118 = vunpack.c.l.b16 %v1047
  %v1119 = vunpack.c.l.b16 %v1048
  %v1120 = vunpack.c.l.b16 %v1049
  %v1121 = vunpack.c.l.b16 %v1050
  %v1122 = vunpack.c.l.b16 %v1051
  %v1123 = vunpack.c.l.b16 %v1052
  %v1124 = vunpack.c.l.b16 %v1053
  %v1125 = vunpack.c.l.b16 %v1054
  %v1126 = vunpack.c.l.b16 %v1055
  %v1127 = vunpack.c.l.b16 %v1056
  %v1128 = vunpack.c.l.b16 %v1057
  %v1129 = vunpack.c.l.b16 %v1058
  %v1130 = vunpack.c.l.b16 %v1059
  %v1131 = vunpack.c.l.b16 %v1060
  %v1132 = vunpack.c.l.b16 %v1061
  %v1133 = vunpack.c.l.b16 %v1062
  %v1134 = vunpack.c.l.b16 %v1063
  %v1135 = vunpack.c.l.b16 %v1064
  %v1136 = vpack.c.b16 %v1105, %v1104
  %v1137 = vpack.c.b16 %v1107, %v1106
  %v1138 = vpack.c.b16 %v1109, %v1108
  %v1139 = vpack.c.b16 %v1111, %v1110
  %v1140 = vpack.c.b16 %v1113, %v1112
  %v1141 = vpack.c.b16 %v1115, %v1114
  %v1142 = vpack.c.b16 %v1117, %v1116
  %v1143 = vpack.c.b16 %v1119, %v1118
  %v1144 = vpack.c.b16 %v1121, %v1120
  %v1145 = vpack.c.b16 %v1123, %v1122
  %v1146 = vpack.c.b16 %v1125, %v1124
  %v1147 = vpack.c.b16 %v1127, %v1126
  %v1148 = vpack.c.b16 %v1129, %v1128
  %v1149 = vpack.c.b16 %v1131, %v1130
  %v1150 = vpack.c.b16 %v1133, %v1132
  %v1151 = vpack.c.b16 %v1135, %v1134
  %1168 = vmatprep.subr.bf16.mxu0 0
  %1169 = vmatpush1.bf16.msra.mxu0 %v1136
  %1170 = vmatprep.subr.bf16.mxu0 0
  %1171 = vmatpush1.bf16.msra.mxu0 %v1137
  %1172 = vmatprep.subr.bf16.mxu0 0
  %1173 = vmatpush1.bf16.msra.mxu0 %v1138
  %1174 = vmatprep.subr.bf16.mxu0 0
  %1175 = vmatpush1.bf16.msra.mxu0 %v1139
  %1176 = vmatprep.subr.bf16.mxu0 0
  %1177 = vmatpush1.bf16.msra.mxu0 %v1140
  %1178 = vmatprep.subr.bf16.mxu0 0
  %1179 = vmatpush1.bf16.msra.mxu0 %v1141
  %1180 = vmatprep.subr.bf16.mxu0 0
  %1181 = vmatpush1.bf16.msra.mxu0 %v1142
  %1182 = vmatprep.subr.bf16.mxu0 0
  %1183 = vmatpush1.bf16.msra.mxu0 %v1143
  %1184 = vmatprep.subr.bf16.mxu0 0
  %1185 = vmatpush1.bf16.msra.mxu0 %v1144
  %1186 = vmatprep.subr.bf16.mxu0 0
  %1187 = vmatpush1.bf16.msra.mxu0 %v1145
  %1188 = vmatprep.subr.bf16.mxu0 0
  %1189 = vmatpush1.bf16.msra.mxu0 %v1146
  %1190 = vmatprep.subr.bf16.mxu0 0
  %1191 = vmatpush1.bf16.msra.mxu0 %v1147
  %1192 = vmatprep.subr.bf16.mxu0 0
  %1193 = vmatpush1.bf16.msra.mxu0 %v1148
  %1194 = vmatprep.subr.bf16.mxu0 0
  %1195 = vmatpush1.bf16.msra.mxu0 %v1149
  %1196 = vmatprep.subr.bf16.mxu0 0
  %1197 = vmatpush1.bf16.msra.mxu0 %v1150
  %1198 = vmatprep.subr.bf16.mxu0 0
  %1199 = vmatpush1.bf16.msra.mxu0 %v1151
  %1200 = vmatprep.mubr.bf16.mxu0 %v1032
  %1201 = vmatmul.mubr.bf16.gmra.mrb[0].mxu0 %v1031
  %v1202 = vpop.f32.mrb[0].mxu0
  %v1203 = vadd.f32 %v1070, %v1202
  %v1204 = vpop.f32.mrb[0].mxu0
  %v1205 = vpop.f32.mrb[0].mxu0
  %v1206 = vpop.f32.mrb[0].mxu0
  %1207 = vdwg.mxu0
  %1208 = vst [vmem:[%s7] sm:$0xff] %v1203
  // Predicated region
  $region30: #{lenet_forward.5} parent=0 // pred_check
    _
  $region31: #{lenet_forward.5} parent=0 // pred_check_branch
    %1210 = sbr.rel (0) target = $region33
  $region32: #{lenet_forward.5} parent=0 // pred_region
    _
  $region33: #{lenet_forward.5} parent=0 // pred_fallthru
    _
  // Predicated region
  $region34: #{lenet_forward.5} parent=0 // pred_check
    _
  $region35: #{lenet_forward.5} parent=0 // pred_check_branch
    %1212 = sbr.rel (0) target = $region37
  $region36: #{lenet_forward.5} parent=0 // pred_region
    _
  $region37: #{lenet_forward.5} parent=0 // pred_fallthru
    _

// kernel: lenet_forward.4
$region0: #{lenet_forward.4}
  #allocation0 [shape = 'u32[]', space=smem, size = 0x4, offset = 0x4, fixed_abs, tag = 'smem constant byte address 0x4 - core index']
  #allocation1 [shape = 'u32[144,128]{1,0:T(1,128)}', space=vmem, size = 0x12000, scoped, tag = 'internal scratch']
  %s0 = inlined_call_operand.vmem [shape: bf16[2,12,12,128], index: 0, kind: input, shape index: {}]
  %s1 = inlined_call_operand.vmem [shape: bf16[25,128,64], index: 1, kind: input, shape index: {}]
  %s2 = inlined_call_operand.vmem [shape: f32[1,64], index: 2, kind: input, shape index: {}]
  %s3 = inlined_call_operand.vmem [shape: bf16[2,4,256], index: 3, kind: output, shape index: {}]
  %s4 = sld [smem:[#allocation0]]
  $region45: #{lenet_forward.4} parent=0
    _
  %s6 = ssub.s32 1, %s4
  %s7 = scalar_select 0, %s6, %s4
  loop: start=0, step=1, limit=4
  $region2: #{lenet_forward.4} parent=0 // loop_pre_header
    _
  $region3: #{lenet_forward.4} parent=0 // loop_header
    %s9 = sphi 0, %s13
    %p10 = scmp.ge.s32.totalorder %s9, 4
    %s19 = sphi 0, %s21
    %s22 = sphi 0, %s19
    %s23 = sphi 0, %s22
    %s39 = sphi 0, %s23
    %s43 = sphi 0, %s43
    %s45 = sphi 0, %s43
    %s46 = sphi 0, %s45
    %s60 = sphi 0, %s46
    %s64 = sphi 0, %s64
    %s66 = sphi 0, %s64
    %s67 = sphi 0, %s66
    %s81 = sphi 0, %s67
    %s87 = sphi 0, %s89
    %s90 = sphi 0, %s87
    %s91 = sphi 0, %s90
    %s107 = sphi 0, %s91
  $region4: #{lenet_forward.4} parent=0 // loop_header_branch
    %12 = sbr.rel (%p10) target = $region8
  $region5: #{lenet_forward.4} parent=0 // loop_body
    %s14 = ssub.s32 %s9, 1
    %s15 = ssub.s32 %s9, 2
    %s16 = sadd.s32 %s9, 1
    %s17 = ssub.s32 %s9, %s16
    %p18 = scmp.eq.s32.totalorder %s17, 0
    %s20 = sadd.s32 %s19, 1
    %s21 = scalar_select %p18, %s19, %s20
    %p24 = pneg %p18
    %p25 = scmp.eq.s32.totalorder %s9, 1
    %p26 = por %p24, %p25
    %p27 = scmp.ne.s32.totalorder %s19, %s22
    %p28 = scmp.eq.s32.totalorder %s9, 0
    %p29 = por %p27, %p28
    %p30 = scmp.ne.s32.totalorder %s19, %s22
    %p31 = scmp.eq.s32.totalorder %s14, 1
    %p32 = por %p30, %p31
    %p33 = scmp.ne.s32.totalorder %s22, %s23
    %p34 = scmp.eq.s32.totalorder %s14, 0
    %p35 = por %p33, %p34
    %p36 = scmp.ne.s32.totalorder %s22, %s23
    %p37 = scmp.eq.s32.totalorder %s15, 1
    %p38 = por %p36, %p37
    %p40 = scmp.ne.s32.totalorder %s23, %s39
    %p41 = scmp.eq.s32.totalorder %s15, 0
    %p42 = por %p40, %p41
    %s44 = sadd.s32 %s43, 1
    %p47 = scmp.eq.s32.totalorder %s9, 1
    %p48 = scmp.ne.s32.totalorder %s43, %s45
    %p49 = scmp.eq.s32.totalorder %s9, 0
    %p50 = por %p48, %p49
    %p51 = scmp.ne.s32.totalorder %s43, %s45
    %p52 = scmp.eq.s32.totalorder %s14, 1
    %p53 = por %p51, %p52
    %p54 = scmp.ne.s32.totalorder %s45, %s46
    %p55 = scmp.eq.s32.totalorder %s14, 0
    %p56 = por %p54, %p55
    %p57 = scmp.ne.s32.totalorder %s45, %s46
    %p58 = scmp.eq.s32.totalorder %s15, 1
    %p59 = por %p57, %p58
    %p61 = scmp.ne.s32.totalorder %s46, %s60
    %p62 = scmp.eq.s32.totalorder %s15, 0
    %p63 = por %p61, %p62
    %s65 = sadd.s32 %s64, 1
    %p68 = scmp.eq.s32.totalorder %s9, 1
    %p69 = scmp.ne.s32.totalorder %s64, %s66
    %p70 = scmp.eq.s32.totalorder %s9, 0
    %p71 = por %p69, %p70
    %p72 = scmp.ne.s32.totalorder %s64, %s66
    %p73 = scmp.eq.s32.totalorder %s14, 1
    %p74 = por %p72, %p73
    %p75 = scmp.ne.s32.totalorder %s66, %s67
    %p76 = scmp.eq.s32.totalorder %s14, 0
    %p77 = por %p75, %p76
    %p78 = scmp.ne.s32.totalorder %s66, %s67
    %p79 = scmp.eq.s32.totalorder %s15, 1
    %p80 = por %p78, %p79
    %p82 = scmp.ne.s32.totalorder %s67, %s81
    %p83 = scmp.eq.s32.totalorder %s15, 0
    %p84 = por %p82, %p83
    %s85 = ssub.s32 %s9, %s16
    %p86 = scmp.eq.s32.totalorder %s85, 0
    %s88 = sadd.s32 %s87, 1
    %s89 = scalar_select %p86, %s87, %s88
    %p92 = pneg %p86
    %p93 = scmp.eq.s32.totalorder %s9, 1
    %p94 = por %p92, %p93
    %p95 = scmp.ne.s32.totalorder %s87, %s90
    %p96 = scmp.eq.s32.totalorder %s9, 0
    %p97 = por %p95, %p96
    %p98 = scmp.ne.s32.totalorder %s87, %s90
    %p99 = scmp.eq.s32.totalorder %s14, 1
    %p100 = por %p98, %p99
    %p101 = scmp.ne.s32.totalorder %s90, %s91
    %p102 = scmp.eq.s32.totalorder %s14, 0
    %p103 = por %p101, %p102
    %p104 = scmp.ne.s32.totalorder %s90, %s91
    %p105 = scmp.eq.s32.totalorder %s15, 1
    %p106 = por %p104, %p105
    %p108 = scmp.ne.s32.totalorder %s91, %s107
    %p109 = scmp.eq.s32.totalorder %s15, 0
    %p110 = por %p108, %p109
    %p111 = scmp.le.s32.totalorder 1, %s9
    %p112 = scmp.lt.s32.totalorder %s9, 3
    %p113 = pnand %p111, %p112
    %p114 = pneg %p113
    // Predicated region
    $region9: #{lenet_forward.4} parent=5 // pred_check
      _
    $region10: #{lenet_forward.4} parent=5 // pred_check_branch
      %116 = sbr.rel (%p113) target = $region12
    $region11: #{lenet_forward.4} parent=5 // pred_region
      %s117 = ssub.s32 %s9, 1
      // Predicated region
      $region13: #{lenet_forward.4} parent=11 // pred_check
        %p118 = pneg %p56
      $region14: #{lenet_forward.4} parent=11 // pred_check_branch
        %120 = sbr.rel (%p118) target = $region16
      $region15: #{lenet_forward.4} parent=11 // pred_region
        _
      $region16: #{lenet_forward.4} parent=11 // pred_fallthru
        _
      // Predicated region
      $region17: #{lenet_forward.4} parent=11 // pred_check
        %p121 = pneg %p77
      $region18: #{lenet_forward.4} parent=11 // pred_check_branch
        %123 = sbr.rel (%p121) target = $region20
      $region19: #{lenet_forward.4} parent=11 // pred_region
        _
      $region20: #{lenet_forward.4} parent=11 // pred_fallthru
        _
    $region12: #{lenet_forward.4} parent=5 // pred_fallthru
      _
    %p124 = scmp.lt.s32.totalorder %s9, 2
    // Predicated region
    $region21: #{lenet_forward.4} parent=5 // pred_check
      %p125 = pneg %p124
    $region22: #{lenet_forward.4} parent=5 // pred_check_branch
      %127 = sbr.rel (%p125) target = $region24
    $region23: #{lenet_forward.4} parent=5 // pred_region
      // Predicated region
      $region25: #{lenet_forward.4} parent=23 // pred_check
        %p128 = pneg %p29
      $region26: #{lenet_forward.4} parent=23 // pred_check_branch
        %130 = sbr.rel (%p128) target = $region28
      $region27: #{lenet_forward.4} parent=23 // pred_region
        %p131 = scmp.lt.s32.totalorder %s9, 1
        %s132 = scalar_select %p131, %s9, 1
        %s133 = smul.addr %s132, 24
        %s134 = smul.addr %s133, 4
        %s135 = scalar_lea.vmem %s0, %s134
      $region28: #{lenet_forward.4} parent=23 // pred_fallthru
        _
    $region24: #{lenet_forward.4} parent=5 // pred_fallthru
      _
    %p136 = scmp.le.s32.totalorder 1, %s9
    %p137 = scmp.lt.s32.totalorder %s9, 3
    %p138 = pnand %p136, %p137
    %p139 = pneg %p138
    // Predicated region
    $region29: #{lenet_forward.4} parent=5 // pred_check
      _
    $region30: #{lenet_forward.4} parent=5 // pred_check_branch
      %141 = sbr.rel (%p138) target = $region32
    $region31: #{lenet_forward.4} parent=5 // pred_region
      %s142 = ssub.s32 %s9, 1
      %p143 = scmp.lt.s32.totalorder %s14, 1
      %s144 = scalar_select %p143, %s14, 1
      %s145 = smul.addr %s144, 24
      %s146 = smul.addr %s145, 4
      %s147 = scalar_lea.vmem %s0, %s146
      %p148 = pneg %p35
      %p149 = pneg %p32
      %p150 = pneg %p56
      %p151 = pneg %p53
      %p152 = pneg %p77
      %p153 = pneg %p74
      %p154 = pneg %p103
      %p155 = pneg %p100
      %p156 = scmp.lt.s32.totalorder %s14, 1
      %s157 = scalar_select %p156, %s14, 1
      %s158 = smul.addr %s157, 2
      %s159 = smul.addr %s158, 2
      %s160 = scalar_lea.vmem %s3, %s159
      %p161 = scmp.lt.s32.totalorder %s14, 1
      %s162 = scalar_select %p161, %s14, 1
      %s163 = smul.addr %s162, 24
      %s164 = smul.addr %s163, 4
      %s165 = scalar_lea.vmem %s0, %s164
      %p166 = scmp.lt.s32.totalorder %s14, 1
      %s167 = scalar_select %p166, %s14, 1
      %s168 = smul.addr %s167, 2
      %s169 = smul.addr %s168, 2
      %s170 = scalar_lea.vmem %s3, %s169
      %v172 = vld [vmem:[%s165] sm:$0xf]
      %v173 = vld [vmem:[%s165 + $0x8] sm:$0xf]
      %v174 = vld [vmem:[%s165 + $0x10] sm:$0xf]
      %v175 = vld [vmem:[%s165 + $0x18] sm:$0xf]
      %v176 = vld [vmem:[%s165 + $0x20] sm:$0xf]
      %v177 = vld [vmem:[%s165 + $0x28] sm:$0xf]
      %v178 = vld [vmem:[%s165 + $0x30] sm:$0xf]
      %v179 = vld [vmem:[%s165 + $0x38] sm:$0xf]
      %v180 = vld [vmem:[%s1] sm:$0xf]
      %v181 = vld [vmem:[%s1 + $0x4] sm:$0xf]
      %v182 = vld [vmem:[%s1 + $0x8] sm:$0xf]
      %v183 = vld [vmem:[%s1 + $0xc] sm:$0xf]
      %v184 = vld [vmem:[%s1 + $0x10] sm:$0xf]
      %v185 = vld [vmem:[%s1 + $0x14] sm:$0xf]
      %v186 = vld [vmem:[%s1 + $0x18] sm:$0xf]
      %v187 = vld [vmem:[%s1 + $0x1c] sm:$0xf]
      %v188 = vld [vmem:[%s1 + $0x20] sm:$0xf]
      %v189 = vld [vmem:[%s1 + $0x24] sm:$0xf]
      %v190 = vld [vmem:[%s1 + $0x28] sm:$0xf]
      %v191 = vld [vmem:[%s1 + $0x2c] sm:$0xf]
      %v192 = vld [vmem:[%s1 + $0x30] sm:$0xf]
      %v193 = vld [vmem:[%s1 + $0x34] sm:$0xf]
      %v194 = vld [vmem:[%s1 + $0x38] sm:$0xf]
      %v195 = vld [vmem:[%s1 + $0x3c] sm:$0xf]
      %v196 = vld [vmem:[%s165 + $0x4] sm:$0x1]
      %v197 = vld [vmem:[%s165 + $0xc] sm:$0x1]
      %v198 = vld [vmem:[%s165 + $0x14] sm:$0x1]
      %v199 = vld [vmem:[%s165 + $0x1c] sm:$0x1]
      %v200 = vld [vmem:[%s165 + $0x24] sm:$0x1]
      %v201 = vld [vmem:[%s165 + $0x2c] sm:$0x1]
      %v202 = vld [vmem:[%s165 + $0x34] sm:$0x1]
      %v203 = vld [vmem:[%s165 + $0x3c] sm:$0x1]
      %vm204 = vsmask.f32 3328
      %vm205 = vsmask.f32 7440
      %vm206 = vmor %vm204, %vm205
      %v208 = vshrl.u32 %v172, 16
      %v210 = vrot.slane %v208, 4
      %v211 = vshll.u32 %v172, 16
      %v213 = vrot.slane %v211, 5
      %v214 = vor.u32 %v210, %v213
      %v215 = vrot.slane %v214, 4
      %v217 = vshll.u32 %v196, 16
      %v219 = vrot.slane %v217, 5
      %v220 = vsel %vm206, %v215, %v219
      %v222 = vshrl.u32 %v173, 16
      %v224 = vrot.slane %v222, 4
      %v225 = vshll.u32 %v173, 16
      %v227 = vrot.slane %v225, 5
      %v228 = vor.u32 %v224, %v227
      %v229 = vrot.slane %v228, 4
      %v231 = vshll.u32 %v197, 16
      %v233 = vrot.slane %v231, 5
      %v234 = vsel %vm206, %v229, %v233
      %v236 = vshrl.u32 %v174, 16
      %v238 = vrot.slane %v236, 4
      %v239 = vshll.u32 %v174, 16
      %v241 = vrot.slane %v239, 5
      %v242 = vor.u32 %v238, %v241
      %v243 = vrot.slane %v242, 4
      %v245 = vshll.u32 %v198, 16
      %v247 = vrot.slane %v245, 5
      %v248 = vsel %vm206, %v243, %v247
      %v250 = vshrl.u32 %v175, 16
      %v252 = vrot.slane %v250, 4
      %v253 = vshll.u32 %v175, 16
      %v255 = vrot.slane %v253, 5
      %v256 = vor.u32 %v252, %v255
      %v257 = vrot.slane %v256, 4
      %v259 = vshll.u32 %v199, 16
      %v261 = vrot.slane %v259, 5
      %v262 = vsel %vm206, %v257, %v261
      %v264 = vshrl.u32 %v176, 16
      %v266 = vrot.slane %v264, 4
      %v267 = vshll.u32 %v176, 16
      %v269 = vrot.slane %v267, 5
      %v270 = vor.u32 %v266, %v269
      %v271 = vrot.slane %v270, 4
      %v273 = vshll.u32 %v200, 16
      %v275 = vrot.slane %v273, 5
      %v276 = vsel %vm206, %v271, %v275
      %v278 = vshrl.u32 %v177, 16
      %v280 = vrot.slane %v278, 4
      %v281 = vshll.u32 %v177, 16
      %v283 = vrot.slane %v281, 5
      %v284 = vor.u32 %v280, %v283
      %v285 = vrot.slane %v284, 4
      %v287 = vshll.u32 %v201, 16
      %v289 = vrot.slane %v287, 5
      %v290 = vsel %vm206, %v285, %v289
      %v292 = vshrl.u32 %v178, 16
      %v294 = vrot.slane %v292, 4
      %v295 = vshll.u32 %v178, 16
      %v297 = vrot.slane %v295, 5
      %v298 = vor.u32 %v294, %v297
      %v299 = vrot.slane %v298, 4
      %v301 = vshll.u32 %v202, 16
      %v303 = vrot.slane %v301, 5
      %v304 = vsel %vm206, %v299, %v303
      %v306 = vshrl.u32 %v179, 16
      %v308 = vrot.slane %v306, 4
      %v309 = vshll.u32 %v179, 16
      %v311 = vrot.slane %v309, 5
      %v312 = vor.u32 %v308, %v311
      %v313 = vrot.slane %v312, 4
      %v315 = vshll.u32 %v203, 16
      %v317 = vrot.slane %v315, 5
      %v318 = vsel %vm206, %v313, %v317
      %s319 = scalar_lea.vmem %s1, 64
      %v320 = vld [vmem:[%s319] sm:$0xf]
      %v321 = vld [vmem:[%s319 + $0x4] sm:$0xf]
      %v322 = vld [vmem:[%s319 + $0x8] sm:$0xf]
      %v323 = vld [vmem:[%s319 + $0xc] sm:$0xf]
      %v324 = vld [vmem:[%s319 + $0x10] sm:$0xf]
      %v325 = vld [vmem:[%s319 + $0x14] sm:$0xf]
      %v326 = vld [vmem:[%s319 + $0x18] sm:$0xf]
      %v327 = vld [vmem:[%s319 + $0x1c] sm:$0xf]
      %v328 = vld [vmem:[%s319 + $0x20] sm:$0xf]
      %v329 = vld [vmem:[%s319 + $0x24] sm:$0xf]
      %v330 = vld [vmem:[%s319 + $0x28] sm:$0xf]
      %v331 = vld [vmem:[%s319 + $0x2c] sm:$0xf]
      %v332 = vld [vmem:[%s319 + $0x30] sm:$0xf]
      %v333 = vld [vmem:[%s319 + $0x34] sm:$0xf]
      %v334 = vld [vmem:[%s319 + $0x38] sm:$0xf]
      %v335 = vld [vmem:[%s319 + $0x3c] sm:$0xf]
      %v336 = vunpack.c.l.b16 %v220
      %v337 = vunpack.c.l.b16 %v234
      %v338 = vunpack.c.l.b16 %v248
      %v339 = vunpack.c.l.b16 %v262
      %v340 = vunpack.c.l.b16 %v276
      %v341 = vunpack.c.l.b16 %v290
      %v342 = vunpack.c.l.b16 %v304
      %v343 = vunpack.c.l.b16 %v318
      %v344 = vpack.c.b16 %v337, %v336
      %v345 = vpack.c.b16 %v339, %v338
      %v346 = vpack.c.b16 %v341, %v340
      %v347 = vpack.c.b16 %v343, %v342
      %v368 = vunpack.c.l.b16 %v320
      %v369 = vunpack.c.l.b16 %v321
      %v370 = vunpack.c.l.b16 %v322
      %v371 = vunpack.c.l.b16 %v323
      %v372 = vunpack.c.l.b16 %v324
      %v373 = vunpack.c.l.b16 %v325
      %v374 = vunpack.c.l.b16 %v326
      %v375 = vunpack.c.l.b16 %v327
      %v376 = vunpack.c.l.b16 %v328
      %v377 = vunpack.c.l.b16 %v329
      %v378 = vunpack.c.l.b16 %v330
      %v379 = vunpack.c.l.b16 %v331
      %v380 = vunpack.c.l.b16 %v332
      %v381 = vunpack.c.l.b16 %v333
      %v382 = vunpack.c.l.b16 %v334
      %v383 = vunpack.c.l.b16 %v335
      %v384 = vpack.c.b16 %v369, %v368
      %v385 = vpack.c.b16 %v371, %v370
      %v386 = vpack.c.b16 %v373, %v372
      %v387 = vpack.c.b16 %v375, %v374
      %v388 = vpack.c.b16 %v377, %v376
      %v389 = vpack.c.b16 %v379, %v378
      %v390 = vpack.c.b16 %v381, %v380
      %v391 = vpack.c.b16 %v383, %v382
      %400 = vmatprep.subr.bf16.mxu0 0
      %401 = vmatpush1.bf16.msra.mxu0 %v384
      %402 = vmatprep.subr.bf16.mxu0 0
      %403 = vmatpush1.bf16.msra.mxu0 %v385
      %404 = vmatprep.subr.bf16.mxu0 0
      %405 = vmatpush1.bf16.msra.mxu0 %v386
      %406 = vmatprep.subr.bf16.mxu0 0
      %407 = vmatpush1.bf16.msra.mxu0 %v387
      %408 = vmatprep.subr.bf16.mxu0 0
      %409 = vmatpush1.bf16.msra.mxu0 %v388
      %410 = vmatprep.subr.bf16.mxu0 0
      %411 = vmatpush1.bf16.msra.mxu0 %v389
      %412 = vmatprep.subr.bf16.mxu0 0
      %413 = vmatpush1.bf16.msra.mxu0 %v390
      %414 = vmatprep.subr.bf16.mxu0 0
      %415 = vmatpush1.bf16.msra.mxu0 %v391
      %416 = vmatprep.subr.bf16.mxu0 0
      %417 = vmatpush1.bf16.msra.mxu0 0
      %418 = vmatprep.subr.bf16.mxu0 0
      %419 = vmatpush1.bf16.msra.mxu0 0
      %420 = vmatprep.subr.bf16.mxu0 0
      %421 = vmatpush1.bf16.msra.mxu0 0
      %422 = vmatprep.subr.bf16.mxu0 0
      %423 = vmatpush1.bf16.msra.mxu0 0
      %424 = vmatprep.subr.bf16.mxu0 0
      %425 = vmatpush1.bf16.msra.mxu0 0
      %426 = vmatprep.subr.bf16.mxu0 0
      %427 = vmatpush1.bf16.msra.mxu0 0
      %428 = vmatprep.subr.bf16.mxu0 0
      %429 = vmatpush1.bf16.msra.mxu0 0
      %430 = vmatprep.subr.bf16.mxu0 0
      %431 = vmatpush1.bf16.msra.mxu0 0
      %432 = vmatprep.mubr.bf16.mxu0 0
      %433 = vmatmul.mubr.bf16.gmra.mrb[0].mxu0 %v344
      %v434 = vpop.f32.mrb[0].mxu0
      %v435 = vadd.f32 0.0, %v434
      %v436 = vpop.f32.mrb[0].mxu0
      %v437 = vpop.f32.mrb[0].mxu0
      %v438 = vadd.f32 0.0, %v437
      %v439 = vpop.f32.mrb[0].mxu0
      %440 = vmatprep.mubr.bf16.mxu0 0
      %441 = vmatmul.mubr.bf16.gmra.mrb[0].mxu0 %v345
      %v442 = vpop.f32.mrb[0].mxu0
      %v443 = vadd.f32 0.0, %v442
      %v444 = vpop.f32.mrb[0].mxu0
      %v445 = vpop.f32.mrb[0].mxu0
      %v446 = vadd.f32 0.0, %v445
      %v447 = vpop.f32.mrb[0].mxu0
      %448 = vmatprep.mubr.bf16.mxu0 0
      %449 = vmatmul.mubr.bf16.gmra.mrb[0].mxu0 %v346
      %v450 = vpop.f32.mrb[0].mxu0
      %v451 = vadd.f32 0.0, %v450
      %v452 = vpop.f32.mrb[0].mxu0
      %v453 = vpop.f32.mrb[0].mxu0
      %v454 = vadd.f32 0.0, %v453
      %v455 = vpop.f32.mrb[0].mxu0
      %456 = vmatprep.mubr.bf16.mxu0 0
      %457 = vmatmul.mubr.bf16.gmra.mrb[0].mxu0 %v347
      %v458 = vpop.f32.mrb[0].mxu0
      %v459 = vadd.f32 0.0, %v458
      %v460 = vpop.f32.mrb[0].mxu0
      %v461 = vpop.f32.mrb[0].mxu0
      %v462 = vadd.f32 0.0, %v461
      %v463 = vpop.f32.mrb[0].mxu0
      %464 = vdwg.mxu0
      %v473 = vunpack.c.l.b16 %v172
      %v474 = vunpack.c.l.b16 %v173
      %v475 = vunpack.c.l.b16 %v174
      %v476 = vunpack.c.l.b16 %v175
      %v477 = vunpack.c.l.b16 %v176
      %v478 = vunpack.c.l.b16 %v177
      %v479 = vunpack.c.l.b16 %v178
      %v480 = vunpack.c.l.b16 %v179
      %v481 = vpack.c.b16 %v474, %v473
      %v482 = vpack.c.b16 %v476, %v475
      %v483 = vpack.c.b16 %v478, %v477
      %v484 = vpack.c.b16 %v480, %v479
      %v505 = vunpack.c.l.b16 %v180
      %v506 = vunpack.c.l.b16 %v181
      %v507 = vunpack.c.l.b16 %v182
      %v508 = vunpack.c.l.b16 %v183
      %v509 = vunpack.c.l.b16 %v184
      %v510 = vunpack.c.l.b16 %v185
      %v511 = vunpack.c.l.b16 %v186
      %v512 = vunpack.c.l.b16 %v187
      %v513 = vunpack.c.l.b16 %v188
      %v514 = vunpack.c.l.b16 %v189
      %v515 = vunpack.c.l.b16 %v190
      %v516 = vunpack.c.l.b16 %v191
      %v517 = vunpack.c.l.b16 %v192
      %v518 = vunpack.c.l.b16 %v193
      %v519 = vunpack.c.l.b16 %v194
      %v520 = vunpack.c.l.b16 %v195
      %v521 = vpack.c.b16 %v506, %v505
      %v522 = vpack.c.b16 %v508, %v507
      %v523 = vpack.c.b16 %v510, %v509
      %v524 = vpack.c.b16 %v512, %v511
      %v525 = vpack.c.b16 %v514, %v513
      %v526 = vpack.c.b16 %v516, %v515
      %v527 = vpack.c.b16 %v518, %v517
      %v528 = vpack.c.b16 %v520, %v519
      %537 = vmatprep.subr.bf16.mxu0 0
      %538 = vmatpush1.bf16.msra.mxu0 %v521
      %539 = vmatprep.subr.bf16.mxu0 0
      %540 = vmatpush1.bf16.msra.mxu0 %v522
      %541 = vmatprep.subr.bf16.mxu0 0
      %542 = vmatpush1.bf16.msra.mxu0 %v523
      %543 = vmatprep.subr.bf16.mxu0 0
      %544 = vmatpush1.bf16.msra.mxu0 %v524
      %545 = vmatprep.subr.bf16.mxu0 0
      %546 = vmatpush1.bf16.msra.mxu0 %v525
      %547 = vmatprep.subr.bf16.mxu0 0
      %548 = vmatpush1.bf16.msra.mxu0 %v526
      %549 = vmatprep.subr.bf16.mxu0 0
      %550 = vmatpush1.bf16.msra.mxu0 %v527
      %551 = vmatprep.subr.bf16.mxu0 0
      %552 = vmatpush1.bf16.msra.mxu0 %v528
      %553 = vmatprep.subr.bf16.mxu0 0
      %554 = vmatpush1.bf16.msra.mxu0 0
      %555 = vmatprep.subr.bf16.mxu0 0
      %556 = vmatpush1.bf16.msra.mxu0 0
      %557 = vmatprep.subr.bf16.mxu0 0
      %558 = vmatpush1.bf16.msra.mxu0 0
      %559 = vmatprep.subr.bf16.mxu0 0
      %560 = vmatpush1.bf16.msra.mxu0 0
      %561 = vmatprep.subr.bf16.mxu0 0
      %562 = vmatpush1.bf16.msra.mxu0 0
      %563 = vmatprep.subr.bf16.mxu0 0
      %564 = vmatpush1.bf16.msra.mxu0 0
      %565 = vmatprep.subr.bf16.mxu0 0
      %566 = vmatpush1.bf16.msra.mxu0 0
      %567 = vmatprep.subr.bf16.mxu0 0
      %568 = vmatpush1.bf16.msra.mxu0 0
      %569 = vmatprep.mubr.bf16.mxu0 0
      %570 = vmatmul.mubr.bf16.gmra.mrb[0].mxu0 %v481
      %v571 = vpop.f32.mrb[0].mxu0
      %v572 = vadd.f32 %v435, %v571
      %v573 = vpop.f32.mrb[0].mxu0
      %v574 = vpop.f32.mrb[0].mxu0
      %v575 = vadd.f32 %v438, %v574
      %v576 = vpop.f32.mrb[0].mxu0
      %577 = vmatprep.mubr.bf16.mxu0 0
      %578 = vmatmul.mubr.bf16.gmra.mrb[0].mxu0 %v482
      %v579 = vpop.f32.mrb[0].mxu0
      %v580 = vadd.f32 %v443, %v579
      %v581 = vpop.f32.mrb[0].mxu0
      %v582 = vpop.f32.mrb[0].mxu0
      %v583 = vadd.f32 %v446, %v582
      %v584 = vpop.f32.mrb[0].mxu0
      %585 = vmatprep.mubr.bf16.mxu0 0
      %586 = vmatmul.mubr.bf16.gmra.mrb[0].mxu0 %v483
      %v587 = vpop.f32.mrb[0].mxu0
      %v588 = vadd.f32 %v451, %v587
      %v589 = vpop.f32.mrb[0].mxu0
      %v590 = vpop.f32.mrb[0].mxu0
      %v591 = vadd.f32 %v454, %v590
      %v592 = vpop.f32.mrb[0].mxu0
      %593 = vmatprep.mubr.bf16.mxu0 0
      %594 = vmatmul.mubr.bf16.gmra.mrb[0].mxu0 %v484
      %v595 = vpop.f32.mrb[0].mxu0
      %v596 = vadd.f32 %v459, %v595
      %v597 = vpop.f32.mrb[0].mxu0
      %v598 = vpop.f32.mrb[0].mxu0
      %v599 = vadd.f32 %v462, %v598
      %v600 = vpop.f32.mrb[0].mxu0
      %601 = vdwg.mxu0
      %v602 = vld [vmem:[%s165] sm:$0xe]
      %v603 = vld [vmem:[%s165 + $0x8] sm:$0xe]
      %v604 = vld [vmem:[%s165 + $0x10] sm:$0xe]
      %v605 = vld [vmem:[%s165 + $0x18] sm:$0xe]
      %v606 = vld [vmem:[%s165 + $0x20] sm:$0xe]
      %v607 = vld [vmem:[%s165 + $0x28] sm:$0xe]
      %v608 = vld [vmem:[%s165 + $0x30] sm:$0xe]
      %v609 = vld [vmem:[%s165 + $0x38] sm:$0xe]
      %vm626 = vcmask 1042432
      %vm627 = vcmask 1046532
      %vm628 = vmor %vm626, %vm627
      %v629 = vrot.slane %v602, 5
      %v630 = vrot.slane %v629, 4
      %v631 = vrot.slane %v196, 5
      %v632 = vsel %vm628, %v630, %v631
      %v633 = vrot.slane %v603, 5
      %v634 = vrot.slane %v633, 4
      %v635 = vrot.slane %v197, 5
      %v636 = vsel %vm628, %v634, %v635
      %v637 = vrot.slane %v604, 5
      %v638 = vrot.slane %v637, 4
      %v639 = vrot.slane %v198, 5
      %v640 = vsel %vm628, %v638, %v639
      %v641 = vrot.slane %v605, 5
      %v642 = vrot.slane %v641, 4
      %v643 = vrot.slane %v199, 5
      %v644 = vsel %vm628, %v642, %v643
      %v645 = vrot.slane %v606, 5
      %v646 = vrot.slane %v645, 4
      %v647 = vrot.slane %v200, 5
      %v648 = vsel %vm628, %v646, %v647
      %v649 = vrot.slane %v607, 5
      %v650 = vrot.slane %v649, 4
      %v651 = vrot.slane %v201, 5
      %v652 = vsel %vm628, %v650, %v651
      %v653 = vrot.slane %v608, 5
      %v654 = vrot.slane %v653, 4
      %v655 = vrot.slane %v202, 5
      %v656 = vsel %vm628, %v654, %v655
      %v657 = vrot.slane %v609, 5
      %v658 = vrot.slane %v657, 4
      %v659 = vrot.slane %v203, 5
      %v660 = vsel %vm628, %v658, %v659
      %s661 = scalar_lea.vmem %s1, 128
      %v662 = vld [vmem:[%s661] sm:$0xf]
      %v663 = vld [vmem:[%s661 + $0x4] sm:$0xf]
      %v664 = vld [vmem:[%s661 + $0x8] sm:$0xf]
      %v665 = vld [vmem:[%s661 + $0xc] sm:$0xf]
      %v666 = vld [vmem:[%s661 + $0x10] sm:$0xf]
      %v667 = vld [vmem:[%s661 + $0x14] sm:$0xf]
      %v668 = vld [vmem:[%s661 + $0x18] sm:$0xf]
      %v669 = vld [vmem:[%s661 + $0x1c] sm:$0xf]
      %v670 = vld [vmem:[%s661 + $0x20] sm:$0xf]
      %v671 = vld [vmem:[%s661 + $0x24] sm:$0xf]
      %v672 = vld [vmem:[%s661 + $0x28] sm:$0xf]
      %v673 = vld [vmem:[%s661 + $0x2c] sm:$0xf]
      %v674 = vld [vmem:[%s661 + $0x30] sm:$0xf]
      %v675 = vld [vmem:[%s661 + $0x34] sm:$0xf]
      %v676 = vld [vmem:[%s661 + $0x38] sm:$0xf]
      %v677 = vld [vmem:[%s661 + $0x3c] sm:$0xf]
      %v678 = vunpack.c.l.b16 %v632
      %v679 = vunpack.c.l.b16 %v636
      %v680 = vunpack.c.l.b16 %v640
      %v681 = vunpack.c.l.b16 %v644
      %v682 = vunpack.c.l.b16 %v648
      %v683 = vunpack.c.l.b16 %v652
      %v684 = vunpack.c.l.b16 %v656
      %v685 = vunpack.c.l.b16 %v660
      %v686 = vpack.c.b16 %v679, %v678
      %v687 = vpack.c.b16 %v681, %v680
      %v688 = vpack.c.b16 %v683, %v682
      %v689 = vpack.c.b16 %v685, %v684
      %v710 = vunpack.c.l.b16 %v662
      %v711 = vunpack.c.l.b16 %v663
      %v712 = vunpack.c.l.b16 %v664
      %v713 = vunpack.c.l.b16 %v665
      %v714 = vunpack.c.l.b16 %v666
      %v715 = vunpack.c.l.b16 %v667
      %v716 = vunpack.c.l.b16 %v668
      %v717 = vunpack.c.l.b16 %v669
      %v718 = vunpack.c.l.b16 %v670
      %v719 = vunpack.c.l.b16 %v671
      %v720 = vunpack.c.l.b16 %v672
      %v721 = vunpack.c.l.b16 %v673
      %v722 = vunpack.c.l.b16 %v674
      %v723 = vunpack.c.l.b16 %v675
      %v724 = vunpack.c.l.b16 %v676
      %v725 = vunpack.c.l.b16 %v677
      %v726 = vpack.c.b16 %v711, %v710
      %v727 = vpack.c.b16 %v713, %v712
      %v728 = vpack.c.b16 %v715, %v714
      %v729 = vpack.c.b16 %v717, %v716
      %v730 = vpack.c.b16 %v719, %v718
      %v731 = vpack.c.b16 %v721, %v720
      %v732 = vpack.c.b16 %v723, %v722
      %v733 = vpack.c.b16 %v725, %v724
      %742 = vmatprep.subr.bf16.mxu0 0
      %743 = vmatpush1.bf16.msra.mxu0 %v726
      %744 = vmatprep.subr.bf16.mxu0 0
      %745 = vmatpush1.bf16.msra.mxu0 %v727
      %746 = vmatprep.subr.bf16.mxu0 0
      %747 = vmatpush1.bf16.msra.mxu0 %v728
      %748 = vmatprep.subr.bf16.mxu0 0
      %749 = vmatpush1.bf16.msra.mxu0 %v729
      %750 = vmatprep.subr.bf16.mxu0 0
      %751 = vmatpush1.bf16.msra.mxu0 %v730
      %752 = vmatprep.subr.bf16.mxu0 0
      %753 = vmatpush1.bf16.msra.mxu0 %v731
      %754 = vmatprep.subr.bf16.mxu0 0
      %755 = vmatpush1.bf16.msra.mxu0 %v732
      %756 = vmatprep.subr.bf16.mxu0 0
      %757 = vmatpush1.bf16.msra.mxu0 %v733
      %758 = vmatprep.subr.bf16.mxu0 0
      %759 = vmatpush1.bf16.msra.mxu0 0
      %760 = vmatprep.subr.bf16.mxu0 0
      %761 = vmatpush1.bf16.msra.mxu0 0
      %762 = vmatprep.subr.bf16.mxu0 0
      %763 = vmatpush1.bf16.msra.mxu0 0
      %764 = vmatprep.subr.bf16.mxu0 0
      %765 = vmatpush1.bf16.msra.mxu0 0
      %766 = vmatprep.subr.bf16.mxu0 0
      %767 = vmatpush1.bf16.msra.mxu0 0
      %768 = vmatprep.subr.bf16.mxu0 0
      %769 = vmatpush1.bf16.msra.mxu0 0
      %770 = vmatprep.subr.bf16.mxu0 0
      %771 = vmatpush1.bf16.msra.mxu0 0
      %772 = vmatprep.subr.bf16.mxu0 0
      %773 = vmatpush1.bf16.msra.mxu0 0
      %774 = vmatprep.mubr.bf16.mxu0 0
      %775 = vmatmul.mubr.bf16.gmra.mrb[0].mxu0 %v686
      %v776 = vpop.f32.mrb[0].mxu0
      %v777 = vadd.f32 0.0, %v776
      %v778 = vpop.f32.mrb[0].mxu0
      %v779 = vpop.f32.mrb[0].mxu0
      %v780 = vadd.f32 0.0, %v779
      %v781 = vpop.f32.mrb[0].mxu0
      %782 = vmatprep.mubr.bf16.mxu0 0
      %783 = vmatmul.mubr.bf16.gmra.mrb[0].mxu0 %v687
      %v784 = vpop.f32.mrb[0].mxu0
      %v785 = vadd.f32 0.0, %v784
      %v786 = vpop.f32.mrb[0].mxu0
      %v787 = vpop.f32.mrb[0].mxu0
      %v788 = vadd.f32 0.0, %v787
      %v789 = vpop.f32.mrb[0].mxu0
      %790 = vmatprep.mubr.bf16.mxu0 0
      %791 = vmatmul.mubr.bf16.gmra.mrb[0].mxu0 %v688
      %v792 = vpop.f32.mrb[0].mxu0
      %v793 = vadd.f32 0.0, %v792
      %v794 = vpop.f32.mrb[0].mxu0
      %v795 = vpop.f32.mrb[0].mxu0
      %v796 = vadd.f32 0.0, %v795
      %v797 = vpop.f32.mrb[0].mxu0
      %798 = vmatprep.mubr.bf16.mxu0 0
      %799 = vmatmul.mubr.bf16.gmra.mrb[0].mxu0 %v689
      %v800 = vpop.f32.mrb[0].mxu0
      %v801 = vadd.f32 0.0, %v800
      %v802 = vpop.f32.mrb[0].mxu0
      %v803 = vpop.f32.mrb[0].mxu0
      %v804 = vadd.f32 0.0, %v803
      %v805 = vpop.f32.mrb[0].mxu0
      %806 = vdwg.mxu0
      %v807 = vadd.f32 %v572, %v777
      %v808 = vadd.f32 %v575, %v780
      %v809 = vadd.f32 %v580, %v785
      %v810 = vadd.f32 %v583, %v788
      %v811 = vadd.f32 %v588, %v793
      %v812 = vadd.f32 %v591, %v796
      %v813 = vadd.f32 %v596, %v801
      %v814 = vadd.f32 %v599, %v804
      %v815 = vld [vmem:[%s165 + $0x4] sm:$0x3]
      %v816 = vld [vmem:[%s165 + $0xc] sm:$0x3]
      %v817 = vld [vmem:[%s165 + $0x14] sm:$0x3]
      %v818 = vld [vmem:[%s165 + $0x1c] sm:$0x3]
      %v819 = vld [vmem:[%s165 + $0x24] sm:$0x3]
      %v820 = vld [vmem:[%s165 + $0x2c] sm:$0x3]
      %v821 = vld [vmem:[%s165 + $0x34] sm:$0x3]
      %v822 = vld [vmem:[%s165 + $0x3c] sm:$0x3]
      %vm823 = vsmask.f32 2304
      %vm824 = vsmask.f32 6416
      %vm825 = vmor %vm823, %vm824
      %v827 = vshrl.u32 %v602, 16
      %v829 = vrot.slane %v827, 5
      %v830 = vshll.u32 %v602, 16
      %v832 = vrot.slane %v830, 6
      %v833 = vor.u32 %v829, %v832
      %v834 = vrot.slane %v833, 4
      %v836 = vshrl.u32 %v815, 16
      %v838 = vrot.slane %v836, 5
      %v839 = vshll.u32 %v815, 16
      %v841 = vrot.slane %v839, 6
      %v842 = vor.u32 %v838, %v841
      %v843 = vsel %vm825, %v834, %v842
      %v845 = vshrl.u32 %v603, 16
      %v847 = vrot.slane %v845, 5
      %v848 = vshll.u32 %v603, 16
      %v850 = vrot.slane %v848, 6
      %v851 = vor.u32 %v847, %v850
      %v852 = vrot.slane %v851, 4
      %v854 = vshrl.u32 %v816, 16
      %v856 = vrot.slane %v854, 5
      %v857 = vshll.u32 %v816, 16
      %v859 = vrot.slane %v857, 6
      %v860 = vor.u32 %v856, %v859
      %v861 = vsel %vm825, %v852, %v860
      %v863 = vshrl.u32 %v604, 16
      %v865 = vrot.slane %v863, 5
      %v866 = vshll.u32 %v604, 16
      %v868 = vrot.slane %v866, 6
      %v869 = vor.u32 %v865, %v868
      %v870 = vrot.slane %v869, 4
      %v872 = vshrl.u32 %v817, 16
      %v874 = vrot.slane %v872, 5
      %v875 = vshll.u32 %v817, 16
      %v877 = vrot.slane %v875, 6
      %v878 = vor.u32 %v874, %v877
      %v879 = vsel %vm825, %v870, %v878
      %v881 = vshrl.u32 %v605, 16
      %v883 = vrot.slane %v881, 5
      %v884 = vshll.u32 %v605, 16
      %v886 = vrot.slane %v884, 6
      %v887 = vor.u32 %v883, %v886
      %v888 = vrot.slane %v887, 4
      %v890 = vshrl.u32 %v818, 16
      %v892 = vrot.slane %v890, 5
      %v893 = vshll.u32 %v818, 16
      %v895 = vrot.slane %v893, 6
      %v896 = vor.u32 %v892, %v895
      %v897 = vsel %vm825, %v888, %v896
      %v899 = vshrl.u32 %v606, 16
      %v901 = vrot.slane %v899, 5
      %v902 = vshll.u32 %v606, 16
      %v904 = vrot.slane %v902, 6
      %v905 = vor.u32 %v901, %v904
      %v906 = vrot.slane %v905, 4
      %v908 = vshrl.u32 %v819, 16
      %v910 = vrot.slane %v908, 5
      %v911 = vshll.u32 %v819, 16
      %v913 = vrot.slane %v911, 6
      %v914 = vor.u32 %v910, %v913
      %v915 = vsel %vm825, %v906, %v914
      %v917 = vshrl.u32 %v607, 16
      %v919 = vrot.slane %v917, 5
      %v920 = vshll.u32 %v607, 16
      %v922 = vrot.slane %v920, 6
      %v923 = vor.u32 %v919, %v922
      %v924 = vrot.slane %v923, 4
      %v926 = vshrl.u32 %v820, 16
      %v928 = vrot.slane %v926, 5
      %v929 = vshll.u32 %v820, 16
      %v931 = vrot.slane %v929, 6
      %v932 = vor.u32 %v928, %v931
      %v933 = vsel %vm825, %v924, %v932
      %v935 = vshrl.u32 %v608, 16
      %v937 = vrot.slane %v935, 5
      %v938 = vshll.u32 %v608, 16
      %v940 = vrot.slane %v938, 6
      %v941 = vor.u32 %v937, %v940
      %v942 = vrot.slane %v941, 4
      %v944 = vshrl.u32 %v821, 16
      %v946 = vrot.slane %v944, 5
      %v947 = vshll.u32 %v821, 16
      %v949 = vrot.slane %v947, 6
      %v950 = vor.u32 %v946, %v949
      %v951 = vsel %vm825, %v942, %v950
      %v953 = vshrl.u32 %v609, 16
      %v955 = vrot.slane %v953, 5
      %v956 = vshll.u32 %v609, 16
      %v958 = vrot.slane %v956, 6
      %v959 = vor.u32 %v955, %v958
      %v960 = vrot.slane %v959, 4
      %v962 = vshrl.u32 %v822, 16
      %v964 = vrot.slane %v962, 5
      %v965 = vshll.u32 %v822, 16
      %v967 = vrot.slane %v965, 6
      %v968 = vor.u32 %v964, %v967
      %v969 = vsel %vm825, %v960, %v968
      %s970 = scalar_lea.vmem %s1, 192
      %v971 = vld [vmem:[%s970] sm:$0xf]
      %v972 = vld [vmem:[%s970 + $0x4] sm:$0xf]
      %v973 = vld [vmem:[%s970 + $0x8] sm:$0xf]
      %v974 = vld [vmem:[%s970 + $0xc] sm:$0xf]
      %v975 = vld [vmem:[%s970 + $0x10] sm:$0xf]
      %v976 = vld [vmem:[%s970 + $0x14] sm:$0xf]
      %v977 = vld [vmem:[%s970 + $0x18] sm:$0xf]
      %v978 = vld [vmem:[%s970 + $0x1c] sm:$0xf]
      %v979 = vld [vmem:[%s970 + $0x20] sm:$0xf]
      %v980 = vld [vmem:[%s970 + $0x24] sm:$0xf]
      %v981 = vld [vmem:[%s970 + $0x28] sm:$0xf]
      %v982 = vld [vmem:[%s970 + $0x2c] sm:$0xf]
      %v983 = vld [vmem:[%s970 + $0x30] sm:$0xf]
      %v984 = vld [vmem:[%s970 + $0x34] sm:$0xf]
      %v985 = vld [vmem:[%s970 + $0x38] sm:$0xf]
      %v986 = vld [vmem:[%s970 + $0x3c] sm:$0xf]
      %v987 = vunpack.c.l.b16 %v843
      %v988 = vunpack.c.l.b16 %v861
      %v989 = vunpack.c.l.b16 %v879
      %v990 = vunpack.c.l.b16 %v897
      %v991 = vunpack.c.l.b16 %v915
      %v992 = vunpack.c.l.b16 %v933
      %v993 = vunpack.c.l.b16 %v951
      %v994 = vunpack.c.l.b16 %v969
      %v995 = vpack.c.b16 %v988, %v987
      %v996 = vpack.c.b16 %v990, %v989
      %v997 = vpack.c.b16 %v992, %v991
      %v998 = vpack.c.b16 %v994, %v993
      %v1019 = vunpack.c.l.b16 %v971
      %v1020 = vunpack.c.l.b16 %v972
      %v1021 = vunpack.c.l.b16 %v973
      %v1022 = vunpack.c.l.b16 %v974
      %v1023 = vunpack.c.l.b16 %v975
      %v1024 = vunpack.c.l.b16 %v976
      %v1025 = vunpack.c.l.b16 %v977
      %v1026 = vunpack.c.l.b16 %v978
      %v1027 = vunpack.c.l.b16 %v979
      %v1028 = vunpack.c.l.b16 %v980
      %v1029 = vunpack.c.l.b16 %v981
      %v1030 = vunpack.c.l.b16 %v982
      %v1031 = vunpack.c.l.b16 %v983
      %v1032 = vunpack.c.l.b16 %v984
      %v1033 = vunpack.c.l.b16 %v985
      %v1034 = vunpack.c.l.b16 %v986
      %v1035 = vpack.c.b16 %v1020, %v1019
      %v1036 = vpack.c.b16 %v1022, %v1021
      %v1037 = vpack.c.b16 %v1024, %v1023
      %v1038 = vpack.c.b16 %v1026, %v1025
      %v1039 = vpack.c.b16 %v1028, %v1027
      %v1040 = vpack.c.b16 %v1030, %v1029
      %v1041 = vpack.c.b16 %v1032, %v1031
      %v1042 = vpack.c.b16 %v1034, %v1033
      %1051 = vmatprep.subr.bf16.mxu0 0
      %1052 = vmatpush1.bf16.msra.mxu0 %v1035
      %1053 = vmatprep.subr.bf16.mxu0 0
      %1054 = vmatpush1.bf16.msra.mxu0 %v1036
      %1055 = vmatprep.subr.bf16.mxu0 0
      %1056 = vmatpush1.bf16.msra.mxu0 %v1037
      %1057 = vmatprep.subr.bf16.mxu0 0
      %1058 = vmatpush1.bf16.msra.mxu0 %v1038
      %1059 = vmatprep.subr.bf16.mxu0 0
      %1060 = vmatpush1.bf16.msra.mxu0 %v1039
      %1061 = vmatprep.subr.bf16.mxu0 0
      %1062 = vmatpush1.bf16.msra.mxu0 %v1040
      %1063 = vmatprep.subr.bf16.mxu0 0
      %1064 = vmatpush1.bf16.msra.mxu0 %v1041
      %1065 = vmatprep.subr.bf16.mxu0 0
      %1066 = vmatpush1.bf16.msra.mxu0 %v1042
      %1067 = vmatprep.subr.bf16.mxu0 0
      %1068 = vmatpush1.bf16.msra.mxu0 0
      %1069 = vmatprep.subr.bf16.mxu0 0
      %1070 = vmatpush1.bf16.msra.mxu0 0
      %1071 = vmatprep.subr.bf16.mxu0 0
      %1072 = vmatpush1.bf16.msra.mxu0 0
      %1073 = vmatprep.subr.bf16.mxu0 0
      %1074 = vmatpush1.bf16.msra.mxu0 0
      %1075 = vmatprep.subr.bf16.mxu0 0
      %1076 = vmatpush1.bf16.msra.mxu0 0
      %1077 = vmatprep.subr.bf16.mxu0 0
      %1078 = vmatpush1.bf16.msra.mxu0 0
      %1079 = vmatprep.subr.bf16.mxu0 0
      %1080 = vmatpush1.bf16.msra.mxu0 0
      %1081 = vmatprep.subr.bf16.mxu0 0
      %1082 = vmatpush1.bf16.msra.mxu0 0
      %1083 = vmatprep.mubr.bf16.mxu0 0
      %1084 = vmatmul.mubr.bf16.gmra.mrb[0].mxu0 %v995
      %v1085 = vpop.f32.mrb[0].mxu0
      %v1086 = vadd.f32 0.0, %v1085
      %v1087 = vpop.f32.mrb[0].mxu0
      %v1088 = vpop.f32.mrb[0].mxu0
      %v1089 = vadd.f32 0.0, %v1088
      %v1090 = vpop.f32.mrb[0].mxu0
      %1091 = vmatprep.mubr.bf16.mxu0 0
      %1092 = vmatmul.mubr.bf16.gmra.mrb[0].mxu0 %v996
      %v1093 = vpop.f32.mrb[0].mxu0
      %v1094 = vadd.f32 0.0, %v1093
      %v1095 = vpop.f32.mrb[0].mxu0
      %v1096 = vpop.f32.mrb[0].mxu0
      %v1097 = vadd.f32 0.0, %v1096
      %v1098 = vpop.f32.mrb[0].mxu0
      %1099 = vmatprep.mubr.bf16.mxu0 0
      %1100 = vmatmul.mubr.bf16.gmra.mrb[0].mxu0 %v997
      %v1101 = vpop.f32.mrb[0].mxu0
      %v1102 = vadd.f32 0.0, %v1101
      %v1103 = vpop.f32.mrb[0].mxu0
      %v1104 = vpop.f32.mrb[0].mxu0
      %v1105 = vadd.f32 0.0, %v1104
      %v1106 = vpop.f32.mrb[0].mxu0
      %1107 = vmatprep.mubr.bf16.mxu0 0
      %1108 = vmatmul.mubr.bf16.gmra.mrb[0].mxu0 %v998
      %v1109 = vpop.f32.mrb[0].mxu0
      %v1110 = vadd.f32 0.0, %v1109
      %v1111 = vpop.f32.mrb[0].mxu0
      %v1112 = vpop.f32.mrb[0].mxu0
      %v1113 = vadd.f32 0.0, %v1112
      %v1114 = vpop.f32.mrb[0].mxu0
      %1115 = vdwg.mxu0
      %v1116 = vadd.f32 %v807, %v1086
      %v1117 = vadd.f32 %v808, %v1089
      %v1118 = vadd.f32 %v809, %v1094
      %v1119 = vadd.f32 %v810, %v1097
      %v1120 = vadd.f32 %v811, %v1102
      %v1121 = vadd.f32 %v812, %v1105
      %v1122 = vadd.f32 %v813, %v1110
      %v1123 = vadd.f32 %v814, %v1113
      %v1124 = vld [vmem:[%s165] sm:$0xc]
      %v1125 = vld [vmem:[%s165 + $0x8] sm:$0xc]
      %v1126 = vld [vmem:[%s165 + $0x10] sm:$0xc]
      %v1127 = vld [vmem:[%s165 + $0x18] sm:$0xc]
      %v1128 = vld [vmem:[%s165 + $0x20] sm:$0xc]
      %v1129 = vld [vmem:[%s165 + $0x28] sm:$0xc]
      %v1130 = vld [vmem:[%s165 + $0x30] sm:$0xc]
      %v1131 = vld [vmem:[%s165 + $0x38] sm:$0xc]
      %vm1148 = vcmask 1041408
      %vm1149 = vcmask 1045508
      %vm1150 = vmor %vm1148, %vm1149
      %v1151 = vrot.slane %v1124, 6
      %v1152 = vrot.slane %v1151, 4
      %v1153 = vrot.slane %v815, 6
      %v1154 = vsel %vm1150, %v1152, %v1153
      %v1155 = vrot.slane %v1125, 6
      %v1156 = vrot.slane %v1155, 4
      %v1157 = vrot.slane %v816, 6
      %v1158 = vsel %vm1150, %v1156, %v1157
      %v1159 = vrot.slane %v1126, 6
      %v1160 = vrot.slane %v1159, 4
      %v1161 = vrot.slane %v817, 6
      %v1162 = vsel %vm1150, %v1160, %v1161
      %v1163 = vrot.slane %v1127, 6
      %v1164 = vrot.slane %v1163, 4
      %v1165 = vrot.slane %v818, 6
      %v1166 = vsel %vm1150, %v1164, %v1165
      %v1167 = vrot.slane %v1128, 6
      %v1168 = vrot.slane %v1167, 4
      %v1169 = vrot.slane %v819, 6
      %v1170 = vsel %vm1150, %v1168, %v1169
      %v1171 = vrot.slane %v1129, 6
      %v1172 = vrot.slane %v1171, 4
      %v1173 = vrot.slane %v820, 6
      %v1174 = vsel %vm1150, %v1172, %v1173
      %v1175 = vrot.slane %v1130, 6
      %v1176 = vrot.slane %v1175, 4
      %v1177 = vrot.slane %v821, 6
      %v1178 = vsel %vm1150, %v1176, %v1177
      %v1179 = vrot.slane %v1131, 6
      %v1180 = vrot.slane %v1179, 4
      %v1181 = vrot.slane %v822, 6
      %v1182 = vsel %vm1150, %v1180, %v1181
      %s1183 = scalar_lea.vmem %s1, 256
      %v1184 = vld [vmem:[%s1183] sm:$0xf]
      %v1185 = vld [vmem:[%s1183 + $0x4] sm:$0xf]
      %v1186 = vld [vmem:[%s1183 + $0x8] sm:$0xf]
      %v1187 = vld [vmem:[%s1183 + $0xc] sm:$0xf]
      %v1188 = vld [vmem:[%s1183 + $0x10] sm:$0xf]
      %v1189 = vld [vmem:[%s1183 + $0x14] sm:$0xf]
      %v1190 = vld [vmem:[%s1183 + $0x18] sm:$0xf]
      %v1191 = vld [vmem:[%s1183 + $0x1c] sm:$0xf]
      %v1192 = vld [vmem:[%s1183 + $0x20] sm:$0xf]
      %v1193 = vld [vmem:[%s1183 + $0x24] sm:$0xf]
      %v1194 = vld [vmem:[%s1183 + $0x28] sm:$0xf]
      %v1195 = vld [vmem:[%s1183 + $0x2c] sm:$0xf]
      %v1196 = vld [vmem:[%s1183 + $0x30] sm:$0xf]
      %v1197 = vld [vmem:[%s1183 + $0x34] sm:$0xf]
      %v1198 = vld [vmem:[%s1183 + $0x38] sm:$0xf]
      %v1199 = vld [vmem:[%s1183 + $0x3c] sm:$0xf]
      %v1200 = vunpack.c.l.b16 %v1154
      %v1201 = vunpack.c.l.b16 %v1158
      %v1202 = vunpack.c.l.b16 %v1162
      %v1203 = vunpack.c.l.b16 %v1166
      %v1204 = vunpack.c.l.b16 %v1170
      %v1205 = vunpack.c.l.b16 %v1174
      %v1206 = vunpack.c.l.b16 %v1178
      %v1207 = vunpack.c.l.b16 %v1182
      %v1208 = vpack.c.b16 %v1201, %v1200
      %v1209 = vpack.c.b16 %v1203, %v1202
      %v1210 = vpack.c.b16 %v1205, %v1204
      %v1211 = vpack.c.b16 %v1207, %v1206
      %v1232 = vunpack.c.l.b16 %v1184
      %v1233 = vunpack.c.l.b16 %v1185
      %v1234 = vunpack.c.l.b16 %v1186
      %v1235 = vunpack.c.l.b16 %v1187
      %v1236 = vunpack.c.l.b16 %v1188
      %v1237 = vunpack.c.l.b16 %v1189
      %v1238 = vunpack.c.l.b16 %v1190
      %v1239 = vunpack.c.l.b16 %v1191
      %v1240 = vunpack.c.l.b16 %v1192
      %v1241 = vunpack.c.l.b16 %v1193
      %v1242 = vunpack.c.l.b16 %v1194
      %v1243 = vunpack.c.l.b16 %v1195
      %v1244 = vunpack.c.l.b16 %v1196
      %v1245 = vunpack.c.l.b16 %v1197
      %v1246 = vunpack.c.l.b16 %v1198
      %v1247 = vunpack.c.l.b16 %v1199
      %v1248 = vpack.c.b16 %v1233, %v1232
      %v1249 = vpack.c.b16 %v1235, %v1234
      %v1250 = vpack.c.b16 %v1237, %v1236
      %v1251 = vpack.c.b16 %v1239, %v1238
      %v1252 = vpack.c.b16 %v1241, %v1240
      %v1253 = vpack.c.b16 %v1243, %v1242
      %v1254 = vpack.c.b16 %v1245, %v1244
      %v1255 = vpack.c.b16 %v1247, %v1246
      %1264 = vmatprep.subr.bf16.mxu0 0
      %1265 = vmatpush1.bf16.msra.mxu0 %v1248
      %1266 = vmatprep.subr.bf16.mxu0 0
      %1267 = vmatpush1.bf16.msra.mxu0 %v1249
      %1268 = vmatprep.subr.bf16.mxu0 0
      %1269 = vmatpush1.bf16.msra.mxu0 %v1250
      %1270 = vmatprep.subr.bf16.mxu0 0
      %1271 = vmatpush1.bf16.msra.mxu0 %v1251
      %1272 = vmatprep.subr.bf16.mxu0 0
      %1273 = vmatpush1.bf16.msra.mxu0 %v1252
      %1274 = vmatprep.subr.bf16.mxu0 0
      %1275 = vmatpush1.bf16.msra.mxu0 %v1253
      %1276 = vmatprep.subr.bf16.mxu0 0
      %1277 = vmatpush1.bf16.msra.mxu0 %v1254
      %1278 = vmatprep.subr.bf16.mxu0 0
      %1279 = vmatpush1.bf16.msra.mxu0 %v1255
      %1280 = vmatprep.subr.bf16.mxu0 0
      %1281 = vmatpush1.bf16.msra.mxu0 0
      %1282 = vmatprep.subr.bf16.mxu0 0
      %1283 = vmatpush1.bf16.msra.mxu0 0
      %1284 = vmatprep.subr.bf16.mxu0 0
      %1285 = vmatpush1.bf16.msra.mxu0 0
      %1286 = vmatprep.subr.bf16.mxu0 0
      %1287 = vmatpush1.bf16.msra.mxu0 0
      %1288 = vmatprep.subr.bf16.mxu0 0
      %1289 = vmatpush1.bf16.msra.mxu0 0
      %1290 = vmatprep.subr.bf16.mxu0 0
      %1291 = vmatpush1.bf16.msra.mxu0 0
      %1292 = vmatprep.subr.bf16.mxu0 0
      %1293 = vmatpush1.bf16.msra.mxu0 0
      %1294 = vmatprep.subr.bf16.mxu0 0
      %1295 = vmatpush1.bf16.msra.mxu0 0
      %1296 = vmatprep.mubr.bf16.mxu0 0
      %1297 = vmatmul.mubr.bf16.gmra.mrb[0].mxu0 %v1208
      %v1298 = vpop.f32.mrb[0].mxu0
      %v1299 = vadd.f32 0.0, %v1298
      %v1300 = vpop.f32.mrb[0].mxu0
      %v1301 = vpop.f32.mrb[0].mxu0
      %v1302 = vadd.f32 0.0, %v1301
      %v1303 = vpop.f32.mrb[0].mxu0
      %1304 = vmatprep.mubr.bf16.mxu0 0
      %1305 = vmatmul.mubr.bf16.gmra.mrb[0].mxu0 %v1209
      %v1306 = vpop.f32.mrb[0].mxu0
      %v1307 = vadd.f32 0.0, %v1306
      %v1308 = vpop.f32.mrb[0].mxu0
      %v1309 = vpop.f32.mrb[0].mxu0
      %v1310 = vadd.f32 0.0, %v1309
      %v1311 = vpop.f32.mrb[0].mxu0
      %1312 = vmatprep.mubr.bf16.mxu0 0
      %1313 = vmatmul.mubr.bf16.gmra.mrb[0].mxu0 %v1210
      %v1314 = vpop.f32.mrb[0].mxu0
      %v1315 = vadd.f32 0.0, %v1314
      %v1316 = vpop.f32.mrb[0].mxu0
      %v1317 = vpop.f32.mrb[0].mxu0
      %v1318 = vadd.f32 0.0, %v1317
      %v1319 = vpop.f32.mrb[0].mxu0
      %1320 = vmatprep.mubr.bf16.mxu0 0
      %1321 = vmatmul.mubr.bf16.gmra.mrb[0].mxu0 %v1211
      %v1322 = vpop.f32.mrb[0].mxu0
      %v1323 = vadd.f32 0.0, %v1322
      %v1324 = vpop.f32.mrb[0].mxu0
      %v1325 = vpop.f32.mrb[0].mxu0
      %v1326 = vadd.f32 0.0, %v1325
      %v1327 = vpop.f32.mrb[0].mxu0
      %1328 = vdwg.mxu0
      %v1329 = vadd.f32 %v1116, %v1299
      %v1330 = vadd.f32 %v1117, %v1302
      %v1331 = vadd.f32 %v1118, %v1307
      %v1332 = vadd.f32 %v1119, %v1310
      %v1333 = vadd.f32 %v1120, %v1315
      %v1334 = vadd.f32 %v1121, %v1318
      %v1335 = vadd.f32 %v1122, %v1323
      %v1336 = vadd.f32 %v1123, %v1326
      %s1337 = scalar_lea.vmem %s165, 8
      %v1338 = vld [vmem:[%s1337] sm:$0xf]
      %v1339 = vld [vmem:[%s1337 + $0x8] sm:$0xf]
      %v1340 = vld [vmem:[%s1337 + $0x10] sm:$0xf]
      %v1341 = vld [vmem:[%s1337 + $0x18] sm:$0xf]
      %v1342 = vld [vmem:[%s1337 + $0x20] sm:$0xf]
      %v1343 = vld [vmem:[%s1337 + $0x28] sm:$0xf]
      %v1344 = vld [vmem:[%s1337 + $0x30] sm:$0xf]
      %v1345 = vld [vmem:[%s1337 + $0x38] sm:$0xf]
      %s1346 = scalar_lea.vmem %s1, 320
      %v1347 = vld [vmem:[%s1346] sm:$0xf]
      %v1348 = vld [vmem:[%s1346 + $0x4] sm:$0xf]
      %v1349 = vld [vmem:[%s1346 + $0x8] sm:$0xf]
      %v1350 = vld [vmem:[%s1346 + $0xc] sm:$0xf]
      %v1351 = vld [vmem:[%s1346 + $0x10] sm:$0xf]
      %v1352 = vld [vmem:[%s1346 + $0x14] sm:$0xf]
      %v1353 = vld [vmem:[%s1346 + $0x18] sm:$0xf]
      %v1354 = vld [vmem:[%s1346 + $0x1c] sm:$0xf]
      %v1355 = vld [vmem:[%s1346 + $0x20] sm:$0xf]
      %v1356 = vld [vmem:[%s1346 + $0x24] sm:$0xf]
      %v1357 = vld [vmem:[%s1346 + $0x28] sm:$0xf]
      %v1358 = vld [vmem:[%s1346 + $0x2c] sm:$0xf]
      %v1359 = vld [vmem:[%s1346 + $0x30] sm:$0xf]
      %v1360 = vld [vmem:[%s1346 + $0x34] sm:$0xf]
      %v1361 = vld [vmem:[%s1346 + $0x38] sm:$0xf]
      %v1362 = vld [vmem:[%s1346 + $0x3c] sm:$0xf]
      %v1371 = vunpack.c.l.b16 %v1338
      %v1372 = vunpack.c.l.b16 %v1339
      %v1373 = vunpack.c.l.b16 %v1340
      %v1374 = vunpack.c.l.b16 %v1341
      %v1375 = vunpack.c.l.b16 %v1342
      %v1376 = vunpack.c.l.b16 %v1343
      %v1377 = vunpack.c.l.b16 %v1344
      %v1378 = vunpack.c.l.b16 %v1345
      %v1379 = vpack.c.b16 %v1372, %v1371
      %v1380 = vpack.c.b16 %v1374, %v1373
      %v1381 = vpack.c.b16 %v1376, %v1375
      %v1382 = vpack.c.b16 %v1378, %v1377
      %v1403 = vunpack.c.l.b16 %v1347
      %v1404 = vunpack.c.l.b16 %v1348
      %v1405 = vunpack.c.l.b16 %v1349
      %v1406 = vunpack.c.l.b16 %v1350
      %v1407 = vunpack.c.l.b16 %v1351
      %v1408 = vunpack.c.l.b16 %v1352
      %v1409 = vunpack.c.l.b16 %v1353
      %v1410 = vunpack.c.l.b16 %v1354
      %v1411 = vunpack.c.l.b16 %v1355
      %v1412 = vunpack.c.l.b16 %v1356
      %v1413 = vunpack.c.l.b16 %v1357
      %v1414 = vunpack.c.l.b16 %v1358
      %v1415 = vunpack.c.l.b16 %v1359
      %v1416 = vunpack.c.l.b16 %v1360
      %v1417 = vunpack.c.l.b16 %v1361
      %v1418 = vunpack.c.l.b16 %v1362
      %v1419 = vpack.c.b16 %v1404, %v1403
      %v1420 = vpack.c.b16 %v1406, %v1405
      %v1421 = vpack.c.b16 %v1408, %v1407
      %v1422 = vpack.c.b16 %v1410, %v1409
      %v1423 = vpack.c.b16 %v1412, %v1411
      %v1424 = vpack.c.b16 %v1414, %v1413
      %v1425 = vpack.c.b16 %v1416, %v1415
      %v1426 = vpack.c.b16 %v1418, %v1417
      %1435 = vmatprep.subr.bf16.mxu0 0
      %1436 = vmatpush1.bf16.msra.mxu0 %v1419
      %1437 = vmatprep.subr.bf16.mxu0 0
      %1438 = vmatpush1.bf16.msra.mxu0 %v1420
      %1439 = vmatprep.subr.bf16.mxu0 0
      %1440 = vmatpush1.bf16.msra.mxu0 %v1421
      %1441 = vmatprep.subr.bf16.mxu0 0
      %1442 = vmatpush1.bf16.msra.mxu0 %v1422
      %1443 = vmatprep.subr.bf16.mxu0 0
      %1444 = vmatpush1.bf16.msra.mxu0 %v1423
      %1445 = vmatprep.subr.bf16.mxu0 0
      %1446 = vmatpush1.bf16.msra.mxu0 %v1424
      %1447 = vmatprep.subr.bf16.mxu0 0
      %1448 = vmatpush1.bf16.msra.mxu0 %v1425
      %1449 = vmatprep.subr.bf16.mxu0 0
      %1450 = vmatpush1.bf16.msra.mxu0 %v1426
      %1451 = vmatprep.subr.bf16.mxu0 0
      %1452 = vmatpush1.bf16.msra.mxu0 0
      %1453 = vmatprep.subr.bf16.mxu0 0
      %1454 = vmatpush1.bf16.msra.mxu0 0
      %1455 = vmatprep.subr.bf16.mxu0 0
      %1456 = vmatpush1.bf16.msra.mxu0 0
      %1457 = vmatprep.subr.bf16.mxu0 0
      %1458 = vmatpush1.bf16.msra.mxu0 0
      %1459 = vmatprep.subr.bf16.mxu0 0
      %1460 = vmatpush1.bf16.msra.mxu0 0
      %1461 = vmatprep.subr.bf16.mxu0 0
      %1462 = vmatpush1.bf16.msra.mxu0 0
      %1463 = vmatprep.subr.bf16.mxu0 0
      %1464 = vmatpush1.bf16.msra.mxu0 0
      %1465 = vmatprep.subr.bf16.mxu0 0
      %1466 = vmatpush1.bf16.msra.mxu0 0
      %1467 = vmatprep.mubr.bf16.mxu0 0
      %1468 = vmatmul.mubr.bf16.gmra.mrb[0].mxu0 %v1379
      %v1469 = vpop.f32.mrb[0].mxu0
      %v1470 = vadd.f32 0.0, %v1469
      %v1471 = vpop.f32.mrb[0].mxu0
      %v1472 = vpop.f32.mrb[0].mxu0
      %v1473 = vadd.f32 0.0, %v1472
      %v1474 = vpop.f32.mrb[0].mxu0
      %1475 = vmatprep.mubr.bf16.mxu0 0
      %1476 = vmatmul.mubr.bf16.gmra.mrb[0].mxu0 %v1380
      %v1477 = vpop.f32.mrb[0].mxu0
      %v1478 = vadd.f32 0.0, %v1477
      %v1479 = vpop.f32.mrb[0].mxu0
      %v1480 = vpop.f32.mrb[0].mxu0
      %v1481 = vadd.f32 0.0, %v1480
      %v1482 = vpop.f32.mrb[0].mxu0
      %1483 = vmatprep.mubr.bf16.mxu0 0
      %1484 = vmatmul.mubr.bf16.gmra.mrb[0].mxu0 %v1381
      %v1485 = vpop.f32.mrb[0].mxu0
      %v1486 = vadd.f32 0.0, %v1485
      %v1487 = vpop.f32.mrb[0].mxu0
      %v1488 = vpop.f32.mrb[0].mxu0
      %v1489 = vadd.f32 0.0, %v1488
      %v1490 = vpop.f32.mrb[0].mxu0
      %1491 = vmatprep.mubr.bf16.mxu0 0
      %1492 = vmatmul.mubr.bf16.gmra.mrb[0].mxu0 %v1382
      %v1493 = vpop.f32.mrb[0].mxu0
      %v1494 = vadd.f32 0.0, %v1493
      %v1495 = vpop.f32.mrb[0].mxu0
      %v1496 = vpop.f32.mrb[0].mxu0
      %v1497 = vadd.f32 0.0, %v1496
      %v1498 = vpop.f32.mrb[0].mxu0
      %1499 = vdwg.mxu0
      %v1500 = vadd.f32 %v1329, %v1470
      %v1501 = vadd.f32 %v1330, %v1473
      %v1502 = vadd.f32 %v1331, %v1478
      %v1503 = vadd.f32 %v1332, %v1481
      %v1504 = vadd.f32 %v1333, %v1486
      %v1505 = vadd.f32 %v1334, %v1489
      %v1506 = vadd.f32 %v1335, %v1494
      %v1507 = vadd.f32 %v1336, %v1497
      %v1508 = vld [vmem:[%s1337] sm:$0xf]
      %v1509 = vld [vmem:[%s1337 + $0x4] sm:$0x1]
      %v1510 = vld [vmem:[%s1337 + $0x8] sm:$0xf]
      %v1511 = vld [vmem:[%s1337 + $0xc] sm:$0x1]
      %v1512 = vld [vmem:[%s1337 + $0x10] sm:$0xf]
      %v1513 = vld [vmem:[%s1337 + $0x14] sm:$0x1]
      %v1514 = vld [vmem:[%s1337 + $0x18] sm:$0xf]
      %v1515 = vld [vmem:[%s1337 + $0x1c] sm:$0x1]
      %v1516 = vld [vmem:[%s1337 + $0x20] sm:$0xf]
      %v1517 = vld [vmem:[%s1337 + $0x24] sm:$0x1]
      %v1518 = vld [vmem:[%s1337 + $0x28] sm:$0xf]
      %v1519 = vld [vmem:[%s1337 + $0x2c] sm:$0x1]
      %v1520 = vld [vmem:[%s1337 + $0x30] sm:$0xf]
      %v1521 = vld [vmem:[%s1337 + $0x34] sm:$0x1]
      %v1522 = vld [vmem:[%s1337 + $0x38] sm:$0xf]
      %v1523 = vld [vmem:[%s1337 + $0x3c] sm:$0x1]
      %v1525 = vshrl.u32 %v1508, 16
      %v1527 = vrot.slane %v1525, 4
      %v1528 = vshll.u32 %v1508, 16
      %v1530 = vrot.slane %v1528, 5
      %v1531 = vor.u32 %v1527, %v1530
      %v1532 = vrot.slane %v1531, 4
      %v1534 = vshll.u32 %v1509, 16
      %v1536 = vrot.slane %v1534, 5
      %v1537 = vsel %vm206, %v1532, %v1536
      %v1539 = vshrl.u32 %v1510, 16
      %v1541 = vrot.slane %v1539, 4
      %v1542 = vshll.u32 %v1510, 16
      %v1544 = vrot.slane %v1542, 5
      %v1545 = vor.u32 %v1541, %v1544
      %v1546 = vrot.slane %v1545, 4
      %v1548 = vshll.u32 %v1511, 16
      %v1550 = vrot.slane %v1548, 5
      %v1551 = vsel %vm206, %v1546, %v1550
      %v1553 = vshrl.u32 %v1512, 16
      %v1555 = vrot.slane %v1553, 4
      %v1556 = vshll.u32 %v1512, 16
      %v1558 = vrot.slane %v1556, 5
      %v1559 = vor.u32 %v1555, %v1558
      %v1560 = vrot.slane %v1559, 4
      %v1562 = vshll.u32 %v1513, 16
      %v1564 = vrot.slane %v1562, 5
      %v1565 = vsel %vm206, %v1560, %v1564
      %v1567 = vshrl.u32 %v1514, 16
      %v1569 = vrot.slane %v1567, 4
      %v1570 = vshll.u32 %v1514, 16
      %v1572 = vrot.slane %v1570, 5
      %v1573 = vor.u32 %v1569, %v1572
      %v1574 = vrot.slane %v1573, 4
      %v1576 = vshll.u32 %v1515, 16
      %v1578 = vrot.slane %v1576, 5
      %v1579 = vsel %vm206, %v1574, %v1578
      %v1581 = vshrl.u32 %v1516, 16
      %v1583 = vrot.slane %v1581, 4
      %v1584 = vshll.u32 %v1516, 16
      %v1586 = vrot.slane %v1584, 5
      %v1587 = vor.u32 %v1583, %v1586
      %v1588 = vrot.slane %v1587, 4
      %v1590 = vshll.u32 %v1517, 16
      %v1592 = vrot.slane %v1590, 5
      %v1593 = vsel %vm206, %v1588, %v1592
      %v1595 = vshrl.u32 %v1518, 16
      %v1597 = vrot.slane %v1595, 4
      %v1598 = vshll.u32 %v1518, 16
      %v1600 = vrot.slane %v1598, 5
      %v1601 = vor.u32 %v1597, %v1600
      %v1602 = vrot.slane %v1601, 4
      %v1604 = vshll.u32 %v1519, 16
      %v1606 = vrot.slane %v1604, 5
      %v1607 = vsel %vm206, %v1602, %v1606
      %v1609 = vshrl.u32 %v1520, 16
      %v1611 = vrot.slane %v1609, 4
      %v1612 = vshll.u32 %v1520, 16
      %v1614 = vrot.slane %v1612, 5
      %v1615 = vor.u32 %v1611, %v1614
      %v1616 = vrot.slane %v1615, 4
      %v1618 = vshll.u32 %v1521, 16
      %v1620 = vrot.slane %v1618, 5
      %v1621 = vsel %vm206, %v1616, %v1620
      %v1623 = vshrl.u32 %v1522, 16
      %v1625 = vrot.slane %v1623, 4
      %v1626 = vshll.u32 %v1522, 16
      %v1628 = vrot.slane %v1626, 5
      %v1629 = vor.u32 %v1625, %v1628
      %v1630 = vrot.slane %v1629, 4
      %v1632 = vshll.u32 %v1523, 16
      %v1634 = vrot.slane %v1632, 5
      %v1635 = vsel %vm206, %v1630, %v1634
      %s1636 = scalar_lea.vmem %s1, 384
      %v1637 = vld [vmem:[%s1636] sm:$0xf]
      %v1638 = vld [vmem:[%s1636 + $0x4] sm:$0xf]
      %v1639 = vld [vmem:[%s1636 + $0x8] sm:$0xf]
      %v1640 = vld [vmem:[%s1636 + $0xc] sm:$0xf]
      %v1641 = vld [vmem:[%s1636 + $0x10] sm:$0xf]
      %v1642 = vld [vmem:[%s1636 + $0x14] sm:$0xf]
      %v1643 = vld [vmem:[%s1636 + $0x18] sm:$0xf]
      %v1644 = vld [vmem:[%s1636 + $0x1c] sm:$0xf]
      %v1645 = vld [vmem:[%s1636 + $0x20] sm:$0xf]
      %v1646 = vld [vmem:[%s1636 + $0x24] sm:$0xf]
      %v1647 = vld [vmem:[%s1636 + $0x28] sm:$0xf]
      %v1648 = vld [vmem:[%s1636 + $0x2c] sm:$0xf]
      %v1649 = vld [vmem:[%s1636 + $0x30] sm:$0xf]
      %v1650 = vld [vmem:[%s1636 + $0x34] sm:$0xf]
      %v1651 = vld [vmem:[%s1636 + $0x38] sm:$0xf]
      %v1652 = vld [vmem:[%s1636 + $0x3c] sm:$0xf]
      %v1653 = vunpack.c.l.b16 %v1537
      %v1654 = vunpack.c.l.b16 %v1551
      %v1655 = vunpack.c.l.b16 %v1565
      %v1656 = vunpack.c.l.b16 %v1579
      %v1657 = vunpack.c.l.b16 %v1593
      %v1658 = vunpack.c.l.b16 %v1607
      %v1659 = vunpack.c.l.b16 %v1621
      %v1660 = vunpack.c.l.b16 %v1635
      %v1661 = vpack.c.b16 %v1654, %v1653
      %v1662 = vpack.c.b16 %v1656, %v1655
      %v1663 = vpack.c.b16 %v1658, %v1657
      %v1664 = vpack.c.b16 %v1660, %v1659
      %v1685 = vunpack.c.l.b16 %v1637
      %v1686 = vunpack.c.l.b16 %v1638
      %v1687 = vunpack.c.l.b16 %v1639
      %v1688 = vunpack.c.l.b16 %v1640
      %v1689 = vunpack.c.l.b16 %v1641
      %v1690 = vunpack.c.l.b16 %v1642
      %v1691 = vunpack.c.l.b16 %v1643
      %v1692 = vunpack.c.l.b16 %v1644
      %v1693 = vunpack.c.l.b16 %v1645
      %v1694 = vunpack.c.l.b16 %v1646
      %v1695 = vunpack.c.l.b16 %v1647
      %v1696 = vunpack.c.l.b16 %v1648
      %v1697 = vunpack.c.l.b16 %v1649
      %v1698 = vunpack.c.l.b16 %v1650
      %v1699 = vunpack.c.l.b16 %v1651
      %v1700 = vunpack.c.l.b16 %v1652
      %v1701 = vpack.c.b16 %v1686, %v1685
      %v1702 = vpack.c.b16 %v1688, %v1687
      %v1703 = vpack.c.b16 %v1690, %v1689
      %v1704 = vpack.c.b16 %v1692, %v1691
      %v1705 = vpack.c.b16 %v1694, %v1693
      %v1706 = vpack.c.b16 %v1696, %v1695
      %v1707 = vpack.c.b16 %v1698, %v1697
      %v1708 = vpack.c.b16 %v1700, %v1699
      %1717 = vmatprep.subr.bf16.mxu0 0
      %1718 = vmatpush1.bf16.msra.mxu0 %v1701
      %1719 = vmatprep.subr.bf16.mxu0 0
      %1720 = vmatpush1.bf16.msra.mxu0 %v1702
      %1721 = vmatprep.subr.bf16.mxu0 0
      %1722 = vmatpush1.bf16.msra.mxu0 %v1703
      %1723 = vmatprep.subr.bf16.mxu0 0
      %1724 = vmatpush1.bf16.msra.mxu0 %v1704
      %1725 = vmatprep.subr.bf16.mxu0 0
      %1726 = vmatpush1.bf16.msra.mxu0 %v1705
      %1727 = vmatprep.subr.bf16.mxu0 0
      %1728 = vmatpush1.bf16.msra.mxu0 %v1706
      %1729 = vmatprep.subr.bf16.mxu0 0
      %1730 = vmatpush1.bf16.msra.mxu0 %v1707
      %1731 = vmatprep.subr.bf16.mxu0 0
      %1732 = vmatpush1.bf16.msra.mxu0 %v1708
      %1733 = vmatprep.subr.bf16.mxu0 0
      %1734 = vmatpush1.bf16.msra.mxu0 0
      %1735 = vmatprep.subr.bf16.mxu0 0
      %1736 = vmatpush1.bf16.msra.mxu0 0
      %1737 = vmatprep.subr.bf16.mxu0 0
      %1738 = vmatpush1.bf16.msra.mxu0 0
      %1739 = vmatprep.subr.bf16.mxu0 0
      %1740 = vmatpush1.bf16.msra.mxu0 0
      %1741 = vmatprep.subr.bf16.mxu0 0
      %1742 = vmatpush1.bf16.msra.mxu0 0
      %1743 = vmatprep.subr.bf16.mxu0 0
      %1744 = vmatpush1.bf16.msra.mxu0 0
      %1745 = vmatprep.subr.bf16.mxu0 0
      %1746 = vmatpush1.bf16.msra.mxu0 0
      %1747 = vmatprep.subr.bf16.mxu0 0
      %1748 = vmatpush1.bf16.msra.mxu0 0
      %1749 = vmatprep.mubr.bf16.mxu0 0
      %1750 = vmatmul.mubr.bf16.gmra.mrb[0].mxu0 %v1661
      %v1751 = vpop.f32.mrb[0].mxu0
      %v1752 = vadd.f32 0.0, %v1751
      %v1753 = vpop.f32.mrb[0].mxu0
      %v1754 = vpop.f32.mrb[0].mxu0
      %v1755 = vadd.f32 0.0, %v1754
      %v1756 = vpop.f32.mrb[0].mxu0
      %1757 = vmatprep.mubr.bf16.mxu0 0
      %1758 = vmatmul.mubr.bf16.gmra.mrb[0].mxu0 %v1662
      %v1759 = vpop.f32.mrb[0].mxu0
      %v1760 = vadd.f32 0.0, %v1759
      %v1761 = vpop.f32.mrb[0].mxu0
      %v1762 = vpop.f32.mrb[0].mxu0
      %v1763 = vadd.f32 0.0, %v1762
      %v1764 = vpop.f32.mrb[0].mxu0
      %1765 = vmatprep.mubr.bf16.mxu0 0
      %1766 = vmatmul.mubr.bf16.gmra.mrb[0].mxu0 %v1663
      %v1767 = vpop.f32.mrb[0].mxu0
      %v1768 = vadd.f32 0.0, %v1767
      %v1769 = vpop.f32.mrb[0].mxu0
      %v1770 = vpop.f32.mrb[0].mxu0
      %v1771 = vadd.f32 0.0, %v1770
      %v1772 = vpop.f32.mrb[0].mxu0
      %1773 = vmatprep.mubr.bf16.mxu0 0
      %1774 = vmatmul.mubr.bf16.gmra.mrb[0].mxu0 %v1664
      %v1775 = vpop.f32.mrb[0].mxu0
      %v1776 = vadd.f32 0.0, %v1775
      %v1777 = vpop.f32.mrb[0].mxu0
      %v1778 = vpop.f32.mrb[0].mxu0
      %v1779 = vadd.f32 0.0, %v1778
      %v1780 = vpop.f32.mrb[0].mxu0
      %1781 = vdwg.mxu0
      %v1782 = vadd.f32 %v1500, %v1752
      %v1783 = vadd.f32 %v1501, %v1755
      %v1784 = vadd.f32 %v1502, %v1760
      %v1785 = vadd.f32 %v1503, %v1763
      %v1786 = vadd.f32 %v1504, %v1768
      %v1787 = vadd.f32 %v1505, %v1771
      %v1788 = vadd.f32 %v1506, %v1776
      %v1789 = vadd.f32 %v1507, %v1779
      %v1790 = vld [vmem:[%s1337] sm:$0xe]
      %v1791 = vld [vmem:[%s1337 + $0x8] sm:$0xe]
      %v1792 = vld [vmem:[%s1337 + $0x10] sm:$0xe]
      %v1793 = vld [vmem:[%s1337 + $0x18] sm:$0xe]
      %v1794 = vld [vmem:[%s1337 + $0x20] sm:$0xe]
      %v1795 = vld [vmem:[%s1337 + $0x28] sm:$0xe]
      %v1796 = vld [vmem:[%s1337 + $0x30] sm:$0xe]
      %v1797 = vld [vmem:[%s1337 + $0x38] sm:$0xe]
      %v1814 = vrot.slane %v1790, 5
      %v1815 = vrot.slane %v1814, 4
      %v1816 = vrot.slane %v1509, 5
      %v1817 = vsel %vm628, %v1815, %v1816
      %v1818 = vrot.slane %v1791, 5
      %v1819 = vrot.slane %v1818, 4
      %v1820 = vrot.slane %v1511, 5
      %v1821 = vsel %vm628, %v1819, %v1820
      %v1822 = vrot.slane %v1792, 5
      %v1823 = vrot.slane %v1822, 4
      %v1824 = vrot.slane %v1513, 5
      %v1825 = vsel %vm628, %v1823, %v1824
      %v1826 = vrot.slane %v1793, 5
      %v1827 = vrot.slane %v1826, 4
      %v1828 = vrot.slane %v1515, 5
      %v1829 = vsel %vm628, %v1827, %v1828
      %v1830 = vrot.slane %v1794, 5
      %v1831 = vrot.slane %v1830, 4
      %v1832 = vrot.slane %v1517, 5
      %v1833 = vsel %vm628, %v1831, %v1832
      %v1834 = vrot.slane %v1795, 5
      %v1835 = vrot.slane %v1834, 4
      %v1836 = vrot.slane %v1519, 5
      %v1837 = vsel %vm628, %v1835, %v1836
      %v1838 = vrot.slane %v1796, 5
      %v1839 = vrot.slane %v1838, 4
      %v1840 = vrot.slane %v1521, 5
      %v1841 = vsel %vm628, %v1839, %v1840
      %v1842 = vrot.slane %v1797, 5
      %v1843 = vrot.slane %v1842, 4
      %v1844 = vrot.slane %v1523, 5
      %v1845 = vsel %vm628, %v1843, %v1844
      %s1846 = scalar_lea.vmem %s1, 448
      %v1847 = vld [vmem:[%s1846] sm:$0xf]
      %v1848 = vld [vmem:[%s1846 + $0x4] sm:$0xf]
      %v1849 = vld [vmem:[%s1846 + $0x8] sm:$0xf]
      %v1850 = vld [vmem:[%s1846 + $0xc] sm:$0xf]
      %v1851 = vld [vmem:[%s1846 + $0x10] sm:$0xf]
      %v1852 = vld [vmem:[%s1846 + $0x14] sm:$0xf]
      %v1853 = vld [vmem:[%s1846 + $0x18] sm:$0xf]
      %v1854 = vld [vmem:[%s1846 + $0x1c] sm:$0xf]
      %v1855 = vld [vmem:[%s1846 + $0x20] sm:$0xf]
      %v1856 = vld [vmem:[%s1846 + $0x24] sm:$0xf]
      %v1857 = vld [vmem:[%s1846 + $0x28] sm:$0xf]
      %v1858 = vld [vmem:[%s1846 + $0x2c] sm:$0xf]
      %v1859 = vld [vmem:[%s1846 + $0x30] sm:$0xf]
      %v1860 = vld [vmem:[%s1846 + $0x34] sm:$0xf]
      %v1861 = vld [vmem:[%s1846 + $0x38] sm:$0xf]
      %v1862 = vld [vmem:[%s1846 + $0x3c] sm:$0xf]
      %v1863 = vunpack.c.l.b16 %v1817
      %v1864 = vunpack.c.l.b16 %v1821
      %v1865 = vunpack.c.l.b16 %v1825
      %v1866 = vunpack.c.l.b16 %v1829
      %v1867 = vunpack.c.l.b16 %v1833
      %v1868 = vunpack.c.l.b16 %v1837
      %v1869 = vunpack.c.l.b16 %v1841
      %v1870 = vunpack.c.l.b16 %v1845
      %v1871 = vpack.c.b16 %v1864, %v1863
      %v1872 = vpack.c.b16 %v1866, %v1865
      %v1873 = vpack.c.b16 %v1868, %v1867
      %v1874 = vpack.c.b16 %v1870, %v1869
      %v1895 = vunpack.c.l.b16 %v1847
      %v1896 = vunpack.c.l.b16 %v1848
      %v1897 = vunpack.c.l.b16 %v1849
      %v1898 = vunpack.c.l.b16 %v1850
      %v1899 = vunpack.c.l.b16 %v1851
      %v1900 = vunpack.c.l.b16 %v1852
      %v1901 = vunpack.c.l.b16 %v1853
      %v1902 = vunpack.c.l.b16 %v1854
      %v1903 = vunpack.c.l.b16 %v1855
      %v1904 = vunpack.c.l.b16 %v1856
      %v1905 = vunpack.c.l.b16 %v1857
      %v1906 = vunpack.c.l.b16 %v1858
      %v1907 = vunpack.c.l.b16 %v1859
      %v1908 = vunpack.c.l.b16 %v1860
      %v1909 = vunpack.c.l.b16 %v1861
      %v1910 = vunpack.c.l.b16 %v1862
      %v1911 = vpack.c.b16 %v1896, %v1895
      %v1912 = vpack.c.b16 %v1898, %v1897
      %v1913 = vpack.c.b16 %v1900, %v1899
      %v1914 = vpack.c.b16 %v1902, %v1901
      %v1915 = vpack.c.b16 %v1904, %v1903
      %v1916 = vpack.c.b16 %v1906, %v1905
      %v1917 = vpack.c.b16 %v1908, %v1907
      %v1918 = vpack.c.b16 %v1910, %v1909
      %1927 = vmatprep.subr.bf16.mxu0 0
      %1928 = vmatpush1.bf16.msra.mxu0 %v1911
      %1929 = vmatprep.subr.bf16.mxu0 0
      %1930 = vmatpush1.bf16.msra.mxu0 %v1912
      %1931 = vmatprep.subr.bf16.mxu0 0
      %1932 = vmatpush1.bf16.msra.mxu0 %v1913
      %1933 = vmatprep.subr.bf16.mxu0 0
      %1934 = vmatpush1.bf16.msra.mxu0 %v1914
      %1935 = vmatprep.subr.bf16.mxu0 0
      %1936 = vmatpush1.bf16.msra.mxu0 %v1915
      %1937 = vmatprep.subr.bf16.mxu0 0
      %1938 = vmatpush1.bf16.msra.mxu0 %v1916
      %1939 = vmatprep.subr.bf16.mxu0 0
      %1940 = vmatpush1.bf16.msra.mxu0 %v1917
      %1941 = vmatprep.subr.bf16.mxu0 0
      %1942 = vmatpush1.bf16.msra.mxu0 %v1918
      %1943 = vmatprep.subr.bf16.mxu0 0
      %1944 = vmatpush1.bf16.msra.mxu0 0
      %1945 = vmatprep.subr.bf16.mxu0 0
      %1946 = vmatpush1.bf16.msra.mxu0 0
      %1947 = vmatprep.subr.bf16.mxu0 0
      %1948 = vmatpush1.bf16.msra.mxu0 0
      %1949 = vmatprep.subr.bf16.mxu0 0
      %1950 = vmatpush1.bf16.msra.mxu0 0
      %1951 = vmatprep.subr.bf16.mxu0 0
      %1952 = vmatpush1.bf16.msra.mxu0 0
      %1953 = vmatprep.subr.bf16.mxu0 0
      %1954 = vmatpush1.bf16.msra.mxu0 0
      %1955 = vmatprep.subr.bf16.mxu0 0
      %1956 = vmatpush1.bf16.msra.mxu0 0
      %1957 = vmatprep.subr.bf16.mxu0 0
      %1958 = vmatpush1.bf16.msra.mxu0 0
      %1959 = vmatprep.mubr.bf16.mxu0 0
      %1960 = vmatmul.mubr.bf16.gmra.mrb[0].mxu0 %v1871
      %v1961 = vpop.f32.mrb[0].mxu0
      %v1962 = vadd.f32 0.0, %v1961
      %v1963 = vpop.f32.mrb[0].mxu0
      %v1964 = vpop.f32.mrb[0].mxu0
      %v1965 = vadd.f32 0.0, %v1964
      %v1966 = vpop.f32.mrb[0].mxu0
      %1967 = vmatprep.mubr.bf16.mxu0 0
      %1968 = vmatmul.mubr.bf16.gmra.mrb[0].mxu0 %v1872
      %v1969 = vpop.f32.mrb[0].mxu0
      %v1970 = vadd.f32 0.0, %v1969
      %v1971 = vpop.f32.mrb[0].mxu0
      %v1972 = vpop.f32.mrb[0].mxu0
      %v1973 = vadd.f32 0.0, %v1972
      %v1974 = vpop.f32.mrb[0].mxu0
      %1975 = vmatprep.mubr.bf16.mxu0 0
      %1976 = vmatmul.mubr.bf16.gmra.mrb[0].mxu0 %v1873
      %v1977 = vpop.f32.mrb[0].mxu0
      %v1978 = vadd.f32 0.0, %v1977
      %v1979 = vpop.f32.mrb[0].mxu0
      %v1980 = vpop.f32.mrb[0].mxu0
      %v1981 = vadd.f32 0.0, %v1980
      %v1982 = vpop.f32.mrb[0].mxu0
      %1983 = vmatprep.mubr.bf16.mxu0 0
      %1984 = vmatmul.mubr.bf16.gmra.mrb[0].mxu0 %v1874
      %v1985 = vpop.f32.mrb[0].mxu0
      %v1986 = vadd.f32 0.0, %v1985
      %v1987 = vpop.f32.mrb[0].mxu0
      %v1988 = vpop.f32.mrb[0].mxu0
      %v1989 = vadd.f32 0.0, %v1988
      %v1990 = vpop.f32.mrb[0].mxu0
      %1991 = vdwg.mxu0
      %v1992 = vadd.f32 %v1782, %v1962
      %v1993 = vadd.f32 %v1783, %v1965
      %v1994 = vadd.f32 %v1784, %v1970
      %v1995 = vadd.f32 %v1785, %v1973
      %v1996 = vadd.f32 %v1786, %v1978
      %v1997 = vadd.f32 %v1787, %v1981
      %v1998 = vadd.f32 %v1788, %v1986
      %v1999 = vadd.f32 %v1789, %v1989
      %v2000 = vld [vmem:[%s1337 + $0x4] sm:$0x3]
      %v2001 = vld [vmem:[%s1337 + $0xc] sm:$0x3]
      %v2002 = vld [vmem:[%s1337 + $0x14] sm:$0x3]
      %v2003 = vld [vmem:[%s1337 + $0x1c] sm:$0x3]
      %v2004 = vld [vmem:[%s1337 + $0x24] sm:$0x3]
      %v2005 = vld [vmem:[%s1337 + $0x2c] sm:$0x3]
      %v2006 = vld [vmem:[%s1337 + $0x34] sm:$0x3]
      %v2007 = vld [vmem:[%s1337 + $0x3c] sm:$0x3]
      %v2009 = vshrl.u32 %v1790, 16
      %v2011 = vrot.slane %v2009, 5
      %v2012 = vshll.u32 %v1790, 16
      %v2014 = vrot.slane %v2012, 6
      %v2015 = vor.u32 %v2011, %v2014
      %v2016 = vrot.slane %v2015, 4
      %v2018 = vshrl.u32 %v2000, 16
      %v2020 = vrot.slane %v2018, 5
      %v2021 = vshll.u32 %v2000, 16
      %v2023 = vrot.slane %v2021, 6
      %v2024 = vor.u32 %v2020, %v2023
      %v2025 = vsel %vm825, %v2016, %v2024
      %v2027 = vshrl.u32 %v1791, 16
      %v2029 = vrot.slane %v2027, 5
      %v2030 = vshll.u32 %v1791, 16
      %v2032 = vrot.slane %v2030, 6
      %v2033 = vor.u32 %v2029, %v2032
      %v2034 = vrot.slane %v2033, 4
      %v2036 = vshrl.u32 %v2001, 16
      %v2038 = vrot.slane %v2036, 5
      %v2039 = vshll.u32 %v2001, 16
      %v2041 = vrot.slane %v2039, 6
      %v2042 = vor.u32 %v2038, %v2041
      %v2043 = vsel %vm825, %v2034, %v2042
      %v2045 = vshrl.u32 %v1792, 16
      %v2047 = vrot.slane %v2045, 5
      %v2048 = vshll.u32 %v1792, 16
      %v2050 = vrot.slane %v2048, 6
      %v2051 = vor.u32 %v2047, %v2050
      %v2052 = vrot.slane %v2051, 4
      %v2054 = vshrl.u32 %v2002, 16
      %v2056 = vrot.slane %v2054, 5
      %v2057 = vshll.u32 %v2002, 16
      %v2059 = vrot.slane %v2057, 6
      %v2060 = vor.u32 %v2056, %v2059
      %v2061 = vsel %vm825, %v2052, %v2060
      %v2063 = vshrl.u32 %v1793, 16
      %v2065 = vrot.slane %v2063, 5
      %v2066 = vshll.u32 %v1793, 16
      %v2068 = vrot.slane %v2066, 6
      %v2069 = vor.u32 %v2065, %v2068
      %v2070 = vrot.slane %v2069, 4
      %v2072 = vshrl.u32 %v2003, 16
      %v2074 = vrot.slane %v2072, 5
      %v2075 = vshll.u32 %v2003, 16
      %v2077 = vrot.slane %v2075, 6
      %v2078 = vor.u32 %v2074, %v2077
      %v2079 = vsel %vm825, %v2070, %v2078
      %v2081 = vshrl.u32 %v1794, 16
      %v2083 = vrot.slane %v2081, 5
      %v2084 = vshll.u32 %v1794, 16
      %v2086 = vrot.slane %v2084, 6
      %v2087 = vor.u32 %v2083, %v2086
      %v2088 = vrot.slane %v2087, 4
      %v2090 = vshrl.u32 %v2004, 16
      %v2092 = vrot.slane %v2090, 5
      %v2093 = vshll.u32 %v2004, 16
      %v2095 = vrot.slane %v2093, 6
      %v2096 = vor.u32 %v2092, %v2095
      %v2097 = vsel %vm825, %v2088, %v2096
      %v2099 = vshrl.u32 %v1795, 16
      %v2101 = vrot.slane %v2099, 5
      %v2102 = vshll.u32 %v1795, 16
      %v2104 = vrot.slane %v2102, 6
      %v2105 = vor.u32 %v2101, %v2104
      %v2106 = vrot.slane %v2105, 4
      %v2108 = vshrl.u32 %v2005, 16
      %v2110 = vrot.slane %v2108, 5
      %v2111 = vshll.u32 %v2005, 16
      %v2113 = vrot.slane %v2111, 6
      %v2114 = vor.u32 %v2110, %v2113
      %v2115 = vsel %vm825, %v2106, %v2114
      %v2117 = vshrl.u32 %v1796, 16
      %v2119 = vrot.slane %v2117, 5
      %v2120 = vshll.u32 %v1796, 16
      %v2122 = vrot.slane %v2120, 6
      %v2123 = vor.u32 %v2119, %v2122
      %v2124 = vrot.slane %v2123, 4
      %v2126 = vshrl.u32 %v2006, 16
      %v2128 = vrot.slane %v2126, 5
      %v2129 = vshll.u32 %v2006, 16
      %v2131 = vrot.slane %v2129, 6
      %v2132 = vor.u32 %v2128, %v2131
      %v2133 = vsel %vm825, %v2124, %v2132
      %v2135 = vshrl.u32 %v1797, 16
      %v2137 = vrot.slane %v2135, 5
      %v2138 = vshll.u32 %v1797, 16
      %v2140 = vrot.slane %v2138, 6
      %v2141 = vor.u32 %v2137, %v2140
      %v2142 = vrot.slane %v2141, 4
      %v2144 = vshrl.u32 %v2007, 16
      %v2146 = vrot.slane %v2144, 5
      %v2147 = vshll.u32 %v2007, 16
      %v2149 = vrot.slane %v2147, 6
      %v2150 = vor.u32 %v2146, %v2149
      %v2151 = vsel %vm825, %v2142, %v2150
      %s2152 = scalar_lea.vmem %s1, 512
      %v2153 = vld [vmem:[%s2152] sm:$0xf]
      %v2154 = vld [vmem:[%s2152 + $0x4] sm:$0xf]
      %v2155 = vld [vmem:[%s2152 + $0x8] sm:$0xf]
      %v2156 = vld [vmem:[%s2152 + $0xc] sm:$0xf]
      %v2157 = vld [vmem:[%s2152 + $0x10] sm:$0xf]
      %v2158 = vld [vmem:[%s2152 + $0x14] sm:$0xf]
      %v2159 = vld [vmem:[%s2152 + $0x18] sm:$0xf]
      %v2160 = vld [vmem:[%s2152 + $0x1c] sm:$0xf]
      %v2161 = vld [vmem:[%s2152 + $0x20] sm:$0xf]
      %v2162 = vld [vmem:[%s2152 + $0x24] sm:$0xf]
      %v2163 = vld [vmem:[%s2152 + $0x28] sm:$0xf]
      %v2164 = vld [vmem:[%s2152 + $0x2c] sm:$0xf]
      %v2165 = vld [vmem:[%s2152 + $0x30] sm:$0xf]
      %v2166 = vld [vmem:[%s2152 + $0x34] sm:$0xf]
      %v2167 = vld [vmem:[%s2152 + $0x38] sm:$0xf]
      %v2168 = vld [vmem:[%s2152 + $0x3c] sm:$0xf]
      %v2169 = vunpack.c.l.b16 %v2025
      %v2170 = vunpack.c.l.b16 %v2043
      %v2171 = vunpack.c.l.b16 %v2061
      %v2172 = vunpack.c.l.b16 %v2079
      %v2173 = vunpack.c.l.b16 %v2097
      %v2174 = vunpack.c.l.b16 %v2115
      %v2175 = vunpack.c.l.b16 %v2133
      %v2176 = vunpack.c.l.b16 %v2151
      %v2177 = vpack.c.b16 %v2170, %v2169
      %v2178 = vpack.c.b16 %v2172, %v2171
      %v2179 = vpack.c.b16 %v2174, %v2173
      %v2180 = vpack.c.b16 %v2176, %v2175
      %v2201 = vunpack.c.l.b16 %v2153
      %v2202 = vunpack.c.l.b16 %v2154
      %v2203 = vunpack.c.l.b16 %v2155
      %v2204 = vunpack.c.l.b16 %v2156
      %v2205 = vunpack.c.l.b16 %v2157
      %v2206 = vunpack.c.l.b16 %v2158
      %v2207 = vunpack.c.l.b16 %v2159
      %v2208 = vunpack.c.l.b16 %v2160
      %v2209 = vunpack.c.l.b16 %v2161
      %v2210 = vunpack.c.l.b16 %v2162
      %v2211 = vunpack.c.l.b16 %v2163
      %v2212 = vunpack.c.l.b16 %v2164
      %v2213 = vunpack.c.l.b16 %v2165
      %v2214 = vunpack.c.l.b16 %v2166
      %v2215 = vunpack.c.l.b16 %v2167
      %v2216 = vunpack.c.l.b16 %v2168
      %v2217 = vpack.c.b16 %v2202, %v2201
      %v2218 = vpack.c.b16 %v2204, %v2203
      %v2219 = vpack.c.b16 %v2206, %v2205
      %v2220 = vpack.c.b16 %v2208, %v2207
      %v2221 = vpack.c.b16 %v2210, %v2209
      %v2222 = vpack.c.b16 %v2212, %v2211
      %v2223 = vpack.c.b16 %v2214, %v2213
      %v2224 = vpack.c.b16 %v2216, %v2215
      %2233 = vmatprep.subr.bf16.mxu0 0
      %2234 = vmatpush1.bf16.msra.mxu0 %v2217
      %2235 = vmatprep.subr.bf16.mxu0 0
      %2236 = vmatpush1.bf16.msra.mxu0 %v2218
      %2237 = vmatprep.subr.bf16.mxu0 0
      %2238 = vmatpush1.bf16.msra.mxu0 %v2219
      %2239 = vmatprep.subr.bf16.mxu0 0
      %2240 = vmatpush1.bf16.msra.mxu0 %v2220
      %2241 = vmatprep.subr.bf16.mxu0 0
      %2242 = vmatpush1.bf16.msra.mxu0 %v2221
      %2243 = vmatprep.subr.bf16.mxu0 0
      %2244 = vmatpush1.bf16.msra.mxu0 %v2222
      %2245 = vmatprep.subr.bf16.mxu0 0
      %2246 = vmatpush1.bf16.msra.mxu0 %v2223
      %2247 = vmatprep.subr.bf16.mxu0 0
      %2248 = vmatpush1.bf16.msra.mxu0 %v2224
      %2249 = vmatprep.subr.bf16.mxu0 0
      %2250 = vmatpush1.bf16.msra.mxu0 0
      %2251 = vmatprep.subr.bf16.mxu0 0
      %2252 = vmatpush1.bf16.msra.mxu0 0
      %2253 = vmatprep.subr.bf16.mxu0 0
      %2254 = vmatpush1.bf16.msra.mxu0 0
      %2255 = vmatprep.subr.bf16.mxu0 0
      %2256 = vmatpush1.bf16.msra.mxu0 0
      %2257 = vmatprep.subr.bf16.mxu0 0
      %2258 = vmatpush1.bf16.msra.mxu0 0
      %2259 = vmatprep.subr.bf16.mxu0 0
      %2260 = vmatpush1.bf16.msra.mxu0 0
      %2261 = vmatprep.subr.bf16.mxu0 0
      %2262 = vmatpush1.bf16.msra.mxu0 0
      %2263 = vmatprep.subr.bf16.mxu0 0
      %2264 = vmatpush1.bf16.msra.mxu0 0
      %2265 = vmatprep.mubr.bf16.mxu0 0
      %2266 = vmatmul.mubr.bf16.gmra.mrb[0].mxu0 %v2177
      %v2267 = vpop.f32.mrb[0].mxu0
      %v2268 = vadd.f32 0.0, %v2267
      %v2269 = vpop.f32.mrb[0].mxu0
      %v2270 = vpop.f32.mrb[0].mxu0
      %v2271 = vadd.f32 0.0, %v2270
      %v2272 = vpop.f32.mrb[0].mxu0
      %2273 = vmatprep.mubr.bf16.mxu0 0
      %2274 = vmatmul.mubr.bf16.gmra.mrb[0].mxu0 %v2178
      %v2275 = vpop.f32.mrb[0].mxu0
      %v2276 = vadd.f32 0.0, %v2275
      %v2277 = vpop.f32.mrb[0].mxu0
      %v2278 = vpop.f32.mrb[0].mxu0
      %v2279 = vadd.f32 0.0, %v2278
      %v2280 = vpop.f32.mrb[0].mxu0
      %2281 = vmatprep.mubr.bf16.mxu0 0
      %2282 = vmatmul.mubr.bf16.gmra.mrb[0].mxu0 %v2179
      %v2283 = vpop.f32.mrb[0].mxu0
      %v2284 = vadd.f32 0.0, %v2283
      %v2285 = vpop.f32.mrb[0].mxu0
      %v2286 = vpop.f32.mrb[0].mxu0
      %v2287 = vadd.f32 0.0, %v2286
      %v2288 = vpop.f32.mrb[0].mxu0
      %2289 = vmatprep.mubr.bf16.mxu0 0
      %2290 = vmatmul.mubr.bf16.gmra.mrb[0].mxu0 %v2180
      %v2291 = vpop.f32.mrb[0].mxu0
      %v2292 = vadd.f32 0.0, %v2291
      %v2293 = vpop.f32.mrb[0].mxu0
      %v2294 = vpop.f32.mrb[0].mxu0
      %v2295 = vadd.f32 0.0, %v2294
      %v2296 = vpop.f32.mrb[0].mxu0
      %2297 = vdwg.mxu0
      %v2298 = vadd.f32 %v1992, %v2268
      %v2299 = vadd.f32 %v1993, %v2271
      %v2300 = vadd.f32 %v1994, %v2276
      %v2301 = vadd.f32 %v1995, %v2279
      %v2302 = vadd.f32 %v1996, %v2284
      %v2303 = vadd.f32 %v1997, %v2287
      %v2304 = vadd.f32 %v1998, %v2292
      %v2305 = vadd.f32 %v1999, %v2295
      %v2306 = vld [vmem:[%s1337] sm:$0xc]
      %v2307 = vld [vmem:[%s1337 + $0x8] sm:$0xc]
      %v2308 = vld [vmem:[%s1337 + $0x10] sm:$0xc]
      %v2309 = vld [vmem:[%s1337 + $0x18] sm:$0xc]
      %v2310 = vld [vmem:[%s1337 + $0x20] sm:$0xc]
      %v2311 = vld [vmem:[%s1337 + $0x28] sm:$0xc]
      %v2312 = vld [vmem:[%s1337 + $0x30] sm:$0xc]
      %v2313 = vld [vmem:[%s1337 + $0x38] sm:$0xc]
      %v2330 = vrot.slane %v2306, 6
      %v2331 = vrot.slane %v2330, 4
      %v2332 = vrot.slane %v2000, 6
      %v2333 = vsel %vm1150, %v2331, %v2332
      %v2334 = vrot.slane %v2307, 6
      %v2335 = vrot.slane %v2334, 4
      %v2336 = vrot.slane %v2001, 6
      %v2337 = vsel %vm1150, %v2335, %v2336
      %v2338 = vrot.slane %v2308, 6
      %v2339 = vrot.slane %v2338, 4
      %v2340 = vrot.slane %v2002, 6
      %v2341 = vsel %vm1150, %v2339, %v2340
      %v2342 = vrot.slane %v2309, 6
      %v2343 = vrot.slane %v2342, 4
      %v2344 = vrot.slane %v2003, 6
      %v2345 = vsel %vm1150, %v2343, %v2344
      %v2346 = vrot.slane %v2310, 6
      %v2347 = vrot.slane %v2346, 4
      %v2348 = vrot.slane %v2004, 6
      %v2349 = vsel %vm1150, %v2347, %v2348
      %v2350 = vrot.slane %v2311, 6
      %v2351 = vrot.slane %v2350, 4
      %v2352 = vrot.slane %v2005, 6
      %v2353 = vsel %vm1150, %v2351, %v2352
      %v2354 = vrot.slane %v2312, 6
      %v2355 = vrot.slane %v2354, 4
      %v2356 = vrot.slane %v2006, 6
      %v2357 = vsel %vm1150, %v2355, %v2356
      %v2358 = vrot.slane %v2313, 6
      %v2359 = vrot.slane %v2358, 4
      %v2360 = vrot.slane %v2007, 6
      %v2361 = vsel %vm1150, %v2359, %v2360
      %s2362 = scalar_lea.vmem %s1, 576
      %v2363 = vld [vmem:[%s2362] sm:$0xf]
      %v2364 = vld [vmem:[%s2362 + $0x4] sm:$0xf]
      %v2365 = vld [vmem:[%s2362 + $0x8] sm:$0xf]
      %v2366 = vld [vmem:[%s2362 + $0xc] sm:$0xf]
      %v2367 = vld [vmem:[%s2362 + $0x10] sm:$0xf]
      %v2368 = vld [vmem:[%s2362 + $0x14] sm:$0xf]
      %v2369 = vld [vmem:[%s2362 + $0x18] sm:$0xf]
      %v2370 = vld [vmem:[%s2362 + $0x1c] sm:$0xf]
      %v2371 = vld [vmem:[%s2362 + $0x20] sm:$0xf]
      %v2372 = vld [vmem:[%s2362 + $0x24] sm:$0xf]
      %v2373 = vld [vmem:[%s2362 + $0x28] sm:$0xf]
      %v2374 = vld [vmem:[%s2362 + $0x2c] sm:$0xf]
      %v2375 = vld [vmem:[%s2362 + $0x30] sm:$0xf]
      %v2376 = vld [vmem:[%s2362 + $0x34] sm:$0xf]
      %v2377 = vld [vmem:[%s2362 + $0x38] sm:$0xf]
      %v2378 = vld [vmem:[%s2362 + $0x3c] sm:$0xf]
      %v2379 = vunpack.c.l.b16 %v2333
      %v2380 = vunpack.c.l.b16 %v2337
      %v2381 = vunpack.c.l.b16 %v2341
      %v2382 = vunpack.c.l.b16 %v2345
      %v2383 = vunpack.c.l.b16 %v2349
      %v2384 = vunpack.c.l.b16 %v2353
      %v2385 = vunpack.c.l.b16 %v2357
      %v2386 = vunpack.c.l.b16 %v2361
      %v2387 = vpack.c.b16 %v2380, %v2379
      %v2388 = vpack.c.b16 %v2382, %v2381
      %v2389 = vpack.c.b16 %v2384, %v2383
      %v2390 = vpack.c.b16 %v2386, %v2385
      %v2411 = vunpack.c.l.b16 %v2363
      %v2412 = vunpack.c.l.b16 %v2364
      %v2413 = vunpack.c.l.b16 %v2365
      %v2414 = vunpack.c.l.b16 %v2366
      %v2415 = vunpack.c.l.b16 %v2367
      %v2416 = vunpack.c.l.b16 %v2368
      %v2417 = vunpack.c.l.b16 %v2369
      %v2418 = vunpack.c.l.b16 %v2370
      %v2419 = vunpack.c.l.b16 %v2371
      %v2420 = vunpack.c.l.b16 %v2372
      %v2421 = vunpack.c.l.b16 %v2373
      %v2422 = vunpack.c.l.b16 %v2374
      %v2423 = vunpack.c.l.b16 %v2375
      %v2424 = vunpack.c.l.b16 %v2376
      %v2425 = vunpack.c.l.b16 %v2377
      %v2426 = vunpack.c.l.b16 %v2378
      %v2427 = vpack.c.b16 %v2412, %v2411
      %v2428 = vpack.c.b16 %v2414, %v2413
      %v2429 = vpack.c.b16 %v2416, %v2415
      %v2430 = vpack.c.b16 %v2418, %v2417
      %v2431 = vpack.c.b16 %v2420, %v2419
      %v2432 = vpack.c.b16 %v2422, %v2421
      %v2433 = vpack.c.b16 %v2424, %v2423
      %v2434 = vpack.c.b16 %v2426, %v2425
      %2443 = vmatprep.subr.bf16.mxu0 0
      %2444 = vmatpush1.bf16.msra.mxu0 %v2427
      %2445 = vmatprep.subr.bf16.mxu0 0
      %2446 = vmatpush1.bf16.msra.mxu0 %v2428
      %2447 = vmatprep.subr.bf16.mxu0 0
      %2448 = vmatpush1.bf16.msra.mxu0 %v2429
      %2449 = vmatprep.subr.bf16.mxu0 0
      %2450 = vmatpush1.bf16.msra.mxu0 %v2430
      %2451 = vmatprep.subr.bf16.mxu0 0
      %2452 = vmatpush1.bf16.msra.mxu0 %v2431
      %2453 = vmatprep.subr.bf16.mxu0 0
      %2454 = vmatpush1.bf16.msra.mxu0 %v2432
      %2455 = vmatprep.subr.bf16.mxu0 0
      %2456 = vmatpush1.bf16.msra.mxu0 %v2433
      %2457 = vmatprep.subr.bf16.mxu0 0
      %2458 = vmatpush1.bf16.msra.mxu0 %v2434
      %2459 = vmatprep.subr.bf16.mxu0 0
      %2460 = vmatpush1.bf16.msra.mxu0 0
      %2461 = vmatprep.subr.bf16.mxu0 0
      %2462 = vmatpush1.bf16.msra.mxu0 0
      %2463 = vmatprep.subr.bf16.mxu0 0
      %2464 = vmatpush1.bf16.msra.mxu0 0
      %2465 = vmatprep.subr.bf16.mxu0 0
      %2466 = vmatpush1.bf16.msra.mxu0 0
      %2467 = vmatprep.subr.bf16.mxu0 0
      %2468 = vmatpush1.bf16.msra.mxu0 0
      %2469 = vmatprep.subr.bf16.mxu0 0
      %2470 = vmatpush1.bf16.msra.mxu0 0
      %2471 = vmatprep.subr.bf16.mxu0 0
      %2472 = vmatpush1.bf16.msra.mxu0 0
      %2473 = vmatprep.subr.bf16.mxu0 0
      %2474 = vmatpush1.bf16.msra.mxu0 0
      %2475 = vmatprep.mubr.bf16.mxu0 0
      %2476 = vmatmul.mubr.bf16.gmra.mrb[0].mxu0 %v2387
      %v2477 = vpop.f32.mrb[0].mxu0
      %v2478 = vadd.f32 0.0, %v2477
      %v2479 = vpop.f32.mrb[0].mxu0
      %v2480 = vpop.f32.mrb[0].mxu0
      %v2481 = vadd.f32 0.0, %v2480
      %v2482 = vpop.f32.mrb[0].mxu0
      %2483 = vmatprep.mubr.bf16.mxu0 0
      %2484 = vmatmul.mubr.bf16.gmra.mrb[0].mxu0 %v2388
      %v2485 = vpop.f32.mrb[0].mxu0
      %v2486 = vadd.f32 0.0, %v2485
      %v2487 = vpop.f32.mrb[0].mxu0
      %v2488 = vpop.f32.mrb[0].mxu0
      %v2489 = vadd.f32 0.0, %v2488
      %v2490 = vpop.f32.mrb[0].mxu0
      %2491 = vmatprep.mubr.bf16.mxu0 0
      %2492 = vmatmul.mubr.bf16.gmra.mrb[0].mxu0 %v2389
      %v2493 = vpop.f32.mrb[0].mxu0
      %v2494 = vadd.f32 0.0, %v2493
      %v2495 = vpop.f32.mrb[0].mxu0
      %v2496 = vpop.f32.mrb[0].mxu0
      %v2497 = vadd.f32 0.0, %v2496
      %v2498 = vpop.f32.mrb[0].mxu0
      %2499 = vmatprep.mubr.bf16.mxu0 0
      %2500 = vmatmul.mubr.bf16.gmra.mrb[0].mxu0 %v2390
      %v2501 = vpop.f32.mrb[0].mxu0
      %v2502 = vadd.f32 0.0, %v2501
      %v2503 = vpop.f32.mrb[0].mxu0
      %v2504 = vpop.f32.mrb[0].mxu0
      %v2505 = vadd.f32 0.0, %v2504
      %v2506 = vpop.f32.mrb[0].mxu0
      %2507 = vdwg.mxu0
      %v2508 = vadd.f32 %v2298, %v2478
      %v2509 = vadd.f32 %v2299, %v2481
      %v2510 = vadd.f32 %v2300, %v2486
      %v2511 = vadd.f32 %v2301, %v2489
      %v2512 = vadd.f32 %v2302, %v2494
      %v2513 = vadd.f32 %v2303, %v2497
      %v2514 = vadd.f32 %v2304, %v2502
      %v2515 = vadd.f32 %v2305, %v2505
      %s2516 = scalar_lea.vmem %s165, 16
      %v2517 = vld [vmem:[%s2516] sm:$0xf]
      %v2518 = vld [vmem:[%s2516 + $0x8] sm:$0xf]
      %v2519 = vld [vmem:[%s2516 + $0x10] sm:$0xf]
      %v2520 = vld [vmem:[%s2516 + $0x18] sm:$0xf]
      %v2521 = vld [vmem:[%s2516 + $0x20] sm:$0xf]
      %v2522 = vld [vmem:[%s2516 + $0x28] sm:$0xf]
      %v2523 = vld [vmem:[%s2516 + $0x30] sm:$0xf]
      %v2524 = vld [vmem:[%s2516 + $0x38] sm:$0xf]
      %s2525 = scalar_lea.vmem %s1, 640
      %v2526 = vld [vmem:[%s2525] sm:$0xf]
      %v2527 = vld [vmem:[%s2525 + $0x4] sm:$0xf]
      %v2528 = vld [vmem:[%s2525 + $0x8] sm:$0xf]
      %v2529 = vld [vmem:[%s2525 + $0xc] sm:$0xf]
      %v2530 = vld [vmem:[%s2525 + $0x10] sm:$0xf]
      %v2531 = vld [vmem:[%s2525 + $0x14] sm:$0xf]
      %v2532 = vld [vmem:[%s2525 + $0x18] sm:$0xf]
      %v2533 = vld [vmem:[%s2525 + $0x1c] sm:$0xf]
      %v2534 = vld [vmem:[%s2525 + $0x20] sm:$0xf]
      %v2535 = vld [vmem:[%s2525 + $0x24] sm:$0xf]
      %v2536 = vld [vmem:[%s2525 + $0x28] sm:$0xf]
      %v2537 = vld [vmem:[%s2525 + $0x2c] sm:$0xf]
      %v2538 = vld [vmem:[%s2525 + $0x30] sm:$0xf]
      %v2539 = vld [vmem:[%s2525 + $0x34] sm:$0xf]
      %v2540 = vld [vmem:[%s2525 + $0x38] sm:$0xf]
      %v2541 = vld [vmem:[%s2525 + $0x3c] sm:$0xf]
      %v2550 = vunpack.c.l.b16 %v2517
      %v2551 = vunpack.c.l.b16 %v2518
      %v2552 = vunpack.c.l.b16 %v2519
      %v2553 = vunpack.c.l.b16 %v2520
      %v2554 = vunpack.c.l.b16 %v2521
      %v2555 = vunpack.c.l.b16 %v2522
      %v2556 = vunpack.c.l.b16 %v2523
      %v2557 = vunpack.c.l.b16 %v2524
      %v2558 = vpack.c.b16 %v2551, %v2550
      %v2559 = vpack.c.b16 %v2553, %v2552
      %v2560 = vpack.c.b16 %v2555, %v2554
      %v2561 = vpack.c.b16 %v2557, %v2556
      %v2582 = vunpack.c.l.b16 %v2526
      %v2583 = vunpack.c.l.b16 %v2527
      %v2584 = vunpack.c.l.b16 %v2528
      %v2585 = vunpack.c.l.b16 %v2529
      %v2586 = vunpack.c.l.b16 %v2530
      %v2587 = vunpack.c.l.b16 %v2531
      %v2588 = vunpack.c.l.b16 %v2532
      %v2589 = vunpack.c.l.b16 %v2533
      %v2590 = vunpack.c.l.b16 %v2534
      %v2591 = vunpack.c.l.b16 %v2535
      %v2592 = vunpack.c.l.b16 %v2536
      %v2593 = vunpack.c.l.b16 %v2537
      %v2594 = vunpack.c.l.b16 %v2538
      %v2595 = vunpack.c.l.b16 %v2539
      %v2596 = vunpack.c.l.b16 %v2540
      %v2597 = vunpack.c.l.b16 %v2541
      %v2598 = vpack.c.b16 %v2583, %v2582
      %v2599 = vpack.c.b16 %v2585, %v2584
      %v2600 = vpack.c.b16 %v2587, %v2586
      %v2601 = vpack.c.b16 %v2589, %v2588
      %v2602 = vpack.c.b16 %v2591, %v2590
      %v2603 = vpack.c.b16 %v2593, %v2592
      %v2604 = vpack.c.b16 %v2595, %v2594
      %v2605 = vpack.c.b16 %v2597, %v2596
      %2614 = vmatprep.subr.bf16.mxu0 0
      %2615 = vmatpush1.bf16.msra.mxu0 %v2598
      %2616 = vmatprep.subr.bf16.mxu0 0
      %2617 = vmatpush1.bf16.msra.mxu0 %v2599
      %2618 = vmatprep.subr.bf16.mxu0 0
      %2619 = vmatpush1.bf16.msra.mxu0 %v2600
      %2620 = vmatprep.subr.bf16.mxu0 0
      %2621 = vmatpush1.bf16.msra.mxu0 %v2601
      %2622 = vmatprep.subr.bf16.mxu0 0
      %2623 = vmatpush1.bf16.msra.mxu0 %v2602
      %2624 = vmatprep.subr.bf16.mxu0 0
      %2625 = vmatpush1.bf16.msra.mxu0 %v2603
      %2626 = vmatprep.subr.bf16.mxu0 0
      %2627 = vmatpush1.bf16.msra.mxu0 %v2604
      %2628 = vmatprep.subr.bf16.mxu0 0
      %2629 = vmatpush1.bf16.msra.mxu0 %v2605
      %2630 = vmatprep.subr.bf16.mxu0 0
      %2631 = vmatpush1.bf16.msra.mxu0 0
      %2632 = vmatprep.subr.bf16.mxu0 0
      %2633 = vmatpush1.bf16.msra.mxu0 0
      %2634 = vmatprep.subr.bf16.mxu0 0
      %2635 = vmatpush1.bf16.msra.mxu0 0
      %2636 = vmatprep.subr.bf16.mxu0 0
      %2637 = vmatpush1.bf16.msra.mxu0 0
      %2638 = vmatprep.subr.bf16.mxu0 0
      %2639 = vmatpush1.bf16.msra.mxu0 0
      %2640 = vmatprep.subr.bf16.mxu0 0
      %2641 = vmatpush1.bf16.msra.mxu0 0
      %2642 = vmatprep.subr.bf16.mxu0 0
      %2643 = vmatpush1.bf16.msra.mxu0 0
      %2644 = vmatprep.subr.bf16.mxu0 0
      %2645 = vmatpush1.bf16.msra.mxu0 0
      %2646 = vmatprep.mubr.bf16.mxu0 0
      %2647 = vmatmul.mubr.bf16.gmra.mrb[0].mxu0 %v2558
      %v2648 = vpop.f32.mrb[0].mxu0
      %v2649 = vadd.f32 0.0, %v2648
      %v2650 = vpop.f32.mrb[0].mxu0
      %v2651 = vpop.f32.mrb[0].mxu0
      %v2652 = vadd.f32 0.0, %v2651
      %v2653 = vpop.f32.mrb[0].mxu0
      %2654 = vmatprep.mubr.bf16.mxu0 0
      %2655 = vmatmul.mubr.bf16.gmra.mrb[0].mxu0 %v2559
      %v2656 = vpop.f32.mrb[0].mxu0
      %v2657 = vadd.f32 0.0, %v2656
      %v2658 = vpop.f32.mrb[0].mxu0
      %v2659 = vpop.f32.mrb[0].mxu0
      %v2660 = vadd.f32 0.0, %v2659
      %v2661 = vpop.f32.mrb[0].mxu0
      %2662 = vmatprep.mubr.bf16.mxu0 0
      %2663 = vmatmul.mubr.bf16.gmra.mrb[0].mxu0 %v2560
      %v2664 = vpop.f32.mrb[0].mxu0
      %v2665 = vadd.f32 0.0, %v2664
      %v2666 = vpop.f32.mrb[0].mxu0
      %v2667 = vpop.f32.mrb[0].mxu0
      %v2668 = vadd.f32 0.0, %v2667
      %v2669 = vpop.f32.mrb[0].mxu0
      %2670 = vmatprep.mubr.bf16.mxu0 0
      %2671 = vmatmul.mubr.bf16.gmra.mrb[0].mxu0 %v2561
      %v2672 = vpop.f32.mrb[0].mxu0
      %v2673 = vadd.f32 0.0, %v2672
      %v2674 = vpop.f32.mrb[0].mxu0
      %v2675 = vpop.f32.mrb[0].mxu0
      %v2676 = vadd.f32 0.0, %v2675
      %v2677 = vpop.f32.mrb[0].mxu0
      %2678 = vdwg.mxu0
      %v2679 = vadd.f32 %v2508, %v2649
      %v2680 = vadd.f32 %v2509, %v2652
      %v2681 = vadd.f32 %v2510, %v2657
      %v2682 = vadd.f32 %v2511, %v2660
      %v2683 = vadd.f32 %v2512, %v2665
      %v2684 = vadd.f32 %v2513, %v2668
      %v2685 = vadd.f32 %v2514, %v2673
      %v2686 = vadd.f32 %v2515, %v2676
      %v2687 = vld [vmem:[%s2516] sm:$0xf]
      %v2688 = vld [vmem:[%s2516 + $0x4] sm:$0x1]
      %v2689 = vld [vmem:[%s2516 + $0x8] sm:$0xf]
      %v2690 = vld [vmem:[%s2516 + $0xc] sm:$0x1]
      %v2691 = vld [vmem:[%s2516 + $0x10] sm:$0xf]
      %v2692 = vld [vmem:[%s2516 + $0x14] sm:$0x1]
      %v2693 = vld [vmem:[%s2516 + $0x18] sm:$0xf]
      %v2694 = vld [vmem:[%s2516 + $0x1c] sm:$0x1]
      %v2695 = vld [vmem:[%s2516 + $0x20] sm:$0xf]
      %v2696 = vld [vmem:[%s2516 + $0x24] sm:$0x1]
      %v2697 = vld [vmem:[%s2516 + $0x28] sm:$0xf]
      %v2698 = vld [vmem:[%s2516 + $0x2c] sm:$0x1]
      %v2699 = vld [vmem:[%s2516 + $0x30] sm:$0xf]
      %v2700 = vld [vmem:[%s2516 + $0x34] sm:$0x1]
      %v2701 = vld [vmem:[%s2516 + $0x38] sm:$0xf]
      %v2702 = vld [vmem:[%s2516 + $0x3c] sm:$0x1]
      %v2704 = vshrl.u32 %v2687, 16
      %v2706 = vrot.slane %v2704, 4
      %v2707 = vshll.u32 %v2687, 16
      %v2709 = vrot.slane %v2707, 5
      %v2710 = vor.u32 %v2706, %v2709
      %v2711 = vrot.slane %v2710, 4
      %v2713 = vshll.u32 %v2688, 16
      %v2715 = vrot.slane %v2713, 5
      %v2716 = vsel %vm206, %v2711, %v2715
      %v2718 = vshrl.u32 %v2689, 16
      %v2720 = vrot.slane %v2718, 4
      %v2721 = vshll.u32 %v2689, 16
      %v2723 = vrot.slane %v2721, 5
      %v2724 = vor.u32 %v2720, %v2723
      %v2725 = vrot.slane %v2724, 4
      %v2727 = vshll.u32 %v2690, 16
      %v2729 = vrot.slane %v2727, 5
      %v2730 = vsel %vm206, %v2725, %v2729
      %v2732 = vshrl.u32 %v2691, 16
      %v2734 = vrot.slane %v2732, 4
      %v2735 = vshll.u32 %v2691, 16
      %v2737 = vrot.slane %v2735, 5
      %v2738 = vor.u32 %v2734, %v2737
      %v2739 = vrot.slane %v2738, 4
      %v2741 = vshll.u32 %v2692, 16
      %v2743 = vrot.slane %v2741, 5
      %v2744 = vsel %vm206, %v2739, %v2743
      %v2746 = vshrl.u32 %v2693, 16
      %v2748 = vrot.slane %v2746, 4
      %v2749 = vshll.u32 %v2693, 16
      %v2751 = vrot.slane %v2749, 5
      %v2752 = vor.u32 %v2748, %v2751
      %v2753 = vrot.slane %v2752, 4
      %v2755 = vshll.u32 %v2694, 16
      %v2757 = vrot.slane %v2755, 5
      %v2758 = vsel %vm206, %v2753, %v2757
      %v2760 = vshrl.u32 %v2695, 16
      %v2762 = vrot.slane %v2760, 4
      %v2763 = vshll.u32 %v2695, 16
      %v2765 = vrot.slane %v2763, 5
      %v2766 = vor.u32 %v2762, %v2765
      %v2767 = vrot.slane %v2766, 4
      %v2769 = vshll.u32 %v2696, 16
      %v2771 = vrot.slane %v2769, 5
      %v2772 = vsel %vm206, %v2767, %v2771
      %v2774 = vshrl.u32 %v2697, 16
      %v2776 = vrot.slane %v2774, 4
      %v2777 = vshll.u32 %v2697, 16
      %v2779 = vrot.slane %v2777, 5
      %v2780 = vor.u32 %v2776, %v2779
      %v2781 = vrot.slane %v2780, 4
      %v2783 = vshll.u32 %v2698, 16
      %v2785 = vrot.slane %v2783, 5
      %v2786 = vsel %vm206, %v2781, %v2785
      %v2788 = vshrl.u32 %v2699, 16
      %v2790 = vrot.slane %v2788, 4
      %v2791 = vshll.u32 %v2699, 16
      %v2793 = vrot.slane %v2791, 5
      %v2794 = vor.u32 %v2790, %v2793
      %v2795 = vrot.slane %v2794, 4
      %v2797 = vshll.u32 %v2700, 16
      %v2799 = vrot.slane %v2797, 5
      %v2800 = vsel %vm206, %v2795, %v2799
      %v2802 = vshrl.u32 %v2701, 16
      %v2804 = vrot.slane %v2802, 4
      %v2805 = vshll.u32 %v2701, 16
      %v2807 = vrot.slane %v2805, 5
      %v2808 = vor.u32 %v2804, %v2807
      %v2809 = vrot.slane %v2808, 4
      %v2811 = vshll.u32 %v2702, 16
      %v2813 = vrot.slane %v2811, 5
      %v2814 = vsel %vm206, %v2809, %v2813
      %s2815 = scalar_lea.vmem %s1, 704
      %v2816 = vld [vmem:[%s2815] sm:$0xf]
      %v2817 = vld [vmem:[%s2815 + $0x4] sm:$0xf]
      %v2818 = vld [vmem:[%s2815 + $0x8] sm:$0xf]
      %v2819 = vld [vmem:[%s2815 + $0xc] sm:$0xf]
      %v2820 = vld [vmem:[%s2815 + $0x10] sm:$0xf]
      %v2821 = vld [vmem:[%s2815 + $0x14] sm:$0xf]
      %v2822 = vld [vmem:[%s2815 + $0x18] sm:$0xf]
      %v2823 = vld [vmem:[%s2815 + $0x1c] sm:$0xf]
      %v2824 = vld [vmem:[%s2815 + $0x20] sm:$0xf]
      %v2825 = vld [vmem:[%s2815 + $0x24] sm:$0xf]
      %v2826 = vld [vmem:[%s2815 + $0x28] sm:$0xf]
      %v2827 = vld [vmem:[%s2815 + $0x2c] sm:$0xf]
      %v2828 = vld [vmem:[%s2815 + $0x30] sm:$0xf]
      %v2829 = vld [vmem:[%s2815 + $0x34] sm:$0xf]
      %v2830 = vld [vmem:[%s2815 + $0x38] sm:$0xf]
      %v2831 = vld [vmem:[%s2815 + $0x3c] sm:$0xf]
      %v2832 = vunpack.c.l.b16 %v2716
      %v2833 = vunpack.c.l.b16 %v2730
      %v2834 = vunpack.c.l.b16 %v2744
      %v2835 = vunpack.c.l.b16 %v2758
      %v2836 = vunpack.c.l.b16 %v2772
      %v2837 = vunpack.c.l.b16 %v2786
      %v2838 = vunpack.c.l.b16 %v2800
      %v2839 = vunpack.c.l.b16 %v2814
      %v2840 = vpack.c.b16 %v2833, %v2832
      %v2841 = vpack.c.b16 %v2835, %v2834
      %v2842 = vpack.c.b16 %v2837, %v2836
      %v2843 = vpack.c.b16 %v2839, %v2838
      %v2864 = vunpack.c.l.b16 %v2816
      %v2865 = vunpack.c.l.b16 %v2817
      %v2866 = vunpack.c.l.b16 %v2818
      %v2867 = vunpack.c.l.b16 %v2819
      %v2868 = vunpack.c.l.b16 %v2820
      %v2869 = vunpack.c.l.b16 %v2821
      %v2870 = vunpack.c.l.b16 %v2822
      %v2871 = vunpack.c.l.b16 %v2823
      %v2872 = vunpack.c.l.b16 %v2824
      %v2873 = vunpack.c.l.b16 %v2825
      %v2874 = vunpack.c.l.b16 %v2826
      %v2875 = vunpack.c.l.b16 %v2827
      %v2876 = vunpack.c.l.b16 %v2828
      %v2877 = vunpack.c.l.b16 %v2829
      %v2878 = vunpack.c.l.b16 %v2830
      %v2879 = vunpack.c.l.b16 %v2831
      %v2880 = vpack.c.b16 %v2865, %v2864
      %v2881 = vpack.c.b16 %v2867, %v2866
      %v2882 = vpack.c.b16 %v2869, %v2868
      %v2883 = vpack.c.b16 %v2871, %v2870
      %v2884 = vpack.c.b16 %v2873, %v2872
      %v2885 = vpack.c.b16 %v2875, %v2874
      %v2886 = vpack.c.b16 %v2877, %v2876
      %v2887 = vpack.c.b16 %v2879, %v2878
      %2896 = vmatprep.subr.bf16.mxu0 0
      %2897 = vmatpush1.bf16.msra.mxu0 %v2880
      %2898 = vmatprep.subr.bf16.mxu0 0
      %2899 = vmatpush1.bf16.msra.mxu0 %v2881
      %2900 = vmatprep.subr.bf16.mxu0 0
      %2901 = vmatpush1.bf16.msra.mxu0 %v2882
      %2902 = vmatprep.subr.bf16.mxu0 0
      %2903 = vmatpush1.bf16.msra.mxu0 %v2883
      %2904 = vmatprep.subr.bf16.mxu0 0
      %2905 = vmatpush1.bf16.msra.mxu0 %v2884
      %2906 = vmatprep.subr.bf16.mxu0 0
      %2907 = vmatpush1.bf16.msra.mxu0 %v2885
      %2908 = vmatprep.subr.bf16.mxu0 0
      %2909 = vmatpush1.bf16.msra.mxu0 %v2886
      %2910 = vmatprep.subr.bf16.mxu0 0
      %2911 = vmatpush1.bf16.msra.mxu0 %v2887
      %2912 = vmatprep.subr.bf16.mxu0 0
      %2913 = vmatpush1.bf16.msra.mxu0 0
      %2914 = vmatprep.subr.bf16.mxu0 0
      %2915 = vmatpush1.bf16.msra.mxu0 0
      %2916 = vmatprep.subr.bf16.mxu0 0
      %2917 = vmatpush1.bf16.msra.mxu0 0
      %2918 = vmatprep.subr.bf16.mxu0 0
      %2919 = vmatpush1.bf16.msra.mxu0 0
      %2920 = vmatprep.subr.bf16.mxu0 0
      %2921 = vmatpush1.bf16.msra.mxu0 0
      %2922 = vmatprep.subr.bf16.mxu0 0
      %2923 = vmatpush1.bf16.msra.mxu0 0
      %2924 = vmatprep.subr.bf16.mxu0 0
      %2925 = vmatpush1.bf16.msra.mxu0 0
      %2926 = vmatprep.subr.bf16.mxu0 0
      %2927 = vmatpush1.bf16.msra.mxu0 0
      %2928 = vmatprep.mubr.bf16.mxu0 0
      %2929 = vmatmul.mubr.bf16.gmra.mrb[0].mxu0 %v2840
      %v2930 = vpop.f32.mrb[0].mxu0
      %v2931 = vadd.f32 0.0, %v2930
      %v2932 = vpop.f32.mrb[0].mxu0
      %v2933 = vpop.f32.mrb[0].mxu0
      %v2934 = vadd.f32 0.0, %v2933
      %v2935 = vpop.f32.mrb[0].mxu0
      %2936 = vmatprep.mubr.bf16.mxu0 0
      %2937 = vmatmul.mubr.bf16.gmra.mrb[0].mxu0 %v2841
      %v2938 = vpop.f32.mrb[0].mxu0
      %v2939 = vadd.f32 0.0, %v2938
      %v2940 = vpop.f32.mrb[0].mxu0
      %v2941 = vpop.f32.mrb[0].mxu0
      %v2942 = vadd.f32 0.0, %v2941
      %v2943 = vpop.f32.mrb[0].mxu0
      %2944 = vmatprep.mubr.bf16.mxu0 0
      %2945 = vmatmul.mubr.bf16.gmra.mrb[0].mxu0 %v2842
      %v2946 = vpop.f32.mrb[0].mxu0
      %v2947 = vadd.f32 0.0, %v2946
      %v2948 = vpop.f32.mrb[0].mxu0
      %v2949 = vpop.f32.mrb[0].mxu0
      %v2950 = vadd.f32 0.0, %v2949
      %v2951 = vpop.f32.mrb[0].mxu0
      %2952 = vmatprep.mubr.bf16.mxu0 0
      %2953 = vmatmul.mubr.bf16.gmra.mrb[0].mxu0 %v2843
      %v2954 = vpop.f32.mrb[0].mxu0
      %v2955 = vadd.f32 0.0, %v2954
      %v2956 = vpop.f32.mrb[0].mxu0
      %v2957 = vpop.f32.mrb[0].mxu0
      %v2958 = vadd.f32 0.0, %v2957
      %v2959 = vpop.f32.mrb[0].mxu0
      %2960 = vdwg.mxu0
      %v2961 = vadd.f32 %v2679, %v2931
      %v2962 = vadd.f32 %v2680, %v2934
      %v2963 = vadd.f32 %v2681, %v2939
      %v2964 = vadd.f32 %v2682, %v2942
      %v2965 = vadd.f32 %v2683, %v2947
      %v2966 = vadd.f32 %v2684, %v2950
      %v2967 = vadd.f32 %v2685, %v2955
      %v2968 = vadd.f32 %v2686, %v2958
      %v2969 = vld [vmem:[%s2516] sm:$0xe]
      %v2970 = vld [vmem:[%s2516 + $0x8] sm:$0xe]
      %v2971 = vld [vmem:[%s2516 + $0x10] sm:$0xe]
      %v2972 = vld [vmem:[%s2516 + $0x18] sm:$0xe]
      %v2973 = vld [vmem:[%s2516 + $0x20] sm:$0xe]
      %v2974 = vld [vmem:[%s2516 + $0x28] sm:$0xe]
      %v2975 = vld [vmem:[%s2516 + $0x30] sm:$0xe]
      %v2976 = vld [vmem:[%s2516 + $0x38] sm:$0xe]
      %v2993 = vrot.slane %v2969, 5
      %v2994 = vrot.slane %v2993, 4
      %v2995 = vrot.slane %v2688, 5
      %v2996 = vsel %vm628, %v2994, %v2995
      %v2997 = vrot.slane %v2970, 5
      %v2998 = vrot.slane %v2997, 4
      %v2999 = vrot.slane %v2690, 5
      %v3000 = vsel %vm628, %v2998, %v2999
      %v3001 = vrot.slane %v2971, 5
      %v3002 = vrot.slane %v3001, 4
      %v3003 = vrot.slane %v2692, 5
      %v3004 = vsel %vm628, %v3002, %v3003
      %v3005 = vrot.slane %v2972, 5
      %v3006 = vrot.slane %v3005, 4
      %v3007 = vrot.slane %v2694, 5
      %v3008 = vsel %vm628, %v3006, %v3007
      %v3009 = vrot.slane %v2973, 5
      %v3010 = vrot.slane %v3009, 4
      %v3011 = vrot.slane %v2696, 5
      %v3012 = vsel %vm628, %v3010, %v3011
      %v3013 = vrot.slane %v2974, 5
      %v3014 = vrot.slane %v3013, 4
      %v3015 = vrot.slane %v2698, 5
      %v3016 = vsel %vm628, %v3014, %v3015
      %v3017 = vrot.slane %v2975, 5
      %v3018 = vrot.slane %v3017, 4
      %v3019 = vrot.slane %v2700, 5
      %v3020 = vsel %vm628, %v3018, %v3019
      %v3021 = vrot.slane %v2976, 5
      %v3022 = vrot.slane %v3021, 4
      %v3023 = vrot.slane %v2702, 5
      %v3024 = vsel %vm628, %v3022, %v3023
      %s3025 = scalar_lea.vmem %s1, 768
      %v3026 = vld [vmem:[%s3025] sm:$0xf]
      %v3027 = vld [vmem:[%s3025 + $0x4] sm:$0xf]
      %v3028 = vld [vmem:[%s3025 + $0x8] sm:$0xf]
      %v3029 = vld [vmem:[%s3025 + $0xc] sm:$0xf]
      %v3030 = vld [vmem:[%s3025 + $0x10] sm:$0xf]
      %v3031 = vld [vmem:[%s3025 + $0x14] sm:$0xf]
      %v3032 = vld [vmem:[%s3025 + $0x18] sm:$0xf]
      %v3033 = vld [vmem:[%s3025 + $0x1c] sm:$0xf]
      %v3034 = vld [vmem:[%s3025 + $0x20] sm:$0xf]
      %v3035 = vld [vmem:[%s3025 + $0x24] sm:$0xf]
      %v3036 = vld [vmem:[%s3025 + $0x28] sm:$0xf]
      %v3037 = vld [vmem:[%s3025 + $0x2c] sm:$0xf]
      %v3038 = vld [vmem:[%s3025 + $0x30] sm:$0xf]
      %v3039 = vld [vmem:[%s3025 + $0x34] sm:$0xf]
      %v3040 = vld [vmem:[%s3025 + $0x38] sm:$0xf]
      %v3041 = vld [vmem:[%s3025 + $0x3c] sm:$0xf]
      %v3042 = vunpack.c.l.b16 %v2996
      %v3043 = vunpack.c.l.b16 %v3000
      %v3044 = vunpack.c.l.b16 %v3004
      %v3045 = vunpack.c.l.b16 %v3008
      %v3046 = vunpack.c.l.b16 %v3012
      %v3047 = vunpack.c.l.b16 %v3016
      %v3048 = vunpack.c.l.b16 %v3020
      %v3049 = vunpack.c.l.b16 %v3024
      %v3050 = vpack.c.b16 %v3043, %v3042
      %v3051 = vpack.c.b16 %v3045, %v3044
      %v3052 = vpack.c.b16 %v3047, %v3046
      %v3053 = vpack.c.b16 %v3049, %v3048
      %v3074 = vunpack.c.l.b16 %v3026
      %v3075 = vunpack.c.l.b16 %v3027
      %v3076 = vunpack.c.l.b16 %v3028
      %v3077 = vunpack.c.l.b16 %v3029
      %v3078 = vunpack.c.l.b16 %v3030
      %v3079 = vunpack.c.l.b16 %v3031
      %v3080 = vunpack.c.l.b16 %v3032
      %v3081 = vunpack.c.l.b16 %v3033
      %v3082 = vunpack.c.l.b16 %v3034
      %v3083 = vunpack.c.l.b16 %v3035
      %v3084 = vunpack.c.l.b16 %v3036
      %v3085 = vunpack.c.l.b16 %v3037
      %v3086 = vunpack.c.l.b16 %v3038
      %v3087 = vunpack.c.l.b16 %v3039
      %v3088 = vunpack.c.l.b16 %v3040
      %v3089 = vunpack.c.l.b16 %v3041
      %v3090 = vpack.c.b16 %v3075, %v3074
      %v3091 = vpack.c.b16 %v3077, %v3076
      %v3092 = vpack.c.b16 %v3079, %v3078
      %v3093 = vpack.c.b16 %v3081, %v3080
      %v3094 = vpack.c.b16 %v3083, %v3082
      %v3095 = vpack.c.b16 %v3085, %v3084
      %v3096 = vpack.c.b16 %v3087, %v3086
      %v3097 = vpack.c.b16 %v3089, %v3088
      %3106 = vmatprep.subr.bf16.mxu0 0
      %3107 = vmatpush1.bf16.msra.mxu0 %v3090
      %3108 = vmatprep.subr.bf16.mxu0 0
      %3109 = vmatpush1.bf16.msra.mxu0 %v3091
      %3110 = vmatprep.subr.bf16.mxu0 0
      %3111 = vmatpush1.bf16.msra.mxu0 %v3092
      %3112 = vmatprep.subr.bf16.mxu0 0
      %3113 = vmatpush1.bf16.msra.mxu0 %v3093
      %3114 = vmatprep.subr.bf16.mxu0 0
      %3115 = vmatpush1.bf16.msra.mxu0 %v3094
      %3116 = vmatprep.subr.bf16.mxu0 0
      %3117 = vmatpush1.bf16.msra.mxu0 %v3095
      %3118 = vmatprep.subr.bf16.mxu0 0
      %3119 = vmatpush1.bf16.msra.mxu0 %v3096
      %3120 = vmatprep.subr.bf16.mxu0 0
      %3121 = vmatpush1.bf16.msra.mxu0 %v3097
      %3122 = vmatprep.subr.bf16.mxu0 0
      %3123 = vmatpush1.bf16.msra.mxu0 0
      %3124 = vmatprep.subr.bf16.mxu0 0
      %3125 = vmatpush1.bf16.msra.mxu0 0
      %3126 = vmatprep.subr.bf16.mxu0 0
      %3127 = vmatpush1.bf16.msra.mxu0 0
      %3128 = vmatprep.subr.bf16.mxu0 0
      %3129 = vmatpush1.bf16.msra.mxu0 0
      %3130 = vmatprep.subr.bf16.mxu0 0
      %3131 = vmatpush1.bf16.msra.mxu0 0
      %3132 = vmatprep.subr.bf16.mxu0 0
      %3133 = vmatpush1.bf16.msra.mxu0 0
      %3134 = vmatprep.subr.bf16.mxu0 0
      %3135 = vmatpush1.bf16.msra.mxu0 0
      %3136 = vmatprep.subr.bf16.mxu0 0
      %3137 = vmatpush1.bf16.msra.mxu0 0
      %3138 = vmatprep.mubr.bf16.mxu0 0
      %3139 = vmatmul.mubr.bf16.gmra.mrb[0].mxu0 %v3050
      %v3140 = vpop.f32.mrb[0].mxu0
      %v3141 = vadd.f32 0.0, %v3140
      %v3142 = vpop.f32.mrb[0].mxu0
      %v3143 = vpop.f32.mrb[0].mxu0
      %v3144 = vadd.f32 0.0, %v3143
      %v3145 = vpop.f32.mrb[0].mxu0
      %3146 = vmatprep.mubr.bf16.mxu0 0
      %3147 = vmatmul.mubr.bf16.gmra.mrb[0].mxu0 %v3051
      %v3148 = vpop.f32.mrb[0].mxu0
      %v3149 = vadd.f32 0.0, %v3148
      %v3150 = vpop.f32.mrb[0].mxu0
      %v3151 = vpop.f32.mrb[0].mxu0
      %v3152 = vadd.f32 0.0, %v3151
      %v3153 = vpop.f32.mrb[0].mxu0
      %3154 = vmatprep.mubr.bf16.mxu0 0
      %3155 = vmatmul.mubr.bf16.gmra.mrb[0].mxu0 %v3052
      %v3156 = vpop.f32.mrb[0].mxu0
      %v3157 = vadd.f32 0.0, %v3156
      %v3158 = vpop.f32.mrb[0].mxu0
      %v3159 = vpop.f32.mrb[0].mxu0
      %v3160 = vadd.f32 0.0, %v3159
      %v3161 = vpop.f32.mrb[0].mxu0
      %3162 = vmatprep.mubr.bf16.mxu0 0
      %3163 = vmatmul.mubr.bf16.gmra.mrb[0].mxu0 %v3053
      %v3164 = vpop.f32.mrb[0].mxu0
      %v3165 = vadd.f32 0.0, %v3164
      %v3166 = vpop.f32.mrb[0].mxu0
      %v3167 = vpop.f32.mrb[0].mxu0
      %v3168 = vadd.f32 0.0, %v3167
      %v3169 = vpop.f32.mrb[0].mxu0
      %3170 = vdwg.mxu0
      %v3171 = vadd.f32 %v2961, %v3141
      %v3172 = vadd.f32 %v2962, %v3144
      %v3173 = vadd.f32 %v2963, %v3149
      %v3174 = vadd.f32 %v2964, %v3152
      %v3175 = vadd.f32 %v2965, %v3157
      %v3176 = vadd.f32 %v2966, %v3160
      %v3177 = vadd.f32 %v2967, %v3165
      %v3178 = vadd.f32 %v2968, %v3168
      %v3179 = vld [vmem:[%s2516 + $0x4] sm:$0x3]
      %v3180 = vld [vmem:[%s2516 + $0xc] sm:$0x3]
      %v3181 = vld [vmem:[%s2516 + $0x14] sm:$0x3]
      %v3182 = vld [vmem:[%s2516 + $0x1c] sm:$0x3]
      %v3183 = vld [vmem:[%s2516 + $0x24] sm:$0x3]
      %v3184 = vld [vmem:[%s2516 + $0x2c] sm:$0x3]
      %v3185 = vld [vmem:[%s2516 + $0x34] sm:$0x3]
      %v3186 = vld [vmem:[%s2516 + $0x3c] sm:$0x3]
      %v3188 = vshrl.u32 %v2969, 16
      %v3190 = vrot.slane %v3188, 5
      %v3191 = vshll.u32 %v2969, 16
      %v3193 = vrot.slane %v3191, 6
      %v3194 = vor.u32 %v3190, %v3193
      %v3195 = vrot.slane %v3194, 4
      %v3197 = vshrl.u32 %v3179, 16
      %v3199 = vrot.slane %v3197, 5
      %v3200 = vshll.u32 %v3179, 16
      %v3202 = vrot.slane %v3200, 6
      %v3203 = vor.u32 %v3199, %v3202
      %v3204 = vsel %vm825, %v3195, %v3203
      %v3206 = vshrl.u32 %v2970, 16
      %v3208 = vrot.slane %v3206, 5
      %v3209 = vshll.u32 %v2970, 16
      %v3211 = vrot.slane %v3209, 6
      %v3212 = vor.u32 %v3208, %v3211
      %v3213 = vrot.slane %v3212, 4
      %v3215 = vshrl.u32 %v3180, 16
      %v3217 = vrot.slane %v3215, 5
      %v3218 = vshll.u32 %v3180, 16
      %v3220 = vrot.slane %v3218, 6
      %v3221 = vor.u32 %v3217, %v3220
      %v3222 = vsel %vm825, %v3213, %v3221
      %v3224 = vshrl.u32 %v2971, 16
      %v3226 = vrot.slane %v3224, 5
      %v3227 = vshll.u32 %v2971, 16
      %v3229 = vrot.slane %v3227, 6
      %v3230 = vor.u32 %v3226, %v3229
      %v3231 = vrot.slane %v3230, 4
      %v3233 = vshrl.u32 %v3181, 16
      %v3235 = vrot.slane %v3233, 5
      %v3236 = vshll.u32 %v3181, 16
      %v3238 = vrot.slane %v3236, 6
      %v3239 = vor.u32 %v3235, %v3238
      %v3240 = vsel %vm825, %v3231, %v3239
      %v3242 = vshrl.u32 %v2972, 16
      %v3244 = vrot.slane %v3242, 5
      %v3245 = vshll.u32 %v2972, 16
      %v3247 = vrot.slane %v3245, 6
      %v3248 = vor.u32 %v3244, %v3247
      %v3249 = vrot.slane %v3248, 4
      %v3251 = vshrl.u32 %v3182, 16
      %v3253 = vrot.slane %v3251, 5
      %v3254 = vshll.u32 %v3182, 16
      %v3256 = vrot.slane %v3254, 6
      %v3257 = vor.u32 %v3253, %v3256
      %v3258 = vsel %vm825, %v3249, %v3257
      %v3260 = vshrl.u32 %v2973, 16
      %v3262 = vrot.slane %v3260, 5
      %v3263 = vshll.u32 %v2973, 16
      %v3265 = vrot.slane %v3263, 6
      %v3266 = vor.u32 %v3262, %v3265
      %v3267 = vrot.slane %v3266, 4
      %v3269 = vshrl.u32 %v3183, 16
      %v3271 = vrot.slane %v3269, 5
      %v3272 = vshll.u32 %v3183, 16
      %v3274 = vrot.slane %v3272, 6
      %v3275 = vor.u32 %v3271, %v3274
      %v3276 = vsel %vm825, %v3267, %v3275
      %v3278 = vshrl.u32 %v2974, 16
      %v3280 = vrot.slane %v3278, 5
      %v3281 = vshll.u32 %v2974, 16
      %v3283 = vrot.slane %v3281, 6
      %v3284 = vor.u32 %v3280, %v3283
      %v3285 = vrot.slane %v3284, 4
      %v3287 = vshrl.u32 %v3184, 16
      %v3289 = vrot.slane %v3287, 5
      %v3290 = vshll.u32 %v3184, 16
      %v3292 = vrot.slane %v3290, 6
      %v3293 = vor.u32 %v3289, %v3292
      %v3294 = vsel %vm825, %v3285, %v3293
      %v3296 = vshrl.u32 %v2975, 16
      %v3298 = vrot.slane %v3296, 5
      %v3299 = vshll.u32 %v2975, 16
      %v3301 = vrot.slane %v3299, 6
      %v3302 = vor.u32 %v3298, %v3301
      %v3303 = vrot.slane %v3302, 4
      %v3305 = vshrl.u32 %v3185, 16
      %v3307 = vrot.slane %v3305, 5
      %v3308 = vshll.u32 %v3185, 16
      %v3310 = vrot.slane %v3308, 6
      %v3311 = vor.u32 %v3307, %v3310
      %v3312 = vsel %vm825, %v3303, %v3311
      %v3314 = vshrl.u32 %v2976, 16
      %v3316 = vrot.slane %v3314, 5
      %v3317 = vshll.u32 %v2976, 16
      %v3319 = vrot.slane %v3317, 6
      %v3320 = vor.u32 %v3316, %v3319
      %v3321 = vrot.slane %v3320, 4
      %v3323 = vshrl.u32 %v3186, 16
      %v3325 = vrot.slane %v3323, 5
      %v3326 = vshll.u32 %v3186, 16
      %v3328 = vrot.slane %v3326, 6
      %v3329 = vor.u32 %v3325, %v3328
      %v3330 = vsel %vm825, %v3321, %v3329
      %s3331 = scalar_lea.vmem %s1, 832
      %v3332 = vld [vmem:[%s3331] sm:$0xf]
      %v3333 = vld [vmem:[%s3331 + $0x4] sm:$0xf]
      %v3334 = vld [vmem:[%s3331 + $0x8] sm:$0xf]
      %v3335 = vld [vmem:[%s3331 + $0xc] sm:$0xf]
      %v3336 = vld [vmem:[%s3331 + $0x10] sm:$0xf]
      %v3337 = vld [vmem:[%s3331 + $0x14] sm:$0xf]
      %v3338 = vld [vmem:[%s3331 + $0x18] sm:$0xf]
      %v3339 = vld [vmem:[%s3331 + $0x1c] sm:$0xf]
      %v3340 = vld [vmem:[%s3331 + $0x20] sm:$0xf]
      %v3341 = vld [vmem:[%s3331 + $0x24] sm:$0xf]
      %v3342 = vld [vmem:[%s3331 + $0x28] sm:$0xf]
      %v3343 = vld [vmem:[%s3331 + $0x2c] sm:$0xf]
      %v3344 = vld [vmem:[%s3331 + $0x30] sm:$0xf]
      %v3345 = vld [vmem:[%s3331 + $0x34] sm:$0xf]
      %v3346 = vld [vmem:[%s3331 + $0x38] sm:$0xf]
      %v3347 = vld [vmem:[%s3331 + $0x3c] sm:$0xf]
      %v3348 = vunpack.c.l.b16 %v3204
      %v3349 = vunpack.c.l.b16 %v3222
      %v3350 = vunpack.c.l.b16 %v3240
      %v3351 = vunpack.c.l.b16 %v3258
      %v3352 = vunpack.c.l.b16 %v3276
      %v3353 = vunpack.c.l.b16 %v3294
      %v3354 = vunpack.c.l.b16 %v3312
      %v3355 = vunpack.c.l.b16 %v3330
      %v3356 = vpack.c.b16 %v3349, %v3348
      %v3357 = vpack.c.b16 %v3351, %v3350
      %v3358 = vpack.c.b16 %v3353, %v3352
      %v3359 = vpack.c.b16 %v3355, %v3354
      %v3380 = vunpack.c.l.b16 %v3332
      %v3381 = vunpack.c.l.b16 %v3333
      %v3382 = vunpack.c.l.b16 %v3334
      %v3383 = vunpack.c.l.b16 %v3335
      %v3384 = vunpack.c.l.b16 %v3336
      %v3385 = vunpack.c.l.b16 %v3337
      %v3386 = vunpack.c.l.b16 %v3338
      %v3387 = vunpack.c.l.b16 %v3339
      %v3388 = vunpack.c.l.b16 %v3340
      %v3389 = vunpack.c.l.b16 %v3341
      %v3390 = vunpack.c.l.b16 %v3342
      %v3391 = vunpack.c.l.b16 %v3343
      %v3392 = vunpack.c.l.b16 %v3344
      %v3393 = vunpack.c.l.b16 %v3345
      %v3394 = vunpack.c.l.b16 %v3346
      %v3395 = vunpack.c.l.b16 %v3347
      %v3396 = vpack.c.b16 %v3381, %v3380
      %v3397 = vpack.c.b16 %v3383, %v3382
      %v3398 = vpack.c.b16 %v3385, %v3384
      %v3399 = vpack.c.b16 %v3387, %v3386
      %v3400 = vpack.c.b16 %v3389, %v3388
      %v3401 = vpack.c.b16 %v3391, %v3390
      %v3402 = vpack.c.b16 %v3393, %v3392
      %v3403 = vpack.c.b16 %v3395, %v3394
      %3412 = vmatprep.subr.bf16.mxu0 0
      %3413 = vmatpush1.bf16.msra.mxu0 %v3396
      %3414 = vmatprep.subr.bf16.mxu0 0
      %3415 = vmatpush1.bf16.msra.mxu0 %v3397
      %3416 = vmatprep.subr.bf16.mxu0 0
      %3417 = vmatpush1.bf16.msra.mxu0 %v3398
      %3418 = vmatprep.subr.bf16.mxu0 0
      %3419 = vmatpush1.bf16.msra.mxu0 %v3399
      %3420 = vmatprep.subr.bf16.mxu0 0
      %3421 = vmatpush1.bf16.msra.mxu0 %v3400
      %3422 = vmatprep.subr.bf16.mxu0 0
      %3423 = vmatpush1.bf16.msra.mxu0 %v3401
      %3424 = vmatprep.subr.bf16.mxu0 0
      %3425 = vmatpush1.bf16.msra.mxu0 %v3402
      %3426 = vmatprep.subr.bf16.mxu0 0
      %3427 = vmatpush1.bf16.msra.mxu0 %v3403
      %3428 = vmatprep.subr.bf16.mxu0 0
      %3429 = vmatpush1.bf16.msra.mxu0 0
      %3430 = vmatprep.subr.bf16.mxu0 0
      %3431 = vmatpush1.bf16.msra.mxu0 0
      %3432 = vmatprep.subr.bf16.mxu0 0
      %3433 = vmatpush1.bf16.msra.mxu0 0
      %3434 = vmatprep.subr.bf16.mxu0 0
      %3435 = vmatpush1.bf16.msra.mxu0 0
      %3436 = vmatprep.subr.bf16.mxu0 0
      %3437 = vmatpush1.bf16.msra.mxu0 0
      %3438 = vmatprep.subr.bf16.mxu0 0
      %3439 = vmatpush1.bf16.msra.mxu0 0
      %3440 = vmatprep.subr.bf16.mxu0 0
      %3441 = vmatpush1.bf16.msra.mxu0 0
      %3442 = vmatprep.subr.bf16.mxu0 0
      %3443 = vmatpush1.bf16.msra.mxu0 0
      %3444 = vmatprep.mubr.bf16.mxu0 0
      %3445 = vmatmul.mubr.bf16.gmra.mrb[0].mxu0 %v3356
      %v3446 = vpop.f32.mrb[0].mxu0
      %v3447 = vadd.f32 0.0, %v3446
      %v3448 = vpop.f32.mrb[0].mxu0
      %v3449 = vpop.f32.mrb[0].mxu0
      %v3450 = vadd.f32 0.0, %v3449
      %v3451 = vpop.f32.mrb[0].mxu0
      %3452 = vmatprep.mubr.bf16.mxu0 0
      %3453 = vmatmul.mubr.bf16.gmra.mrb[0].mxu0 %v3357
      %v3454 = vpop.f32.mrb[0].mxu0
      %v3455 = vadd.f32 0.0, %v3454
      %v3456 = vpop.f32.mrb[0].mxu0
      %v3457 = vpop.f32.mrb[0].mxu0
      %v3458 = vadd.f32 0.0, %v3457
      %v3459 = vpop.f32.mrb[0].mxu0
      %3460 = vmatprep.mubr.bf16.mxu0 0
      %3461 = vmatmul.mubr.bf16.gmra.mrb[0].mxu0 %v3358
      %v3462 = vpop.f32.mrb[0].mxu0
      %v3463 = vadd.f32 0.0, %v3462
      %v3464 = vpop.f32.mrb[0].mxu0
      %v3465 = vpop.f32.mrb[0].mxu0
      %v3466 = vadd.f32 0.0, %v3465
      %v3467 = vpop.f32.mrb[0].mxu0
      %3468 = vmatprep.mubr.bf16.mxu0 0
      %3469 = vmatmul.mubr.bf16.gmra.mrb[0].mxu0 %v3359
      %v3470 = vpop.f32.mrb[0].mxu0
      %v3471 = vadd.f32 0.0, %v3470
      %v3472 = vpop.f32.mrb[0].mxu0
      %v3473 = vpop.f32.mrb[0].mxu0
      %v3474 = vadd.f32 0.0, %v3473
      %v3475 = vpop.f32.mrb[0].mxu0
      %3476 = vdwg.mxu0
      %v3477 = vadd.f32 %v3171, %v3447
      %v3478 = vadd.f32 %v3172, %v3450
      %v3479 = vadd.f32 %v3173, %v3455
      %v3480 = vadd.f32 %v3174, %v3458
      %v3481 = vadd.f32 %v3175, %v3463
      %v3482 = vadd.f32 %v3176, %v3466
      %v3483 = vadd.f32 %v3177, %v3471
      %v3484 = vadd.f32 %v3178, %v3474
      %v3485 = vld [vmem:[%s2516] sm:$0xc]
      %v3486 = vld [vmem:[%s2516 + $0x8] sm:$0xc]
      %v3487 = vld [vmem:[%s2516 + $0x10] sm:$0xc]
      %v3488 = vld [vmem:[%s2516 + $0x18] sm:$0xc]
      %v3489 = vld [vmem:[%s2516 + $0x20] sm:$0xc]
      %v3490 = vld [vmem:[%s2516 + $0x28] sm:$0xc]
      %v3491 = vld [vmem:[%s2516 + $0x30] sm:$0xc]
      %v3492 = vld [vmem:[%s2516 + $0x38] sm:$0xc]
      %v3509 = vrot.slane %v3485, 6
      %v3510 = vrot.slane %v3509, 4
      %v3511 = vrot.slane %v3179, 6
      %v3512 = vsel %vm1150, %v3510, %v3511
      %v3513 = vrot.slane %v3486, 6
      %v3514 = vrot.slane %v3513, 4
      %v3515 = vrot.slane %v3180, 6
      %v3516 = vsel %vm1150, %v3514, %v3515
      %v3517 = vrot.slane %v3487, 6
      %v3518 = vrot.slane %v3517, 4
      %v3519 = vrot.slane %v3181, 6
      %v3520 = vsel %vm1150, %v3518, %v3519
      %v3521 = vrot.slane %v3488, 6
      %v3522 = vrot.slane %v3521, 4
      %v3523 = vrot.slane %v3182, 6
      %v3524 = vsel %vm1150, %v3522, %v3523
      %v3525 = vrot.slane %v3489, 6
      %v3526 = vrot.slane %v3525, 4
      %v3527 = vrot.slane %v3183, 6
      %v3528 = vsel %vm1150, %v3526, %v3527
      %v3529 = vrot.slane %v3490, 6
      %v3530 = vrot.slane %v3529, 4
      %v3531 = vrot.slane %v3184, 6
      %v3532 = vsel %vm1150, %v3530, %v3531
      %v3533 = vrot.slane %v3491, 6
      %v3534 = vrot.slane %v3533, 4
      %v3535 = vrot.slane %v3185, 6
      %v3536 = vsel %vm1150, %v3534, %v3535
      %v3537 = vrot.slane %v3492, 6
      %v3538 = vrot.slane %v3537, 4
      %v3539 = vrot.slane %v3186, 6
      %v3540 = vsel %vm1150, %v3538, %v3539
      %s3541 = scalar_lea.vmem %s1, 896
      %v3542 = vld [vmem:[%s3541] sm:$0xf]
      %v3543 = vld [vmem:[%s3541 + $0x4] sm:$0xf]
      %v3544 = vld [vmem:[%s3541 + $0x8] sm:$0xf]
      %v3545 = vld [vmem:[%s3541 + $0xc] sm:$0xf]
      %v3546 = vld [vmem:[%s3541 + $0x10] sm:$0xf]
      %v3547 = vld [vmem:[%s3541 + $0x14] sm:$0xf]
      %v3548 = vld [vmem:[%s3541 + $0x18] sm:$0xf]
      %v3549 = vld [vmem:[%s3541 + $0x1c] sm:$0xf]
      %v3550 = vld [vmem:[%s3541 + $0x20] sm:$0xf]
      %v3551 = vld [vmem:[%s3541 + $0x24] sm:$0xf]
      %v3552 = vld [vmem:[%s3541 + $0x28] sm:$0xf]
      %v3553 = vld [vmem:[%s3541 + $0x2c] sm:$0xf]
      %v3554 = vld [vmem:[%s3541 + $0x30] sm:$0xf]
      %v3555 = vld [vmem:[%s3541 + $0x34] sm:$0xf]
      %v3556 = vld [vmem:[%s3541 + $0x38] sm:$0xf]
      %v3557 = vld [vmem:[%s3541 + $0x3c] sm:$0xf]
      %v3558 = vunpack.c.l.b16 %v3512
      %v3559 = vunpack.c.l.b16 %v3516
      %v3560 = vunpack.c.l.b16 %v3520
      %v3561 = vunpack.c.l.b16 %v3524
      %v3562 = vunpack.c.l.b16 %v3528
      %v3563 = vunpack.c.l.b16 %v3532
      %v3564 = vunpack.c.l.b16 %v3536
      %v3565 = vunpack.c.l.b16 %v3540
      %v3566 = vpack.c.b16 %v3559, %v3558
      %v3567 = vpack.c.b16 %v3561, %v3560
      %v3568 = vpack.c.b16 %v3563, %v3562
      %v3569 = vpack.c.b16 %v3565, %v3564
      %v3590 = vunpack.c.l.b16 %v3542
      %v3591 = vunpack.c.l.b16 %v3543
      %v3592 = vunpack.c.l.b16 %v3544
      %v3593 = vunpack.c.l.b16 %v3545
      %v3594 = vunpack.c.l.b16 %v3546
      %v3595 = vunpack.c.l.b16 %v3547
      %v3596 = vunpack.c.l.b16 %v3548
      %v3597 = vunpack.c.l.b16 %v3549
      %v3598 = vunpack.c.l.b16 %v3550
      %v3599 = vunpack.c.l.b16 %v3551
      %v3600 = vunpack.c.l.b16 %v3552
      %v3601 = vunpack.c.l.b16 %v3553
      %v3602 = vunpack.c.l.b16 %v3554
      %v3603 = vunpack.c.l.b16 %v3555
      %v3604 = vunpack.c.l.b16 %v3556
      %v3605 = vunpack.c.l.b16 %v3557
      %v3606 = vpack.c.b16 %v3591, %v3590
      %v3607 = vpack.c.b16 %v3593, %v3592
      %v3608 = vpack.c.b16 %v3595, %v3594
      %v3609 = vpack.c.b16 %v3597, %v3596
      %v3610 = vpack.c.b16 %v3599, %v3598
      %v3611 = vpack.c.b16 %v3601, %v3600
      %v3612 = vpack.c.b16 %v3603, %v3602
      %v3613 = vpack.c.b16 %v3605, %v3604
      %3622 = vmatprep.subr.bf16.mxu0 0
      %3623 = vmatpush1.bf16.msra.mxu0 %v3606
      %3624 = vmatprep.subr.bf16.mxu0 0
      %3625 = vmatpush1.bf16.msra.mxu0 %v3607
      %3626 = vmatprep.subr.bf16.mxu0 0
      %3627 = vmatpush1.bf16.msra.mxu0 %v3608
      %3628 = vmatprep.subr.bf16.mxu0 0
      %3629 = vmatpush1.bf16.msra.mxu0 %v3609
      %3630 = vmatprep.subr.bf16.mxu0 0
      %3631 = vmatpush1.bf16.msra.mxu0 %v3610
      %3632 = vmatprep.subr.bf16.mxu0 0
      %3633 = vmatpush1.bf16.msra.mxu0 %v3611
      %3634 = vmatprep.subr.bf16.mxu0 0
      %3635 = vmatpush1.bf16.msra.mxu0 %v3612
      %3636 = vmatprep.subr.bf16.mxu0 0
      %3637 = vmatpush1.bf16.msra.mxu0 %v3613
      %3638 = vmatprep.subr.bf16.mxu0 0
      %3639 = vmatpush1.bf16.msra.mxu0 0
      %3640 = vmatprep.subr.bf16.mxu0 0
      %3641 = vmatpush1.bf16.msra.mxu0 0
      %3642 = vmatprep.subr.bf16.mxu0 0
      %3643 = vmatpush1.bf16.msra.mxu0 0
      %3644 = vmatprep.subr.bf16.mxu0 0
      %3645 = vmatpush1.bf16.msra.mxu0 0
      %3646 = vmatprep.subr.bf16.mxu0 0
      %3647 = vmatpush1.bf16.msra.mxu0 0
      %3648 = vmatprep.subr.bf16.mxu0 0
      %3649 = vmatpush1.bf16.msra.mxu0 0
      %3650 = vmatprep.subr.bf16.mxu0 0
      %3651 = vmatpush1.bf16.msra.mxu0 0
      %3652 = vmatprep.subr.bf16.mxu0 0
      %3653 = vmatpush1.bf16.msra.mxu0 0
      %3654 = vmatprep.mubr.bf16.mxu0 0
      %3655 = vmatmul.mubr.bf16.gmra.mrb[0].mxu0 %v3566
      %v3656 = vpop.f32.mrb[0].mxu0
      %v3657 = vadd.f32 0.0, %v3656
      %v3658 = vpop.f32.mrb[0].mxu0
      %v3659 = vpop.f32.mrb[0].mxu0
      %v3660 = vadd.f32 0.0, %v3659
      %v3661 = vpop.f32.mrb[0].mxu0
      %3662 = vmatprep.mubr.bf16.mxu0 0
      %3663 = vmatmul.mubr.bf16.gmra.mrb[0].mxu0 %v3567
      %v3664 = vpop.f32.mrb[0].mxu0
      %v3665 = vadd.f32 0.0, %v3664
      %v3666 = vpop.f32.mrb[0].mxu0
      %v3667 = vpop.f32.mrb[0].mxu0
      %v3668 = vadd.f32 0.0, %v3667
      %v3669 = vpop.f32.mrb[0].mxu0
      %3670 = vmatprep.mubr.bf16.mxu0 0
      %3671 = vmatmul.mubr.bf16.gmra.mrb[0].mxu0 %v3568
      %v3672 = vpop.f32.mrb[0].mxu0
      %v3673 = vadd.f32 0.0, %v3672
      %v3674 = vpop.f32.mrb[0].mxu0
      %v3675 = vpop.f32.mrb[0].mxu0
      %v3676 = vadd.f32 0.0, %v3675
      %v3677 = vpop.f32.mrb[0].mxu0
      %3678 = vmatprep.mubr.bf16.mxu0 0
      %3679 = vmatmul.mubr.bf16.gmra.mrb[0].mxu0 %v3569
      %v3680 = vpop.f32.mrb[0].mxu0
      %v3681 = vadd.f32 0.0, %v3680
      %v3682 = vpop.f32.mrb[0].mxu0
      %v3683 = vpop.f32.mrb[0].mxu0
      %v3684 = vadd.f32 0.0, %v3683
      %v3685 = vpop.f32.mrb[0].mxu0
      %3686 = vdwg.mxu0
      %v3687 = vadd.f32 %v3477, %v3657
      %v3688 = vadd.f32 %v3478, %v3660
      %v3689 = vadd.f32 %v3479, %v3665
      %v3690 = vadd.f32 %v3480, %v3668
      %v3691 = vadd.f32 %v3481, %v3673
      %v3692 = vadd.f32 %v3482, %v3676
      %v3693 = vadd.f32 %v3483, %v3681
      %v3694 = vadd.f32 %v3484, %v3684
      %s3695 = scalar_lea.vmem %s165, 24
      %v3696 = vld [vmem:[%s3695] sm:$0xf]
      %v3697 = vld [vmem:[%s3695 + $0x8] sm:$0xf]
      %v3698 = vld [vmem:[%s3695 + $0x10] sm:$0xf]
      %v3699 = vld [vmem:[%s3695 + $0x18] sm:$0xf]
      %v3700 = vld [vmem:[%s3695 + $0x20] sm:$0xf]
      %v3701 = vld [vmem:[%s3695 + $0x28] sm:$0xf]
      %v3702 = vld [vmem:[%s3695 + $0x30] sm:$0xf]
      %v3703 = vld [vmem:[%s3695 + $0x38] sm:$0xf]
      %s3704 = scalar_lea.vmem %s1, 960
      %v3705 = vld [vmem:[%s3704] sm:$0xf]
      %v3706 = vld [vmem:[%s3704 + $0x4] sm:$0xf]
      %v3707 = vld [vmem:[%s3704 + $0x8] sm:$0xf]
      %v3708 = vld [vmem:[%s3704 + $0xc] sm:$0xf]
      %v3709 = vld [vmem:[%s3704 + $0x10] sm:$0xf]
      %v3710 = vld [vmem:[%s3704 + $0x14] sm:$0xf]
      %v3711 = vld [vmem:[%s3704 + $0x18] sm:$0xf]
      %v3712 = vld [vmem:[%s3704 + $0x1c] sm:$0xf]
      %v3713 = vld [vmem:[%s3704 + $0x20] sm:$0xf]
      %v3714 = vld [vmem:[%s3704 + $0x24] sm:$0xf]
      %v3715 = vld [vmem:[%s3704 + $0x28] sm:$0xf]
      %v3716 = vld [vmem:[%s3704 + $0x2c] sm:$0xf]
      %v3717 = vld [vmem:[%s3704 + $0x30] sm:$0xf]
      %v3718 = vld [vmem:[%s3704 + $0x34] sm:$0xf]
      %v3719 = vld [vmem:[%s3704 + $0x38] sm:$0xf]
      %v3720 = vld [vmem:[%s3704 + $0x3c] sm:$0xf]
      %v3729 = vunpack.c.l.b16 %v3696
      %v3730 = vunpack.c.l.b16 %v3697
      %v3731 = vunpack.c.l.b16 %v3698
      %v3732 = vunpack.c.l.b16 %v3699
      %v3733 = vunpack.c.l.b16 %v3700
      %v3734 = vunpack.c.l.b16 %v3701
      %v3735 = vunpack.c.l.b16 %v3702
      %v3736 = vunpack.c.l.b16 %v3703
      %v3737 = vpack.c.b16 %v3730, %v3729
      %v3738 = vpack.c.b16 %v3732, %v3731
      %v3739 = vpack.c.b16 %v3734, %v3733
      %v3740 = vpack.c.b16 %v3736, %v3735
      %v3761 = vunpack.c.l.b16 %v3705
      %v3762 = vunpack.c.l.b16 %v3706
      %v3763 = vunpack.c.l.b16 %v3707
      %v3764 = vunpack.c.l.b16 %v3708
      %v3765 = vunpack.c.l.b16 %v3709
      %v3766 = vunpack.c.l.b16 %v3710
      %v3767 = vunpack.c.l.b16 %v3711
      %v3768 = vunpack.c.l.b16 %v3712
      %v3769 = vunpack.c.l.b16 %v3713
      %v3770 = vunpack.c.l.b16 %v3714
      %v3771 = vunpack.c.l.b16 %v3715
      %v3772 = vunpack.c.l.b16 %v3716
      %v3773 = vunpack.c.l.b16 %v3717
      %v3774 = vunpack.c.l.b16 %v3718
      %v3775 = vunpack.c.l.b16 %v3719
      %v3776 = vunpack.c.l.b16 %v3720
      %v3777 = vpack.c.b16 %v3762, %v3761
      %v3778 = vpack.c.b16 %v3764, %v3763
      %v3779 = vpack.c.b16 %v3766, %v3765
      %v3780 = vpack.c.b16 %v3768, %v3767
      %v3781 = vpack.c.b16 %v3770, %v3769
      %v3782 = vpack.c.b16 %v3772, %v3771
      %v3783 = vpack.c.b16 %v3774, %v3773
      %v3784 = vpack.c.b16 %v3776, %v3775
      %3793 = vmatprep.subr.bf16.mxu0 0
      %3794 = vmatpush1.bf16.msra.mxu0 %v3777
      %3795 = vmatprep.subr.bf16.mxu0 0
      %3796 = vmatpush1.bf16.msra.mxu0 %v3778
      %3797 = vmatprep.subr.bf16.mxu0 0
      %3798 = vmatpush1.bf16.msra.mxu0 %v3779
      %3799 = vmatprep.subr.bf16.mxu0 0
      %3800 = vmatpush1.bf16.msra.mxu0 %v3780
      %3801 = vmatprep.subr.bf16.mxu0 0
      %3802 = vmatpush1.bf16.msra.mxu0 %v3781
      %3803 = vmatprep.subr.bf16.mxu0 0
      %3804 = vmatpush1.bf16.msra.mxu0 %v3782
      %3805 = vmatprep.subr.bf16.mxu0 0
      %3806 = vmatpush1.bf16.msra.mxu0 %v3783
      %3807 = vmatprep.subr.bf16.mxu0 0
      %3808 = vmatpush1.bf16.msra.mxu0 %v3784
      %3809 = vmatprep.subr.bf16.mxu0 0
      %3810 = vmatpush1.bf16.msra.mxu0 0
      %3811 = vmatprep.subr.bf16.mxu0 0
      %3812 = vmatpush1.bf16.msra.mxu0 0
      %3813 = vmatprep.subr.bf16.mxu0 0
      %3814 = vmatpush1.bf16.msra.mxu0 0
      %3815 = vmatprep.subr.bf16.mxu0 0
      %3816 = vmatpush1.bf16.msra.mxu0 0
      %3817 = vmatprep.subr.bf16.mxu0 0
      %3818 = vmatpush1.bf16.msra.mxu0 0
      %3819 = vmatprep.subr.bf16.mxu0 0
      %3820 = vmatpush1.bf16.msra.mxu0 0
      %3821 = vmatprep.subr.bf16.mxu0 0
      %3822 = vmatpush1.bf16.msra.mxu0 0
      %3823 = vmatprep.subr.bf16.mxu0 0
      %3824 = vmatpush1.bf16.msra.mxu0 0
      %3825 = vmatprep.mubr.bf16.mxu0 0
      %3826 = vmatmul.mubr.bf16.gmra.mrb[0].mxu0 %v3737
      %v3827 = vpop.f32.mrb[0].mxu0
      %v3828 = vadd.f32 0.0, %v3827
      %v3829 = vpop.f32.mrb[0].mxu0
      %v3830 = vpop.f32.mrb[0].mxu0
      %v3831 = vadd.f32 0.0, %v3830
      %v3832 = vpop.f32.mrb[0].mxu0
      %3833 = vmatprep.mubr.bf16.mxu0 0
      %3834 = vmatmul.mubr.bf16.gmra.mrb[0].mxu0 %v3738
      %v3835 = vpop.f32.mrb[0].mxu0
      %v3836 = vadd.f32 0.0, %v3835
      %v3837 = vpop.f32.mrb[0].mxu0
      %v3838 = vpop.f32.mrb[0].mxu0
      %v3839 = vadd.f32 0.0, %v3838
      %v3840 = vpop.f32.mrb[0].mxu0
      %3841 = vmatprep.mubr.bf16.mxu0 0
      %3842 = vmatmul.mubr.bf16.gmra.mrb[0].mxu0 %v3739
      %v3843 = vpop.f32.mrb[0].mxu0
      %v3844 = vadd.f32 0.0, %v3843
      %v3845 = vpop.f32.mrb[0].mxu0
      %v3846 = vpop.f32.mrb[0].mxu0
      %v3847 = vadd.f32 0.0, %v3846
      %v3848 = vpop.f32.mrb[0].mxu0
      %3849 = vmatprep.mubr.bf16.mxu0 0
      %3850 = vmatmul.mubr.bf16.gmra.mrb[0].mxu0 %v3740
      %v3851 = vpop.f32.mrb[0].mxu0
      %v3852 = vadd.f32 0.0, %v3851
      %v3853 = vpop.f32.mrb[0].mxu0
      %v3854 = vpop.f32.mrb[0].mxu0
      %v3855 = vadd.f32 0.0, %v3854
      %v3856 = vpop.f32.mrb[0].mxu0
      %3857 = vdwg.mxu0
      %v3858 = vadd.f32 %v3687, %v3828
      %v3859 = vadd.f32 %v3688, %v3831
      %v3860 = vadd.f32 %v3689, %v3836
      %v3861 = vadd.f32 %v3690, %v3839
      %v3862 = vadd.f32 %v3691, %v3844
      %v3863 = vadd.f32 %v3692, %v3847
      %v3864 = vadd.f32 %v3693, %v3852
      %v3865 = vadd.f32 %v3694, %v3855
      %v3866 = vld [vmem:[%s3695] sm:$0xf]
      %v3867 = vld [vmem:[%s3695 + $0x4] sm:$0x1]
      %v3868 = vld [vmem:[%s3695 + $0x8] sm:$0xf]
      %v3869 = vld [vmem:[%s3695 + $0xc] sm:$0x1]
      %v3870 = vld [vmem:[%s3695 + $0x10] sm:$0xf]
      %v3871 = vld [vmem:[%s3695 + $0x14] sm:$0x1]
      %v3872 = vld [vmem:[%s3695 + $0x18] sm:$0xf]
      %v3873 = vld [vmem:[%s3695 + $0x1c] sm:$0x1]
      %v3874 = vld [vmem:[%s3695 + $0x20] sm:$0xf]
      %v3875 = vld [vmem:[%s3695 + $0x24] sm:$0x1]
      %v3876 = vld [vmem:[%s3695 + $0x28] sm:$0xf]
      %v3877 = vld [vmem:[%s3695 + $0x2c] sm:$0x1]
      %v3878 = vld [vmem:[%s3695 + $0x30] sm:$0xf]
      %v3879 = vld [vmem:[%s3695 + $0x34] sm:$0x1]
      %v3880 = vld [vmem:[%s3695 + $0x38] sm:$0xf]
      %v3881 = vld [vmem:[%s3695 + $0x3c] sm:$0x1]
      %v3883 = vshrl.u32 %v3866, 16
      %v3885 = vrot.slane %v3883, 4
      %v3886 = vshll.u32 %v3866, 16
      %v3888 = vrot.slane %v3886, 5
      %v3889 = vor.u32 %v3885, %v3888
      %v3890 = vrot.slane %v3889, 4
      %v3892 = vshll.u32 %v3867, 16
      %v3894 = vrot.slane %v3892, 5
      %v3895 = vsel %vm206, %v3890, %v3894
      %v3897 = vshrl.u32 %v3868, 16
      %v3899 = vrot.slane %v3897, 4
      %v3900 = vshll.u32 %v3868, 16
      %v3902 = vrot.slane %v3900, 5
      %v3903 = vor.u32 %v3899, %v3902
      %v3904 = vrot.slane %v3903, 4
      %v3906 = vshll.u32 %v3869, 16
      %v3908 = vrot.slane %v3906, 5
      %v3909 = vsel %vm206, %v3904, %v3908
      %v3911 = vshrl.u32 %v3870, 16
      %v3913 = vrot.slane %v3911, 4
      %v3914 = vshll.u32 %v3870, 16
      %v3916 = vrot.slane %v3914, 5
      %v3917 = vor.u32 %v3913, %v3916
      %v3918 = vrot.slane %v3917, 4
      %v3920 = vshll.u32 %v3871, 16
      %v3922 = vrot.slane %v3920, 5
      %v3923 = vsel %vm206, %v3918, %v3922
      %v3925 = vshrl.u32 %v3872, 16
      %v3927 = vrot.slane %v3925, 4
      %v3928 = vshll.u32 %v3872, 16
      %v3930 = vrot.slane %v3928, 5
      %v3931 = vor.u32 %v3927, %v3930
      %v3932 = vrot.slane %v3931, 4
      %v3934 = vshll.u32 %v3873, 16
      %v3936 = vrot.slane %v3934, 5
      %v3937 = vsel %vm206, %v3932, %v3936
      %v3939 = vshrl.u32 %v3874, 16
      %v3941 = vrot.slane %v3939, 4
      %v3942 = vshll.u32 %v3874, 16
      %v3944 = vrot.slane %v3942, 5
      %v3945 = vor.u32 %v3941, %v3944
      %v3946 = vrot.slane %v3945, 4
      %v3948 = vshll.u32 %v3875, 16
      %v3950 = vrot.slane %v3948, 5
      %v3951 = vsel %vm206, %v3946, %v3950
      %v3953 = vshrl.u32 %v3876, 16
      %v3955 = vrot.slane %v3953, 4
      %v3956 = vshll.u32 %v3876, 16
      %v3958 = vrot.slane %v3956, 5
      %v3959 = vor.u32 %v3955, %v3958
      %v3960 = vrot.slane %v3959, 4
      %v3962 = vshll.u32 %v3877, 16
      %v3964 = vrot.slane %v3962, 5
      %v3965 = vsel %vm206, %v3960, %v3964
      %v3967 = vshrl.u32 %v3878, 16
      %v3969 = vrot.slane %v3967, 4
      %v3970 = vshll.u32 %v3878, 16
      %v3972 = vrot.slane %v3970, 5
      %v3973 = vor.u32 %v3969, %v3972
      %v3974 = vrot.slane %v3973, 4
      %v3976 = vshll.u32 %v3879, 16
      %v3978 = vrot.slane %v3976, 5
      %v3979 = vsel %vm206, %v3974, %v3978
      %v3981 = vshrl.u32 %v3880, 16
      %v3983 = vrot.slane %v3981, 4
      %v3984 = vshll.u32 %v3880, 16
      %v3986 = vrot.slane %v3984, 5
      %v3987 = vor.u32 %v3983, %v3986
      %v3988 = vrot.slane %v3987, 4
      %v3990 = vshll.u32 %v3881, 16
      %v3992 = vrot.slane %v3990, 5
      %v3993 = vsel %vm206, %v3988, %v3992
      %s3994 = scalar_lea.vmem %s1, 1024
      %v3995 = vld [vmem:[%s3994] sm:$0xf]
      %v3996 = vld [vmem:[%s3994 + $0x4] sm:$0xf]
      %v3997 = vld [vmem:[%s3994 + $0x8] sm:$0xf]
      %v3998 = vld [vmem:[%s3994 + $0xc] sm:$0xf]
      %v3999 = vld [vmem:[%s3994 + $0x10] sm:$0xf]
      %v4000 = vld [vmem:[%s3994 + $0x14] sm:$0xf]
      %v4001 = vld [vmem:[%s3994 + $0x18] sm:$0xf]
      %v4002 = vld [vmem:[%s3994 + $0x1c] sm:$0xf]
      %v4003 = vld [vmem:[%s3994 + $0x20] sm:$0xf]
      %v4004 = vld [vmem:[%s3994 + $0x24] sm:$0xf]
      %v4005 = vld [vmem:[%s3994 + $0x28] sm:$0xf]
      %v4006 = vld [vmem:[%s3994 + $0x2c] sm:$0xf]
      %v4007 = vld [vmem:[%s3994 + $0x30] sm:$0xf]
      %v4008 = vld [vmem:[%s3994 + $0x34] sm:$0xf]
      %v4009 = vld [vmem:[%s3994 + $0x38] sm:$0xf]
      %v4010 = vld [vmem:[%s3994 + $0x3c] sm:$0xf]
      %v4011 = vunpack.c.l.b16 %v3895
      %v4012 = vunpack.c.l.b16 %v3909
      %v4013 = vunpack.c.l.b16 %v3923
      %v4014 = vunpack.c.l.b16 %v3937
      %v4015 = vunpack.c.l.b16 %v3951
      %v4016 = vunpack.c.l.b16 %v3965
      %v4017 = vunpack.c.l.b16 %v3979
      %v4018 = vunpack.c.l.b16 %v3993
      %v4019 = vpack.c.b16 %v4012, %v4011
      %v4020 = vpack.c.b16 %v4014, %v4013
      %v4021 = vpack.c.b16 %v4016, %v4015
      %v4022 = vpack.c.b16 %v4018, %v4017
      %v4043 = vunpack.c.l.b16 %v3995
      %v4044 = vunpack.c.l.b16 %v3996
      %v4045 = vunpack.c.l.b16 %v3997
      %v4046 = vunpack.c.l.b16 %v3998
      %v4047 = vunpack.c.l.b16 %v3999
      %v4048 = vunpack.c.l.b16 %v4000
      %v4049 = vunpack.c.l.b16 %v4001
      %v4050 = vunpack.c.l.b16 %v4002
      %v4051 = vunpack.c.l.b16 %v4003
      %v4052 = vunpack.c.l.b16 %v4004
      %v4053 = vunpack.c.l.b16 %v4005
      %v4054 = vunpack.c.l.b16 %v4006
      %v4055 = vunpack.c.l.b16 %v4007
      %v4056 = vunpack.c.l.b16 %v4008
      %v4057 = vunpack.c.l.b16 %v4009
      %v4058 = vunpack.c.l.b16 %v4010
      %v4059 = vpack.c.b16 %v4044, %v4043
      %v4060 = vpack.c.b16 %v4046, %v4045
      %v4061 = vpack.c.b16 %v4048, %v4047
      %v4062 = vpack.c.b16 %v4050, %v4049
      %v4063 = vpack.c.b16 %v4052, %v4051
      %v4064 = vpack.c.b16 %v4054, %v4053
      %v4065 = vpack.c.b16 %v4056, %v4055
      %v4066 = vpack.c.b16 %v4058, %v4057
      %4075 = vmatprep.subr.bf16.mxu0 0
      %4076 = vmatpush1.bf16.msra.mxu0 %v4059
      %4077 = vmatprep.subr.bf16.mxu0 0
      %4078 = vmatpush1.bf16.msra.mxu0 %v4060
      %4079 = vmatprep.subr.bf16.mxu0 0
      %4080 = vmatpush1.bf16.msra.mxu0 %v4061
      %4081 = vmatprep.subr.bf16.mxu0 0
      %4082 = vmatpush1.bf16.msra.mxu0 %v4062
      %4083 = vmatprep.subr.bf16.mxu0 0
      %4084 = vmatpush1.bf16.msra.mxu0 %v4063
      %4085 = vmatprep.subr.bf16.mxu0 0
      %4086 = vmatpush1.bf16.msra.mxu0 %v4064
      %4087 = vmatprep.subr.bf16.mxu0 0
      %4088 = vmatpush1.bf16.msra.mxu0 %v4065
      %4089 = vmatprep.subr.bf16.mxu0 0
      %4090 = vmatpush1.bf16.msra.mxu0 %v4066
      %4091 = vmatprep.subr.bf16.mxu0 0
      %4092 = vmatpush1.bf16.msra.mxu0 0
      %4093 = vmatprep.subr.bf16.mxu0 0
      %4094 = vmatpush1.bf16.msra.mxu0 0
      %4095 = vmatprep.subr.bf16.mxu0 0
      %4096 = vmatpush1.bf16.msra.mxu0 0
      %4097 = vmatprep.subr.bf16.mxu0 0
      %4098 = vmatpush1.bf16.msra.mxu0 0
      %4099 = vmatprep.subr.bf16.mxu0 0
      %4100 = vmatpush1.bf16.msra.mxu0 0
      %4101 = vmatprep.subr.bf16.mxu0 0
      %4102 = vmatpush1.bf16.msra.mxu0 0
      %4103 = vmatprep.subr.bf16.mxu0 0
      %4104 = vmatpush1.bf16.msra.mxu0 0
      %4105 = vmatprep.subr.bf16.mxu0 0
      %4106 = vmatpush1.bf16.msra.mxu0 0
      %4107 = vmatprep.mubr.bf16.mxu0 0
      %4108 = vmatmul.mubr.bf16.gmra.mrb[0].mxu0 %v4019
      %v4109 = vpop.f32.mrb[0].mxu0
      %v4110 = vadd.f32 0.0, %v4109
      %v4111 = vpop.f32.mrb[0].mxu0
      %v4112 = vpop.f32.mrb[0].mxu0
      %v4113 = vadd.f32 0.0, %v4112
      %v4114 = vpop.f32.mrb[0].mxu0
      %4115 = vmatprep.mubr.bf16.mxu0 0
      %4116 = vmatmul.mubr.bf16.gmra.mrb[0].mxu0 %v4020
      %v4117 = vpop.f32.mrb[0].mxu0
      %v4118 = vadd.f32 0.0, %v4117
      %v4119 = vpop.f32.mrb[0].mxu0
      %v4120 = vpop.f32.mrb[0].mxu0
      %v4121 = vadd.f32 0.0, %v4120
      %v4122 = vpop.f32.mrb[0].mxu0
      %4123 = vmatprep.mubr.bf16.mxu0 0
      %4124 = vmatmul.mubr.bf16.gmra.mrb[0].mxu0 %v4021
      %v4125 = vpop.f32.mrb[0].mxu0
      %v4126 = vadd.f32 0.0, %v4125
      %v4127 = vpop.f32.mrb[0].mxu0
      %v4128 = vpop.f32.mrb[0].mxu0
      %v4129 = vadd.f32 0.0, %v4128
      %v4130 = vpop.f32.mrb[0].mxu0
      %4131 = vmatprep.mubr.bf16.mxu0 0
      %4132 = vmatmul.mubr.bf16.gmra.mrb[0].mxu0 %v4022
      %v4133 = vpop.f32.mrb[0].mxu0
      %v4134 = vadd.f32 0.0, %v4133
      %v4135 = vpop.f32.mrb[0].mxu0
      %v4136 = vpop.f32.mrb[0].mxu0
      %v4137 = vadd.f32 0.0, %v4136
      %v4138 = vpop.f32.mrb[0].mxu0
      %4139 = vdwg.mxu0
      %v4140 = vadd.f32 %v3858, %v4110
      %v4141 = vadd.f32 %v3859, %v4113
      %v4142 = vadd.f32 %v3860, %v4118
      %v4143 = vadd.f32 %v3861, %v4121
      %v4144 = vadd.f32 %v3862, %v4126
      %v4145 = vadd.f32 %v3863, %v4129
      %v4146 = vadd.f32 %v3864, %v4134
      %v4147 = vadd.f32 %v3865, %v4137
      %v4148 = vld [vmem:[%s3695] sm:$0xe]
      %v4149 = vld [vmem:[%s3695 + $0x8] sm:$0xe]
      %v4150 = vld [vmem:[%s3695 + $0x10] sm:$0xe]
      %v4151 = vld [vmem:[%s3695 + $0x18] sm:$0xe]
      %v4152 = vld [vmem:[%s3695 + $0x20] sm:$0xe]
      %v4153 = vld [vmem:[%s3695 + $0x28] sm:$0xe]
      %v4154 = vld [vmem:[%s3695 + $0x30] sm:$0xe]
      %v4155 = vld [vmem:[%s3695 + $0x38] sm:$0xe]
      %v4172 = vrot.slane %v4148, 5
      %v4173 = vrot.slane %v4172, 4
      %v4174 = vrot.slane %v3867, 5
      %v4175 = vsel %vm628, %v4173, %v4174
      %v4176 = vrot.slane %v4149, 5
      %v4177 = vrot.slane %v4176, 4
      %v4178 = vrot.slane %v3869, 5
      %v4179 = vsel %vm628, %v4177, %v4178
      %v4180 = vrot.slane %v4150, 5
      %v4181 = vrot.slane %v4180, 4
      %v4182 = vrot.slane %v3871, 5
      %v4183 = vsel %vm628, %v4181, %v4182
      %v4184 = vrot.slane %v4151, 5
      %v4185 = vrot.slane %v4184, 4
      %v4186 = vrot.slane %v3873, 5
      %v4187 = vsel %vm628, %v4185, %v4186
      %v4188 = vrot.slane %v4152, 5
      %v4189 = vrot.slane %v4188, 4
      %v4190 = vrot.slane %v3875, 5
      %v4191 = vsel %vm628, %v4189, %v4190
      %v4192 = vrot.slane %v4153, 5
      %v4193 = vrot.slane %v4192, 4
      %v4194 = vrot.slane %v3877, 5
      %v4195 = vsel %vm628, %v4193, %v4194
      %v4196 = vrot.slane %v4154, 5
      %v4197 = vrot.slane %v4196, 4
      %v4198 = vrot.slane %v3879, 5
      %v4199 = vsel %vm628, %v4197, %v4198
      %v4200 = vrot.slane %v4155, 5
      %v4201 = vrot.slane %v4200, 4
      %v4202 = vrot.slane %v3881, 5
      %v4203 = vsel %vm628, %v4201, %v4202
      %s4204 = scalar_lea.vmem %s1, 1088
      %v4205 = vld [vmem:[%s4204] sm:$0xf]
      %v4206 = vld [vmem:[%s4204 + $0x4] sm:$0xf]
      %v4207 = vld [vmem:[%s4204 + $0x8] sm:$0xf]
      %v4208 = vld [vmem:[%s4204 + $0xc] sm:$0xf]
      %v4209 = vld [vmem:[%s4204 + $0x10] sm:$0xf]
      %v4210 = vld [vmem:[%s4204 + $0x14] sm:$0xf]
      %v4211 = vld [vmem:[%s4204 + $0x18] sm:$0xf]
      %v4212 = vld [vmem:[%s4204 + $0x1c] sm:$0xf]
      %v4213 = vld [vmem:[%s4204 + $0x20] sm:$0xf]
      %v4214 = vld [vmem:[%s4204 + $0x24] sm:$0xf]
      %v4215 = vld [vmem:[%s4204 + $0x28] sm:$0xf]
      %v4216 = vld [vmem:[%s4204 + $0x2c] sm:$0xf]
      %v4217 = vld [vmem:[%s4204 + $0x30] sm:$0xf]
      %v4218 = vld [vmem:[%s4204 + $0x34] sm:$0xf]
      %v4219 = vld [vmem:[%s4204 + $0x38] sm:$0xf]
      %v4220 = vld [vmem:[%s4204 + $0x3c] sm:$0xf]
      %v4221 = vunpack.c.l.b16 %v4175
      %v4222 = vunpack.c.l.b16 %v4179
      %v4223 = vunpack.c.l.b16 %v4183
      %v4224 = vunpack.c.l.b16 %v4187
      %v4225 = vunpack.c.l.b16 %v4191
      %v4226 = vunpack.c.l.b16 %v4195
      %v4227 = vunpack.c.l.b16 %v4199
      %v4228 = vunpack.c.l.b16 %v4203
      %v4229 = vpack.c.b16 %v4222, %v4221
      %v4230 = vpack.c.b16 %v4224, %v4223
      %v4231 = vpack.c.b16 %v4226, %v4225
      %v4232 = vpack.c.b16 %v4228, %v4227
      %v4253 = vunpack.c.l.b16 %v4205
      %v4254 = vunpack.c.l.b16 %v4206
      %v4255 = vunpack.c.l.b16 %v4207
      %v4256 = vunpack.c.l.b16 %v4208
      %v4257 = vunpack.c.l.b16 %v4209
      %v4258 = vunpack.c.l.b16 %v4210
      %v4259 = vunpack.c.l.b16 %v4211
      %v4260 = vunpack.c.l.b16 %v4212
      %v4261 = vunpack.c.l.b16 %v4213
      %v4262 = vunpack.c.l.b16 %v4214
      %v4263 = vunpack.c.l.b16 %v4215
      %v4264 = vunpack.c.l.b16 %v4216
      %v4265 = vunpack.c.l.b16 %v4217
      %v4266 = vunpack.c.l.b16 %v4218
      %v4267 = vunpack.c.l.b16 %v4219
      %v4268 = vunpack.c.l.b16 %v4220
      %v4269 = vpack.c.b16 %v4254, %v4253
      %v4270 = vpack.c.b16 %v4256, %v4255
      %v4271 = vpack.c.b16 %v4258, %v4257
      %v4272 = vpack.c.b16 %v4260, %v4259
      %v4273 = vpack.c.b16 %v4262, %v4261
      %v4274 = vpack.c.b16 %v4264, %v4263
      %v4275 = vpack.c.b16 %v4266, %v4265
      %v4276 = vpack.c.b16 %v4268, %v4267
      %4285 = vmatprep.subr.bf16.mxu0 0
      %4286 = vmatpush1.bf16.msra.mxu0 %v4269
      %4287 = vmatprep.subr.bf16.mxu0 0
      %4288 = vmatpush1.bf16.msra.mxu0 %v4270
      %4289 = vmatprep.subr.bf16.mxu0 0
      %4290 = vmatpush1.bf16.msra.mxu0 %v4271
      %4291 = vmatprep.subr.bf16.mxu0 0
      %4292 = vmatpush1.bf16.msra.mxu0 %v4272
      %4293 = vmatprep.subr.bf16.mxu0 0
      %4294 = vmatpush1.bf16.msra.mxu0 %v4273
      %4295 = vmatprep.subr.bf16.mxu0 0
      %4296 = vmatpush1.bf16.msra.mxu0 %v4274
      %4297 = vmatprep.subr.bf16.mxu0 0
      %4298 = vmatpush1.bf16.msra.mxu0 %v4275
      %4299 = vmatprep.subr.bf16.mxu0 0
      %4300 = vmatpush1.bf16.msra.mxu0 %v4276
      %4301 = vmatprep.subr.bf16.mxu0 0
      %4302 = vmatpush1.bf16.msra.mxu0 0
      %4303 = vmatprep.subr.bf16.mxu0 0
      %4304 = vmatpush1.bf16.msra.mxu0 0
      %4305 = vmatprep.subr.bf16.mxu0 0
      %4306 = vmatpush1.bf16.msra.mxu0 0
      %4307 = vmatprep.subr.bf16.mxu0 0
      %4308 = vmatpush1.bf16.msra.mxu0 0
      %4309 = vmatprep.subr.bf16.mxu0 0
      %4310 = vmatpush1.bf16.msra.mxu0 0
      %4311 = vmatprep.subr.bf16.mxu0 0
      %4312 = vmatpush1.bf16.msra.mxu0 0
      %4313 = vmatprep.subr.bf16.mxu0 0
      %4314 = vmatpush1.bf16.msra.mxu0 0
      %4315 = vmatprep.subr.bf16.mxu0 0
      %4316 = vmatpush1.bf16.msra.mxu0 0
      %4317 = vmatprep.mubr.bf16.mxu0 0
      %4318 = vmatmul.mubr.bf16.gmra.mrb[0].mxu0 %v4229
      %v4319 = vpop.f32.mrb[0].mxu0
      %v4320 = vadd.f32 0.0, %v4319
      %v4321 = vpop.f32.mrb[0].mxu0
      %v4322 = vpop.f32.mrb[0].mxu0
      %v4323 = vadd.f32 0.0, %v4322
      %v4324 = vpop.f32.mrb[0].mxu0
      %4325 = vmatprep.mubr.bf16.mxu0 0
      %4326 = vmatmul.mubr.bf16.gmra.mrb[0].mxu0 %v4230
      %v4327 = vpop.f32.mrb[0].mxu0
      %v4328 = vadd.f32 0.0, %v4327
      %v4329 = vpop.f32.mrb[0].mxu0
      %v4330 = vpop.f32.mrb[0].mxu0
      %v4331 = vadd.f32 0.0, %v4330
      %v4332 = vpop.f32.mrb[0].mxu0
      %4333 = vmatprep.mubr.bf16.mxu0 0
      %4334 = vmatmul.mubr.bf16.gmra.mrb[0].mxu0 %v4231
      %v4335 = vpop.f32.mrb[0].mxu0
      %v4336 = vadd.f32 0.0, %v4335
      %v4337 = vpop.f32.mrb[0].mxu0
      %v4338 = vpop.f32.mrb[0].mxu0
      %v4339 = vadd.f32 0.0, %v4338
      %v4340 = vpop.f32.mrb[0].mxu0
      %4341 = vmatprep.mubr.bf16.mxu0 0
      %4342 = vmatmul.mubr.bf16.gmra.mrb[0].mxu0 %v4232
      %v4343 = vpop.f32.mrb[0].mxu0
      %v4344 = vadd.f32 0.0, %v4343
      %v4345 = vpop.f32.mrb[0].mxu0
      %v4346 = vpop.f32.mrb[0].mxu0
      %v4347 = vadd.f32 0.0, %v4346
      %v4348 = vpop.f32.mrb[0].mxu0
      %4349 = vdwg.mxu0
      %v4350 = vadd.f32 %v4140, %v4320
      %v4351 = vadd.f32 %v4141, %v4323
      %v4352 = vadd.f32 %v4142, %v4328
      %v4353 = vadd.f32 %v4143, %v4331
      %v4354 = vadd.f32 %v4144, %v4336
      %v4355 = vadd.f32 %v4145, %v4339
      %v4356 = vadd.f32 %v4146, %v4344
      %v4357 = vadd.f32 %v4147, %v4347
      %v4358 = vld [vmem:[%s3695 + $0x4] sm:$0x3]
      %v4359 = vld [vmem:[%s3695 + $0xc] sm:$0x3]
      %v4360 = vld [vmem:[%s3695 + $0x14] sm:$0x3]
      %v4361 = vld [vmem:[%s3695 + $0x1c] sm:$0x3]
      %v4362 = vld [vmem:[%s3695 + $0x24] sm:$0x3]
      %v4363 = vld [vmem:[%s3695 + $0x2c] sm:$0x3]
      %v4364 = vld [vmem:[%s3695 + $0x34] sm:$0x3]
      %v4365 = vld [vmem:[%s3695 + $0x3c] sm:$0x3]
      %v4367 = vshrl.u32 %v4148, 16
      %v4369 = vrot.slane %v4367, 5
      %v4370 = vshll.u32 %v4148, 16
      %v4372 = vrot.slane %v4370, 6
      %v4373 = vor.u32 %v4369, %v4372
      %v4374 = vrot.slane %v4373, 4
      %v4376 = vshrl.u32 %v4358, 16
      %v4378 = vrot.slane %v4376, 5
      %v4379 = vshll.u32 %v4358, 16
      %v4381 = vrot.slane %v4379, 6
      %v4382 = vor.u32 %v4378, %v4381
      %v4383 = vsel %vm825, %v4374, %v4382
      %v4385 = vshrl.u32 %v4149, 16
      %v4387 = vrot.slane %v4385, 5
      %v4388 = vshll.u32 %v4149, 16
      %v4390 = vrot.slane %v4388, 6
      %v4391 = vor.u32 %v4387, %v4390
      %v4392 = vrot.slane %v4391, 4
      %v4394 = vshrl.u32 %v4359, 16
      %v4396 = vrot.slane %v4394, 5
      %v4397 = vshll.u32 %v4359, 16
      %v4399 = vrot.slane %v4397, 6
      %v4400 = vor.u32 %v4396, %v4399
      %v4401 = vsel %vm825, %v4392, %v4400
      %v4403 = vshrl.u32 %v4150, 16
      %v4405 = vrot.slane %v4403, 5
      %v4406 = vshll.u32 %v4150, 16
      %v4408 = vrot.slane %v4406, 6
      %v4409 = vor.u32 %v4405, %v4408
      %v4410 = vrot.slane %v4409, 4
      %v4412 = vshrl.u32 %v4360, 16
      %v4414 = vrot.slane %v4412, 5
      %v4415 = vshll.u32 %v4360, 16
      %v4417 = vrot.slane %v4415, 6
      %v4418 = vor.u32 %v4414, %v4417
      %v4419 = vsel %vm825, %v4410, %v4418
      %v4421 = vshrl.u32 %v4151, 16
      %v4423 = vrot.slane %v4421, 5
      %v4424 = vshll.u32 %v4151, 16
      %v4426 = vrot.slane %v4424, 6
      %v4427 = vor.u32 %v4423, %v4426
      %v4428 = vrot.slane %v4427, 4
      %v4430 = vshrl.u32 %v4361, 16
      %v4432 = vrot.slane %v4430, 5
      %v4433 = vshll.u32 %v4361, 16
      %v4435 = vrot.slane %v4433, 6
      %v4436 = vor.u32 %v4432, %v4435
      %v4437 = vsel %vm825, %v4428, %v4436
      %v4439 = vshrl.u32 %v4152, 16
      %v4441 = vrot.slane %v4439, 5
      %v4442 = vshll.u32 %v4152, 16
      %v4444 = vrot.slane %v4442, 6
      %v4445 = vor.u32 %v4441, %v4444
      %v4446 = vrot.slane %v4445, 4
      %v4448 = vshrl.u32 %v4362, 16
      %v4450 = vrot.slane %v4448, 5
      %v4451 = vshll.u32 %v4362, 16
      %v4453 = vrot.slane %v4451, 6
      %v4454 = vor.u32 %v4450, %v4453
      %v4455 = vsel %vm825, %v4446, %v4454
      %v4457 = vshrl.u32 %v4153, 16
      %v4459 = vrot.slane %v4457, 5
      %v4460 = vshll.u32 %v4153, 16
      %v4462 = vrot.slane %v4460, 6
      %v4463 = vor.u32 %v4459, %v4462
      %v4464 = vrot.slane %v4463, 4
      %v4466 = vshrl.u32 %v4363, 16
      %v4468 = vrot.slane %v4466, 5
      %v4469 = vshll.u32 %v4363, 16
      %v4471 = vrot.slane %v4469, 6
      %v4472 = vor.u32 %v4468, %v4471
      %v4473 = vsel %vm825, %v4464, %v4472
      %v4475 = vshrl.u32 %v4154, 16
      %v4477 = vrot.slane %v4475, 5
      %v4478 = vshll.u32 %v4154, 16
      %v4480 = vrot.slane %v4478, 6
      %v4481 = vor.u32 %v4477, %v4480
      %v4482 = vrot.slane %v4481, 4
      %v4484 = vshrl.u32 %v4364, 16
      %v4486 = vrot.slane %v4484, 5
      %v4487 = vshll.u32 %v4364, 16
      %v4489 = vrot.slane %v4487, 6
      %v4490 = vor.u32 %v4486, %v4489
      %v4491 = vsel %vm825, %v4482, %v4490
      %v4493 = vshrl.u32 %v4155, 16
      %v4495 = vrot.slane %v4493, 5
      %v4496 = vshll.u32 %v4155, 16
      %v4498 = vrot.slane %v4496, 6
      %v4499 = vor.u32 %v4495, %v4498
      %v4500 = vrot.slane %v4499, 4
      %v4502 = vshrl.u32 %v4365, 16
      %v4504 = vrot.slane %v4502, 5
      %v4505 = vshll.u32 %v4365, 16
      %v4507 = vrot.slane %v4505, 6
      %v4508 = vor.u32 %v4504, %v4507
      %v4509 = vsel %vm825, %v4500, %v4508
      %s4510 = scalar_lea.vmem %s1, 1152
      %v4511 = vld [vmem:[%s4510] sm:$0xf]
      %v4512 = vld [vmem:[%s4510 + $0x4] sm:$0xf]
      %v4513 = vld [vmem:[%s4510 + $0x8] sm:$0xf]
      %v4514 = vld [vmem:[%s4510 + $0xc] sm:$0xf]
      %v4515 = vld [vmem:[%s4510 + $0x10] sm:$0xf]
      %v4516 = vld [vmem:[%s4510 + $0x14] sm:$0xf]
      %v4517 = vld [vmem:[%s4510 + $0x18] sm:$0xf]
      %v4518 = vld [vmem:[%s4510 + $0x1c] sm:$0xf]
      %v4519 = vld [vmem:[%s4510 + $0x20] sm:$0xf]
      %v4520 = vld [vmem:[%s4510 + $0x24] sm:$0xf]
      %v4521 = vld [vmem:[%s4510 + $0x28] sm:$0xf]
      %v4522 = vld [vmem:[%s4510 + $0x2c] sm:$0xf]
      %v4523 = vld [vmem:[%s4510 + $0x30] sm:$0xf]
      %v4524 = vld [vmem:[%s4510 + $0x34] sm:$0xf]
      %v4525 = vld [vmem:[%s4510 + $0x38] sm:$0xf]
      %v4526 = vld [vmem:[%s4510 + $0x3c] sm:$0xf]
      %v4527 = vunpack.c.l.b16 %v4383
      %v4528 = vunpack.c.l.b16 %v4401
      %v4529 = vunpack.c.l.b16 %v4419
      %v4530 = vunpack.c.l.b16 %v4437
      %v4531 = vunpack.c.l.b16 %v4455
      %v4532 = vunpack.c.l.b16 %v4473
      %v4533 = vunpack.c.l.b16 %v4491
      %v4534 = vunpack.c.l.b16 %v4509
      %v4535 = vpack.c.b16 %v4528, %v4527
      %v4536 = vpack.c.b16 %v4530, %v4529
      %v4537 = vpack.c.b16 %v4532, %v4531
      %v4538 = vpack.c.b16 %v4534, %v4533
      %v4559 = vunpack.c.l.b16 %v4511
      %v4560 = vunpack.c.l.b16 %v4512
      %v4561 = vunpack.c.l.b16 %v4513
      %v4562 = vunpack.c.l.b16 %v4514
      %v4563 = vunpack.c.l.b16 %v4515
      %v4564 = vunpack.c.l.b16 %v4516
      %v4565 = vunpack.c.l.b16 %v4517
      %v4566 = vunpack.c.l.b16 %v4518
      %v4567 = vunpack.c.l.b16 %v4519
      %v4568 = vunpack.c.l.b16 %v4520
      %v4569 = vunpack.c.l.b16 %v4521
      %v4570 = vunpack.c.l.b16 %v4522
      %v4571 = vunpack.c.l.b16 %v4523
      %v4572 = vunpack.c.l.b16 %v4524
      %v4573 = vunpack.c.l.b16 %v4525
      %v4574 = vunpack.c.l.b16 %v4526
      %v4575 = vpack.c.b16 %v4560, %v4559
      %v4576 = vpack.c.b16 %v4562, %v4561
      %v4577 = vpack.c.b16 %v4564, %v4563
      %v4578 = vpack.c.b16 %v4566, %v4565
      %v4579 = vpack.c.b16 %v4568, %v4567
      %v4580 = vpack.c.b16 %v4570, %v4569
      %v4581 = vpack.c.b16 %v4572, %v4571
      %v4582 = vpack.c.b16 %v4574, %v4573
      %4591 = vmatprep.subr.bf16.mxu0 0
      %4592 = vmatpush1.bf16.msra.mxu0 %v4575
      %4593 = vmatprep.subr.bf16.mxu0 0
      %4594 = vmatpush1.bf16.msra.mxu0 %v4576
      %4595 = vmatprep.subr.bf16.mxu0 0
      %4596 = vmatpush1.bf16.msra.mxu0 %v4577
      %4597 = vmatprep.subr.bf16.mxu0 0
      %4598 = vmatpush1.bf16.msra.mxu0 %v4578
      %4599 = vmatprep.subr.bf16.mxu0 0
      %4600 = vmatpush1.bf16.msra.mxu0 %v4579
      %4601 = vmatprep.subr.bf16.mxu0 0
      %4602 = vmatpush1.bf16.msra.mxu0 %v4580
      %4603 = vmatprep.subr.bf16.mxu0 0
      %4604 = vmatpush1.bf16.msra.mxu0 %v4581
      %4605 = vmatprep.subr.bf16.mxu0 0
      %4606 = vmatpush1.bf16.msra.mxu0 %v4582
      %4607 = vmatprep.subr.bf16.mxu0 0
      %4608 = vmatpush1.bf16.msra.mxu0 0
      %4609 = vmatprep.subr.bf16.mxu0 0
      %4610 = vmatpush1.bf16.msra.mxu0 0
      %4611 = vmatprep.subr.bf16.mxu0 0
      %4612 = vmatpush1.bf16.msra.mxu0 0
      %4613 = vmatprep.subr.bf16.mxu0 0
      %4614 = vmatpush1.bf16.msra.mxu0 0
      %4615 = vmatprep.subr.bf16.mxu0 0
      %4616 = vmatpush1.bf16.msra.mxu0 0
      %4617 = vmatprep.subr.bf16.mxu0 0
      %4618 = vmatpush1.bf16.msra.mxu0 0
      %4619 = vmatprep.subr.bf16.mxu0 0
      %4620 = vmatpush1.bf16.msra.mxu0 0
      %4621 = vmatprep.subr.bf16.mxu0 0
      %4622 = vmatpush1.bf16.msra.mxu0 0
      %4623 = vmatprep.mubr.bf16.mxu0 0
      %4624 = vmatmul.mubr.bf16.gmra.mrb[0].mxu0 %v4535
      %v4625 = vpop.f32.mrb[0].mxu0
      %v4626 = vadd.f32 0.0, %v4625
      %v4627 = vpop.f32.mrb[0].mxu0
      %v4628 = vpop.f32.mrb[0].mxu0
      %v4629 = vadd.f32 0.0, %v4628
      %v4630 = vpop.f32.mrb[0].mxu0
      %4631 = vmatprep.mubr.bf16.mxu0 0
      %4632 = vmatmul.mubr.bf16.gmra.mrb[0].mxu0 %v4536
      %v4633 = vpop.f32.mrb[0].mxu0
      %v4634 = vadd.f32 0.0, %v4633
      %v4635 = vpop.f32.mrb[0].mxu0
      %v4636 = vpop.f32.mrb[0].mxu0
      %v4637 = vadd.f32 0.0, %v4636
      %v4638 = vpop.f32.mrb[0].mxu0
      %4639 = vmatprep.mubr.bf16.mxu0 0
      %4640 = vmatmul.mubr.bf16.gmra.mrb[0].mxu0 %v4537
      %v4641 = vpop.f32.mrb[0].mxu0
      %v4642 = vadd.f32 0.0, %v4641
      %v4643 = vpop.f32.mrb[0].mxu0
      %v4644 = vpop.f32.mrb[0].mxu0
      %v4645 = vadd.f32 0.0, %v4644
      %v4646 = vpop.f32.mrb[0].mxu0
      %4647 = vmatprep.mubr.bf16.mxu0 0
      %4648 = vmatmul.mubr.bf16.gmra.mrb[0].mxu0 %v4538
      %v4649 = vpop.f32.mrb[0].mxu0
      %v4650 = vadd.f32 0.0, %v4649
      %v4651 = vpop.f32.mrb[0].mxu0
      %v4652 = vpop.f32.mrb[0].mxu0
      %v4653 = vadd.f32 0.0, %v4652
      %v4654 = vpop.f32.mrb[0].mxu0
      %4655 = vdwg.mxu0
      %v4656 = vadd.f32 %v4350, %v4626
      %v4657 = vadd.f32 %v4351, %v4629
      %v4658 = vadd.f32 %v4352, %v4634
      %v4659 = vadd.f32 %v4353, %v4637
      %v4660 = vadd.f32 %v4354, %v4642
      %v4661 = vadd.f32 %v4355, %v4645
      %v4662 = vadd.f32 %v4356, %v4650
      %v4663 = vadd.f32 %v4357, %v4653
      %v4664 = vld [vmem:[%s3695] sm:$0xc]
      %v4665 = vld [vmem:[%s3695 + $0x8] sm:$0xc]
      %v4666 = vld [vmem:[%s3695 + $0x10] sm:$0xc]
      %v4667 = vld [vmem:[%s3695 + $0x18] sm:$0xc]
      %v4668 = vld [vmem:[%s3695 + $0x20] sm:$0xc]
      %v4669 = vld [vmem:[%s3695 + $0x28] sm:$0xc]
      %v4670 = vld [vmem:[%s3695 + $0x30] sm:$0xc]
      %v4671 = vld [vmem:[%s3695 + $0x38] sm:$0xc]
      %v4688 = vrot.slane %v4664, 6
      %v4689 = vrot.slane %v4688, 4
      %v4690 = vrot.slane %v4358, 6
      %v4691 = vsel %vm1150, %v4689, %v4690
      %v4692 = vrot.slane %v4665, 6
      %v4693 = vrot.slane %v4692, 4
      %v4694 = vrot.slane %v4359, 6
      %v4695 = vsel %vm1150, %v4693, %v4694
      %v4696 = vrot.slane %v4666, 6
      %v4697 = vrot.slane %v4696, 4
      %v4698 = vrot.slane %v4360, 6
      %v4699 = vsel %vm1150, %v4697, %v4698
      %v4700 = vrot.slane %v4667, 6
      %v4701 = vrot.slane %v4700, 4
      %v4702 = vrot.slane %v4361, 6
      %v4703 = vsel %vm1150, %v4701, %v4702
      %v4704 = vrot.slane %v4668, 6
      %v4705 = vrot.slane %v4704, 4
      %v4706 = vrot.slane %v4362, 6
      %v4707 = vsel %vm1150, %v4705, %v4706
      %v4708 = vrot.slane %v4669, 6
      %v4709 = vrot.slane %v4708, 4
      %v4710 = vrot.slane %v4363, 6
      %v4711 = vsel %vm1150, %v4709, %v4710
      %v4712 = vrot.slane %v4670, 6
      %v4713 = vrot.slane %v4712, 4
      %v4714 = vrot.slane %v4364, 6
      %v4715 = vsel %vm1150, %v4713, %v4714
      %v4716 = vrot.slane %v4671, 6
      %v4717 = vrot.slane %v4716, 4
      %v4718 = vrot.slane %v4365, 6
      %v4719 = vsel %vm1150, %v4717, %v4718
      %s4720 = scalar_lea.vmem %s1, 1216
      %v4721 = vld [vmem:[%s4720] sm:$0xf]
      %v4722 = vld [vmem:[%s4720 + $0x4] sm:$0xf]
      %v4723 = vld [vmem:[%s4720 + $0x8] sm:$0xf]
      %v4724 = vld [vmem:[%s4720 + $0xc] sm:$0xf]
      %v4725 = vld [vmem:[%s4720 + $0x10] sm:$0xf]
      %v4726 = vld [vmem:[%s4720 + $0x14] sm:$0xf]
      %v4727 = vld [vmem:[%s4720 + $0x18] sm:$0xf]
      %v4728 = vld [vmem:[%s4720 + $0x1c] sm:$0xf]
      %v4729 = vld [vmem:[%s4720 + $0x20] sm:$0xf]
      %v4730 = vld [vmem:[%s4720 + $0x24] sm:$0xf]
      %v4731 = vld [vmem:[%s4720 + $0x28] sm:$0xf]
      %v4732 = vld [vmem:[%s4720 + $0x2c] sm:$0xf]
      %v4733 = vld [vmem:[%s4720 + $0x30] sm:$0xf]
      %v4734 = vld [vmem:[%s4720 + $0x34] sm:$0xf]
      %v4735 = vld [vmem:[%s4720 + $0x38] sm:$0xf]
      %v4736 = vld [vmem:[%s4720 + $0x3c] sm:$0xf]
      %v4737 = vunpack.c.l.b16 %v4691
      %v4738 = vunpack.c.l.b16 %v4695
      %v4739 = vunpack.c.l.b16 %v4699
      %v4740 = vunpack.c.l.b16 %v4703
      %v4741 = vunpack.c.l.b16 %v4707
      %v4742 = vunpack.c.l.b16 %v4711
      %v4743 = vunpack.c.l.b16 %v4715
      %v4744 = vunpack.c.l.b16 %v4719
      %v4745 = vpack.c.b16 %v4738, %v4737
      %v4746 = vpack.c.b16 %v4740, %v4739
      %v4747 = vpack.c.b16 %v4742, %v4741
      %v4748 = vpack.c.b16 %v4744, %v4743
      %v4769 = vunpack.c.l.b16 %v4721
      %v4770 = vunpack.c.l.b16 %v4722
      %v4771 = vunpack.c.l.b16 %v4723
      %v4772 = vunpack.c.l.b16 %v4724
      %v4773 = vunpack.c.l.b16 %v4725
      %v4774 = vunpack.c.l.b16 %v4726
      %v4775 = vunpack.c.l.b16 %v4727
      %v4776 = vunpack.c.l.b16 %v4728
      %v4777 = vunpack.c.l.b16 %v4729
      %v4778 = vunpack.c.l.b16 %v4730
      %v4779 = vunpack.c.l.b16 %v4731
      %v4780 = vunpack.c.l.b16 %v4732
      %v4781 = vunpack.c.l.b16 %v4733
      %v4782 = vunpack.c.l.b16 %v4734
      %v4783 = vunpack.c.l.b16 %v4735
      %v4784 = vunpack.c.l.b16 %v4736
      %v4785 = vpack.c.b16 %v4770, %v4769
      %v4786 = vpack.c.b16 %v4772, %v4771
      %v4787 = vpack.c.b16 %v4774, %v4773
      %v4788 = vpack.c.b16 %v4776, %v4775
      %v4789 = vpack.c.b16 %v4778, %v4777
      %v4790 = vpack.c.b16 %v4780, %v4779
      %v4791 = vpack.c.b16 %v4782, %v4781
      %v4792 = vpack.c.b16 %v4784, %v4783
      %4801 = vmatprep.subr.bf16.mxu0 0
      %4802 = vmatpush1.bf16.msra.mxu0 %v4785
      %4803 = vmatprep.subr.bf16.mxu0 0
      %4804 = vmatpush1.bf16.msra.mxu0 %v4786
      %4805 = vmatprep.subr.bf16.mxu0 0
      %4806 = vmatpush1.bf16.msra.mxu0 %v4787
      %4807 = vmatprep.subr.bf16.mxu0 0
      %4808 = vmatpush1.bf16.msra.mxu0 %v4788
      %4809 = vmatprep.subr.bf16.mxu0 0
      %4810 = vmatpush1.bf16.msra.mxu0 %v4789
      %4811 = vmatprep.subr.bf16.mxu0 0
      %4812 = vmatpush1.bf16.msra.mxu0 %v4790
      %4813 = vmatprep.subr.bf16.mxu0 0
      %4814 = vmatpush1.bf16.msra.mxu0 %v4791
      %4815 = vmatprep.subr.bf16.mxu0 0
      %4816 = vmatpush1.bf16.msra.mxu0 %v4792
      %4817 = vmatprep.subr.bf16.mxu0 0
      %4818 = vmatpush1.bf16.msra.mxu0 0
      %4819 = vmatprep.subr.bf16.mxu0 0
      %4820 = vmatpush1.bf16.msra.mxu0 0
      %4821 = vmatprep.subr.bf16.mxu0 0
      %4822 = vmatpush1.bf16.msra.mxu0 0
      %4823 = vmatprep.subr.bf16.mxu0 0
      %4824 = vmatpush1.bf16.msra.mxu0 0
      %4825 = vmatprep.subr.bf16.mxu0 0
      %4826 = vmatpush1.bf16.msra.mxu0 0
      %4827 = vmatprep.subr.bf16.mxu0 0
      %4828 = vmatpush1.bf16.msra.mxu0 0
      %4829 = vmatprep.subr.bf16.mxu0 0
      %4830 = vmatpush1.bf16.msra.mxu0 0
      %4831 = vmatprep.subr.bf16.mxu0 0
      %4832 = vmatpush1.bf16.msra.mxu0 0
      %4833 = vmatprep.mubr.bf16.mxu0 0
      %4834 = vmatmul.mubr.bf16.gmra.mrb[0].mxu0 %v4745
      %v4835 = vpop.f32.mrb[0].mxu0
      %v4836 = vadd.f32 0.0, %v4835
      %v4837 = vpop.f32.mrb[0].mxu0
      %v4838 = vpop.f32.mrb[0].mxu0
      %v4839 = vadd.f32 0.0, %v4838
      %v4840 = vpop.f32.mrb[0].mxu0
      %4841 = vmatprep.mubr.bf16.mxu0 0
      %4842 = vmatmul.mubr.bf16.gmra.mrb[0].mxu0 %v4746
      %v4843 = vpop.f32.mrb[0].mxu0
      %v4844 = vadd.f32 0.0, %v4843
      %v4845 = vpop.f32.mrb[0].mxu0
      %v4846 = vpop.f32.mrb[0].mxu0
      %v4847 = vadd.f32 0.0, %v4846
      %v4848 = vpop.f32.mrb[0].mxu0
      %4849 = vmatprep.mubr.bf16.mxu0 0
      %4850 = vmatmul.mubr.bf16.gmra.mrb[0].mxu0 %v4747
      %v4851 = vpop.f32.mrb[0].mxu0
      %v4852 = vadd.f32 0.0, %v4851
      %v4853 = vpop.f32.mrb[0].mxu0
      %v4854 = vpop.f32.mrb[0].mxu0
      %v4855 = vadd.f32 0.0, %v4854
      %v4856 = vpop.f32.mrb[0].mxu0
      %4857 = vmatprep.mubr.bf16.mxu0 0
      %4858 = vmatmul.mubr.bf16.gmra.mrb[0].mxu0 %v4748
      %v4859 = vpop.f32.mrb[0].mxu0
      %v4860 = vadd.f32 0.0, %v4859
      %v4861 = vpop.f32.mrb[0].mxu0
      %v4862 = vpop.f32.mrb[0].mxu0
      %v4863 = vadd.f32 0.0, %v4862
      %v4864 = vpop.f32.mrb[0].mxu0
      %4865 = vdwg.mxu0
      %v4866 = vadd.f32 %v4656, %v4836
      %v4867 = vadd.f32 %v4657, %v4839
      %v4868 = vadd.f32 %v4658, %v4844
      %v4869 = vadd.f32 %v4659, %v4847
      %v4870 = vadd.f32 %v4660, %v4852
      %v4871 = vadd.f32 %v4661, %v4855
      %v4872 = vadd.f32 %v4662, %v4860
      %v4873 = vadd.f32 %v4663, %v4863
      %s4874 = scalar_lea.vmem %s165, 32
      %v4875 = vld [vmem:[%s4874] sm:$0xf]
      %v4876 = vld [vmem:[%s4874 + $0x8] sm:$0xf]
      %v4877 = vld [vmem:[%s4874 + $0x10] sm:$0xf]
      %v4878 = vld [vmem:[%s4874 + $0x18] sm:$0xf]
      %v4879 = vld [vmem:[%s4874 + $0x20] sm:$0xf]
      %v4880 = vld [vmem:[%s4874 + $0x28] sm:$0xf]
      %v4881 = vld [vmem:[%s4874 + $0x30] sm:$0xf]
      %v4882 = vld [vmem:[%s4874 + $0x38] sm:$0xf]
      %s4883 = scalar_lea.vmem %s1, 1280
      %v4884 = vld [vmem:[%s4883] sm:$0xf]
      %v4885 = vld [vmem:[%s4883 + $0x4] sm:$0xf]
      %v4886 = vld [vmem:[%s4883 + $0x8] sm:$0xf]
      %v4887 = vld [vmem:[%s4883 + $0xc] sm:$0xf]
      %v4888 = vld [vmem:[%s4883 + $0x10] sm:$0xf]
      %v4889 = vld [vmem:[%s4883 + $0x14] sm:$0xf]
      %v4890 = vld [vmem:[%s4883 + $0x18] sm:$0xf]
      %v4891 = vld [vmem:[%s4883 + $0x1c] sm:$0xf]
      %v4892 = vld [vmem:[%s4883 + $0x20] sm:$0xf]
      %v4893 = vld [vmem:[%s4883 + $0x24] sm:$0xf]
      %v4894 = vld [vmem:[%s4883 + $0x28] sm:$0xf]
      %v4895 = vld [vmem:[%s4883 + $0x2c] sm:$0xf]
      %v4896 = vld [vmem:[%s4883 + $0x30] sm:$0xf]
      %v4897 = vld [vmem:[%s4883 + $0x34] sm:$0xf]
      %v4898 = vld [vmem:[%s4883 + $0x38] sm:$0xf]
      %v4899 = vld [vmem:[%s4883 + $0x3c] sm:$0xf]
      %v4908 = vunpack.c.l.b16 %v4875
      %v4909 = vunpack.c.l.b16 %v4876
      %v4910 = vunpack.c.l.b16 %v4877
      %v4911 = vunpack.c.l.b16 %v4878
      %v4912 = vunpack.c.l.b16 %v4879
      %v4913 = vunpack.c.l.b16 %v4880
      %v4914 = vunpack.c.l.b16 %v4881
      %v4915 = vunpack.c.l.b16 %v4882
      %v4916 = vpack.c.b16 %v4909, %v4908
      %v4917 = vpack.c.b16 %v4911, %v4910
      %v4918 = vpack.c.b16 %v4913, %v4912
      %v4919 = vpack.c.b16 %v4915, %v4914
      %v4940 = vunpack.c.l.b16 %v4884
      %v4941 = vunpack.c.l.b16 %v4885
      %v4942 = vunpack.c.l.b16 %v4886
      %v4943 = vunpack.c.l.b16 %v4887
      %v4944 = vunpack.c.l.b16 %v4888
      %v4945 = vunpack.c.l.b16 %v4889
      %v4946 = vunpack.c.l.b16 %v4890
      %v4947 = vunpack.c.l.b16 %v4891
      %v4948 = vunpack.c.l.b16 %v4892
      %v4949 = vunpack.c.l.b16 %v4893
      %v4950 = vunpack.c.l.b16 %v4894
      %v4951 = vunpack.c.l.b16 %v4895
      %v4952 = vunpack.c.l.b16 %v4896
      %v4953 = vunpack.c.l.b16 %v4897
      %v4954 = vunpack.c.l.b16 %v4898
      %v4955 = vunpack.c.l.b16 %v4899
      %v4956 = vpack.c.b16 %v4941, %v4940
      %v4957 = vpack.c.b16 %v4943, %v4942
      %v4958 = vpack.c.b16 %v4945, %v4944
      %v4959 = vpack.c.b16 %v4947, %v4946
      %v4960 = vpack.c.b16 %v4949, %v4948
      %v4961 = vpack.c.b16 %v4951, %v4950
      %v4962 = vpack.c.b16 %v4953, %v4952
      %v4963 = vpack.c.b16 %v4955, %v4954
      %4972 = vmatprep.subr.bf16.mxu0 0
      %4973 = vmatpush1.bf16.msra.mxu0 %v4956
      %4974 = vmatprep.subr.bf16.mxu0 0
      %4975 = vmatpush1.bf16.msra.mxu0 %v4957
      %4976 = vmatprep.subr.bf16.mxu0 0
      %4977 = vmatpush1.bf16.msra.mxu0 %v4958
      %4978 = vmatprep.subr.bf16.mxu0 0
      %4979 = vmatpush1.bf16.msra.mxu0 %v4959
      %4980 = vmatprep.subr.bf16.mxu0 0
      %4981 = vmatpush1.bf16.msra.mxu0 %v4960
      %4982 = vmatprep.subr.bf16.mxu0 0
      %4983 = vmatpush1.bf16.msra.mxu0 %v4961
      %4984 = vmatprep.subr.bf16.mxu0 0
      %4985 = vmatpush1.bf16.msra.mxu0 %v4962
      %4986 = vmatprep.subr.bf16.mxu0 0
      %4987 = vmatpush1.bf16.msra.mxu0 %v4963
      %4988 = vmatprep.subr.bf16.mxu0 0
      %4989 = vmatpush1.bf16.msra.mxu0 0
      %4990 = vmatprep.subr.bf16.mxu0 0
      %4991 = vmatpush1.bf16.msra.mxu0 0
      %4992 = vmatprep.subr.bf16.mxu0 0
      %4993 = vmatpush1.bf16.msra.mxu0 0
      %4994 = vmatprep.subr.bf16.mxu0 0
      %4995 = vmatpush1.bf16.msra.mxu0 0
      %4996 = vmatprep.subr.bf16.mxu0 0
      %4997 = vmatpush1.bf16.msra.mxu0 0
      %4998 = vmatprep.subr.bf16.mxu0 0
      %4999 = vmatpush1.bf16.msra.mxu0 0
      %5000 = vmatprep.subr.bf16.mxu0 0
      %5001 = vmatpush1.bf16.msra.mxu0 0
      %5002 = vmatprep.subr.bf16.mxu0 0
      %5003 = vmatpush1.bf16.msra.mxu0 0
      %5004 = vmatprep.mubr.bf16.mxu0 0
      %5005 = vmatmul.mubr.bf16.gmra.mrb[0].mxu0 %v4916
      %v5006 = vpop.f32.mrb[0].mxu0
      %v5007 = vadd.f32 0.0, %v5006
      %v5008 = vpop.f32.mrb[0].mxu0
      %v5009 = vpop.f32.mrb[0].mxu0
      %v5010 = vadd.f32 0.0, %v5009
      %v5011 = vpop.f32.mrb[0].mxu0
      %5012 = vmatprep.mubr.bf16.mxu0 0
      %5013 = vmatmul.mubr.bf16.gmra.mrb[0].mxu0 %v4917
      %v5014 = vpop.f32.mrb[0].mxu0
      %v5015 = vadd.f32 0.0, %v5014
      %v5016 = vpop.f32.mrb[0].mxu0
      %v5017 = vpop.f32.mrb[0].mxu0
      %v5018 = vadd.f32 0.0, %v5017
      %v5019 = vpop.f32.mrb[0].mxu0
      %5020 = vmatprep.mubr.bf16.mxu0 0
      %5021 = vmatmul.mubr.bf16.gmra.mrb[0].mxu0 %v4918
      %v5022 = vpop.f32.mrb[0].mxu0
      %v5023 = vadd.f32 0.0, %v5022
      %v5024 = vpop.f32.mrb[0].mxu0
      %v5025 = vpop.f32.mrb[0].mxu0
      %v5026 = vadd.f32 0.0, %v5025
      %v5027 = vpop.f32.mrb[0].mxu0
      %5028 = vmatprep.mubr.bf16.mxu0 0
      %5029 = vmatmul.mubr.bf16.gmra.mrb[0].mxu0 %v4919
      %v5030 = vpop.f32.mrb[0].mxu0
      %v5031 = vadd.f32 0.0, %v5030
      %v5032 = vpop.f32.mrb[0].mxu0
      %v5033 = vpop.f32.mrb[0].mxu0
      %v5034 = vadd.f32 0.0, %v5033
      %v5035 = vpop.f32.mrb[0].mxu0
      %5036 = vdwg.mxu0
      %v5037 = vadd.f32 %v4866, %v5007
      %v5038 = vadd.f32 %v4867, %v5010
      %v5039 = vadd.f32 %v4868, %v5015
      %v5040 = vadd.f32 %v4869, %v5018
      %v5041 = vadd.f32 %v4870, %v5023
      %v5042 = vadd.f32 %v4871, %v5026
      %v5043 = vadd.f32 %v4872, %v5031
      %v5044 = vadd.f32 %v4873, %v5034
      %v5045 = vld [vmem:[%s4874] sm:$0xf]
      %v5046 = vld [vmem:[%s4874 + $0x4] sm:$0x1]
      %v5047 = vld [vmem:[%s4874 + $0x8] sm:$0xf]
      %v5048 = vld [vmem:[%s4874 + $0xc] sm:$0x1]
      %v5049 = vld [vmem:[%s4874 + $0x10] sm:$0xf]
      %v5050 = vld [vmem:[%s4874 + $0x14] sm:$0x1]
      %v5051 = vld [vmem:[%s4874 + $0x18] sm:$0xf]
      %v5052 = vld [vmem:[%s4874 + $0x1c] sm:$0x1]
      %v5053 = vld [vmem:[%s4874 + $0x20] sm:$0xf]
      %v5054 = vld [vmem:[%s4874 + $0x24] sm:$0x1]
      %v5055 = vld [vmem:[%s4874 + $0x28] sm:$0xf]
      %v5056 = vld [vmem:[%s4874 + $0x2c] sm:$0x1]
      %v5057 = vld [vmem:[%s4874 + $0x30] sm:$0xf]
      %v5058 = vld [vmem:[%s4874 + $0x34] sm:$0x1]
      %v5059 = vld [vmem:[%s4874 + $0x38] sm:$0xf]
      %v5060 = vld [vmem:[%s4874 + $0x3c] sm:$0x1]
      %v5062 = vshrl.u32 %v5045, 16
      %v5064 = vrot.slane %v5062, 4
      %v5065 = vshll.u32 %v5045, 16
      %v5067 = vrot.slane %v5065, 5
      %v5068 = vor.u32 %v5064, %v5067
      %v5069 = vrot.slane %v5068, 4
      %v5071 = vshll.u32 %v5046, 16
      %v5073 = vrot.slane %v5071, 5
      %v5074 = vsel %vm206, %v5069, %v5073
      %v5076 = vshrl.u32 %v5047, 16
      %v5078 = vrot.slane %v5076, 4
      %v5079 = vshll.u32 %v5047, 16
      %v5081 = vrot.slane %v5079, 5
      %v5082 = vor.u32 %v5078, %v5081
      %v5083 = vrot.slane %v5082, 4
      %v5085 = vshll.u32 %v5048, 16
      %v5087 = vrot.slane %v5085, 5
      %v5088 = vsel %vm206, %v5083, %v5087
      %v5090 = vshrl.u32 %v5049, 16
      %v5092 = vrot.slane %v5090, 4
      %v5093 = vshll.u32 %v5049, 16
      %v5095 = vrot.slane %v5093, 5
      %v5096 = vor.u32 %v5092, %v5095
      %v5097 = vrot.slane %v5096, 4
      %v5099 = vshll.u32 %v5050, 16
      %v5101 = vrot.slane %v5099, 5
      %v5102 = vsel %vm206, %v5097, %v5101
      %v5104 = vshrl.u32 %v5051, 16
      %v5106 = vrot.slane %v5104, 4
      %v5107 = vshll.u32 %v5051, 16
      %v5109 = vrot.slane %v5107, 5
      %v5110 = vor.u32 %v5106, %v5109
      %v5111 = vrot.slane %v5110, 4
      %v5113 = vshll.u32 %v5052, 16
      %v5115 = vrot.slane %v5113, 5
      %v5116 = vsel %vm206, %v5111, %v5115
      %v5118 = vshrl.u32 %v5053, 16
      %v5120 = vrot.slane %v5118, 4
      %v5121 = vshll.u32 %v5053, 16
      %v5123 = vrot.slane %v5121, 5
      %v5124 = vor.u32 %v5120, %v5123
      %v5125 = vrot.slane %v5124, 4
      %v5127 = vshll.u32 %v5054, 16
      %v5129 = vrot.slane %v5127, 5
      %v5130 = vsel %vm206, %v5125, %v5129
      %v5132 = vshrl.u32 %v5055, 16
      %v5134 = vrot.slane %v5132, 4
      %v5135 = vshll.u32 %v5055, 16
      %v5137 = vrot.slane %v5135, 5
      %v5138 = vor.u32 %v5134, %v5137
      %v5139 = vrot.slane %v5138, 4
      %v5141 = vshll.u32 %v5056, 16
      %v5143 = vrot.slane %v5141, 5
      %v5144 = vsel %vm206, %v5139, %v5143
      %v5146 = vshrl.u32 %v5057, 16
      %v5148 = vrot.slane %v5146, 4
      %v5149 = vshll.u32 %v5057, 16
      %v5151 = vrot.slane %v5149, 5
      %v5152 = vor.u32 %v5148, %v5151
      %v5153 = vrot.slane %v5152, 4
      %v5155 = vshll.u32 %v5058, 16
      %v5157 = vrot.slane %v5155, 5
      %v5158 = vsel %vm206, %v5153, %v5157
      %v5160 = vshrl.u32 %v5059, 16
      %v5162 = vrot.slane %v5160, 4
      %v5163 = vshll.u32 %v5059, 16
      %v5165 = vrot.slane %v5163, 5
      %v5166 = vor.u32 %v5162, %v5165
      %v5167 = vrot.slane %v5166, 4
      %v5169 = vshll.u32 %v5060, 16
      %v5171 = vrot.slane %v5169, 5
      %v5172 = vsel %vm206, %v5167, %v5171
      %s5173 = scalar_lea.vmem %s1, 1344
      %v5174 = vld [vmem:[%s5173] sm:$0xf]
      %v5175 = vld [vmem:[%s5173 + $0x4] sm:$0xf]
      %v5176 = vld [vmem:[%s5173 + $0x8] sm:$0xf]
      %v5177 = vld [vmem:[%s5173 + $0xc] sm:$0xf]
      %v5178 = vld [vmem:[%s5173 + $0x10] sm:$0xf]
      %v5179 = vld [vmem:[%s5173 + $0x14] sm:$0xf]
      %v5180 = vld [vmem:[%s5173 + $0x18] sm:$0xf]
      %v5181 = vld [vmem:[%s5173 + $0x1c] sm:$0xf]
      %v5182 = vld [vmem:[%s5173 + $0x20] sm:$0xf]
      %v5183 = vld [vmem:[%s5173 + $0x24] sm:$0xf]
      %v5184 = vld [vmem:[%s5173 + $0x28] sm:$0xf]
      %v5185 = vld [vmem:[%s5173 + $0x2c] sm:$0xf]
      %v5186 = vld [vmem:[%s5173 + $0x30] sm:$0xf]
      %v5187 = vld [vmem:[%s5173 + $0x34] sm:$0xf]
      %v5188 = vld [vmem:[%s5173 + $0x38] sm:$0xf]
      %v5189 = vld [vmem:[%s5173 + $0x3c] sm:$0xf]
      %v5190 = vunpack.c.l.b16 %v5074
      %v5191 = vunpack.c.l.b16 %v5088
      %v5192 = vunpack.c.l.b16 %v5102
      %v5193 = vunpack.c.l.b16 %v5116
      %v5194 = vunpack.c.l.b16 %v5130
      %v5195 = vunpack.c.l.b16 %v5144
      %v5196 = vunpack.c.l.b16 %v5158
      %v5197 = vunpack.c.l.b16 %v5172
      %v5198 = vpack.c.b16 %v5191, %v5190
      %v5199 = vpack.c.b16 %v5193, %v5192
      %v5200 = vpack.c.b16 %v5195, %v5194
      %v5201 = vpack.c.b16 %v5197, %v5196
      %v5222 = vunpack.c.l.b16 %v5174
      %v5223 = vunpack.c.l.b16 %v5175
      %v5224 = vunpack.c.l.b16 %v5176
      %v5225 = vunpack.c.l.b16 %v5177
      %v5226 = vunpack.c.l.b16 %v5178
      %v5227 = vunpack.c.l.b16 %v5179
      %v5228 = vunpack.c.l.b16 %v5180
      %v5229 = vunpack.c.l.b16 %v5181
      %v5230 = vunpack.c.l.b16 %v5182
      %v5231 = vunpack.c.l.b16 %v5183
      %v5232 = vunpack.c.l.b16 %v5184
      %v5233 = vunpack.c.l.b16 %v5185
      %v5234 = vunpack.c.l.b16 %v5186
      %v5235 = vunpack.c.l.b16 %v5187
      %v5236 = vunpack.c.l.b16 %v5188
      %v5237 = vunpack.c.l.b16 %v5189
      %v5238 = vpack.c.b16 %v5223, %v5222
      %v5239 = vpack.c.b16 %v5225, %v5224
      %v5240 = vpack.c.b16 %v5227, %v5226
      %v5241 = vpack.c.b16 %v5229, %v5228
      %v5242 = vpack.c.b16 %v5231, %v5230
      %v5243 = vpack.c.b16 %v5233, %v5232
      %v5244 = vpack.c.b16 %v5235, %v5234
      %v5245 = vpack.c.b16 %v5237, %v5236
      %5254 = vmatprep.subr.bf16.mxu0 0
      %5255 = vmatpush1.bf16.msra.mxu0 %v5238
      %5256 = vmatprep.subr.bf16.mxu0 0
      %5257 = vmatpush1.bf16.msra.mxu0 %v5239
      %5258 = vmatprep.subr.bf16.mxu0 0
      %5259 = vmatpush1.bf16.msra.mxu0 %v5240
      %5260 = vmatprep.subr.bf16.mxu0 0
      %5261 = vmatpush1.bf16.msra.mxu0 %v5241
      %5262 = vmatprep.subr.bf16.mxu0 0
      %5263 = vmatpush1.bf16.msra.mxu0 %v5242
      %5264 = vmatprep.subr.bf16.mxu0 0
      %5265 = vmatpush1.bf16.msra.mxu0 %v5243
      %5266 = vmatprep.subr.bf16.mxu0 0
      %5267 = vmatpush1.bf16.msra.mxu0 %v5244
      %5268 = vmatprep.subr.bf16.mxu0 0
      %5269 = vmatpush1.bf16.msra.mxu0 %v5245
      %5270 = vmatprep.subr.bf16.mxu0 0
      %5271 = vmatpush1.bf16.msra.mxu0 0
      %5272 = vmatprep.subr.bf16.mxu0 0
      %5273 = vmatpush1.bf16.msra.mxu0 0
      %5274 = vmatprep.subr.bf16.mxu0 0
      %5275 = vmatpush1.bf16.msra.mxu0 0
      %5276 = vmatprep.subr.bf16.mxu0 0
      %5277 = vmatpush1.bf16.msra.mxu0 0
      %5278 = vmatprep.subr.bf16.mxu0 0
      %5279 = vmatpush1.bf16.msra.mxu0 0
      %5280 = vmatprep.subr.bf16.mxu0 0
      %5281 = vmatpush1.bf16.msra.mxu0 0
      %5282 = vmatprep.subr.bf16.mxu0 0
      %5283 = vmatpush1.bf16.msra.mxu0 0
      %5284 = vmatprep.subr.bf16.mxu0 0
      %5285 = vmatpush1.bf16.msra.mxu0 0
      %5286 = vmatprep.mubr.bf16.mxu0 0
      %5287 = vmatmul.mubr.bf16.gmra.mrb[0].mxu0 %v5198
      %v5288 = vpop.f32.mrb[0].mxu0
      %v5289 = vadd.f32 0.0, %v5288
      %v5290 = vpop.f32.mrb[0].mxu0
      %v5291 = vpop.f32.mrb[0].mxu0
      %v5292 = vadd.f32 0.0, %v5291
      %v5293 = vpop.f32.mrb[0].mxu0
      %5294 = vmatprep.mubr.bf16.mxu0 0
      %5295 = vmatmul.mubr.bf16.gmra.mrb[0].mxu0 %v5199
      %v5296 = vpop.f32.mrb[0].mxu0
      %v5297 = vadd.f32 0.0, %v5296
      %v5298 = vpop.f32.mrb[0].mxu0
      %v5299 = vpop.f32.mrb[0].mxu0
      %v5300 = vadd.f32 0.0, %v5299
      %v5301 = vpop.f32.mrb[0].mxu0
      %5302 = vmatprep.mubr.bf16.mxu0 0
      %5303 = vmatmul.mubr.bf16.gmra.mrb[0].mxu0 %v5200
      %v5304 = vpop.f32.mrb[0].mxu0
      %v5305 = vadd.f32 0.0, %v5304
      %v5306 = vpop.f32.mrb[0].mxu0
      %v5307 = vpop.f32.mrb[0].mxu0
      %v5308 = vadd.f32 0.0, %v5307
      %v5309 = vpop.f32.mrb[0].mxu0
      %5310 = vmatprep.mubr.bf16.mxu0 0
      %5311 = vmatmul.mubr.bf16.gmra.mrb[0].mxu0 %v5201
      %v5312 = vpop.f32.mrb[0].mxu0
      %v5313 = vadd.f32 0.0, %v5312
      %v5314 = vpop.f32.mrb[0].mxu0
      %v5315 = vpop.f32.mrb[0].mxu0
      %v5316 = vadd.f32 0.0, %v5315
      %v5317 = vpop.f32.mrb[0].mxu0
      %5318 = vdwg.mxu0
      %v5319 = vadd.f32 %v5037, %v5289
      %v5320 = vadd.f32 %v5038, %v5292
      %v5321 = vadd.f32 %v5039, %v5297
      %v5322 = vadd.f32 %v5040, %v5300
      %v5323 = vadd.f32 %v5041, %v5305
      %v5324 = vadd.f32 %v5042, %v5308
      %v5325 = vadd.f32 %v5043, %v5313
      %v5326 = vadd.f32 %v5044, %v5316
      %v5327 = vld [vmem:[%s4874] sm:$0xe]
      %v5328 = vld [vmem:[%s4874 + $0x8] sm:$0xe]
      %v5329 = vld [vmem:[%s4874 + $0x10] sm:$0xe]
      %v5330 = vld [vmem:[%s4874 + $0x18] sm:$0xe]
      %v5331 = vld [vmem:[%s4874 + $0x20] sm:$0xe]
      %v5332 = vld [vmem:[%s4874 + $0x28] sm:$0xe]
      %v5333 = vld [vmem:[%s4874 + $0x30] sm:$0xe]
      %v5334 = vld [vmem:[%s4874 + $0x38] sm:$0xe]
      %v5351 = vrot.slane %v5327, 5
      %v5352 = vrot.slane %v5351, 4
      %v5353 = vrot.slane %v5046, 5
      %v5354 = vsel %vm628, %v5352, %v5353
      %v5355 = vrot.slane %v5328, 5
      %v5356 = vrot.slane %v5355, 4
      %v5357 = vrot.slane %v5048, 5
      %v5358 = vsel %vm628, %v5356, %v5357
      %v5359 = vrot.slane %v5329, 5
      %v5360 = vrot.slane %v5359, 4
      %v5361 = vrot.slane %v5050, 5
      %v5362 = vsel %vm628, %v5360, %v5361
      %v5363 = vrot.slane %v5330, 5
      %v5364 = vrot.slane %v5363, 4
      %v5365 = vrot.slane %v5052, 5
      %v5366 = vsel %vm628, %v5364, %v5365
      %v5367 = vrot.slane %v5331, 5
      %v5368 = vrot.slane %v5367, 4
      %v5369 = vrot.slane %v5054, 5
      %v5370 = vsel %vm628, %v5368, %v5369
      %v5371 = vrot.slane %v5332, 5
      %v5372 = vrot.slane %v5371, 4
      %v5373 = vrot.slane %v5056, 5
      %v5374 = vsel %vm628, %v5372, %v5373
      %v5375 = vrot.slane %v5333, 5
      %v5376 = vrot.slane %v5375, 4
      %v5377 = vrot.slane %v5058, 5
      %v5378 = vsel %vm628, %v5376, %v5377
      %v5379 = vrot.slane %v5334, 5
      %v5380 = vrot.slane %v5379, 4
      %v5381 = vrot.slane %v5060, 5
      %v5382 = vsel %vm628, %v5380, %v5381
      %s5383 = scalar_lea.vmem %s1, 1408
      %v5384 = vld [vmem:[%s5383] sm:$0xf]
      %v5385 = vld [vmem:[%s5383 + $0x4] sm:$0xf]
      %v5386 = vld [vmem:[%s5383 + $0x8] sm:$0xf]
      %v5387 = vld [vmem:[%s5383 + $0xc] sm:$0xf]
      %v5388 = vld [vmem:[%s5383 + $0x10] sm:$0xf]
      %v5389 = vld [vmem:[%s5383 + $0x14] sm:$0xf]
      %v5390 = vld [vmem:[%s5383 + $0x18] sm:$0xf]
      %v5391 = vld [vmem:[%s5383 + $0x1c] sm:$0xf]
      %v5392 = vld [vmem:[%s5383 + $0x20] sm:$0xf]
      %v5393 = vld [vmem:[%s5383 + $0x24] sm:$0xf]
      %v5394 = vld [vmem:[%s5383 + $0x28] sm:$0xf]
      %v5395 = vld [vmem:[%s5383 + $0x2c] sm:$0xf]
      %v5396 = vld [vmem:[%s5383 + $0x30] sm:$0xf]
      %v5397 = vld [vmem:[%s5383 + $0x34] sm:$0xf]
      %v5398 = vld [vmem:[%s5383 + $0x38] sm:$0xf]
      %v5399 = vld [vmem:[%s5383 + $0x3c] sm:$0xf]
      %v5400 = vunpack.c.l.b16 %v5354
      %v5401 = vunpack.c.l.b16 %v5358
      %v5402 = vunpack.c.l.b16 %v5362
      %v5403 = vunpack.c.l.b16 %v5366
      %v5404 = vunpack.c.l.b16 %v5370
      %v5405 = vunpack.c.l.b16 %v5374
      %v5406 = vunpack.c.l.b16 %v5378
      %v5407 = vunpack.c.l.b16 %v5382
      %v5408 = vpack.c.b16 %v5401, %v5400
      %v5409 = vpack.c.b16 %v5403, %v5402
      %v5410 = vpack.c.b16 %v5405, %v5404
      %v5411 = vpack.c.b16 %v5407, %v5406
      %v5432 = vunpack.c.l.b16 %v5384
      %v5433 = vunpack.c.l.b16 %v5385
      %v5434 = vunpack.c.l.b16 %v5386
      %v5435 = vunpack.c.l.b16 %v5387
      %v5436 = vunpack.c.l.b16 %v5388
      %v5437 = vunpack.c.l.b16 %v5389
      %v5438 = vunpack.c.l.b16 %v5390
      %v5439 = vunpack.c.l.b16 %v5391
      %v5440 = vunpack.c.l.b16 %v5392
      %v5441 = vunpack.c.l.b16 %v5393
      %v5442 = vunpack.c.l.b16 %v5394
      %v5443 = vunpack.c.l.b16 %v5395
      %v5444 = vunpack.c.l.b16 %v5396
      %v5445 = vunpack.c.l.b16 %v5397
      %v5446 = vunpack.c.l.b16 %v5398
      %v5447 = vunpack.c.l.b16 %v5399
      %v5448 = vpack.c.b16 %v5433, %v5432
      %v5449 = vpack.c.b16 %v5435, %v5434
      %v5450 = vpack.c.b16 %v5437, %v5436
      %v5451 = vpack.c.b16 %v5439, %v5438
      %v5452 = vpack.c.b16 %v5441, %v5440
      %v5453 = vpack.c.b16 %v5443, %v5442
      %v5454 = vpack.c.b16 %v5445, %v5444
      %v5455 = vpack.c.b16 %v5447, %v5446
      %5464 = vmatprep.subr.bf16.mxu0 0
      %5465 = vmatpush1.bf16.msra.mxu0 %v5448
      %5466 = vmatprep.subr.bf16.mxu0 0
      %5467 = vmatpush1.bf16.msra.mxu0 %v5449
      %5468 = vmatprep.subr.bf16.mxu0 0
      %5469 = vmatpush1.bf16.msra.mxu0 %v5450
      %5470 = vmatprep.subr.bf16.mxu0 0
      %5471 = vmatpush1.bf16.msra.mxu0 %v5451
      %5472 = vmatprep.subr.bf16.mxu0 0
      %5473 = vmatpush1.bf16.msra.mxu0 %v5452
      %5474 = vmatprep.subr.bf16.mxu0 0
      %5475 = vmatpush1.bf16.msra.mxu0 %v5453
      %5476 = vmatprep.subr.bf16.mxu0 0
      %5477 = vmatpush1.bf16.msra.mxu0 %v5454
      %5478 = vmatprep.subr.bf16.mxu0 0
      %5479 = vmatpush1.bf16.msra.mxu0 %v5455
      %5480 = vmatprep.subr.bf16.mxu0 0
      %5481 = vmatpush1.bf16.msra.mxu0 0
      %5482 = vmatprep.subr.bf16.mxu0 0
      %5483 = vmatpush1.bf16.msra.mxu0 0
      %5484 = vmatprep.subr.bf16.mxu0 0
      %5485 = vmatpush1.bf16.msra.mxu0 0
      %5486 = vmatprep.subr.bf16.mxu0 0
      %5487 = vmatpush1.bf16.msra.mxu0 0
      %5488 = vmatprep.subr.bf16.mxu0 0
      %5489 = vmatpush1.bf16.msra.mxu0 0
      %5490 = vmatprep.subr.bf16.mxu0 0
      %5491 = vmatpush1.bf16.msra.mxu0 0
      %5492 = vmatprep.subr.bf16.mxu0 0
      %5493 = vmatpush1.bf16.msra.mxu0 0
      %5494 = vmatprep.subr.bf16.mxu0 0
      %5495 = vmatpush1.bf16.msra.mxu0 0
      %5496 = vmatprep.mubr.bf16.mxu0 0
      %5497 = vmatmul.mubr.bf16.gmra.mrb[0].mxu0 %v5408
      %v5498 = vpop.f32.mrb[0].mxu0
      %v5499 = vadd.f32 0.0, %v5498
      %v5500 = vpop.f32.mrb[0].mxu0
      %v5501 = vpop.f32.mrb[0].mxu0
      %v5502 = vadd.f32 0.0, %v5501
      %v5503 = vpop.f32.mrb[0].mxu0
      %5504 = vmatprep.mubr.bf16.mxu0 0
      %5505 = vmatmul.mubr.bf16.gmra.mrb[0].mxu0 %v5409
      %v5506 = vpop.f32.mrb[0].mxu0
      %v5507 = vadd.f32 0.0, %v5506
      %v5508 = vpop.f32.mrb[0].mxu0
      %v5509 = vpop.f32.mrb[0].mxu0
      %v5510 = vadd.f32 0.0, %v5509
      %v5511 = vpop.f32.mrb[0].mxu0
      %5512 = vmatprep.mubr.bf16.mxu0 0
      %5513 = vmatmul.mubr.bf16.gmra.mrb[0].mxu0 %v5410
      %v5514 = vpop.f32.mrb[0].mxu0
      %v5515 = vadd.f32 0.0, %v5514
      %v5516 = vpop.f32.mrb[0].mxu0
      %v5517 = vpop.f32.mrb[0].mxu0
      %v5518 = vadd.f32 0.0, %v5517
      %v5519 = vpop.f32.mrb[0].mxu0
      %5520 = vmatprep.mubr.bf16.mxu0 0
      %5521 = vmatmul.mubr.bf16.gmra.mrb[0].mxu0 %v5411
      %v5522 = vpop.f32.mrb[0].mxu0
      %v5523 = vadd.f32 0.0, %v5522
      %v5524 = vpop.f32.mrb[0].mxu0
      %v5525 = vpop.f32.mrb[0].mxu0
      %v5526 = vadd.f32 0.0, %v5525
      %v5527 = vpop.f32.mrb[0].mxu0
      %5528 = vdwg.mxu0
      %v5529 = vadd.f32 %v5319, %v5499
      %v5530 = vadd.f32 %v5320, %v5502
      %v5531 = vadd.f32 %v5321, %v5507
      %v5532 = vadd.f32 %v5322, %v5510
      %v5533 = vadd.f32 %v5323, %v5515
      %v5534 = vadd.f32 %v5324, %v5518
      %v5535 = vadd.f32 %v5325, %v5523
      %v5536 = vadd.f32 %v5326, %v5526
      %v5537 = vld [vmem:[%s4874 + $0x4] sm:$0x3]
      %v5538 = vld [vmem:[%s4874 + $0xc] sm:$0x3]
      %v5539 = vld [vmem:[%s4874 + $0x14] sm:$0x3]
      %v5540 = vld [vmem:[%s4874 + $0x1c] sm:$0x3]
      %v5541 = vld [vmem:[%s4874 + $0x24] sm:$0x3]
      %v5542 = vld [vmem:[%s4874 + $0x2c] sm:$0x3]
      %v5543 = vld [vmem:[%s4874 + $0x34] sm:$0x3]
      %v5544 = vld [vmem:[%s4874 + $0x3c] sm:$0x3]
      %v5546 = vshrl.u32 %v5327, 16
      %v5548 = vrot.slane %v5546, 5
      %v5549 = vshll.u32 %v5327, 16
      %v5551 = vrot.slane %v5549, 6
      %v5552 = vor.u32 %v5548, %v5551
      %v5553 = vrot.slane %v5552, 4
      %v5555 = vshrl.u32 %v5537, 16
      %v5557 = vrot.slane %v5555, 5
      %v5558 = vshll.u32 %v5537, 16
      %v5560 = vrot.slane %v5558, 6
      %v5561 = vor.u32 %v5557, %v5560
      %v5562 = vsel %vm825, %v5553, %v5561
      %v5564 = vshrl.u32 %v5328, 16
      %v5566 = vrot.slane %v5564, 5
      %v5567 = vshll.u32 %v5328, 16
      %v5569 = vrot.slane %v5567, 6
      %v5570 = vor.u32 %v5566, %v5569
      %v5571 = vrot.slane %v5570, 4
      %v5573 = vshrl.u32 %v5538, 16
      %v5575 = vrot.slane %v5573, 5
      %v5576 = vshll.u32 %v5538, 16
      %v5578 = vrot.slane %v5576, 6
      %v5579 = vor.u32 %v5575, %v5578
      %v5580 = vsel %vm825, %v5571, %v5579
      %v5582 = vshrl.u32 %v5329, 16
      %v5584 = vrot.slane %v5582, 5
      %v5585 = vshll.u32 %v5329, 16
      %v5587 = vrot.slane %v5585, 6
      %v5588 = vor.u32 %v5584, %v5587
      %v5589 = vrot.slane %v5588, 4
      %v5591 = vshrl.u32 %v5539, 16
      %v5593 = vrot.slane %v5591, 5
      %v5594 = vshll.u32 %v5539, 16
      %v5596 = vrot.slane %v5594, 6
      %v5597 = vor.u32 %v5593, %v5596
      %v5598 = vsel %vm825, %v5589, %v5597
      %v5600 = vshrl.u32 %v5330, 16
      %v5602 = vrot.slane %v5600, 5
      %v5603 = vshll.u32 %v5330, 16
      %v5605 = vrot.slane %v5603, 6
      %v5606 = vor.u32 %v5602, %v5605
      %v5607 = vrot.slane %v5606, 4
      %v5609 = vshrl.u32 %v5540, 16
      %v5611 = vrot.slane %v5609, 5
      %v5612 = vshll.u32 %v5540, 16
      %v5614 = vrot.slane %v5612, 6
      %v5615 = vor.u32 %v5611, %v5614
      %v5616 = vsel %vm825, %v5607, %v5615
      %v5618 = vshrl.u32 %v5331, 16
      %v5620 = vrot.slane %v5618, 5
      %v5621 = vshll.u32 %v5331, 16
      %v5623 = vrot.slane %v5621, 6
      %v5624 = vor.u32 %v5620, %v5623
      %v5625 = vrot.slane %v5624, 4
      %v5627 = vshrl.u32 %v5541, 16
      %v5629 = vrot.slane %v5627, 5
      %v5630 = vshll.u32 %v5541, 16
      %v5632 = vrot.slane %v5630, 6
      %v5633 = vor.u32 %v5629, %v5632
      %v5634 = vsel %vm825, %v5625, %v5633
      %v5636 = vshrl.u32 %v5332, 16
      %v5638 = vrot.slane %v5636, 5
      %v5639 = vshll.u32 %v5332, 16
      %v5641 = vrot.slane %v5639, 6
      %v5642 = vor.u32 %v5638, %v5641
      %v5643 = vrot.slane %v5642, 4
      %v5645 = vshrl.u32 %v5542, 16
      %v5647 = vrot.slane %v5645, 5
      %v5648 = vshll.u32 %v5542, 16
      %v5650 = vrot.slane %v5648, 6
      %v5651 = vor.u32 %v5647, %v5650
      %v5652 = vsel %vm825, %v5643, %v5651
      %v5654 = vshrl.u32 %v5333, 16
      %v5656 = vrot.slane %v5654, 5
      %v5657 = vshll.u32 %v5333, 16
      %v5659 = vrot.slane %v5657, 6
      %v5660 = vor.u32 %v5656, %v5659
      %v5661 = vrot.slane %v5660, 4
      %v5663 = vshrl.u32 %v5543, 16
      %v5665 = vrot.slane %v5663, 5
      %v5666 = vshll.u32 %v5543, 16
      %v5668 = vrot.slane %v5666, 6
      %v5669 = vor.u32 %v5665, %v5668
      %v5670 = vsel %vm825, %v5661, %v5669
      %v5672 = vshrl.u32 %v5334, 16
      %v5674 = vrot.slane %v5672, 5
      %v5675 = vshll.u32 %v5334, 16
      %v5677 = vrot.slane %v5675, 6
      %v5678 = vor.u32 %v5674, %v5677
      %v5679 = vrot.slane %v5678, 4
      %v5681 = vshrl.u32 %v5544, 16
      %v5683 = vrot.slane %v5681, 5
      %v5684 = vshll.u32 %v5544, 16
      %v5686 = vrot.slane %v5684, 6
      %v5687 = vor.u32 %v5683, %v5686
      %v5688 = vsel %vm825, %v5679, %v5687
      %s5689 = scalar_lea.vmem %s1, 1472
      %v5690 = vld [vmem:[%s5689] sm:$0xf]
      %v5691 = vld [vmem:[%s5689 + $0x4] sm:$0xf]
      %v5692 = vld [vmem:[%s5689 + $0x8] sm:$0xf]
      %v5693 = vld [vmem:[%s5689 + $0xc] sm:$0xf]
      %v5694 = vld [vmem:[%s5689 + $0x10] sm:$0xf]
      %v5695 = vld [vmem:[%s5689 + $0x14] sm:$0xf]
      %v5696 = vld [vmem:[%s5689 + $0x18] sm:$0xf]
      %v5697 = vld [vmem:[%s5689 + $0x1c] sm:$0xf]
      %v5698 = vld [vmem:[%s5689 + $0x20] sm:$0xf]
      %v5699 = vld [vmem:[%s5689 + $0x24] sm:$0xf]
      %v5700 = vld [vmem:[%s5689 + $0x28] sm:$0xf]
      %v5701 = vld [vmem:[%s5689 + $0x2c] sm:$0xf]
      %v5702 = vld [vmem:[%s5689 + $0x30] sm:$0xf]
      %v5703 = vld [vmem:[%s5689 + $0x34] sm:$0xf]
      %v5704 = vld [vmem:[%s5689 + $0x38] sm:$0xf]
      %v5705 = vld [vmem:[%s5689 + $0x3c] sm:$0xf]
      %v5706 = vunpack.c.l.b16 %v5562
      %v5707 = vunpack.c.l.b16 %v5580
      %v5708 = vunpack.c.l.b16 %v5598
      %v5709 = vunpack.c.l.b16 %v5616
      %v5710 = vunpack.c.l.b16 %v5634
      %v5711 = vunpack.c.l.b16 %v5652
      %v5712 = vunpack.c.l.b16 %v5670
      %v5713 = vunpack.c.l.b16 %v5688
      %v5714 = vpack.c.b16 %v5707, %v5706
      %v5715 = vpack.c.b16 %v5709, %v5708
      %v5716 = vpack.c.b16 %v5711, %v5710
      %v5717 = vpack.c.b16 %v5713, %v5712
      %v5738 = vunpack.c.l.b16 %v5690
      %v5739 = vunpack.c.l.b16 %v5691
      %v5740 = vunpack.c.l.b16 %v5692
      %v5741 = vunpack.c.l.b16 %v5693
      %v5742 = vunpack.c.l.b16 %v5694
      %v5743 = vunpack.c.l.b16 %v5695
      %v5744 = vunpack.c.l.b16 %v5696
      %v5745 = vunpack.c.l.b16 %v5697
      %v5746 = vunpack.c.l.b16 %v5698
      %v5747 = vunpack.c.l.b16 %v5699
      %v5748 = vunpack.c.l.b16 %v5700
      %v5749 = vunpack.c.l.b16 %v5701
      %v5750 = vunpack.c.l.b16 %v5702
      %v5751 = vunpack.c.l.b16 %v5703
      %v5752 = vunpack.c.l.b16 %v5704
      %v5753 = vunpack.c.l.b16 %v5705
      %v5754 = vpack.c.b16 %v5739, %v5738
      %v5755 = vpack.c.b16 %v5741, %v5740
      %v5756 = vpack.c.b16 %v5743, %v5742
      %v5757 = vpack.c.b16 %v5745, %v5744
      %v5758 = vpack.c.b16 %v5747, %v5746
      %v5759 = vpack.c.b16 %v5749, %v5748
      %v5760 = vpack.c.b16 %v5751, %v5750
      %v5761 = vpack.c.b16 %v5753, %v5752
      %5770 = vmatprep.subr.bf16.mxu0 0
      %5771 = vmatpush1.bf16.msra.mxu0 %v5754
      %5772 = vmatprep.subr.bf16.mxu0 0
      %5773 = vmatpush1.bf16.msra.mxu0 %v5755
      %5774 = vmatprep.subr.bf16.mxu0 0
      %5775 = vmatpush1.bf16.msra.mxu0 %v5756
      %5776 = vmatprep.subr.bf16.mxu0 0
      %5777 = vmatpush1.bf16.msra.mxu0 %v5757
      %5778 = vmatprep.subr.bf16.mxu0 0
      %5779 = vmatpush1.bf16.msra.mxu0 %v5758
      %5780 = vmatprep.subr.bf16.mxu0 0
      %5781 = vmatpush1.bf16.msra.mxu0 %v5759
      %5782 = vmatprep.subr.bf16.mxu0 0
      %5783 = vmatpush1.bf16.msra.mxu0 %v5760
      %5784 = vmatprep.subr.bf16.mxu0 0
      %5785 = vmatpush1.bf16.msra.mxu0 %v5761
      %5786 = vmatprep.subr.bf16.mxu0 0
      %5787 = vmatpush1.bf16.msra.mxu0 0
      %5788 = vmatprep.subr.bf16.mxu0 0
      %5789 = vmatpush1.bf16.msra.mxu0 0
      %5790 = vmatprep.subr.bf16.mxu0 0
      %5791 = vmatpush1.bf16.msra.mxu0 0
      %5792 = vmatprep.subr.bf16.mxu0 0
      %5793 = vmatpush1.bf16.msra.mxu0 0
      %5794 = vmatprep.subr.bf16.mxu0 0
      %5795 = vmatpush1.bf16.msra.mxu0 0
      %5796 = vmatprep.subr.bf16.mxu0 0
      %5797 = vmatpush1.bf16.msra.mxu0 0
      %5798 = vmatprep.subr.bf16.mxu0 0
      %5799 = vmatpush1.bf16.msra.mxu0 0
      %5800 = vmatprep.subr.bf16.mxu0 0
      %5801 = vmatpush1.bf16.msra.mxu0 0
      %5802 = vmatprep.mubr.bf16.mxu0 0
      %5803 = vmatmul.mubr.bf16.gmra.mrb[0].mxu0 %v5714
      %v5804 = vpop.f32.mrb[0].mxu0
      %v5805 = vadd.f32 0.0, %v5804
      %v5806 = vpop.f32.mrb[0].mxu0
      %v5807 = vpop.f32.mrb[0].mxu0
      %v5808 = vadd.f32 0.0, %v5807
      %v5809 = vpop.f32.mrb[0].mxu0
      %5810 = vmatprep.mubr.bf16.mxu0 0
      %5811 = vmatmul.mubr.bf16.gmra.mrb[0].mxu0 %v5715
      %v5812 = vpop.f32.mrb[0].mxu0
      %v5813 = vadd.f32 0.0, %v5812
      %v5814 = vpop.f32.mrb[0].mxu0
      %v5815 = vpop.f32.mrb[0].mxu0
      %v5816 = vadd.f32 0.0, %v5815
      %v5817 = vpop.f32.mrb[0].mxu0
      %5818 = vmatprep.mubr.bf16.mxu0 0
      %5819 = vmatmul.mubr.bf16.gmra.mrb[0].mxu0 %v5716
      %v5820 = vpop.f32.mrb[0].mxu0
      %v5821 = vadd.f32 0.0, %v5820
      %v5822 = vpop.f32.mrb[0].mxu0
      %v5823 = vpop.f32.mrb[0].mxu0
      %v5824 = vadd.f32 0.0, %v5823
      %v5825 = vpop.f32.mrb[0].mxu0
      %5826 = vmatprep.mubr.bf16.mxu0 0
      %5827 = vmatmul.mubr.bf16.gmra.mrb[0].mxu0 %v5717
      %v5828 = vpop.f32.mrb[0].mxu0
      %v5829 = vadd.f32 0.0, %v5828
      %v5830 = vpop.f32.mrb[0].mxu0
      %v5831 = vpop.f32.mrb[0].mxu0
      %v5832 = vadd.f32 0.0, %v5831
      %v5833 = vpop.f32.mrb[0].mxu0
      %5834 = vdwg.mxu0
      %v5835 = vadd.f32 %v5529, %v5805
      %v5836 = vadd.f32 %v5530, %v5808
      %v5837 = vadd.f32 %v5531, %v5813
      %v5838 = vadd.f32 %v5532, %v5816
      %v5839 = vadd.f32 %v5533, %v5821
      %v5840 = vadd.f32 %v5534, %v5824
      %v5841 = vadd.f32 %v5535, %v5829
      %v5842 = vadd.f32 %v5536, %v5832
      %v5843 = vld [vmem:[%s4874] sm:$0xc]
      %v5844 = vld [vmem:[%s4874 + $0x8] sm:$0xc]
      %v5845 = vld [vmem:[%s4874 + $0x10] sm:$0xc]
      %v5846 = vld [vmem:[%s4874 + $0x18] sm:$0xc]
      %v5847 = vld [vmem:[%s4874 + $0x20] sm:$0xc]
      %v5848 = vld [vmem:[%s4874 + $0x28] sm:$0xc]
      %v5849 = vld [vmem:[%s4874 + $0x30] sm:$0xc]
      %v5850 = vld [vmem:[%s4874 + $0x38] sm:$0xc]
      %v5867 = vrot.slane %v5843, 6
      %v5868 = vrot.slane %v5867, 4
      %v5869 = vrot.slane %v5537, 6
      %v5870 = vsel %vm1150, %v5868, %v5869
      %v5871 = vrot.slane %v5844, 6
      %v5872 = vrot.slane %v5871, 4
      %v5873 = vrot.slane %v5538, 6
      %v5874 = vsel %vm1150, %v5872, %v5873
      %v5875 = vrot.slane %v5845, 6
      %v5876 = vrot.slane %v5875, 4
      %v5877 = vrot.slane %v5539, 6
      %v5878 = vsel %vm1150, %v5876, %v5877
      %v5879 = vrot.slane %v5846, 6
      %v5880 = vrot.slane %v5879, 4
      %v5881 = vrot.slane %v5540, 6
      %v5882 = vsel %vm1150, %v5880, %v5881
      %v5883 = vrot.slane %v5847, 6
      %v5884 = vrot.slane %v5883, 4
      %v5885 = vrot.slane %v5541, 6
      %v5886 = vsel %vm1150, %v5884, %v5885
      %v5887 = vrot.slane %v5848, 6
      %v5888 = vrot.slane %v5887, 4
      %v5889 = vrot.slane %v5542, 6
      %v5890 = vsel %vm1150, %v5888, %v5889
      %v5891 = vrot.slane %v5849, 6
      %v5892 = vrot.slane %v5891, 4
      %v5893 = vrot.slane %v5543, 6
      %v5894 = vsel %vm1150, %v5892, %v5893
      %v5895 = vrot.slane %v5850, 6
      %v5896 = vrot.slane %v5895, 4
      %v5897 = vrot.slane %v5544, 6
      %v5898 = vsel %vm1150, %v5896, %v5897
      %s5899 = scalar_lea.vmem %s1, 1536
      %v5900 = vld [vmem:[%s5899] sm:$0xf]
      %v5901 = vld [vmem:[%s5899 + $0x4] sm:$0xf]
      %v5902 = vld [vmem:[%s5899 + $0x8] sm:$0xf]
      %v5903 = vld [vmem:[%s5899 + $0xc] sm:$0xf]
      %v5904 = vld [vmem:[%s5899 + $0x10] sm:$0xf]
      %v5905 = vld [vmem:[%s5899 + $0x14] sm:$0xf]
      %v5906 = vld [vmem:[%s5899 + $0x18] sm:$0xf]
      %v5907 = vld [vmem:[%s5899 + $0x1c] sm:$0xf]
      %v5908 = vld [vmem:[%s5899 + $0x20] sm:$0xf]
      %v5909 = vld [vmem:[%s5899 + $0x24] sm:$0xf]
      %v5910 = vld [vmem:[%s5899 + $0x28] sm:$0xf]
      %v5911 = vld [vmem:[%s5899 + $0x2c] sm:$0xf]
      %v5912 = vld [vmem:[%s5899 + $0x30] sm:$0xf]
      %v5913 = vld [vmem:[%s5899 + $0x34] sm:$0xf]
      %v5914 = vld [vmem:[%s5899 + $0x38] sm:$0xf]
      %v5915 = vld [vmem:[%s5899 + $0x3c] sm:$0xf]
      %v5916 = vunpack.c.l.b16 %v5870
      %v5917 = vunpack.c.l.b16 %v5874
      %v5918 = vunpack.c.l.b16 %v5878
      %v5919 = vunpack.c.l.b16 %v5882
      %v5920 = vunpack.c.l.b16 %v5886
      %v5921 = vunpack.c.l.b16 %v5890
      %v5922 = vunpack.c.l.b16 %v5894
      %v5923 = vunpack.c.l.b16 %v5898
      %v5924 = vpack.c.b16 %v5917, %v5916
      %v5925 = vpack.c.b16 %v5919, %v5918
      %v5926 = vpack.c.b16 %v5921, %v5920
      %v5927 = vpack.c.b16 %v5923, %v5922
      %v5948 = vunpack.c.l.b16 %v5900
      %v5949 = vunpack.c.l.b16 %v5901
      %v5950 = vunpack.c.l.b16 %v5902
      %v5951 = vunpack.c.l.b16 %v5903
      %v5952 = vunpack.c.l.b16 %v5904
      %v5953 = vunpack.c.l.b16 %v5905
      %v5954 = vunpack.c.l.b16 %v5906
      %v5955 = vunpack.c.l.b16 %v5907
      %v5956 = vunpack.c.l.b16 %v5908
      %v5957 = vunpack.c.l.b16 %v5909
      %v5958 = vunpack.c.l.b16 %v5910
      %v5959 = vunpack.c.l.b16 %v5911
      %v5960 = vunpack.c.l.b16 %v5912
      %v5961 = vunpack.c.l.b16 %v5913
      %v5962 = vunpack.c.l.b16 %v5914
      %v5963 = vunpack.c.l.b16 %v5915
      %v5964 = vpack.c.b16 %v5949, %v5948
      %v5965 = vpack.c.b16 %v5951, %v5950
      %v5966 = vpack.c.b16 %v5953, %v5952
      %v5967 = vpack.c.b16 %v5955, %v5954
      %v5968 = vpack.c.b16 %v5957, %v5956
      %v5969 = vpack.c.b16 %v5959, %v5958
      %v5970 = vpack.c.b16 %v5961, %v5960
      %v5971 = vpack.c.b16 %v5963, %v5962
      %5980 = vmatprep.subr.bf16.mxu0 0
      %5981 = vmatpush1.bf16.msra.mxu0 %v5964
      %5982 = vmatprep.subr.bf16.mxu0 0
      %5983 = vmatpush1.bf16.msra.mxu0 %v5965
      %5984 = vmatprep.subr.bf16.mxu0 0
      %5985 = vmatpush1.bf16.msra.mxu0 %v5966
      %5986 = vmatprep.subr.bf16.mxu0 0
      %5987 = vmatpush1.bf16.msra.mxu0 %v5967
      %5988 = vmatprep.subr.bf16.mxu0 0
      %5989 = vmatpush1.bf16.msra.mxu0 %v5968
      %5990 = vmatprep.subr.bf16.mxu0 0
      %5991 = vmatpush1.bf16.msra.mxu0 %v5969
      %5992 = vmatprep.subr.bf16.mxu0 0
      %5993 = vmatpush1.bf16.msra.mxu0 %v5970
      %5994 = vmatprep.subr.bf16.mxu0 0
      %5995 = vmatpush1.bf16.msra.mxu0 %v5971
      %5996 = vmatprep.subr.bf16.mxu0 0
      %5997 = vmatpush1.bf16.msra.mxu0 0
      %5998 = vmatprep.subr.bf16.mxu0 0
      %5999 = vmatpush1.bf16.msra.mxu0 0
      %6000 = vmatprep.subr.bf16.mxu0 0
      %6001 = vmatpush1.bf16.msra.mxu0 0
      %6002 = vmatprep.subr.bf16.mxu0 0
      %6003 = vmatpush1.bf16.msra.mxu0 0
      %6004 = vmatprep.subr.bf16.mxu0 0
      %6005 = vmatpush1.bf16.msra.mxu0 0
      %6006 = vmatprep.subr.bf16.mxu0 0
      %6007 = vmatpush1.bf16.msra.mxu0 0
      %6008 = vmatprep.subr.bf16.mxu0 0
      %6009 = vmatpush1.bf16.msra.mxu0 0
      %6010 = vmatprep.subr.bf16.mxu0 0
      %6011 = vmatpush1.bf16.msra.mxu0 0
      %6012 = vmatprep.mubr.bf16.mxu0 0
      %6013 = vmatmul.mubr.bf16.gmra.mrb[0].mxu0 %v5924
      %v6014 = vpop.f32.mrb[0].mxu0
      %v6015 = vadd.f32 0.0, %v6014
      %v6016 = vpop.f32.mrb[0].mxu0
      %v6017 = vpop.f32.mrb[0].mxu0
      %v6018 = vadd.f32 0.0, %v6017
      %v6019 = vpop.f32.mrb[0].mxu0
      %6020 = vmatprep.mubr.bf16.mxu0 0
      %6021 = vmatmul.mubr.bf16.gmra.mrb[0].mxu0 %v5925
      %v6022 = vpop.f32.mrb[0].mxu0
      %v6023 = vadd.f32 0.0, %v6022
      %v6024 = vpop.f32.mrb[0].mxu0
      %v6025 = vpop.f32.mrb[0].mxu0
      %v6026 = vadd.f32 0.0, %v6025
      %v6027 = vpop.f32.mrb[0].mxu0
      %6028 = vmatprep.mubr.bf16.mxu0 0
      %6029 = vmatmul.mubr.bf16.gmra.mrb[0].mxu0 %v5926
      %v6030 = vpop.f32.mrb[0].mxu0
      %v6031 = vadd.f32 0.0, %v6030
      %v6032 = vpop.f32.mrb[0].mxu0
      %v6033 = vpop.f32.mrb[0].mxu0
      %v6034 = vadd.f32 0.0, %v6033
      %v6035 = vpop.f32.mrb[0].mxu0
      %6036 = vmatprep.mubr.bf16.mxu0 0
      %6037 = vmatmul.mubr.bf16.gmra.mrb[0].mxu0 %v5927
      %v6038 = vpop.f32.mrb[0].mxu0
      %v6039 = vadd.f32 0.0, %v6038
      %v6040 = vpop.f32.mrb[0].mxu0
      %v6041 = vpop.f32.mrb[0].mxu0
      %v6042 = vadd.f32 0.0, %v6041
      %v6043 = vpop.f32.mrb[0].mxu0
      %6044 = vdwg.mxu0
      %v6045 = vadd.f32 %v5835, %v6015
      %v6046 = vadd.f32 %v5836, %v6018
      %v6047 = vadd.f32 %v5837, %v6023
      %v6048 = vadd.f32 %v5838, %v6026
      %v6049 = vadd.f32 %v5839, %v6031
      %v6050 = vadd.f32 %v5840, %v6034
      %v6051 = vadd.f32 %v5841, %v6039
      %v6052 = vadd.f32 %v5842, %v6042
      %v6061 = vcombine.high %v6045, %v6045
      %v6063 = vunpack.c.l.s4 1983009808
      %v6064 = vunpack.c.0.s8 %v6063
      %v6065 = vlaneseq
      %v6066 = vshrl.u32 %v6065, 7
      %v6067 = vsub.s32 %v6064, %v6066
      %v6068 = vrot.slane %v6045, %v6067
      %v6070 = vunpack.c.l.s4 1983009808
      %v6071 = vunpack.c.0.s8 %v6070
      %v6072 = vlaneseq
      %v6073 = vshrl.u32 %v6072, 7
      %v6074 = vsub.s32 %v6071, %v6073
      %v6075 = vrot.slane %v6061, %v6074
      %v6076 = vcombine.high %v6068, %v6068
      %v6077 = vcombine.high %v6075, %v6075
      %v6078 = vcombine.high %v6046, %v6046
      %v6080 = vunpack.c.l.s4 1983009808
      %v6081 = vunpack.c.0.s8 %v6080
      %v6082 = vlaneseq
      %v6083 = vshrl.u32 %v6082, 7
      %v6084 = vsub.s32 %v6081, %v6083
      %v6085 = vrot.slane %v6046, %v6084
      %v6087 = vunpack.c.l.s4 1983009808
      %v6088 = vunpack.c.0.s8 %v6087
      %v6089 = vlaneseq
      %v6090 = vshrl.u32 %v6089, 7
      %v6091 = vsub.s32 %v6088, %v6090
      %v6092 = vrot.slane %v6078, %v6091
      %v6093 = vcombine.high %v6085, %v6085
      %v6094 = vcombine.high %v6092, %v6092
      %v6095 = vcombine.high %v6047, %v6047
      %v6097 = vunpack.c.l.s4 1983009808
      %v6098 = vunpack.c.0.s8 %v6097
      %v6099 = vlaneseq
      %v6100 = vshrl.u32 %v6099, 7
      %v6101 = vsub.s32 %v6098, %v6100
      %v6102 = vrot.slane %v6047, %v6101
      %v6104 = vunpack.c.l.s4 1983009808
      %v6105 = vunpack.c.0.s8 %v6104
      %v6106 = vlaneseq
      %v6107 = vshrl.u32 %v6106, 7
      %v6108 = vsub.s32 %v6105, %v6107
      %v6109 = vrot.slane %v6095, %v6108
      %v6110 = vcombine.high %v6102, %v6102
      %v6111 = vcombine.high %v6109, %v6109
      %v6112 = vcombine.high %v6048, %v6048
      %v6114 = vunpack.c.l.s4 1983009808
      %v6115 = vunpack.c.0.s8 %v6114
      %v6116 = vlaneseq
      %v6117 = vshrl.u32 %v6116, 7
      %v6118 = vsub.s32 %v6115, %v6117
      %v6119 = vrot.slane %v6048, %v6118
      %v6121 = vunpack.c.l.s4 1983009808
      %v6122 = vunpack.c.0.s8 %v6121
      %v6123 = vlaneseq
      %v6124 = vshrl.u32 %v6123, 7
      %v6125 = vsub.s32 %v6122, %v6124
      %v6126 = vrot.slane %v6112, %v6125
      %v6127 = vcombine.high %v6119, %v6119
      %v6128 = vcombine.high %v6126, %v6126
      %v6129 = vcombine.high %v6049, %v6049
      %v6131 = vunpack.c.l.s4 1983009808
      %v6132 = vunpack.c.0.s8 %v6131
      %v6133 = vlaneseq
      %v6134 = vshrl.u32 %v6133, 7
      %v6135 = vsub.s32 %v6132, %v6134
      %v6136 = vrot.slane %v6049, %v6135
      %v6138 = vunpack.c.l.s4 1983009808
      %v6139 = vunpack.c.0.s8 %v6138
      %v6140 = vlaneseq
      %v6141 = vshrl.u32 %v6140, 7
      %v6142 = vsub.s32 %v6139, %v6141
      %v6143 = vrot.slane %v6129, %v6142
      %v6144 = vcombine.high %v6136, %v6136
      %v6145 = vcombine.high %v6143, %v6143
      %v6146 = vcombine.high %v6050, %v6050
      %v6148 = vunpack.c.l.s4 1983009808
      %v6149 = vunpack.c.0.s8 %v6148
      %v6150 = vlaneseq
      %v6151 = vshrl.u32 %v6150, 7
      %v6152 = vsub.s32 %v6149, %v6151
      %v6153 = vrot.slane %v6050, %v6152
      %v6155 = vunpack.c.l.s4 1983009808
      %v6156 = vunpack.c.0.s8 %v6155
      %v6157 = vlaneseq
      %v6158 = vshrl.u32 %v6157, 7
      %v6159 = vsub.s32 %v6156, %v6158
      %v6160 = vrot.slane %v6146, %v6159
      %v6161 = vcombine.high %v6153, %v6153
      %v6162 = vcombine.high %v6160, %v6160
      %v6163 = vcombine.high %v6051, %v6051
      %v6165 = vunpack.c.l.s4 1983009808
      %v6166 = vunpack.c.0.s8 %v6165
      %v6167 = vlaneseq
      %v6168 = vshrl.u32 %v6167, 7
      %v6169 = vsub.s32 %v6166, %v6168
      %v6170 = vrot.slane %v6051, %v6169
      %v6172 = vunpack.c.l.s4 1983009808
      %v6173 = vunpack.c.0.s8 %v6172
      %v6174 = vlaneseq
      %v6175 = vshrl.u32 %v6174, 7
      %v6176 = vsub.s32 %v6173, %v6175
      %v6177 = vrot.slane %v6163, %v6176
      %v6178 = vcombine.high %v6170, %v6170
      %v6179 = vcombine.high %v6177, %v6177
      %v6180 = vcombine.high %v6052, %v6052
      %v6182 = vunpack.c.l.s4 1983009808
      %v6183 = vunpack.c.0.s8 %v6182
      %v6184 = vlaneseq
      %v6185 = vshrl.u32 %v6184, 7
      %v6186 = vsub.s32 %v6183, %v6185
      %v6187 = vrot.slane %v6052, %v6186
      %v6189 = vunpack.c.l.s4 1983009808
      %v6190 = vunpack.c.0.s8 %v6189
      %v6191 = vlaneseq
      %v6192 = vshrl.u32 %v6191, 7
      %v6193 = vsub.s32 %v6190, %v6192
      %v6194 = vrot.slane %v6180, %v6193
      %v6195 = vcombine.high %v6187, %v6187
      %v6196 = vcombine.high %v6194, %v6194
      %vm6229 = vcmask 517120
      %v6230 = vsel %vm6229, %v6068, -inf
      %v6231 = vrot.slane %v6230, 4
      %v6232 = vmax.f32 %v6230, %v6231
      %v6233 = vrot.slane %v6232, 2
      %v6234 = vmax.f32 %v6232, %v6233
      %v6235 = vrot.slane %v6234, 1
      %v6236 = vmax.f32 %v6234, %v6235
      %v6237 = vsel %vm6229, %v6076, -inf
      %v6238 = vrot.slane %v6237, 4
      %v6239 = vmax.f32 %v6237, %v6238
      %v6240 = vrot.slane %v6239, 2
      %v6241 = vmax.f32 %v6239, %v6240
      %v6242 = vrot.slane %v6241, 1
      %v6243 = vmax.f32 %v6241, %v6242
      %v6244 = vsel %vm6229, %v6075, -inf
      %v6245 = vrot.slane %v6244, 4
      %v6246 = vmax.f32 %v6244, %v6245
      %v6247 = vrot.slane %v6246, 2
      %v6248 = vmax.f32 %v6246, %v6247
      %v6249 = vrot.slane %v6248, 1
      %v6250 = vmax.f32 %v6248, %v6249
      %v6251 = vsel %vm6229, %v6077, -inf
      %v6252 = vrot.slane %v6251, 4
      %v6253 = vmax.f32 %v6251, %v6252
      %v6254 = vrot.slane %v6253, 2
      %v6255 = vmax.f32 %v6253, %v6254
      %v6256 = vrot.slane %v6255, 1
      %v6257 = vmax.f32 %v6255, %v6256
      %v6258 = vsel %vm6229, %v6085, -inf
      %v6259 = vrot.slane %v6258, 4
      %v6260 = vmax.f32 %v6258, %v6259
      %v6261 = vrot.slane %v6260, 2
      %v6262 = vmax.f32 %v6260, %v6261
      %v6263 = vrot.slane %v6262, 1
      %v6264 = vmax.f32 %v6262, %v6263
      %v6265 = vsel %vm6229, %v6093, -inf
      %v6266 = vrot.slane %v6265, 4
      %v6267 = vmax.f32 %v6265, %v6266
      %v6268 = vrot.slane %v6267, 2
      %v6269 = vmax.f32 %v6267, %v6268
      %v6270 = vrot.slane %v6269, 1
      %v6271 = vmax.f32 %v6269, %v6270
      %v6272 = vsel %vm6229, %v6092, -inf
      %v6273 = vrot.slane %v6272, 4
      %v6274 = vmax.f32 %v6272, %v6273
      %v6275 = vrot.slane %v6274, 2
      %v6276 = vmax.f32 %v6274, %v6275
      %v6277 = vrot.slane %v6276, 1
      %v6278 = vmax.f32 %v6276, %v6277
      %v6279 = vsel %vm6229, %v6094, -inf
      %v6280 = vrot.slane %v6279, 4
      %v6281 = vmax.f32 %v6279, %v6280
      %v6282 = vrot.slane %v6281, 2
      %v6283 = vmax.f32 %v6281, %v6282
      %v6284 = vrot.slane %v6283, 1
      %v6285 = vmax.f32 %v6283, %v6284
      %v6286 = vsel %vm6229, %v6102, -inf
      %v6287 = vrot.slane %v6286, 4
      %v6288 = vmax.f32 %v6286, %v6287
      %v6289 = vrot.slane %v6288, 2
      %v6290 = vmax.f32 %v6288, %v6289
      %v6291 = vrot.slane %v6290, 1
      %v6292 = vmax.f32 %v6290, %v6291
      %v6293 = vsel %vm6229, %v6110, -inf
      %v6294 = vrot.slane %v6293, 4
      %v6295 = vmax.f32 %v6293, %v6294
      %v6296 = vrot.slane %v6295, 2
      %v6297 = vmax.f32 %v6295, %v6296
      %v6298 = vrot.slane %v6297, 1
      %v6299 = vmax.f32 %v6297, %v6298
      %v6300 = vsel %vm6229, %v6109, -inf
      %v6301 = vrot.slane %v6300, 4
      %v6302 = vmax.f32 %v6300, %v6301
      %v6303 = vrot.slane %v6302, 2
      %v6304 = vmax.f32 %v6302, %v6303
      %v6305 = vrot.slane %v6304, 1
      %v6306 = vmax.f32 %v6304, %v6305
      %v6307 = vsel %vm6229, %v6111, -inf
      %v6308 = vrot.slane %v6307, 4
      %v6309 = vmax.f32 %v6307, %v6308
      %v6310 = vrot.slane %v6309, 2
      %v6311 = vmax.f32 %v6309, %v6310
      %v6312 = vrot.slane %v6311, 1
      %v6313 = vmax.f32 %v6311, %v6312
      %v6314 = vsel %vm6229, %v6119, -inf
      %v6315 = vrot.slane %v6314, 4
      %v6316 = vmax.f32 %v6314, %v6315
      %v6317 = vrot.slane %v6316, 2
      %v6318 = vmax.f32 %v6316, %v6317
      %v6319 = vrot.slane %v6318, 1
      %v6320 = vmax.f32 %v6318, %v6319
      %v6321 = vsel %vm6229, %v6127, -inf
      %v6322 = vrot.slane %v6321, 4
      %v6323 = vmax.f32 %v6321, %v6322
      %v6324 = vrot.slane %v6323, 2
      %v6325 = vmax.f32 %v6323, %v6324
      %v6326 = vrot.slane %v6325, 1
      %v6327 = vmax.f32 %v6325, %v6326
      %v6328 = vsel %vm6229, %v6126, -inf
      %v6329 = vrot.slane %v6328, 4
      %v6330 = vmax.f32 %v6328, %v6329
      %v6331 = vrot.slane %v6330, 2
      %v6332 = vmax.f32 %v6330, %v6331
      %v6333 = vrot.slane %v6332, 1
      %v6334 = vmax.f32 %v6332, %v6333
      %v6335 = vsel %vm6229, %v6128, -inf
      %v6336 = vrot.slane %v6335, 4
      %v6337 = vmax.f32 %v6335, %v6336
      %v6338 = vrot.slane %v6337, 2
      %v6339 = vmax.f32 %v6337, %v6338
      %v6340 = vrot.slane %v6339, 1
      %v6341 = vmax.f32 %v6339, %v6340
      %v6342 = vsel %vm6229, %v6136, -inf
      %v6343 = vrot.slane %v6342, 4
      %v6344 = vmax.f32 %v6342, %v6343
      %v6345 = vrot.slane %v6344, 2
      %v6346 = vmax.f32 %v6344, %v6345
      %v6347 = vrot.slane %v6346, 1
      %v6348 = vmax.f32 %v6346, %v6347
      %v6349 = vsel %vm6229, %v6144, -inf
      %v6350 = vrot.slane %v6349, 4
      %v6351 = vmax.f32 %v6349, %v6350
      %v6352 = vrot.slane %v6351, 2
      %v6353 = vmax.f32 %v6351, %v6352
      %v6354 = vrot.slane %v6353, 1
      %v6355 = vmax.f32 %v6353, %v6354
      %v6356 = vsel %vm6229, %v6143, -inf
      %v6357 = vrot.slane %v6356, 4
      %v6358 = vmax.f32 %v6356, %v6357
      %v6359 = vrot.slane %v6358, 2
      %v6360 = vmax.f32 %v6358, %v6359
      %v6361 = vrot.slane %v6360, 1
      %v6362 = vmax.f32 %v6360, %v6361
      %v6363 = vsel %vm6229, %v6145, -inf
      %v6364 = vrot.slane %v6363, 4
      %v6365 = vmax.f32 %v6363, %v6364
      %v6366 = vrot.slane %v6365, 2
      %v6367 = vmax.f32 %v6365, %v6366
      %v6368 = vrot.slane %v6367, 1
      %v6369 = vmax.f32 %v6367, %v6368
      %v6370 = vsel %vm6229, %v6153, -inf
      %v6371 = vrot.slane %v6370, 4
      %v6372 = vmax.f32 %v6370, %v6371
      %v6373 = vrot.slane %v6372, 2
      %v6374 = vmax.f32 %v6372, %v6373
      %v6375 = vrot.slane %v6374, 1
      %v6376 = vmax.f32 %v6374, %v6375
      %v6377 = vsel %vm6229, %v6161, -inf
      %v6378 = vrot.slane %v6377, 4
      %v6379 = vmax.f32 %v6377, %v6378
      %v6380 = vrot.slane %v6379, 2
      %v6381 = vmax.f32 %v6379, %v6380
      %v6382 = vrot.slane %v6381, 1
      %v6383 = vmax.f32 %v6381, %v6382
      %v6384 = vsel %vm6229, %v6160, -inf
      %v6385 = vrot.slane %v6384, 4
      %v6386 = vmax.f32 %v6384, %v6385
      %v6387 = vrot.slane %v6386, 2
      %v6388 = vmax.f32 %v6386, %v6387
      %v6389 = vrot.slane %v6388, 1
      %v6390 = vmax.f32 %v6388, %v6389
      %v6391 = vsel %vm6229, %v6162, -inf
      %v6392 = vrot.slane %v6391, 4
      %v6393 = vmax.f32 %v6391, %v6392
      %v6394 = vrot.slane %v6393, 2
      %v6395 = vmax.f32 %v6393, %v6394
      %v6396 = vrot.slane %v6395, 1
      %v6397 = vmax.f32 %v6395, %v6396
      %v6398 = vsel %vm6229, %v6170, -inf
      %v6399 = vrot.slane %v6398, 4
      %v6400 = vmax.f32 %v6398, %v6399
      %v6401 = vrot.slane %v6400, 2
      %v6402 = vmax.f32 %v6400, %v6401
      %v6403 = vrot.slane %v6402, 1
      %v6404 = vmax.f32 %v6402, %v6403
      %v6405 = vsel %vm6229, %v6178, -inf
      %v6406 = vrot.slane %v6405, 4
      %v6407 = vmax.f32 %v6405, %v6406
      %v6408 = vrot.slane %v6407, 2
      %v6409 = vmax.f32 %v6407, %v6408
      %v6410 = vrot.slane %v6409, 1
      %v6411 = vmax.f32 %v6409, %v6410
      %v6412 = vsel %vm6229, %v6177, -inf
      %v6413 = vrot.slane %v6412, 4
      %v6414 = vmax.f32 %v6412, %v6413
      %v6415 = vrot.slane %v6414, 2
      %v6416 = vmax.f32 %v6414, %v6415
      %v6417 = vrot.slane %v6416, 1
      %v6418 = vmax.f32 %v6416, %v6417
      %v6419 = vsel %vm6229, %v6179, -inf
      %v6420 = vrot.slane %v6419, 4
      %v6421 = vmax.f32 %v6419, %v6420
      %v6422 = vrot.slane %v6421, 2
      %v6423 = vmax.f32 %v6421, %v6422
      %v6424 = vrot.slane %v6423, 1
      %v6425 = vmax.f32 %v6423, %v6424
      %v6426 = vsel %vm6229, %v6187, -inf
      %v6427 = vrot.slane %v6426, 4
      %v6428 = vmax.f32 %v6426, %v6427
      %v6429 = vrot.slane %v6428, 2
      %v6430 = vmax.f32 %v6428, %v6429
      %v6431 = vrot.slane %v6430, 1
      %v6432 = vmax.f32 %v6430, %v6431
      %v6433 = vsel %vm6229, %v6195, -inf
      %v6434 = vrot.slane %v6433, 4
      %v6435 = vmax.f32 %v6433, %v6434
      %v6436 = vrot.slane %v6435, 2
      %v6437 = vmax.f32 %v6435, %v6436
      %v6438 = vrot.slane %v6437, 1
      %v6439 = vmax.f32 %v6437, %v6438
      %v6440 = vsel %vm6229, %v6194, -inf
      %v6441 = vrot.slane %v6440, 4
      %v6442 = vmax.f32 %v6440, %v6441
      %v6443 = vrot.slane %v6442, 2
      %v6444 = vmax.f32 %v6442, %v6443
      %v6445 = vrot.slane %v6444, 1
      %v6446 = vmax.f32 %v6444, %v6445
      %v6447 = vsel %vm6229, %v6196, -inf
      %v6448 = vrot.slane %v6447, 4
      %v6449 = vmax.f32 %v6447, %v6448
      %v6450 = vrot.slane %v6449, 2
      %v6451 = vmax.f32 %v6449, %v6450
      %v6452 = vrot.slane %v6451, 1
      %v6453 = vmax.f32 %v6451, %v6452
      %vm6454 = vcmask 523264
      %v6455 = vsel %vm6454, %v6236, -inf
      %v6456 = vsel %vm6454, %v6264, -inf
      %v6457 = vmax.f32 %v6455, %v6456
      %v6458 = vsel %vm6454, %v6243, -inf
      %v6459 = vsel %vm6454, %v6271, -inf
      %v6460 = vmax.f32 %v6458, %v6459
      %v6461 = vsel %vm6454, %v6250, -inf
      %v6462 = vsel %vm6454, %v6278, -inf
      %v6463 = vmax.f32 %v6461, %v6462
      %v6464 = vsel %vm6454, %v6257, -inf
      %v6465 = vsel %vm6454, %v6285, -inf
      %v6466 = vmax.f32 %v6464, %v6465
      %v6467 = vsel %vm6454, %v6292, -inf
      %v6468 = vsel %vm6454, %v6320, -inf
      %v6469 = vmax.f32 %v6467, %v6468
      %v6470 = vsel %vm6454, %v6299, -inf
      %v6471 = vsel %vm6454, %v6327, -inf
      %v6472 = vmax.f32 %v6470, %v6471
      %v6473 = vsel %vm6454, %v6306, -inf
      %v6474 = vsel %vm6454, %v6334, -inf
      %v6475 = vmax.f32 %v6473, %v6474
      %v6476 = vsel %vm6454, %v6313, -inf
      %v6477 = vsel %vm6454, %v6341, -inf
      %v6478 = vmax.f32 %v6476, %v6477
      %v6479 = vsel %vm6454, %v6348, -inf
      %v6480 = vsel %vm6454, %v6376, -inf
      %v6481 = vmax.f32 %v6479, %v6480
      %v6482 = vsel %vm6454, %v6355, -inf
      %v6483 = vsel %vm6454, %v6383, -inf
      %v6484 = vmax.f32 %v6482, %v6483
      %v6485 = vsel %vm6454, %v6362, -inf
      %v6486 = vsel %vm6454, %v6390, -inf
      %v6487 = vmax.f32 %v6485, %v6486
      %v6488 = vsel %vm6454, %v6369, -inf
      %v6489 = vsel %vm6454, %v6397, -inf
      %v6490 = vmax.f32 %v6488, %v6489
      %v6491 = vsel %vm6454, %v6404, -inf
      %v6492 = vsel %vm6454, %v6432, -inf
      %v6493 = vmax.f32 %v6491, %v6492
      %v6494 = vsel %vm6454, %v6411, -inf
      %v6495 = vsel %vm6454, %v6439, -inf
      %v6496 = vmax.f32 %v6494, %v6495
      %v6497 = vsel %vm6454, %v6418, -inf
      %v6498 = vsel %vm6454, %v6446, -inf
      %v6499 = vmax.f32 %v6497, %v6498
      %v6500 = vsel %vm6454, %v6425, -inf
      %v6501 = vsel %vm6454, %v6453, -inf
      %v6502 = vmax.f32 %v6500, %v6501
      %v6503 = vld [vmem:[%s2] sm:$0x1]
      %v6505 = vlaneseq
      %v6506 = vshrl.u32 %v6505, 7
      %v6507 = vsub.s32 0, %v6506
      %v6508 = vrot.slane %v6503, %v6507
      %v6510 = vadd.f32 %v6457, %v6508
      %v6511 = vadd.f32 %v6460, %v6508
      %v6512 = vadd.f32 %v6463, %v6508
      %v6513 = vadd.f32 %v6466, %v6508
      %v6514 = vadd.f32 %v6469, %v6508
      %v6515 = vadd.f32 %v6472, %v6508
      %v6516 = vadd.f32 %v6475, %v6508
      %v6517 = vadd.f32 %v6478, %v6508
      %v6518 = vadd.f32 %v6481, %v6508
      %v6519 = vadd.f32 %v6484, %v6508
      %v6520 = vadd.f32 %v6487, %v6508
      %v6521 = vadd.f32 %v6490, %v6508
      %v6522 = vadd.f32 %v6493, %v6508
      %v6523 = vadd.f32 %v6496, %v6508
      %v6524 = vadd.f32 %v6499, %v6508
      %v6525 = vadd.f32 %v6502, %v6508
      %v6526 = vmax.f32 %v6510, 0.0
      %v6527 = vmax.f32 %v6511, 0.0
      %v6528 = vmax.f32 %v6512, 0.0
      %v6529 = vmax.f32 %v6513, 0.0
      %v6530 = vmax.f32 %v6514, 0.0
      %v6531 = vmax.f32 %v6515, 0.0
      %v6532 = vmax.f32 %v6516, 0.0
      %v6533 = vmax.f32 %v6517, 0.0
      %v6534 = vmax.f32 %v6518, 0.0
      %v6535 = vmax.f32 %v6519, 0.0
      %v6536 = vmax.f32 %v6520, 0.0
      %v6537 = vmax.f32 %v6521, 0.0
      %v6538 = vmax.f32 %v6522, 0.0
      %v6539 = vmax.f32 %v6523, 0.0
      %v6540 = vmax.f32 %v6524, 0.0
      %v6541 = vmax.f32 %v6525, 0.0
      %v6558 = vrot.slane %v6527, 7
      %vm6559 = vcmask 1041409
      %v6560 = vsel %vm6559, %v6558, %v6526
      %v6561 = vrot.slane %v6528, 6
      %vm6562 = vcmask 1042434
      %v6563 = vsel %vm6562, %v6561, %v6560
      %v6564 = vrot.slane %v6529, 5
      %vm6565 = vcmask 1043459
      %v6566 = vsel %vm6565, %v6564, %v6563
      %v6567 = vrot.slane %v6531, 7
      %v6568 = vsel %vm6559, %v6567, %v6530
      %v6569 = vrot.slane %v6532, 6
      %v6570 = vsel %vm6562, %v6569, %v6568
      %v6571 = vrot.slane %v6533, 5
      %v6572 = vsel %vm6565, %v6571, %v6570
      %v6573 = vrot.slane %v6535, 7
      %v6574 = vsel %vm6559, %v6573, %v6534
      %v6575 = vrot.slane %v6536, 6
      %v6576 = vsel %vm6562, %v6575, %v6574
      %v6577 = vrot.slane %v6537, 5
      %v6578 = vsel %vm6565, %v6577, %v6576
      %v6579 = vrot.slane %v6539, 7
      %v6580 = vsel %vm6559, %v6579, %v6538
      %v6581 = vrot.slane %v6540, 6
      %v6582 = vsel %vm6562, %v6581, %v6580
      %v6583 = vrot.slane %v6541, 5
      %v6584 = vsel %vm6565, %v6583, %v6582
      %v6589 = vcombine.low %v6566, %v6578
      %v6591 = vunpack.c.l.s4 1983009808
      %v6592 = vunpack.c.0.s8 %v6591
      %v6593 = vlaneseq
      %v6594 = vshrl.u32 %v6593, 7
      %v6595 = vsub.s32 %v6592, %v6594
      %v6596 = vrot.slane %v6589, %v6595
      %v6597 = vcombine.low %v6572, %v6584
      %v6599 = vunpack.c.l.s4 1983009808
      %v6600 = vunpack.c.0.s8 %v6599
      %v6601 = vlaneseq
      %v6602 = vshrl.u32 %v6601, 7
      %v6603 = vsub.s32 %v6600, %v6602
      %v6604 = vrot.slane %v6597, %v6603
      %v6605 = vcombine.low %v6596, %v6604
      %v6606 = vcombine.high %v6596, %v6604
      %v6608 = vunpack.c.l.s4 1934713408
      %v6609 = vunpack.c.0.s8 %v6608
      %v6610 = vlaneseq
      %v6611 = vshrl.u32 %v6610, 7
      %v6612 = vsub.s32 %v6609, %v6611
      %v6613 = vrot.slane %v6605, %v6612
      %v6615 = vunpack.c.l.s4 1934713408
      %v6616 = vunpack.c.0.s8 %v6615
      %v6617 = vlaneseq
      %v6618 = vshrl.u32 %v6617, 7
      %v6619 = vsub.s32 %v6616, %v6618
      %v6620 = vrot.slane %v6606, %v6619
      %v6621 = vcombine.high %v6613, 0.0
      %v6622 = vcombine.high %v6620, 0.0
      %6624 = vrot.lane.b32.xlu0 %v6621, 64
      %v6625 = vpop.permute.xlu0 %6624
      %6628 = vrot.lane.b32.xlu0 %v6622, 64
      %v6629 = vpop.permute.xlu0 %6628
      %v6631 = vsel %vm6454, %v6613, %v6625
      %v6632 = vsel %vm6454, %v6620, %v6629
      %v6633 = vpack.c.bf16 %v6631, %v6631
      %v6634 = vpack.c.bf16 %v6632, %v6632
      %v6637 = vcombine.low %v6633, %v6634
      %v6639 = vunpack.c.l.s4 1983009808
      %v6640 = vunpack.c.0.s8 %v6639
      %v6641 = vlaneseq
      %v6642 = vshrl.u32 %v6641, 7
      %v6643 = vsub.s32 %v6640, %v6642
      %v6644 = vrot.slane %v6637, %v6643
      %6646 = vst [vmem:[%s170] sm:$0xf] %v6644
      %p6647 = scmp.lt.s32.totalorder %s14, 1
      %s6648 = scalar_select %p6647, %s14, 1
      %s6649 = smul.addr %s6648, 2
      %s6650 = smul.addr %s6649, 2
      %s6651 = scalar_lea.vmem %s3, %s6650
      // Predicated region
      $region33: #{lenet_forward.4} parent=31 // pred_check
        %p6652 = pneg %p100
      $region34: #{lenet_forward.4} parent=31 // pred_check_branch
        %6654 = sbr.rel (%p6652) target = $region36
      $region35: #{lenet_forward.4} parent=31 // pred_region
        _
      $region36: #{lenet_forward.4} parent=31 // pred_fallthru
        _
    $region32: #{lenet_forward.4} parent=5 // pred_fallthru
      _
    %p6655 = scmp.le.s32.totalorder 2, %s9
    // Predicated region
    $region37: #{lenet_forward.4} parent=5 // pred_check
      %p6656 = pneg %p6655
    $region38: #{lenet_forward.4} parent=5 // pred_check_branch
      %6658 = sbr.rel (%p6656) target = $region40
    $region39: #{lenet_forward.4} parent=5 // pred_region
      %s6659 = ssub.s32 %s9, 2
      // Predicated region
      $region41: #{lenet_forward.4} parent=39 // pred_check
        %p6660 = pneg %p106
      $region42: #{lenet_forward.4} parent=39 // pred_check_branch
        %6662 = sbr.rel (%p6660) target = $region44
      $region43: #{lenet_forward.4} parent=39 // pred_region
        %p6663 = scmp.lt.s32.totalorder %s15, 1
        %s6664 = scalar_select %p6663, %s15, 1
        %s6665 = smul.addr %s6664, 2
        %s6666 = smul.addr %s6665, 2
        %s6667 = scalar_lea.vmem %s3, %s6666
      $region44: #{lenet_forward.4} parent=39 // pred_fallthru
        _
    $region40: #{lenet_forward.4} parent=5 // pred_fallthru
      _
  $region6: #{lenet_forward.4} parent=0 // loop_footer
    %s13 = sadd.s32 1, %s9
  $region7: #{lenet_forward.4} parent=0 // loop_footer_branch
    %8 = sbr.rel target = $region3
  $region8: #{lenet_forward.4} parent=0 // loop_exit
    _

</llo_original>
